<compile_context>
chip_gen: v6e
topology: v6e:2x2x1
jax: 0.10.0
libtpu: 0.0.40
codegen_flags: <defaults>
</compile_context>

<pallas_src>
import functools

import numpy as np
import jax
import jax.numpy as jnp
from jax.experimental import pallas as pl
from jax.experimental.pallas import tpu as pltpu

BN_EPS = 1e-5
C = 24  # base channel width of the network


# ----------------------------------------------------------------------------
# The fused kernel (single invocation, everything resident in VMEM / vregs)
# ----------------------------------------------------------------------------
def _ssrn_kernel(x0_ref, w1_ref, w2_ref, w3_ref, w4_ref, w5_ref, w6_ref, w7_ref,
                 w8_ref, wfc_ref, spad_ref, expand_ref, bsp_ref, pk24_ref,
                 pk128_ref, bfc_ref, o_ref, *, B, D1, P):
    f32 = jnp.float32
    HW = P * P
    Ho = P - 2
    span = (Ho - 1) * P + Ho                      # contiguous rows covering all
    shifts = [di * P + dj for di in range(3) for dj in range(3)]

    # ---- hoisted parameter loads (each ref read exactly once) ----
    pk24 = pk24_ref[...]        # (16, 24): bn1..bn3,bn6..bn8 (g,b) + b5,b6,b7,b8
    pk128 = pk128_ref[...]      # (3, 128): b4, bn5_g, bn5_b
    bsp = bsp_ref[...]          # (3, D1*C): widened conv1/2/3 biases
    expand = expand_ref[...]    # (C, D1*C): per-channel -> per-(depth,channel)
    spad = spad_ref[...]        # (HW, span): replicate-pad row selection
    bfc = bfc_ref[...]
    wfc = wfc_ref[...]
    w8 = w8_ref[...]
    w5p = w5_ref[...]           # (9*128, C)
    w6p = w6_ref[...]           # (9*C, C)
    w7p = w7_ref[...]
    w6_taps = [w6p[k * C:(k + 1) * C, :] for k in range(9)]
    w7_taps = [w7p[k * C:(k + 1) * C, :] for k in range(9)]

    # ---- BatchNorm helpers (single pass: sum + sum-of-squares) ----
    def bn_relu_spec(z, g, be):
        # z: (B*HW, D1*C); per-channel stats over rows AND depth blocks.
        cnt = float(z.shape[0] * D1)
        s1 = jnp.sum(z, axis=0, keepdims=True)
        s2 = jnp.sum(z * z, axis=0, keepdims=True)
        s1c = s1[:, 0:C]
        s2c = s2[:, 0:C]
        for d in range(1, D1):
            s1c = s1c + s1[:, d * C:(d + 1) * C]
            s2c = s2c + s2[:, d * C:(d + 1) * C]
        mu = s1c / cnt
        var = jnp.maximum(s2c / cnt - mu * mu, 0.0)
        scale = g * jax.lax.rsqrt(var + BN_EPS)
        shift = be - mu * scale
        scale_w = jnp.dot(scale, expand, preferred_element_type=f32)
        shift_w = jnp.dot(shift, expand, preferred_element_type=f32)
        return jnp.maximum(z * scale_w + shift_w, 0.0)

    def bn_relu_full(z, g, be):
        cnt = float(z.shape[0])
        s1 = jnp.sum(z, axis=0, keepdims=True)
        s2 = jnp.sum(z * z, axis=0, keepdims=True)
        mu = s1 / cnt
        var = jnp.maximum(s2 / cnt - mu * mu, 0.0)
        scale = g * jax.lax.rsqrt(var + BN_EPS)
        shift = be - mu * scale
        return jnp.maximum(z * scale + shift, 0.0)

    # ---------------- spectral residual stage (one matmul per conv) ----------
    x0 = x0_ref[...]                                              # (B*HW, D)
    z1 = jnp.dot(x0, w1_ref[...], preferred_element_type=f32) + bsp[0:1, :]
    a1 = bn_relu_spec(z1, pk24[0:1, :], pk24[1:2, :])             # conv1/bn1/relu
    z2 = jnp.dot(a1, w2_ref[...], preferred_element_type=f32) + bsp[1:2, :]
    a2 = bn_relu_spec(z2, pk24[2:3, :], pk24[3:4, :])             # conv2/bn2/relu
    z3 = jnp.dot(a2, w3_ref[...], preferred_element_type=f32) + bsp[2:3, :] + a1
    a3 = bn_relu_spec(z3, pk24[4:5, :], pk24[5:6, :])             # conv3+res/bn3
    z4 = jnp.dot(a3, w4_ref[...], preferred_element_type=f32) + pk128[0:1, :]
    x4 = bn_relu_full(z4, pk128[1:2, :], pk128[2:3, :])           # conv4/bn5 -> (B*HW,128)

    # ---------------- spatial residual stage ---------------------------------
    # interior-column validity mask over span rows, built from iota (no div/mod)
    r = jax.lax.broadcasted_iota(jnp.int32, (span, 1), 0)
    fl = jnp.zeros_like(r)
    for k in range(1, (span - 1) // P + 1):
        fl = fl + (r >= k * P).astype(jnp.int32)                  # fl == r // P
    mask1 = ((r - P * fl) <= (P - 3)).astype(f32)                 # (span, 1)
    cnt_sp = float(B * Ho * Ho)

    def masked_bn_relu(zs, g, be):
        s1 = jnp.zeros((1, C), f32)
        s2 = jnp.zeros((1, C), f32)
        for zb in zs:
            zm = zb * mask1
            s1 = s1 + jnp.sum(zm, axis=0, keepdims=True)
            s2 = s2 + jnp.sum(zm * zb, axis=0, keepdims=True)
        mu = s1 / cnt_sp
        var = jnp.maximum(s2 / cnt_sp - mu * mu, 0.0)
        scale = g * jax.lax.rsqrt(var + BN_EPS)
        shift = be - mu * scale
        return [jnp.maximum(zb * scale + shift, 0.0) for zb in zs]

    # conv5: 3x3 'valid' conv over the 128 conv4 channels; the 9 taps are fused
    # into a single K = 9*128 MXU contraction per batch (lane-aligned pieces).
    z5 = []
    for b in range(B):
        xb = x4[b * HW:(b + 1) * HW, :]                           # (HW, 128)
        lhs = jnp.concatenate([xb[s:s + span, :] for s in shifts], axis=1)
        z5.append(jnp.dot(lhs, w5p, preferred_element_type=f32) + pk24[12:13, :])
    a5 = masked_bn_relu(z5, pk24[6:7, :], pk24[7:8, :])           # bn6/relu

    # conv8 (1x1) residual branch
    res = [jnp.dot(a5[b], w8, preferred_element_type=f32) + pk24[15:16, :]
           for b in range(B)]

    def spatial_conv(vb, taps):
        # replicate padding via a row-selection matmul, then 9 register-
        # accumulated tap matmuls (no VMEM read-modify-write).
        padb = jnp.dot(spad, vb, preferred_element_type=f32)      # (HW, C)
        acc = jnp.dot(padb[0:span, :], taps[0], preferred_element_type=f32)
        for k in range(1, 9):
            s = shifts[k]
            acc = acc + jnp.dot(padb[s:s + span, :], taps[k],
                                preferred_element_type=f32)
        return acc

    z6 = [spatial_conv(a5[b], w6_taps) + pk24[13:14, :] for b in range(B)]
    a6 = masked_bn_relu(z6, pk24[8:9, :], pk24[9:10, :])          # bn7/relu
    z7 = [spatial_conv(a6[b], w7_taps) + pk24[14:15, :] + res[b] for b in range(B)]
    a7 = masked_bn_relu(z7, pk24[10:11, :], pk24[11:12, :])       # bn8/relu

    # global average pool over the valid (P-2)x(P-2) positions + fc
    inv = 1.0 / float(Ho * Ho)
    for b in range(B):
        pooled = jnp.sum(a7[b] * mask1, axis=0, keepdims=True) * inv   # (1, C)
        o_ref[b:b + 1, :] = (jnp.dot(pooled, wfc, preferred_element_type=f32)
                             + bfc)


# ----------------------------------------------------------------------------
# Parameters (deterministic, kaiming-like; conv weights stored tap-major
# (tap, in, out) so the wrapper can fold taps into banded matrices)
# ----------------------------------------------------------------------------
def make_params(input_channels, n_classes, key):
    D1 = (input_channels - 7) // 2 + 1
    ks = jax.random.split(key, 12)

    def kaiming(k, shape, fan_in):
        return jax.random.normal(k, shape, jnp.float32) * jnp.sqrt(2.0 / fan_in)

    p = {}
    p['w1'] = kaiming(ks[0], (7, C), 7)               # conv1 (7,1,1), stride 2
    p['b1'] = jnp.zeros((C,), jnp.float32)
    p['w2'] = kaiming(ks[1], (7, C, C), 7 * C)        # conv2
    p['b2'] = jnp.zeros((C,), jnp.float32)
    p['w3'] = kaiming(ks[2], (7, C, C), 7 * C)        # conv3
    p['b3'] = jnp.zeros((C,), jnp.float32)
    p['w4'] = kaiming(ks[3], (D1, C, 128), D1 * C)    # conv4 (full depth)
    p['b4'] = jnp.zeros((128,), jnp.float32)
    p['w5'] = kaiming(ks[4], (9, 128, C), 9 * 128)    # conv5 (128,3,3)
    p['b5'] = jnp.zeros((C,), jnp.float32)
    p['w6'] = kaiming(ks[5], (9, C, C), 9 * C)        # conv6 3x3
    p['b6'] = 0.01 * jax.random.normal(ks[6], (C,), jnp.float32)
    p['w7'] = kaiming(ks[7], (9, C, C), 9 * C)        # conv7 3x3
    p['b7'] = 0.01 * jax.random.normal(ks[8], (C,), jnp.float32)
    p['w8'] = kaiming(ks[9], (C, C), C)               # conv8 1x1
    p['b8'] = 0.01 * jax.random.normal(ks[10], (C,), jnp.float32)
    p['w_fc'] = kaiming(ks[11], (C, n_classes), C)
    p['b_fc'] = jnp.zeros((n_classes,), jnp.float32)
    for name, c in [('bn1', C), ('bn2', C), ('bn3', C), ('bn5', 128),
                    ('bn6', C), ('bn7', C), ('bn8', C)]:
        p[name + '_g'] = jnp.ones((c,), jnp.float32)
        p[name + '_b'] = jnp.zeros((c,), jnp.float32)
    return p


# ----------------------------------------------------------------------------
# Forward pass: a single fused Pallas kernel; the wrapper only does tiny
# one-off weight packing (tap fusion / padding folding) and the input relayout.
# ----------------------------------------------------------------------------
def ssrn_forward(x, params, *, input_channels, patch_size):
    B = x.shape[0]
    D, P = input_channels, patch_size
    HW = P * P
    D1 = (D - 7) // 2 + 1
    Dp = D1 + 6
    Ho = P - 2
    span = (Ho - 1) * P + Ho
    n_classes = params['w_fc'].shape[1]
    f32 = jnp.float32

    # lane-dense input: spectral bands on lanes, (batch*spatial) on rows
    x0 = jnp.transpose(x.reshape(B, D, HW), (0, 2, 1)).reshape(B * HW, D).astype(f32)

    # ---- static constants (numpy -> small VMEM operands) ----
    eye = np.eye(C, dtype=np.float32)
    # replicate depth-padding folded as a (valid -> padded-depth) selection
    ep = np.zeros((D1 * C, Dp * C), np.float32)
    for k in range(Dp):
        d = min(max(k - 3, 0), D1 - 1)
        ep[d * C:(d + 1) * C, k * C:(k + 1) * C] = eye
    e_pad = jnp.asarray(ep)
    # per-channel -> per-(depth,channel) lane expansion (BN scale/shift widening)
    expand = jnp.asarray(np.tile(eye, (1, D1)))                    # (C, D1*C)
    # spatial replicate-padding as a row-selection matrix (padded PxP <- valid span)
    sp = np.zeros((HW, span), np.float32)
    for i in range(P):
        ci = min(max(i, 1), P - 2)
        for j in range(P):
            cj = min(max(j, 1), P - 2)
            sp[i * P + j, ci * P + cj - (P + 1)] = 1.0
    s_pad = jnp.asarray(sp)

    # ---- weight packing: taps fused into banded matrices (one matmul / conv) --
    W1 = jnp.concatenate(
        [jnp.pad(params['w1'], ((2 * d, D - 7 - 2 * d), (0, 0))) for d in range(D1)],
        axis=1)                                                    # (D, D1*C)

    def band_spec(w):  # (7, C, C) -> (D1*C, D1*C) with replicate padding folded
        wf = w.reshape(7 * C, C)
        wb = jnp.concatenate(
            [jnp.pad(wf, ((d * C, (D1 - 1 - d) * C), (0, 0))) for d in range(D1)],
            axis=1)                                                # (Dp*C, D1*C)
        return jnp.dot(e_pad, wb)

    W2 = band_spec(params['w2'])
    W3 = band_spec(params['w3'])
    W4 = params['w4'].reshape(D1 * C, 128)
    W5 = params['w5'].reshape(9 * 128, C)
    W6 = params['w6'].reshape(9 * C, C)
    W7 = params['w7'].reshape(9 * C, C)

    def row(v):
        return v.reshape(1, -1).astype(f32)

    bias_spec = jnp.concatenate(
        [jnp.tile(row(params['b1']), (1, D1)),
         jnp.tile(row(params['b2']), (1, D1)),
         jnp.tile(row(params['b3']), (1, D1))], axis=0)            # (3, D1*C)
    pk24 = jnp.stack(
        [params['bn1_g'], params['bn1_b'], params['bn2_g'], params['bn2_b'],
         params['bn3_g'], params['bn3_b'], params['bn6_g'], params['bn6_b'],
         params['bn7_g'], params['bn7_b'], params['bn8_g'], params['bn8_b'],
         params['b5'], params['b6'], params['b7'], params['b8']],
        axis=0).astype(f32)                                        # (16, C)
    pk128 = jnp.stack([params['b4'], params['bn5_g'], params['bn5_b']],
                      axis=0).astype(f32)                          # (3, 128)
    bfc = row(params['b_fc'])

    kern = functools.partial(_ssrn_kernel, B=B, D1=D1, P=P)
    vspec = pl.BlockSpec(memory_space=pltpu.MemorySpace.VMEM)
    inputs = (x0, W1, W2, W3, W4, W5, W6, W7,
              params['w8'].astype(f32), params['w_fc'].astype(f32),
              s_pad, expand, bias_spec, pk24, pk128, bfc)
    return pl.pallas_call(
        kern,
        out_shape=jax.ShapeDtypeStruct((B, n_classes), f32),
        in_specs=[vspec] * len(inputs),
        out_specs=vspec,
        compiler_params=pltpu.CompilerParams(
            vmem_limit_bytes=32 * 1024 * 1024),
    )(*inputs)


# ----------------------------------------------------------------------------
if __name__ == "__main__":
    B = 2
    input_channels = 16   # spectral bands (depth D)
    patch_size = 9        # H = W
    n_classes = 5

    key = jax.random.PRNGKey(0)
    k_x, k_p = jax.random.split(key)
    x = jax.random.normal(k_x, (B, 1, input_channels, patch_size, patch_size),
                          dtype=jnp.float32)
    params = make_params(input_channels, n_classes, k_p)

    fwd = jax.jit(functools.partial(ssrn_forward,
                                    input_channels=input_channels,
                                    patch_size=patch_size))
    out = jax.block_until_ready(fwd(x, params))
    assert out.shape == (B, n_classes), out.shape
    assert bool(jnp.all(jnp.isfinite(out)))
    print("KERNEL_OK")
</pallas_src>

<mosaic_0001>
module attributes {stable_mosaic.version = 11 : i64} {
  func.func @_ssrn_kernel(%arg0: memref<162x16xf32, #tpu.memory_space<vmem>>, %arg1: memref<16x120xf32, #tpu.memory_space<vmem>>, %arg2: memref<120x120xf32, #tpu.memory_space<vmem>>, %arg3: memref<120x120xf32, #tpu.memory_space<vmem>>, %arg4: memref<120x128xf32, #tpu.memory_space<vmem>>, %arg5: memref<1152x24xf32, #tpu.memory_space<vmem>>, %arg6: memref<216x24xf32, #tpu.memory_space<vmem>>, %arg7: memref<216x24xf32, #tpu.memory_space<vmem>>, %arg8: memref<24x24xf32, #tpu.memory_space<vmem>>, %arg9: memref<24x5xf32, #tpu.memory_space<vmem>>, %arg10: memref<81x61xf32, #tpu.memory_space<vmem>>, %arg11: memref<24x120xf32, #tpu.memory_space<vmem>>, %arg12: memref<3x120xf32, #tpu.memory_space<vmem>>, %arg13: memref<16x24xf32, #tpu.memory_space<vmem>>, %arg14: memref<3x128xf32, #tpu.memory_space<vmem>>, %arg15: memref<1x5xf32, #tpu.memory_space<vmem>>, %arg16: memref<2x5xf32, #tpu.memory_space<vmem>>) attributes {dimension_semantics = [], scalar_prefetch = 0 : i64, scratch_operands = 0 : i64, tpu.core_type = #tpu.core_type<tc>} {
    %c0 = arith.constant 0 : index
    %c0_0 = arith.constant 0 : index
    %0 = vector.load %arg13[%c0, %c0_0] : memref<16x24xf32, #tpu.memory_space<vmem>>, vector<16x24xf32>
    %c0_1 = arith.constant 0 : index
    %c0_2 = arith.constant 0 : index
    %1 = vector.load %arg14[%c0_1, %c0_2] : memref<3x128xf32, #tpu.memory_space<vmem>>, vector<3x128xf32>
    %c0_3 = arith.constant 0 : index
    %c0_4 = arith.constant 0 : index
    %2 = vector.load %arg12[%c0_3, %c0_4] : memref<3x120xf32, #tpu.memory_space<vmem>>, vector<3x120xf32>
    %c0_5 = arith.constant 0 : index
    %c0_6 = arith.constant 0 : index
    %3 = vector.load %arg11[%c0_5, %c0_6] : memref<24x120xf32, #tpu.memory_space<vmem>>, vector<24x120xf32>
    %c0_7 = arith.constant 0 : index
    %c0_8 = arith.constant 0 : index
    %4 = vector.load %arg10[%c0_7, %c0_8] : memref<81x61xf32, #tpu.memory_space<vmem>>, vector<81x61xf32>
    %c0_9 = arith.constant 0 : index
    %c0_10 = arith.constant 0 : index
    %5 = vector.load %arg15[%c0_9, %c0_10] : memref<1x5xf32, #tpu.memory_space<vmem>>, vector<1x5xf32>
    %c0_11 = arith.constant 0 : index
    %c0_12 = arith.constant 0 : index
    %6 = vector.load %arg9[%c0_11, %c0_12] : memref<24x5xf32, #tpu.memory_space<vmem>>, vector<24x5xf32>
    %c0_13 = arith.constant 0 : index
    %c0_14 = arith.constant 0 : index
    %7 = vector.load %arg8[%c0_13, %c0_14] : memref<24x24xf32, #tpu.memory_space<vmem>>, vector<24x24xf32>
    %c0_15 = arith.constant 0 : index
    %c0_16 = arith.constant 0 : index
    %8 = vector.load %arg5[%c0_15, %c0_16] : memref<1152x24xf32, #tpu.memory_space<vmem>>, vector<1152x24xf32>
    %c0_17 = arith.constant 0 : index
    %c0_18 = arith.constant 0 : index
    %9 = vector.load %arg6[%c0_17, %c0_18] : memref<216x24xf32, #tpu.memory_space<vmem>>, vector<216x24xf32>
    %c0_19 = arith.constant 0 : index
    %c0_20 = arith.constant 0 : index
    %10 = vector.load %arg7[%c0_19, %c0_20] : memref<216x24xf32, #tpu.memory_space<vmem>>, vector<216x24xf32>
    %11 = vector.extract_strided_slice %9 {offsets = [0, 0], sizes = [24, 24], strides = [1, 1]} : vector<216x24xf32> to vector<24x24xf32>
    %12 = vector.extract_strided_slice %9 {offsets = [24, 0], sizes = [24, 24], strides = [1, 1]} : vector<216x24xf32> to vector<24x24xf32>
    %13 = vector.extract_strided_slice %9 {offsets = [48, 0], sizes = [24, 24], strides = [1, 1]} : vector<216x24xf32> to vector<24x24xf32>
    %14 = vector.extract_strided_slice %9 {offsets = [72, 0], sizes = [24, 24], strides = [1, 1]} : vector<216x24xf32> to vector<24x24xf32>
    %15 = vector.extract_strided_slice %9 {offsets = [96, 0], sizes = [24, 24], strides = [1, 1]} : vector<216x24xf32> to vector<24x24xf32>
    %16 = vector.extract_strided_slice %9 {offsets = [120, 0], sizes = [24, 24], strides = [1, 1]} : vector<216x24xf32> to vector<24x24xf32>
    %17 = vector.extract_strided_slice %9 {offsets = [144, 0], sizes = [24, 24], strides = [1, 1]} : vector<216x24xf32> to vector<24x24xf32>
    %18 = vector.extract_strided_slice %9 {offsets = [168, 0], sizes = [24, 24], strides = [1, 1]} : vector<216x24xf32> to vector<24x24xf32>
    %19 = vector.extract_strided_slice %9 {offsets = [192, 0], sizes = [24, 24], strides = [1, 1]} : vector<216x24xf32> to vector<24x24xf32>
    %20 = vector.extract_strided_slice %10 {offsets = [0, 0], sizes = [24, 24], strides = [1, 1]} : vector<216x24xf32> to vector<24x24xf32>
    %21 = vector.extract_strided_slice %10 {offsets = [24, 0], sizes = [24, 24], strides = [1, 1]} : vector<216x24xf32> to vector<24x24xf32>
    %22 = vector.extract_strided_slice %10 {offsets = [48, 0], sizes = [24, 24], strides = [1, 1]} : vector<216x24xf32> to vector<24x24xf32>
    %23 = vector.extract_strided_slice %10 {offsets = [72, 0], sizes = [24, 24], strides = [1, 1]} : vector<216x24xf32> to vector<24x24xf32>
    %24 = vector.extract_strided_slice %10 {offsets = [96, 0], sizes = [24, 24], strides = [1, 1]} : vector<216x24xf32> to vector<24x24xf32>
    %25 = vector.extract_strided_slice %10 {offsets = [120, 0], sizes = [24, 24], strides = [1, 1]} : vector<216x24xf32> to vector<24x24xf32>
    %26 = vector.extract_strided_slice %10 {offsets = [144, 0], sizes = [24, 24], strides = [1, 1]} : vector<216x24xf32> to vector<24x24xf32>
    %27 = vector.extract_strided_slice %10 {offsets = [168, 0], sizes = [24, 24], strides = [1, 1]} : vector<216x24xf32> to vector<24x24xf32>
    %28 = vector.extract_strided_slice %10 {offsets = [192, 0], sizes = [24, 24], strides = [1, 1]} : vector<216x24xf32> to vector<24x24xf32>
    %c0_21 = arith.constant 0 : index
    %c0_22 = arith.constant 0 : index
    %29 = vector.load %arg0[%c0_21, %c0_22] : memref<162x16xf32, #tpu.memory_space<vmem>>, vector<162x16xf32>
    %c0_23 = arith.constant 0 : index
    %c0_24 = arith.constant 0 : index
    %30 = vector.load %arg1[%c0_23, %c0_24] : memref<16x120xf32, #tpu.memory_space<vmem>>, vector<16x120xf32>
    %cst = arith.constant dense<0.000000e+00> : vector<162x120xf32>
    %31 = tpu.matmul %29, %30, %cst {dimension_numbers = #tpu.dot_dimension_numbers<[1], [0], [0], [1], [0, 0, 1, 1], [], []>} : vector<162x16xf32>, vector<16x120xf32>, vector<162x120xf32> -> vector<162x120xf32>
    %32 = vector.extract_strided_slice %2 {offsets = [0, 0], sizes = [1, 120], strides = [1, 1]} : vector<3x120xf32> to vector<1x120xf32>
    %33 = vector.broadcast %32 : vector<1x120xf32> to vector<162x120xf32>
    %34 = arith.addf %31, %33 : vector<162x120xf32>
    %35 = vector.extract_strided_slice %0 {offsets = [0, 0], sizes = [1, 24], strides = [1, 1]} : vector<16x24xf32> to vector<1x24xf32>
    %36 = vector.extract_strided_slice %0 {offsets = [1, 0], sizes = [1, 24], strides = [1, 1]} : vector<16x24xf32> to vector<1x24xf32>
    %cst_25 = arith.constant dense<0.000000e+00> : vector<120xf32>
    %37 = vector.multi_reduction <add>, %34, %cst_25 [0] : vector<162x120xf32> to vector<120xf32>
    %38 = vector.shape_cast %37 : vector<120xf32> to vector<1x120xf32>
    %39 = arith.mulf %34, %34 : vector<162x120xf32>
    %cst_26 = arith.constant dense<0.000000e+00> : vector<120xf32>
    %40 = vector.multi_reduction <add>, %39, %cst_26 [0] : vector<162x120xf32> to vector<120xf32>
    %41 = vector.shape_cast %40 : vector<120xf32> to vector<1x120xf32>
    %42 = vector.extract_strided_slice %38 {offsets = [0, 0], sizes = [1, 24], strides = [1, 1]} : vector<1x120xf32> to vector<1x24xf32>
    %43 = vector.extract_strided_slice %41 {offsets = [0, 0], sizes = [1, 24], strides = [1, 1]} : vector<1x120xf32> to vector<1x24xf32>
    %44 = vector.extract_strided_slice %38 {offsets = [0, 24], sizes = [1, 24], strides = [1, 1]} : vector<1x120xf32> to vector<1x24xf32>
    %45 = arith.addf %42, %44 : vector<1x24xf32>
    %46 = vector.extract_strided_slice %41 {offsets = [0, 24], sizes = [1, 24], strides = [1, 1]} : vector<1x120xf32> to vector<1x24xf32>
    %47 = arith.addf %43, %46 : vector<1x24xf32>
    %48 = vector.extract_strided_slice %38 {offsets = [0, 48], sizes = [1, 24], strides = [1, 1]} : vector<1x120xf32> to vector<1x24xf32>
    %49 = arith.addf %45, %48 : vector<1x24xf32>
    %50 = vector.extract_strided_slice %41 {offsets = [0, 48], sizes = [1, 24], strides = [1, 1]} : vector<1x120xf32> to vector<1x24xf32>
    %51 = arith.addf %47, %50 : vector<1x24xf32>
    %52 = vector.extract_strided_slice %38 {offsets = [0, 72], sizes = [1, 24], strides = [1, 1]} : vector<1x120xf32> to vector<1x24xf32>
    %53 = arith.addf %49, %52 : vector<1x24xf32>
    %54 = vector.extract_strided_slice %41 {offsets = [0, 72], sizes = [1, 24], strides = [1, 1]} : vector<1x120xf32> to vector<1x24xf32>
    %55 = arith.addf %51, %54 : vector<1x24xf32>
    %56 = vector.extract_strided_slice %38 {offsets = [0, 96], sizes = [1, 24], strides = [1, 1]} : vector<1x120xf32> to vector<1x24xf32>
    %57 = arith.addf %53, %56 : vector<1x24xf32>
    %58 = vector.extract_strided_slice %41 {offsets = [0, 96], sizes = [1, 24], strides = [1, 1]} : vector<1x120xf32> to vector<1x24xf32>
    %59 = arith.addf %55, %58 : vector<1x24xf32>
    %cst_27 = arith.constant 8.100000e+02 : f32
    %60 = vector.broadcast %cst_27 : f32 to vector<1x24xf32>
    %61 = arith.divf %57, %60 : vector<1x24xf32>
    %cst_28 = arith.constant 8.100000e+02 : f32
    %62 = vector.broadcast %cst_28 : f32 to vector<1x24xf32>
    %63 = arith.divf %59, %62 : vector<1x24xf32>
    %64 = arith.mulf %61, %61 : vector<1x24xf32>
    %65 = arith.subf %63, %64 : vector<1x24xf32>
    %cst_29 = arith.constant 0.000000e+00 : f32
    %66 = vector.broadcast %cst_29 : f32 to vector<1x24xf32>
    %67 = arith.maximumf %65, %66 : vector<1x24xf32>
    %cst_30 = arith.constant 9.99999974E-6 : f32
    %68 = vector.broadcast %cst_30 : f32 to vector<1x24xf32>
    %69 = arith.addf %67, %68 : vector<1x24xf32>
    %70 = math.rsqrt %69 : vector<1x24xf32>
    %71 = arith.mulf %35, %70 : vector<1x24xf32>
    %72 = arith.mulf %61, %71 : vector<1x24xf32>
    %73 = arith.subf %36, %72 : vector<1x24xf32>
    %cst_31 = arith.constant dense<0.000000e+00> : vector<1x120xf32>
    %74 = tpu.matmul %71, %3, %cst_31 {dimension_numbers = #tpu.dot_dimension_numbers<[1], [0], [0], [1], [0, 0, 1, 1], [], []>} : vector<1x24xf32>, vector<24x120xf32>, vector<1x120xf32> -> vector<1x120xf32>
    %cst_32 = arith.constant dense<0.000000e+00> : vector<1x120xf32>
    %75 = tpu.matmul %73, %3, %cst_32 {dimension_numbers = #tpu.dot_dimension_numbers<[1], [0], [0], [1], [0, 0, 1, 1], [], []>} : vector<1x24xf32>, vector<24x120xf32>, vector<1x120xf32> -> vector<1x120xf32>
    %76 = vector.broadcast %74 : vector<1x120xf32> to vector<162x120xf32>
    %77 = arith.mulf %34, %76 : vector<162x120xf32>
    %78 = vector.broadcast %75 : vector<1x120xf32> to vector<162x120xf32>
    %79 = arith.addf %77, %78 : vector<162x120xf32>
    %cst_33 = arith.constant 0.000000e+00 : f32
    %80 = vector.broadcast %cst_33 : f32 to vector<162x120xf32>
    %81 = arith.maximumf %79, %80 : vector<162x120xf32>
    %c0_34 = arith.constant 0 : index
    %c0_35 = arith.constant 0 : index
    %82 = vector.load %arg2[%c0_34, %c0_35] : memref<120x120xf32, #tpu.memory_space<vmem>>, vector<120x120xf32>
    %cst_36 = arith.constant dense<0.000000e+00> : vector<162x120xf32>
    %83 = tpu.matmul %81, %82, %cst_36 {dimension_numbers = #tpu.dot_dimension_numbers<[1], [0], [0], [1], [0, 0, 1, 1], [], []>} : vector<162x120xf32>, vector<120x120xf32>, vector<162x120xf32> -> vector<162x120xf32>
    %84 = vector.extract_strided_slice %2 {offsets = [1, 0], sizes = [1, 120], strides = [1, 1]} : vector<3x120xf32> to vector<1x120xf32>
    %85 = vector.broadcast %84 : vector<1x120xf32> to vector<162x120xf32>
    %86 = arith.addf %83, %85 : vector<162x120xf32>
    %87 = vector.extract_strided_slice %0 {offsets = [2, 0], sizes = [1, 24], strides = [1, 1]} : vector<16x24xf32> to vector<1x24xf32>
    %88 = vector.extract_strided_slice %0 {offsets = [3, 0], sizes = [1, 24], strides = [1, 1]} : vector<16x24xf32> to vector<1x24xf32>
    %cst_37 = arith.constant dense<0.000000e+00> : vector<120xf32>
    %89 = vector.multi_reduction <add>, %86, %cst_37 [0] : vector<162x120xf32> to vector<120xf32>
    %90 = vector.shape_cast %89 : vector<120xf32> to vector<1x120xf32>
    %91 = arith.mulf %86, %86 : vector<162x120xf32>
    %cst_38 = arith.constant dense<0.000000e+00> : vector<120xf32>
    %92 = vector.multi_reduction <add>, %91, %cst_38 [0] : vector<162x120xf32> to vector<120xf32>
    %93 = vector.shape_cast %92 : vector<120xf32> to vector<1x120xf32>
    %94 = vector.extract_strided_slice %90 {offsets = [0, 0], sizes = [1, 24], strides = [1, 1]} : vector<1x120xf32> to vector<1x24xf32>
    %95 = vector.extract_strided_slice %93 {offsets = [0, 0], sizes = [1, 24], strides = [1, 1]} : vector<1x120xf32> to vector<1x24xf32>
    %96 = vector.extract_strided_slice %90 {offsets = [0, 24], sizes = [1, 24], strides = [1, 1]} : vector<1x120xf32> to vector<1x24xf32>
    %97 = arith.addf %94, %96 : vector<1x24xf32>
    %98 = vector.extract_strided_slice %93 {offsets = [0, 24], sizes = [1, 24], strides = [1, 1]} : vector<1x120xf32> to vector<1x24xf32>
    %99 = arith.addf %95, %98 : vector<1x24xf32>
    %100 = vector.extract_strided_slice %90 {offsets = [0, 48], sizes = [1, 24], strides = [1, 1]} : vector<1x120xf32> to vector<1x24xf32>
    %101 = arith.addf %97, %100 : vector<1x24xf32>
    %102 = vector.extract_strided_slice %93 {offsets = [0, 48], sizes = [1, 24], strides = [1, 1]} : vector<1x120xf32> to vector<1x24xf32>
    %103 = arith.addf %99, %102 : vector<1x24xf32>
    %104 = vector.extract_strided_slice %90 {offsets = [0, 72], sizes = [1, 24], strides = [1, 1]} : vector<1x120xf32> to vector<1x24xf32>
    %105 = arith.addf %101, %104 : vector<1x24xf32>
    %106 = vector.extract_strided_slice %93 {offsets = [0, 72], sizes = [1, 24], strides = [1, 1]} : vector<1x120xf32> to vector<1x24xf32>
    %107 = arith.addf %103, %106 : vector<1x24xf32>
    %108 = vector.extract_strided_slice %90 {offsets = [0, 96], sizes = [1, 24], strides = [1, 1]} : vector<1x120xf32> to vector<1x24xf32>
    %109 = arith.addf %105, %108 : vector<1x24xf32>
    %110 = vector.extract_strided_slice %93 {offsets = [0, 96], sizes = [1, 24], strides = [1, 1]} : vector<1x120xf32> to vector<1x24xf32>
    %111 = arith.addf %107, %110 : vector<1x24xf32>
    %cst_39 = arith.constant 8.100000e+02 : f32
    %112 = vector.broadcast %cst_39 : f32 to vector<1x24xf32>
    %113 = arith.divf %109, %112 : vector<1x24xf32>
    %cst_40 = arith.constant 8.100000e+02 : f32
    %114 = vector.broadcast %cst_40 : f32 to vector<1x24xf32>
    %115 = arith.divf %111, %114 : vector<1x24xf32>
    %116 = arith.mulf %113, %113 : vector<1x24xf32>
    %117 = arith.subf %115, %116 : vector<1x24xf32>
    %cst_41 = arith.constant 0.000000e+00 : f32
    %118 = vector.broadcast %cst_41 : f32 to vector<1x24xf32>
    %119 = arith.maximumf %117, %118 : vector<1x24xf32>
    %cst_42 = arith.constant 9.99999974E-6 : f32
    %120 = vector.broadcast %cst_42 : f32 to vector<1x24xf32>
    %121 = arith.addf %119, %120 : vector<1x24xf32>
    %122 = math.rsqrt %121 : vector<1x24xf32>
    %123 = arith.mulf %87, %122 : vector<1x24xf32>
    %124 = arith.mulf %113, %123 : vector<1x24xf32>
    %125 = arith.subf %88, %124 : vector<1x24xf32>
    %cst_43 = arith.constant dense<0.000000e+00> : vector<1x120xf32>
    %126 = tpu.matmul %123, %3, %cst_43 {dimension_numbers = #tpu.dot_dimension_numbers<[1], [0], [0], [1], [0, 0, 1, 1], [], []>} : vector<1x24xf32>, vector<24x120xf32>, vector<1x120xf32> -> vector<1x120xf32>
    %cst_44 = arith.constant dense<0.000000e+00> : vector<1x120xf32>
    %127 = tpu.matmul %125, %3, %cst_44 {dimension_numbers = #tpu.dot_dimension_numbers<[1], [0], [0], [1], [0, 0, 1, 1], [], []>} : vector<1x24xf32>, vector<24x120xf32>, vector<1x120xf32> -> vector<1x120xf32>
    %128 = vector.broadcast %126 : vector<1x120xf32> to vector<162x120xf32>
    %129 = arith.mulf %86, %128 : vector<162x120xf32>
    %130 = vector.broadcast %127 : vector<1x120xf32> to vector<162x120xf32>
    %131 = arith.addf %129, %130 : vector<162x120xf32>
    %cst_45 = arith.constant 0.000000e+00 : f32
    %132 = vector.broadcast %cst_45 : f32 to vector<162x120xf32>
    %133 = arith.maximumf %131, %132 : vector<162x120xf32>
    %c0_46 = arith.constant 0 : index
    %c0_47 = arith.constant 0 : index
    %134 = vector.load %arg3[%c0_46, %c0_47] : memref<120x120xf32, #tpu.memory_space<vmem>>, vector<120x120xf32>
    %cst_48 = arith.constant dense<0.000000e+00> : vector<162x120xf32>
    %135 = tpu.matmul %133, %134, %cst_48 {dimension_numbers = #tpu.dot_dimension_numbers<[1], [0], [0], [1], [0, 0, 1, 1], [], []>} : vector<162x120xf32>, vector<120x120xf32>, vector<162x120xf32> -> vector<162x120xf32>
    %136 = vector.extract_strided_slice %2 {offsets = [2, 0], sizes = [1, 120], strides = [1, 1]} : vector<3x120xf32> to vector<1x120xf32>
    %137 = vector.broadcast %136 : vector<1x120xf32> to vector<162x120xf32>
    %138 = arith.addf %135, %137 : vector<162x120xf32>
    %139 = arith.addf %138, %81 : vector<162x120xf32>
    %140 = vector.extract_strided_slice %0 {offsets = [4, 0], sizes = [1, 24], strides = [1, 1]} : vector<16x24xf32> to vector<1x24xf32>
    %141 = vector.extract_strided_slice %0 {offsets = [5, 0], sizes = [1, 24], strides = [1, 1]} : vector<16x24xf32> to vector<1x24xf32>
    %cst_49 = arith.constant dense<0.000000e+00> : vector<120xf32>
    %142 = vector.multi_reduction <add>, %139, %cst_49 [0] : vector<162x120xf32> to vector<120xf32>
    %143 = vector.shape_cast %142 : vector<120xf32> to vector<1x120xf32>
    %144 = arith.mulf %139, %139 : vector<162x120xf32>
    %cst_50 = arith.constant dense<0.000000e+00> : vector<120xf32>
    %145 = vector.multi_reduction <add>, %144, %cst_50 [0] : vector<162x120xf32> to vector<120xf32>
    %146 = vector.shape_cast %145 : vector<120xf32> to vector<1x120xf32>
    %147 = vector.extract_strided_slice %143 {offsets = [0, 0], sizes = [1, 24], strides = [1, 1]} : vector<1x120xf32> to vector<1x24xf32>
    %148 = vector.extract_strided_slice %146 {offsets = [0, 0], sizes = [1, 24], strides = [1, 1]} : vector<1x120xf32> to vector<1x24xf32>
    %149 = vector.extract_strided_slice %143 {offsets = [0, 24], sizes = [1, 24], strides = [1, 1]} : vector<1x120xf32> to vector<1x24xf32>
    %150 = arith.addf %147, %149 : vector<1x24xf32>
    %151 = vector.extract_strided_slice %146 {offsets = [0, 24], sizes = [1, 24], strides = [1, 1]} : vector<1x120xf32> to vector<1x24xf32>
    %152 = arith.addf %148, %151 : vector<1x24xf32>
    %153 = vector.extract_strided_slice %143 {offsets = [0, 48], sizes = [1, 24], strides = [1, 1]} : vector<1x120xf32> to vector<1x24xf32>
    %154 = arith.addf %150, %153 : vector<1x24xf32>
    %155 = vector.extract_strided_slice %146 {offsets = [0, 48], sizes = [1, 24], strides = [1, 1]} : vector<1x120xf32> to vector<1x24xf32>
    %156 = arith.addf %152, %155 : vector<1x24xf32>
    %157 = vector.extract_strided_slice %143 {offsets = [0, 72], sizes = [1, 24], strides = [1, 1]} : vector<1x120xf32> to vector<1x24xf32>
    %158 = arith.addf %154, %157 : vector<1x24xf32>
    %159 = vector.extract_strided_slice %146 {offsets = [0, 72], sizes = [1, 24], strides = [1, 1]} : vector<1x120xf32> to vector<1x24xf32>
    %160 = arith.addf %156, %159 : vector<1x24xf32>
    %161 = vector.extract_strided_slice %143 {offsets = [0, 96], sizes = [1, 24], strides = [1, 1]} : vector<1x120xf32> to vector<1x24xf32>
    %162 = arith.addf %158, %161 : vector<1x24xf32>
    %163 = vector.extract_strided_slice %146 {offsets = [0, 96], sizes = [1, 24], strides = [1, 1]} : vector<1x120xf32> to vector<1x24xf32>
    %164 = arith.addf %160, %163 : vector<1x24xf32>
    %cst_51 = arith.constant 8.100000e+02 : f32
    %165 = vector.broadcast %cst_51 : f32 to vector<1x24xf32>
    %166 = arith.divf %162, %165 : vector<1x24xf32>
    %cst_52 = arith.constant 8.100000e+02 : f32
    %167 = vector.broadcast %cst_52 : f32 to vector<1x24xf32>
    %168 = arith.divf %164, %167 : vector<1x24xf32>
    %169 = arith.mulf %166, %166 : vector<1x24xf32>
    %170 = arith.subf %168, %169 : vector<1x24xf32>
    %cst_53 = arith.constant 0.000000e+00 : f32
    %171 = vector.broadcast %cst_53 : f32 to vector<1x24xf32>
    %172 = arith.maximumf %170, %171 : vector<1x24xf32>
    %cst_54 = arith.constant 9.99999974E-6 : f32
    %173 = vector.broadcast %cst_54 : f32 to vector<1x24xf32>
    %174 = arith.addf %172, %173 : vector<1x24xf32>
    %175 = math.rsqrt %174 : vector<1x24xf32>
    %176 = arith.mulf %140, %175 : vector<1x24xf32>
    %177 = arith.mulf %166, %176 : vector<1x24xf32>
    %178 = arith.subf %141, %177 : vector<1x24xf32>
    %cst_55 = arith.constant dense<0.000000e+00> : vector<1x120xf32>
    %179 = tpu.matmul %176, %3, %cst_55 {dimension_numbers = #tpu.dot_dimension_numbers<[1], [0], [0], [1], [0, 0, 1, 1], [], []>} : vector<1x24xf32>, vector<24x120xf32>, vector<1x120xf32> -> vector<1x120xf32>
    %cst_56 = arith.constant dense<0.000000e+00> : vector<1x120xf32>
    %180 = tpu.matmul %178, %3, %cst_56 {dimension_numbers = #tpu.dot_dimension_numbers<[1], [0], [0], [1], [0, 0, 1, 1], [], []>} : vector<1x24xf32>, vector<24x120xf32>, vector<1x120xf32> -> vector<1x120xf32>
    %181 = vector.broadcast %179 : vector<1x120xf32> to vector<162x120xf32>
    %182 = arith.mulf %139, %181 : vector<162x120xf32>
    %183 = vector.broadcast %180 : vector<1x120xf32> to vector<162x120xf32>
    %184 = arith.addf %182, %183 : vector<162x120xf32>
    %cst_57 = arith.constant 0.000000e+00 : f32
    %185 = vector.broadcast %cst_57 : f32 to vector<162x120xf32>
    %186 = arith.maximumf %184, %185 : vector<162x120xf32>
    %c0_58 = arith.constant 0 : index
    %c0_59 = arith.constant 0 : index
    %187 = vector.load %arg4[%c0_58, %c0_59] : memref<120x128xf32, #tpu.memory_space<vmem>>, vector<120x128xf32>
    %cst_60 = arith.constant dense<0.000000e+00> : vector<162x128xf32>
    %188 = tpu.matmul %186, %187, %cst_60 {dimension_numbers = #tpu.dot_dimension_numbers<[1], [0], [0], [1], [0, 0, 1, 1], [], []>} : vector<162x120xf32>, vector<120x128xf32>, vector<162x128xf32> -> vector<162x128xf32>
    %189 = vector.extract_strided_slice %1 {offsets = [0, 0], sizes = [1, 128], strides = [1, 1]} : vector<3x128xf32> to vector<1x128xf32>
    %190 = vector.broadcast %189 : vector<1x128xf32> to vector<162x128xf32>
    %191 = arith.addf %188, %190 : vector<162x128xf32>
    %192 = vector.extract_strided_slice %1 {offsets = [1, 0], sizes = [1, 128], strides = [1, 1]} : vector<3x128xf32> to vector<1x128xf32>
    %193 = vector.extract_strided_slice %1 {offsets = [2, 0], sizes = [1, 128], strides = [1, 1]} : vector<3x128xf32> to vector<1x128xf32>
    %cst_61 = arith.constant dense<0.000000e+00> : vector<128xf32>
    %194 = vector.multi_reduction <add>, %191, %cst_61 [0] : vector<162x128xf32> to vector<128xf32>
    %195 = vector.shape_cast %194 : vector<128xf32> to vector<1x128xf32>
    %196 = arith.mulf %191, %191 : vector<162x128xf32>
    %cst_62 = arith.constant dense<0.000000e+00> : vector<128xf32>
    %197 = vector.multi_reduction <add>, %196, %cst_62 [0] : vector<162x128xf32> to vector<128xf32>
    %198 = vector.shape_cast %197 : vector<128xf32> to vector<1x128xf32>
    %cst_63 = arith.constant 1.620000e+02 : f32
    %199 = vector.broadcast %cst_63 : f32 to vector<1x128xf32>
    %200 = arith.divf %195, %199 : vector<1x128xf32>
    %cst_64 = arith.constant 1.620000e+02 : f32
    %201 = vector.broadcast %cst_64 : f32 to vector<1x128xf32>
    %202 = arith.divf %198, %201 : vector<1x128xf32>
    %203 = arith.mulf %200, %200 : vector<1x128xf32>
    %204 = arith.subf %202, %203 : vector<1x128xf32>
    %cst_65 = arith.constant 0.000000e+00 : f32
    %205 = vector.broadcast %cst_65 : f32 to vector<1x128xf32>
    %206 = arith.maximumf %204, %205 : vector<1x128xf32>
    %cst_66 = arith.constant 9.99999974E-6 : f32
    %207 = vector.broadcast %cst_66 : f32 to vector<1x128xf32>
    %208 = arith.addf %206, %207 : vector<1x128xf32>
    %209 = math.rsqrt %208 : vector<1x128xf32>
    %210 = arith.mulf %192, %209 : vector<1x128xf32>
    %211 = arith.mulf %200, %210 : vector<1x128xf32>
    %212 = arith.subf %193, %211 : vector<1x128xf32>
    %213 = vector.broadcast %210 : vector<1x128xf32> to vector<162x128xf32>
    %214 = arith.mulf %191, %213 : vector<162x128xf32>
    %215 = vector.broadcast %212 : vector<1x128xf32> to vector<162x128xf32>
    %216 = arith.addf %214, %215 : vector<162x128xf32>
    %cst_67 = arith.constant 0.000000e+00 : f32
    %217 = vector.broadcast %cst_67 : f32 to vector<162x128xf32>
    %218 = arith.maximumf %216, %217 : vector<162x128xf32>
    %219 = tpu.iota {dimensions = array<i32: 0>} : vector<61x1xi32>
    %c0_i32 = arith.constant 0 : i32
    %220 = vector.broadcast %c0_i32 : i32 to vector<61x1xi32>
    %c9_i32 = arith.constant 9 : i32
    %221 = vector.broadcast %c9_i32 : i32 to vector<61x1xi32>
    %222 = arith.cmpi sge, %219, %221 : vector<61x1xi32>
    %223 = arith.extui %222 : vector<61x1xi1> to vector<61x1xi32>
    %224 = arith.addi %220, %223 : vector<61x1xi32>
    %c18_i32 = arith.constant 18 : i32
    %225 = vector.broadcast %c18_i32 : i32 to vector<61x1xi32>
    %226 = arith.cmpi sge, %219, %225 : vector<61x1xi32>
    %227 = arith.extui %226 : vector<61x1xi1> to vector<61x1xi32>
    %228 = arith.addi %224, %227 : vector<61x1xi32>
    %c27_i32 = arith.constant 27 : i32
    %229 = vector.broadcast %c27_i32 : i32 to vector<61x1xi32>
    %230 = arith.cmpi sge, %219, %229 : vector<61x1xi32>
    %231 = arith.extui %230 : vector<61x1xi1> to vector<61x1xi32>
    %232 = arith.addi %228, %231 : vector<61x1xi32>
    %c36_i32 = arith.constant 36 : i32
    %233 = vector.broadcast %c36_i32 : i32 to vector<61x1xi32>
    %234 = arith.cmpi sge, %219, %233 : vector<61x1xi32>
    %235 = arith.extui %234 : vector<61x1xi1> to vector<61x1xi32>
    %236 = arith.addi %232, %235 : vector<61x1xi32>
    %c45_i32 = arith.constant 45 : i32
    %237 = vector.broadcast %c45_i32 : i32 to vector<61x1xi32>
    %238 = arith.cmpi sge, %219, %237 : vector<61x1xi32>
    %239 = arith.extui %238 : vector<61x1xi1> to vector<61x1xi32>
    %240 = arith.addi %236, %239 : vector<61x1xi32>
    %c54_i32 = arith.constant 54 : i32
    %241 = vector.broadcast %c54_i32 : i32 to vector<61x1xi32>
    %242 = arith.cmpi sge, %219, %241 : vector<61x1xi32>
    %243 = arith.extui %242 : vector<61x1xi1> to vector<61x1xi32>
    %244 = arith.addi %240, %243 : vector<61x1xi32>
    %c9_i32_68 = arith.constant 9 : i32
    %245 = vector.broadcast %c9_i32_68 : i32 to vector<61x1xi32>
    %246 = arith.muli %245, %244 : vector<61x1xi32>
    %247 = arith.subi %219, %246 : vector<61x1xi32>
    %c6_i32 = arith.constant 6 : i32
    %248 = vector.broadcast %c6_i32 : i32 to vector<61x1xi32>
    %249 = arith.cmpi sle, %247, %248 : vector<61x1xi32>
    %250 = arith.extui %249 : vector<61x1xi1> to vector<61x1xi32>
    %251 = arith.sitofp %250 : vector<61x1xi32> to vector<61x1xf32>
    %252 = vector.extract_strided_slice %218 {offsets = [0, 0], sizes = [81, 128], strides = [1, 1]} : vector<162x128xf32> to vector<81x128xf32>
    %253 = vector.extract_strided_slice %252 {offsets = [0, 0], sizes = [61, 128], strides = [1, 1]} : vector<81x128xf32> to vector<61x128xf32>
    %254 = vector.extract_strided_slice %252 {offsets = [1, 0], sizes = [61, 128], strides = [1, 1]} : vector<81x128xf32> to vector<61x128xf32>
    %255 = vector.extract_strided_slice %252 {offsets = [2, 0], sizes = [61, 128], strides = [1, 1]} : vector<81x128xf32> to vector<61x128xf32>
    %256 = vector.extract_strided_slice %252 {offsets = [9, 0], sizes = [61, 128], strides = [1, 1]} : vector<81x128xf32> to vector<61x128xf32>
    %257 = vector.extract_strided_slice %252 {offsets = [10, 0], sizes = [61, 128], strides = [1, 1]} : vector<81x128xf32> to vector<61x128xf32>
    %258 = vector.extract_strided_slice %252 {offsets = [11, 0], sizes = [61, 128], strides = [1, 1]} : vector<81x128xf32> to vector<61x128xf32>
    %259 = vector.extract_strided_slice %252 {offsets = [18, 0], sizes = [61, 128], strides = [1, 1]} : vector<81x128xf32> to vector<61x128xf32>
    %260 = vector.extract_strided_slice %252 {offsets = [19, 0], sizes = [61, 128], strides = [1, 1]} : vector<81x128xf32> to vector<61x128xf32>
    %261 = vector.extract_strided_slice %252 {offsets = [20, 0], sizes = [61, 128], strides = [1, 1]} : vector<81x128xf32> to vector<61x128xf32>
    %262 = tpu.concatenate %253, %254, %255, %256, %257, %258, %259, %260, %261 in 1 : vector<61x128xf32>, vector<61x128xf32>, vector<61x128xf32>, vector<61x128xf32>, vector<61x128xf32>, vector<61x128xf32>, vector<61x128xf32>, vector<61x128xf32>, vector<61x128xf32> -> vector<61x1152xf32>
    %cst_69 = arith.constant dense<0.000000e+00> : vector<61x24xf32>
    %263 = tpu.matmul %262, %8, %cst_69 {dimension_numbers = #tpu.dot_dimension_numbers<[1], [0], [0], [1], [0, 0, 1, 1], [], []>} : vector<61x1152xf32>, vector<1152x24xf32>, vector<61x24xf32> -> vector<61x24xf32>
    %264 = vector.extract_strided_slice %0 {offsets = [12, 0], sizes = [1, 24], strides = [1, 1]} : vector<16x24xf32> to vector<1x24xf32>
    %265 = vector.broadcast %264 : vector<1x24xf32> to vector<61x24xf32>
    %266 = arith.addf %263, %265 : vector<61x24xf32>
    %267 = vector.extract_strided_slice %218 {offsets = [81, 0], sizes = [81, 128], strides = [1, 1]} : vector<162x128xf32> to vector<81x128xf32>
    %268 = vector.extract_strided_slice %267 {offsets = [0, 0], sizes = [61, 128], strides = [1, 1]} : vector<81x128xf32> to vector<61x128xf32>
    %269 = vector.extract_strided_slice %267 {offsets = [1, 0], sizes = [61, 128], strides = [1, 1]} : vector<81x128xf32> to vector<61x128xf32>
    %270 = vector.extract_strided_slice %267 {offsets = [2, 0], sizes = [61, 128], strides = [1, 1]} : vector<81x128xf32> to vector<61x128xf32>
    %271 = vector.extract_strided_slice %267 {offsets = [9, 0], sizes = [61, 128], strides = [1, 1]} : vector<81x128xf32> to vector<61x128xf32>
    %272 = vector.extract_strided_slice %267 {offsets = [10, 0], sizes = [61, 128], strides = [1, 1]} : vector<81x128xf32> to vector<61x128xf32>
    %273 = vector.extract_strided_slice %267 {offsets = [11, 0], sizes = [61, 128], strides = [1, 1]} : vector<81x128xf32> to vector<61x128xf32>
    %274 = vector.extract_strided_slice %267 {offsets = [18, 0], sizes = [61, 128], strides = [1, 1]} : vector<81x128xf32> to vector<61x128xf32>
    %275 = vector.extract_strided_slice %267 {offsets = [19, 0], sizes = [61, 128], strides = [1, 1]} : vector<81x128xf32> to vector<61x128xf32>
    %276 = vector.extract_strided_slice %267 {offsets = [20, 0], sizes = [61, 128], strides = [1, 1]} : vector<81x128xf32> to vector<61x128xf32>
    %277 = tpu.concatenate %268, %269, %270, %271, %272, %273, %274, %275, %276 in 1 : vector<61x128xf32>, vector<61x128xf32>, vector<61x128xf32>, vector<61x128xf32>, vector<61x128xf32>, vector<61x128xf32>, vector<61x128xf32>, vector<61x128xf32>, vector<61x128xf32> -> vector<61x1152xf32>
    %cst_70 = arith.constant dense<0.000000e+00> : vector<61x24xf32>
    %278 = tpu.matmul %277, %8, %cst_70 {dimension_numbers = #tpu.dot_dimension_numbers<[1], [0], [0], [1], [0, 0, 1, 1], [], []>} : vector<61x1152xf32>, vector<1152x24xf32>, vector<61x24xf32> -> vector<61x24xf32>
    %279 = vector.extract_strided_slice %0 {offsets = [12, 0], sizes = [1, 24], strides = [1, 1]} : vector<16x24xf32> to vector<1x24xf32>
    %280 = vector.broadcast %279 : vector<1x24xf32> to vector<61x24xf32>
    %281 = arith.addf %278, %280 : vector<61x24xf32>
    %282 = vector.extract_strided_slice %0 {offsets = [6, 0], sizes = [1, 24], strides = [1, 1]} : vector<16x24xf32> to vector<1x24xf32>
    %283 = vector.extract_strided_slice %0 {offsets = [7, 0], sizes = [1, 24], strides = [1, 1]} : vector<16x24xf32> to vector<1x24xf32>
    %cst_71 = arith.constant 0.000000e+00 : f32
    %284 = vector.broadcast %cst_71 : f32 to vector<1x24xf32>
    %cst_72 = arith.constant 0.000000e+00 : f32
    %285 = vector.broadcast %cst_72 : f32 to vector<1x24xf32>
    %286 = vector.broadcast %251 : vector<61x1xf32> to vector<61x24xf32>
    %287 = arith.mulf %266, %286 : vector<61x24xf32>
    %cst_73 = arith.constant dense<0.000000e+00> : vector<24xf32>
    %288 = vector.multi_reduction <add>, %287, %cst_73 [0] : vector<61x24xf32> to vector<24xf32>
    %289 = vector.shape_cast %288 : vector<24xf32> to vector<1x24xf32>
    %290 = arith.addf %284, %289 : vector<1x24xf32>
    %291 = arith.mulf %287, %266 : vector<61x24xf32>
    %cst_74 = arith.constant dense<0.000000e+00> : vector<24xf32>
    %292 = vector.multi_reduction <add>, %291, %cst_74 [0] : vector<61x24xf32> to vector<24xf32>
    %293 = vector.shape_cast %292 : vector<24xf32> to vector<1x24xf32>
    %294 = arith.addf %285, %293 : vector<1x24xf32>
    %295 = vector.broadcast %251 : vector<61x1xf32> to vector<61x24xf32>
    %296 = arith.mulf %281, %295 : vector<61x24xf32>
    %cst_75 = arith.constant dense<0.000000e+00> : vector<24xf32>
    %297 = vector.multi_reduction <add>, %296, %cst_75 [0] : vector<61x24xf32> to vector<24xf32>
    %298 = vector.shape_cast %297 : vector<24xf32> to vector<1x24xf32>
    %299 = arith.addf %290, %298 : vector<1x24xf32>
    %300 = arith.mulf %296, %281 : vector<61x24xf32>
    %cst_76 = arith.constant dense<0.000000e+00> : vector<24xf32>
    %301 = vector.multi_reduction <add>, %300, %cst_76 [0] : vector<61x24xf32> to vector<24xf32>
    %302 = vector.shape_cast %301 : vector<24xf32> to vector<1x24xf32>
    %303 = arith.addf %294, %302 : vector<1x24xf32>
    %cst_77 = arith.constant 9.800000e+01 : f32
    %304 = vector.broadcast %cst_77 : f32 to vector<1x24xf32>
    %305 = arith.divf %299, %304 : vector<1x24xf32>
    %cst_78 = arith.constant 9.800000e+01 : f32
    %306 = vector.broadcast %cst_78 : f32 to vector<1x24xf32>
    %307 = arith.divf %303, %306 : vector<1x24xf32>
    %308 = arith.mulf %305, %305 : vector<1x24xf32>
    %309 = arith.subf %307, %308 : vector<1x24xf32>
    %cst_79 = arith.constant 0.000000e+00 : f32
    %310 = vector.broadcast %cst_79 : f32 to vector<1x24xf32>
    %311 = arith.maximumf %309, %310 : vector<1x24xf32>
    %cst_80 = arith.constant 9.99999974E-6 : f32
    %312 = vector.broadcast %cst_80 : f32 to vector<1x24xf32>
    %313 = arith.addf %311, %312 : vector<1x24xf32>
    %314 = math.rsqrt %313 : vector<1x24xf32>
    %315 = arith.mulf %282, %314 : vector<1x24xf32>
    %316 = arith.mulf %305, %315 : vector<1x24xf32>
    %317 = arith.subf %283, %316 : vector<1x24xf32>
    %318 = vector.broadcast %315 : vector<1x24xf32> to vector<61x24xf32>
    %319 = arith.mulf %266, %318 : vector<61x24xf32>
    %320 = vector.broadcast %317 : vector<1x24xf32> to vector<61x24xf32>
    %321 = arith.addf %319, %320 : vector<61x24xf32>
    %cst_81 = arith.constant 0.000000e+00 : f32
    %322 = vector.broadcast %cst_81 : f32 to vector<61x24xf32>
    %323 = arith.maximumf %321, %322 : vector<61x24xf32>
    %324 = vector.broadcast %315 : vector<1x24xf32> to vector<61x24xf32>
    %325 = arith.mulf %281, %324 : vector<61x24xf32>
    %326 = vector.broadcast %317 : vector<1x24xf32> to vector<61x24xf32>
    %327 = arith.addf %325, %326 : vector<61x24xf32>
    %cst_82 = arith.constant 0.000000e+00 : f32
    %328 = vector.broadcast %cst_82 : f32 to vector<61x24xf32>
    %329 = arith.maximumf %327, %328 : vector<61x24xf32>
    %cst_83 = arith.constant dense<0.000000e+00> : vector<61x24xf32>
    %330 = tpu.matmul %323, %7, %cst_83 {dimension_numbers = #tpu.dot_dimension_numbers<[1], [0], [0], [1], [0, 0, 1, 1], [], []>} : vector<61x24xf32>, vector<24x24xf32>, vector<61x24xf32> -> vector<61x24xf32>
    %331 = vector.extract_strided_slice %0 {offsets = [15, 0], sizes = [1, 24], strides = [1, 1]} : vector<16x24xf32> to vector<1x24xf32>
    %332 = vector.broadcast %331 : vector<1x24xf32> to vector<61x24xf32>
    %333 = arith.addf %330, %332 : vector<61x24xf32>
    %cst_84 = arith.constant dense<0.000000e+00> : vector<61x24xf32>
    %334 = tpu.matmul %329, %7, %cst_84 {dimension_numbers = #tpu.dot_dimension_numbers<[1], [0], [0], [1], [0, 0, 1, 1], [], []>} : vector<61x24xf32>, vector<24x24xf32>, vector<61x24xf32> -> vector<61x24xf32>
    %335 = vector.extract_strided_slice %0 {offsets = [15, 0], sizes = [1, 24], strides = [1, 1]} : vector<16x24xf32> to vector<1x24xf32>
    %336 = vector.broadcast %335 : vector<1x24xf32> to vector<61x24xf32>
    %337 = arith.addf %334, %336 : vector<61x24xf32>
    %cst_85 = arith.constant dense<0.000000e+00> : vector<81x24xf32>
    %338 = tpu.matmul %4, %323, %cst_85 {dimension_numbers = #tpu.dot_dimension_numbers<[1], [0], [0], [1], [0, 0, 1, 1], [], []>} : vector<81x61xf32>, vector<61x24xf32>, vector<81x24xf32> -> vector<81x24xf32>
    %339 = vector.extract_strided_slice %338 {offsets = [0, 0], sizes = [61, 24], strides = [1, 1]} : vector<81x24xf32> to vector<61x24xf32>
    %cst_86 = arith.constant dense<0.000000e+00> : vector<61x24xf32>
    %340 = tpu.matmul %339, %11, %cst_86 {dimension_numbers = #tpu.dot_dimension_numbers<[1], [0], [0], [1], [0, 0, 1, 1], [], []>} : vector<61x24xf32>, vector<24x24xf32>, vector<61x24xf32> -> vector<61x24xf32>
    %341 = vector.extract_strided_slice %338 {offsets = [1, 0], sizes = [61, 24], strides = [1, 1]} : vector<81x24xf32> to vector<61x24xf32>
    %cst_87 = arith.constant dense<0.000000e+00> : vector<61x24xf32>
    %342 = tpu.matmul %341, %12, %cst_87 {dimension_numbers = #tpu.dot_dimension_numbers<[1], [0], [0], [1], [0, 0, 1, 1], [], []>} : vector<61x24xf32>, vector<24x24xf32>, vector<61x24xf32> -> vector<61x24xf32>
    %343 = arith.addf %340, %342 : vector<61x24xf32>
    %344 = vector.extract_strided_slice %338 {offsets = [2, 0], sizes = [61, 24], strides = [1, 1]} : vector<81x24xf32> to vector<61x24xf32>
    %cst_88 = arith.constant dense<0.000000e+00> : vector<61x24xf32>
    %345 = tpu.matmul %344, %13, %cst_88 {dimension_numbers = #tpu.dot_dimension_numbers<[1], [0], [0], [1], [0, 0, 1, 1], [], []>} : vector<61x24xf32>, vector<24x24xf32>, vector<61x24xf32> -> vector<61x24xf32>
    %346 = arith.addf %343, %345 : vector<61x24xf32>
    %347 = vector.extract_strided_slice %338 {offsets = [9, 0], sizes = [61, 24], strides = [1, 1]} : vector<81x24xf32> to vector<61x24xf32>
    %cst_89 = arith.constant dense<0.000000e+00> : vector<61x24xf32>
    %348 = tpu.matmul %347, %14, %cst_89 {dimension_numbers = #tpu.dot_dimension_numbers<[1], [0], [0], [1], [0, 0, 1, 1], [], []>} : vector<61x24xf32>, vector<24x24xf32>, vector<61x24xf32> -> vector<61x24xf32>
    %349 = arith.addf %346, %348 : vector<61x24xf32>
    %350 = vector.extract_strided_slice %338 {offsets = [10, 0], sizes = [61, 24], strides = [1, 1]} : vector<81x24xf32> to vector<61x24xf32>
    %cst_90 = arith.constant dense<0.000000e+00> : vector<61x24xf32>
    %351 = tpu.matmul %350, %15, %cst_90 {dimension_numbers = #tpu.dot_dimension_numbers<[1], [0], [0], [1], [0, 0, 1, 1], [], []>} : vector<61x24xf32>, vector<24x24xf32>, vector<61x24xf32> -> vector<61x24xf32>
    %352 = arith.addf %349, %351 : vector<61x24xf32>
    %353 = vector.extract_strided_slice %338 {offsets = [11, 0], sizes = [61, 24], strides = [1, 1]} : vector<81x24xf32> to vector<61x24xf32>
    %cst_91 = arith.constant dense<0.000000e+00> : vector<61x24xf32>
    %354 = tpu.matmul %353, %16, %cst_91 {dimension_numbers = #tpu.dot_dimension_numbers<[1], [0], [0], [1], [0, 0, 1, 1], [], []>} : vector<61x24xf32>, vector<24x24xf32>, vector<61x24xf32> -> vector<61x24xf32>
    %355 = arith.addf %352, %354 : vector<61x24xf32>
    %356 = vector.extract_strided_slice %338 {offsets = [18, 0], sizes = [61, 24], strides = [1, 1]} : vector<81x24xf32> to vector<61x24xf32>
    %cst_92 = arith.constant dense<0.000000e+00> : vector<61x24xf32>
    %357 = tpu.matmul %356, %17, %cst_92 {dimension_numbers = #tpu.dot_dimension_numbers<[1], [0], [0], [1], [0, 0, 1, 1], [], []>} : vector<61x24xf32>, vector<24x24xf32>, vector<61x24xf32> -> vector<61x24xf32>
    %358 = arith.addf %355, %357 : vector<61x24xf32>
    %359 = vector.extract_strided_slice %338 {offsets = [19, 0], sizes = [61, 24], strides = [1, 1]} : vector<81x24xf32> to vector<61x24xf32>
    %cst_93 = arith.constant dense<0.000000e+00> : vector<61x24xf32>
    %360 = tpu.matmul %359, %18, %cst_93 {dimension_numbers = #tpu.dot_dimension_numbers<[1], [0], [0], [1], [0, 0, 1, 1], [], []>} : vector<61x24xf32>, vector<24x24xf32>, vector<61x24xf32> -> vector<61x24xf32>
    %361 = arith.addf %358, %360 : vector<61x24xf32>
    %362 = vector.extract_strided_slice %338 {offsets = [20, 0], sizes = [61, 24], strides = [1, 1]} : vector<81x24xf32> to vector<61x24xf32>
    %cst_94 = arith.constant dense<0.000000e+00> : vector<61x24xf32>
    %363 = tpu.matmul %362, %19, %cst_94 {dimension_numbers = #tpu.dot_dimension_numbers<[1], [0], [0], [1], [0, 0, 1, 1], [], []>} : vector<61x24xf32>, vector<24x24xf32>, vector<61x24xf32> -> vector<61x24xf32>
    %364 = arith.addf %361, %363 : vector<61x24xf32>
    %365 = vector.extract_strided_slice %0 {offsets = [13, 0], sizes = [1, 24], strides = [1, 1]} : vector<16x24xf32> to vector<1x24xf32>
    %366 = vector.broadcast %365 : vector<1x24xf32> to vector<61x24xf32>
    %367 = arith.addf %364, %366 : vector<61x24xf32>
    %cst_95 = arith.constant dense<0.000000e+00> : vector<81x24xf32>
    %368 = tpu.matmul %4, %329, %cst_95 {dimension_numbers = #tpu.dot_dimension_numbers<[1], [0], [0], [1], [0, 0, 1, 1], [], []>} : vector<81x61xf32>, vector<61x24xf32>, vector<81x24xf32> -> vector<81x24xf32>
    %369 = vector.extract_strided_slice %368 {offsets = [0, 0], sizes = [61, 24], strides = [1, 1]} : vector<81x24xf32> to vector<61x24xf32>
    %cst_96 = arith.constant dense<0.000000e+00> : vector<61x24xf32>
    %370 = tpu.matmul %369, %11, %cst_96 {dimension_numbers = #tpu.dot_dimension_numbers<[1], [0], [0], [1], [0, 0, 1, 1], [], []>} : vector<61x24xf32>, vector<24x24xf32>, vector<61x24xf32> -> vector<61x24xf32>
    %371 = vector.extract_strided_slice %368 {offsets = [1, 0], sizes = [61, 24], strides = [1, 1]} : vector<81x24xf32> to vector<61x24xf32>
    %cst_97 = arith.constant dense<0.000000e+00> : vector<61x24xf32>
    %372 = tpu.matmul %371, %12, %cst_97 {dimension_numbers = #tpu.dot_dimension_numbers<[1], [0], [0], [1], [0, 0, 1, 1], [], []>} : vector<61x24xf32>, vector<24x24xf32>, vector<61x24xf32> -> vector<61x24xf32>
    %373 = arith.addf %370, %372 : vector<61x24xf32>
    %374 = vector.extract_strided_slice %368 {offsets = [2, 0], sizes = [61, 24], strides = [1, 1]} : vector<81x24xf32> to vector<61x24xf32>
    %cst_98 = arith.constant dense<0.000000e+00> : vector<61x24xf32>
    %375 = tpu.matmul %374, %13, %cst_98 {dimension_numbers = #tpu.dot_dimension_numbers<[1], [0], [0], [1], [0, 0, 1, 1], [], []>} : vector<61x24xf32>, vector<24x24xf32>, vector<61x24xf32> -> vector<61x24xf32>
    %376 = arith.addf %373, %375 : vector<61x24xf32>
    %377 = vector.extract_strided_slice %368 {offsets = [9, 0], sizes = [61, 24], strides = [1, 1]} : vector<81x24xf32> to vector<61x24xf32>
    %cst_99 = arith.constant dense<0.000000e+00> : vector<61x24xf32>
    %378 = tpu.matmul %377, %14, %cst_99 {dimension_numbers = #tpu.dot_dimension_numbers<[1], [0], [0], [1], [0, 0, 1, 1], [], []>} : vector<61x24xf32>, vector<24x24xf32>, vector<61x24xf32> -> vector<61x24xf32>
    %379 = arith.addf %376, %378 : vector<61x24xf32>
    %380 = vector.extract_strided_slice %368 {offsets = [10, 0], sizes = [61, 24], strides = [1, 1]} : vector<81x24xf32> to vector<61x24xf32>
    %cst_100 = arith.constant dense<0.000000e+00> : vector<61x24xf32>
    %381 = tpu.matmul %380, %15, %cst_100 {dimension_numbers = #tpu.dot_dimension_numbers<[1], [0], [0], [1], [0, 0, 1, 1], [], []>} : vector<61x24xf32>, vector<24x24xf32>, vector<61x24xf32> -> vector<61x24xf32>
    %382 = arith.addf %379, %381 : vector<61x24xf32>
    %383 = vector.extract_strided_slice %368 {offsets = [11, 0], sizes = [61, 24], strides = [1, 1]} : vector<81x24xf32> to vector<61x24xf32>
    %cst_101 = arith.constant dense<0.000000e+00> : vector<61x24xf32>
    %384 = tpu.matmul %383, %16, %cst_101 {dimension_numbers = #tpu.dot_dimension_numbers<[1], [0], [0], [1], [0, 0, 1, 1], [], []>} : vector<61x24xf32>, vector<24x24xf32>, vector<61x24xf32> -> vector<61x24xf32>
    %385 = arith.addf %382, %384 : vector<61x24xf32>
    %386 = vector.extract_strided_slice %368 {offsets = [18, 0], sizes = [61, 24], strides = [1, 1]} : vector<81x24xf32> to vector<61x24xf32>
    %cst_102 = arith.constant dense<0.000000e+00> : vector<61x24xf32>
    %387 = tpu.matmul %386, %17, %cst_102 {dimension_numbers = #tpu.dot_dimension_numbers<[1], [0], [0], [1], [0, 0, 1, 1], [], []>} : vector<61x24xf32>, vector<24x24xf32>, vector<61x24xf32> -> vector<61x24xf32>
    %388 = arith.addf %385, %387 : vector<61x24xf32>
    %389 = vector.extract_strided_slice %368 {offsets = [19, 0], sizes = [61, 24], strides = [1, 1]} : vector<81x24xf32> to vector<61x24xf32>
    %cst_103 = arith.constant dense<0.000000e+00> : vector<61x24xf32>
    %390 = tpu.matmul %389, %18, %cst_103 {dimension_numbers = #tpu.dot_dimension_numbers<[1], [0], [0], [1], [0, 0, 1, 1], [], []>} : vector<61x24xf32>, vector<24x24xf32>, vector<61x24xf32> -> vector<61x24xf32>
    %391 = arith.addf %388, %390 : vector<61x24xf32>
    %392 = vector.extract_strided_slice %368 {offsets = [20, 0], sizes = [61, 24], strides = [1, 1]} : vector<81x24xf32> to vector<61x24xf32>
    %cst_104 = arith.constant dense<0.000000e+00> : vector<61x24xf32>
    %393 = tpu.matmul %392, %19, %cst_104 {dimension_numbers = #tpu.dot_dimension_numbers<[1], [0], [0], [1], [0, 0, 1, 1], [], []>} : vector<61x24xf32>, vector<24x24xf32>, vector<61x24xf32> -> vector<61x24xf32>
    %394 = arith.addf %391, %393 : vector<61x24xf32>
    %395 = vector.extract_strided_slice %0 {offsets = [13, 0], sizes = [1, 24], strides = [1, 1]} : vector<16x24xf32> to vector<1x24xf32>
    %396 = vector.broadcast %395 : vector<1x24xf32> to vector<61x24xf32>
    %397 = arith.addf %394, %396 : vector<61x24xf32>
    %398 = vector.extract_strided_slice %0 {offsets = [8, 0], sizes = [1, 24], strides = [1, 1]} : vector<16x24xf32> to vector<1x24xf32>
    %399 = vector.extract_strided_slice %0 {offsets = [9, 0], sizes = [1, 24], strides = [1, 1]} : vector<16x24xf32> to vector<1x24xf32>
    %cst_105 = arith.constant 0.000000e+00 : f32
    %400 = vector.broadcast %cst_105 : f32 to vector<1x24xf32>
    %cst_106 = arith.constant 0.000000e+00 : f32
    %401 = vector.broadcast %cst_106 : f32 to vector<1x24xf32>
    %402 = vector.broadcast %251 : vector<61x1xf32> to vector<61x24xf32>
    %403 = arith.mulf %367, %402 : vector<61x24xf32>
    %cst_107 = arith.constant dense<0.000000e+00> : vector<24xf32>
    %404 = vector.multi_reduction <add>, %403, %cst_107 [0] : vector<61x24xf32> to vector<24xf32>
    %405 = vector.shape_cast %404 : vector<24xf32> to vector<1x24xf32>
    %406 = arith.addf %400, %405 : vector<1x24xf32>
    %407 = arith.mulf %403, %367 : vector<61x24xf32>
    %cst_108 = arith.constant dense<0.000000e+00> : vector<24xf32>
    %408 = vector.multi_reduction <add>, %407, %cst_108 [0] : vector<61x24xf32> to vector<24xf32>
    %409 = vector.shape_cast %408 : vector<24xf32> to vector<1x24xf32>
    %410 = arith.addf %401, %409 : vector<1x24xf32>
    %411 = vector.broadcast %251 : vector<61x1xf32> to vector<61x24xf32>
    %412 = arith.mulf %397, %411 : vector<61x24xf32>
    %cst_109 = arith.constant dense<0.000000e+00> : vector<24xf32>
    %413 = vector.multi_reduction <add>, %412, %cst_109 [0] : vector<61x24xf32> to vector<24xf32>
    %414 = vector.shape_cast %413 : vector<24xf32> to vector<1x24xf32>
    %415 = arith.addf %406, %414 : vector<1x24xf32>
    %416 = arith.mulf %412, %397 : vector<61x24xf32>
    %cst_110 = arith.constant dense<0.000000e+00> : vector<24xf32>
    %417 = vector.multi_reduction <add>, %416, %cst_110 [0] : vector<61x24xf32> to vector<24xf32>
    %418 = vector.shape_cast %417 : vector<24xf32> to vector<1x24xf32>
    %419 = arith.addf %410, %418 : vector<1x24xf32>
    %cst_111 = arith.constant 9.800000e+01 : f32
    %420 = vector.broadcast %cst_111 : f32 to vector<1x24xf32>
    %421 = arith.divf %415, %420 : vector<1x24xf32>
    %cst_112 = arith.constant 9.800000e+01 : f32
    %422 = vector.broadcast %cst_112 : f32 to vector<1x24xf32>
    %423 = arith.divf %419, %422 : vector<1x24xf32>
    %424 = arith.mulf %421, %421 : vector<1x24xf32>
    %425 = arith.subf %423, %424 : vector<1x24xf32>
    %cst_113 = arith.constant 0.000000e+00 : f32
    %426 = vector.broadcast %cst_113 : f32 to vector<1x24xf32>
    %427 = arith.maximumf %425, %426 : vector<1x24xf32>
    %cst_114 = arith.constant 9.99999974E-6 : f32
    %428 = vector.broadcast %cst_114 : f32 to vector<1x24xf32>
    %429 = arith.addf %427, %428 : vector<1x24xf32>
    %430 = math.rsqrt %429 : vector<1x24xf32>
    %431 = arith.mulf %398, %430 : vector<1x24xf32>
    %432 = arith.mulf %421, %431 : vector<1x24xf32>
    %433 = arith.subf %399, %432 : vector<1x24xf32>
    %434 = vector.broadcast %431 : vector<1x24xf32> to vector<61x24xf32>
    %435 = arith.mulf %367, %434 : vector<61x24xf32>
    %436 = vector.broadcast %433 : vector<1x24xf32> to vector<61x24xf32>
    %437 = arith.addf %435, %436 : vector<61x24xf32>
    %cst_115 = arith.constant 0.000000e+00 : f32
    %438 = vector.broadcast %cst_115 : f32 to vector<61x24xf32>
    %439 = arith.maximumf %437, %438 : vector<61x24xf32>
    %440 = vector.broadcast %431 : vector<1x24xf32> to vector<61x24xf32>
    %441 = arith.mulf %397, %440 : vector<61x24xf32>
    %442 = vector.broadcast %433 : vector<1x24xf32> to vector<61x24xf32>
    %443 = arith.addf %441, %442 : vector<61x24xf32>
    %cst_116 = arith.constant 0.000000e+00 : f32
    %444 = vector.broadcast %cst_116 : f32 to vector<61x24xf32>
    %445 = arith.maximumf %443, %444 : vector<61x24xf32>
    %cst_117 = arith.constant dense<0.000000e+00> : vector<81x24xf32>
    %446 = tpu.matmul %4, %439, %cst_117 {dimension_numbers = #tpu.dot_dimension_numbers<[1], [0], [0], [1], [0, 0, 1, 1], [], []>} : vector<81x61xf32>, vector<61x24xf32>, vector<81x24xf32> -> vector<81x24xf32>
    %447 = vector.extract_strided_slice %446 {offsets = [0, 0], sizes = [61, 24], strides = [1, 1]} : vector<81x24xf32> to vector<61x24xf32>
    %cst_118 = arith.constant dense<0.000000e+00> : vector<61x24xf32>
    %448 = tpu.matmul %447, %20, %cst_118 {dimension_numbers = #tpu.dot_dimension_numbers<[1], [0], [0], [1], [0, 0, 1, 1], [], []>} : vector<61x24xf32>, vector<24x24xf32>, vector<61x24xf32> -> vector<61x24xf32>
    %449 = vector.extract_strided_slice %446 {offsets = [1, 0], sizes = [61, 24], strides = [1, 1]} : vector<81x24xf32> to vector<61x24xf32>
    %cst_119 = arith.constant dense<0.000000e+00> : vector<61x24xf32>
    %450 = tpu.matmul %449, %21, %cst_119 {dimension_numbers = #tpu.dot_dimension_numbers<[1], [0], [0], [1], [0, 0, 1, 1], [], []>} : vector<61x24xf32>, vector<24x24xf32>, vector<61x24xf32> -> vector<61x24xf32>
    %451 = arith.addf %448, %450 : vector<61x24xf32>
    %452 = vector.extract_strided_slice %446 {offsets = [2, 0], sizes = [61, 24], strides = [1, 1]} : vector<81x24xf32> to vector<61x24xf32>
    %cst_120 = arith.constant dense<0.000000e+00> : vector<61x24xf32>
    %453 = tpu.matmul %452, %22, %cst_120 {dimension_numbers = #tpu.dot_dimension_numbers<[1], [0], [0], [1], [0, 0, 1, 1], [], []>} : vector<61x24xf32>, vector<24x24xf32>, vector<61x24xf32> -> vector<61x24xf32>
    %454 = arith.addf %451, %453 : vector<61x24xf32>
    %455 = vector.extract_strided_slice %446 {offsets = [9, 0], sizes = [61, 24], strides = [1, 1]} : vector<81x24xf32> to vector<61x24xf32>
    %cst_121 = arith.constant dense<0.000000e+00> : vector<61x24xf32>
    %456 = tpu.matmul %455, %23, %cst_121 {dimension_numbers = #tpu.dot_dimension_numbers<[1], [0], [0], [1], [0, 0, 1, 1], [], []>} : vector<61x24xf32>, vector<24x24xf32>, vector<61x24xf32> -> vector<61x24xf32>
    %457 = arith.addf %454, %456 : vector<61x24xf32>
    %458 = vector.extract_strided_slice %446 {offsets = [10, 0], sizes = [61, 24], strides = [1, 1]} : vector<81x24xf32> to vector<61x24xf32>
    %cst_122 = arith.constant dense<0.000000e+00> : vector<61x24xf32>
    %459 = tpu.matmul %458, %24, %cst_122 {dimension_numbers = #tpu.dot_dimension_numbers<[1], [0], [0], [1], [0, 0, 1, 1], [], []>} : vector<61x24xf32>, vector<24x24xf32>, vector<61x24xf32> -> vector<61x24xf32>
    %460 = arith.addf %457, %459 : vector<61x24xf32>
    %461 = vector.extract_strided_slice %446 {offsets = [11, 0], sizes = [61, 24], strides = [1, 1]} : vector<81x24xf32> to vector<61x24xf32>
    %cst_123 = arith.constant dense<0.000000e+00> : vector<61x24xf32>
    %462 = tpu.matmul %461, %25, %cst_123 {dimension_numbers = #tpu.dot_dimension_numbers<[1], [0], [0], [1], [0, 0, 1, 1], [], []>} : vector<61x24xf32>, vector<24x24xf32>, vector<61x24xf32> -> vector<61x24xf32>
    %463 = arith.addf %460, %462 : vector<61x24xf32>
    %464 = vector.extract_strided_slice %446 {offsets = [18, 0], sizes = [61, 24], strides = [1, 1]} : vector<81x24xf32> to vector<61x24xf32>
    %cst_124 = arith.constant dense<0.000000e+00> : vector<61x24xf32>
    %465 = tpu.matmul %464, %26, %cst_124 {dimension_numbers = #tpu.dot_dimension_numbers<[1], [0], [0], [1], [0, 0, 1, 1], [], []>} : vector<61x24xf32>, vector<24x24xf32>, vector<61x24xf32> -> vector<61x24xf32>
    %466 = arith.addf %463, %465 : vector<61x24xf32>
    %467 = vector.extract_strided_slice %446 {offsets = [19, 0], sizes = [61, 24], strides = [1, 1]} : vector<81x24xf32> to vector<61x24xf32>
    %cst_125 = arith.constant dense<0.000000e+00> : vector<61x24xf32>
    %468 = tpu.matmul %467, %27, %cst_125 {dimension_numbers = #tpu.dot_dimension_numbers<[1], [0], [0], [1], [0, 0, 1, 1], [], []>} : vector<61x24xf32>, vector<24x24xf32>, vector<61x24xf32> -> vector<61x24xf32>
    %469 = arith.addf %466, %468 : vector<61x24xf32>
    %470 = vector.extract_strided_slice %446 {offsets = [20, 0], sizes = [61, 24], strides = [1, 1]} : vector<81x24xf32> to vector<61x24xf32>
    %cst_126 = arith.constant dense<0.000000e+00> : vector<61x24xf32>
    %471 = tpu.matmul %470, %28, %cst_126 {dimension_numbers = #tpu.dot_dimension_numbers<[1], [0], [0], [1], [0, 0, 1, 1], [], []>} : vector<61x24xf32>, vector<24x24xf32>, vector<61x24xf32> -> vector<61x24xf32>
    %472 = arith.addf %469, %471 : vector<61x24xf32>
    %473 = vector.extract_strided_slice %0 {offsets = [14, 0], sizes = [1, 24], strides = [1, 1]} : vector<16x24xf32> to vector<1x24xf32>
    %474 = vector.broadcast %473 : vector<1x24xf32> to vector<61x24xf32>
    %475 = arith.addf %472, %474 : vector<61x24xf32>
    %476 = arith.addf %475, %333 : vector<61x24xf32>
    %cst_127 = arith.constant dense<0.000000e+00> : vector<81x24xf32>
    %477 = tpu.matmul %4, %445, %cst_127 {dimension_numbers = #tpu.dot_dimension_numbers<[1], [0], [0], [1], [0, 0, 1, 1], [], []>} : vector<81x61xf32>, vector<61x24xf32>, vector<81x24xf32> -> vector<81x24xf32>
    %478 = vector.extract_strided_slice %477 {offsets = [0, 0], sizes = [61, 24], strides = [1, 1]} : vector<81x24xf32> to vector<61x24xf32>
    %cst_128 = arith.constant dense<0.000000e+00> : vector<61x24xf32>
    %479 = tpu.matmul %478, %20, %cst_128 {dimension_numbers = #tpu.dot_dimension_numbers<[1], [0], [0], [1], [0, 0, 1, 1], [], []>} : vector<61x24xf32>, vector<24x24xf32>, vector<61x24xf32> -> vector<61x24xf32>
    %480 = vector.extract_strided_slice %477 {offsets = [1, 0], sizes = [61, 24], strides = [1, 1]} : vector<81x24xf32> to vector<61x24xf32>
    %cst_129 = arith.constant dense<0.000000e+00> : vector<61x24xf32>
    %481 = tpu.matmul %480, %21, %cst_129 {dimension_numbers = #tpu.dot_dimension_numbers<[1], [0], [0], [1], [0, 0, 1, 1], [], []>} : vector<61x24xf32>, vector<24x24xf32>, vector<61x24xf32> -> vector<61x24xf32>
    %482 = arith.addf %479, %481 : vector<61x24xf32>
    %483 = vector.extract_strided_slice %477 {offsets = [2, 0], sizes = [61, 24], strides = [1, 1]} : vector<81x24xf32> to vector<61x24xf32>
    %cst_130 = arith.constant dense<0.000000e+00> : vector<61x24xf32>
    %484 = tpu.matmul %483, %22, %cst_130 {dimension_numbers = #tpu.dot_dimension_numbers<[1], [0], [0], [1], [0, 0, 1, 1], [], []>} : vector<61x24xf32>, vector<24x24xf32>, vector<61x24xf32> -> vector<61x24xf32>
    %485 = arith.addf %482, %484 : vector<61x24xf32>
    %486 = vector.extract_strided_slice %477 {offsets = [9, 0], sizes = [61, 24], strides = [1, 1]} : vector<81x24xf32> to vector<61x24xf32>
    %cst_131 = arith.constant dense<0.000000e+00> : vector<61x24xf32>
    %487 = tpu.matmul %486, %23, %cst_131 {dimension_numbers = #tpu.dot_dimension_numbers<[1], [0], [0], [1], [0, 0, 1, 1], [], []>} : vector<61x24xf32>, vector<24x24xf32>, vector<61x24xf32> -> vector<61x24xf32>
    %488 = arith.addf %485, %487 : vector<61x24xf32>
    %489 = vector.extract_strided_slice %477 {offsets = [10, 0], sizes = [61, 24], strides = [1, 1]} : vector<81x24xf32> to vector<61x24xf32>
    %cst_132 = arith.constant dense<0.000000e+00> : vector<61x24xf32>
    %490 = tpu.matmul %489, %24, %cst_132 {dimension_numbers = #tpu.dot_dimension_numbers<[1], [0], [0], [1], [0, 0, 1, 1], [], []>} : vector<61x24xf32>, vector<24x24xf32>, vector<61x24xf32> -> vector<61x24xf32>
    %491 = arith.addf %488, %490 : vector<61x24xf32>
    %492 = vector.extract_strided_slice %477 {offsets = [11, 0], sizes = [61, 24], strides = [1, 1]} : vector<81x24xf32> to vector<61x24xf32>
    %cst_133 = arith.constant dense<0.000000e+00> : vector<61x24xf32>
    %493 = tpu.matmul %492, %25, %cst_133 {dimension_numbers = #tpu.dot_dimension_numbers<[1], [0], [0], [1], [0, 0, 1, 1], [], []>} : vector<61x24xf32>, vector<24x24xf32>, vector<61x24xf32> -> vector<61x24xf32>
    %494 = arith.addf %491, %493 : vector<61x24xf32>
    %495 = vector.extract_strided_slice %477 {offsets = [18, 0], sizes = [61, 24], strides = [1, 1]} : vector<81x24xf32> to vector<61x24xf32>
    %cst_134 = arith.constant dense<0.000000e+00> : vector<61x24xf32>
    %496 = tpu.matmul %495, %26, %cst_134 {dimension_numbers = #tpu.dot_dimension_numbers<[1], [0], [0], [1], [0, 0, 1, 1], [], []>} : vector<61x24xf32>, vector<24x24xf32>, vector<61x24xf32> -> vector<61x24xf32>
    %497 = arith.addf %494, %496 : vector<61x24xf32>
    %498 = vector.extract_strided_slice %477 {offsets = [19, 0], sizes = [61, 24], strides = [1, 1]} : vector<81x24xf32> to vector<61x24xf32>
    %cst_135 = arith.constant dense<0.000000e+00> : vector<61x24xf32>
    %499 = tpu.matmul %498, %27, %cst_135 {dimension_numbers = #tpu.dot_dimension_numbers<[1], [0], [0], [1], [0, 0, 1, 1], [], []>} : vector<61x24xf32>, vector<24x24xf32>, vector<61x24xf32> -> vector<61x24xf32>
    %500 = arith.addf %497, %499 : vector<61x24xf32>
    %501 = vector.extract_strided_slice %477 {offsets = [20, 0], sizes = [61, 24], strides = [1, 1]} : vector<81x24xf32> to vector<61x24xf32>
    %cst_136 = arith.constant dense<0.000000e+00> : vector<61x24xf32>
    %502 = tpu.matmul %501, %28, %cst_136 {dimension_numbers = #tpu.dot_dimension_numbers<[1], [0], [0], [1], [0, 0, 1, 1], [], []>} : vector<61x24xf32>, vector<24x24xf32>, vector<61x24xf32> -> vector<61x24xf32>
    %503 = arith.addf %500, %502 : vector<61x24xf32>
    %504 = vector.extract_strided_slice %0 {offsets = [14, 0], sizes = [1, 24], strides = [1, 1]} : vector<16x24xf32> to vector<1x24xf32>
    %505 = vector.broadcast %504 : vector<1x24xf32> to vector<61x24xf32>
    %506 = arith.addf %503, %505 : vector<61x24xf32>
    %507 = arith.addf %506, %337 : vector<61x24xf32>
    %508 = vector.extract_strided_slice %0 {offsets = [10, 0], sizes = [1, 24], strides = [1, 1]} : vector<16x24xf32> to vector<1x24xf32>
    %509 = vector.extract_strided_slice %0 {offsets = [11, 0], sizes = [1, 24], strides = [1, 1]} : vector<16x24xf32> to vector<1x24xf32>
    %cst_137 = arith.constant 0.000000e+00 : f32
    %510 = vector.broadcast %cst_137 : f32 to vector<1x24xf32>
    %cst_138 = arith.constant 0.000000e+00 : f32
    %511 = vector.broadcast %cst_138 : f32 to vector<1x24xf32>
    %512 = vector.broadcast %251 : vector<61x1xf32> to vector<61x24xf32>
    %513 = arith.mulf %476, %512 : vector<61x24xf32>
    %cst_139 = arith.constant dense<0.000000e+00> : vector<24xf32>
    %514 = vector.multi_reduction <add>, %513, %cst_139 [0] : vector<61x24xf32> to vector<24xf32>
    %515 = vector.shape_cast %514 : vector<24xf32> to vector<1x24xf32>
    %516 = arith.addf %510, %515 : vector<1x24xf32>
    %517 = arith.mulf %513, %476 : vector<61x24xf32>
    %cst_140 = arith.constant dense<0.000000e+00> : vector<24xf32>
    %518 = vector.multi_reduction <add>, %517, %cst_140 [0] : vector<61x24xf32> to vector<24xf32>
    %519 = vector.shape_cast %518 : vector<24xf32> to vector<1x24xf32>
    %520 = arith.addf %511, %519 : vector<1x24xf32>
    %521 = vector.broadcast %251 : vector<61x1xf32> to vector<61x24xf32>
    %522 = arith.mulf %507, %521 : vector<61x24xf32>
    %cst_141 = arith.constant dense<0.000000e+00> : vector<24xf32>
    %523 = vector.multi_reduction <add>, %522, %cst_141 [0] : vector<61x24xf32> to vector<24xf32>
    %524 = vector.shape_cast %523 : vector<24xf32> to vector<1x24xf32>
    %525 = arith.addf %516, %524 : vector<1x24xf32>
    %526 = arith.mulf %522, %507 : vector<61x24xf32>
    %cst_142 = arith.constant dense<0.000000e+00> : vector<24xf32>
    %527 = vector.multi_reduction <add>, %526, %cst_142 [0] : vector<61x24xf32> to vector<24xf32>
    %528 = vector.shape_cast %527 : vector<24xf32> to vector<1x24xf32>
    %529 = arith.addf %520, %528 : vector<1x24xf32>
    %cst_143 = arith.constant 9.800000e+01 : f32
    %530 = vector.broadcast %cst_143 : f32 to vector<1x24xf32>
    %531 = arith.divf %525, %530 : vector<1x24xf32>
    %cst_144 = arith.constant 9.800000e+01 : f32
    %532 = vector.broadcast %cst_144 : f32 to vector<1x24xf32>
    %533 = arith.divf %529, %532 : vector<1x24xf32>
    %534 = arith.mulf %531, %531 : vector<1x24xf32>
    %535 = arith.subf %533, %534 : vector<1x24xf32>
    %cst_145 = arith.constant 0.000000e+00 : f32
    %536 = vector.broadcast %cst_145 : f32 to vector<1x24xf32>
    %537 = arith.maximumf %535, %536 : vector<1x24xf32>
    %cst_146 = arith.constant 9.99999974E-6 : f32
    %538 = vector.broadcast %cst_146 : f32 to vector<1x24xf32>
    %539 = arith.addf %537, %538 : vector<1x24xf32>
    %540 = math.rsqrt %539 : vector<1x24xf32>
    %541 = arith.mulf %508, %540 : vector<1x24xf32>
    %542 = arith.mulf %531, %541 : vector<1x24xf32>
    %543 = arith.subf %509, %542 : vector<1x24xf32>
    %544 = vector.broadcast %541 : vector<1x24xf32> to vector<61x24xf32>
    %545 = arith.mulf %476, %544 : vector<61x24xf32>
    %546 = vector.broadcast %543 : vector<1x24xf32> to vector<61x24xf32>
    %547 = arith.addf %545, %546 : vector<61x24xf32>
    %cst_147 = arith.constant 0.000000e+00 : f32
    %548 = vector.broadcast %cst_147 : f32 to vector<61x24xf32>
    %549 = arith.maximumf %547, %548 : vector<61x24xf32>
    %550 = vector.broadcast %541 : vector<1x24xf32> to vector<61x24xf32>
    %551 = arith.mulf %507, %550 : vector<61x24xf32>
    %552 = vector.broadcast %543 : vector<1x24xf32> to vector<61x24xf32>
    %553 = arith.addf %551, %552 : vector<61x24xf32>
    %cst_148 = arith.constant 0.000000e+00 : f32
    %554 = vector.broadcast %cst_148 : f32 to vector<61x24xf32>
    %555 = arith.maximumf %553, %554 : vector<61x24xf32>
    %556 = vector.broadcast %251 : vector<61x1xf32> to vector<61x24xf32>
    %557 = arith.mulf %549, %556 : vector<61x24xf32>
    %cst_149 = arith.constant dense<0.000000e+00> : vector<24xf32>
    %558 = vector.multi_reduction <add>, %557, %cst_149 [0] : vector<61x24xf32> to vector<24xf32>
    %559 = vector.shape_cast %558 : vector<24xf32> to vector<1x24xf32>
    %cst_150 = arith.constant 0.0204081628 : f32
    %560 = vector.broadcast %cst_150 : f32 to vector<1x24xf32>
    %561 = arith.mulf %559, %560 : vector<1x24xf32>
    %cst_151 = arith.constant dense<0.000000e+00> : vector<1x5xf32>
    %562 = tpu.matmul %561, %6, %cst_151 {dimension_numbers = #tpu.dot_dimension_numbers<[1], [0], [0], [1], [0, 0, 1, 1], [], []>} : vector<1x24xf32>, vector<24x5xf32>, vector<1x5xf32> -> vector<1x5xf32>
    %563 = arith.addf %562, %5 : vector<1x5xf32>
    %c0_152 = arith.constant 0 : index
    %c0_153 = arith.constant 0 : index
    %564 = vector.load %arg16[%c0_152, %c0_153] : memref<2x5xf32, #tpu.memory_space<vmem>>, vector<1x5xf32>
    tpu.vector_store %arg16[%c0_152, %c0_153], %563 {strides = array<i32>} : memref<2x5xf32, #tpu.memory_space<vmem>>, vector<1x5xf32>,
    %565 = vector.broadcast %251 : vector<61x1xf32> to vector<61x24xf32>
    %566 = arith.mulf %555, %565 : vector<61x24xf32>
    %cst_154 = arith.constant dense<0.000000e+00> : vector<24xf32>
    %567 = vector.multi_reduction <add>, %566, %cst_154 [0] : vector<61x24xf32> to vector<24xf32>
    %568 = vector.shape_cast %567 : vector<24xf32> to vector<1x24xf32>
    %cst_155 = arith.constant 0.0204081628 : f32
    %569 = vector.broadcast %cst_155 : f32 to vector<1x24xf32>
    %570 = arith.mulf %568, %569 : vector<1x24xf32>
    %cst_156 = arith.constant dense<0.000000e+00> : vector<1x5xf32>
    %571 = tpu.matmul %570, %6, %cst_156 {dimension_numbers = #tpu.dot_dimension_numbers<[1], [0], [0], [1], [0, 0, 1, 1], [], []>} : vector<1x24xf32>, vector<24x5xf32>, vector<1x5xf32> -> vector<1x5xf32>
    %572 = arith.addf %571, %5 : vector<1x5xf32>
    %c1 = arith.constant 1 : index
    %c0_157 = arith.constant 0 : index
    %573 = vector.load %arg16[%c1, %c0_157] : memref<2x5xf32, #tpu.memory_space<vmem>>, vector<1x5xf32>
    tpu.vector_store %arg16[%c1, %c0_157], %572 {strides = array<i32>} : memref<2x5xf32, #tpu.memory_space<vmem>>, vector<1x5xf32>,
    return
  }
}

</mosaic_0001>

<llo_original>
// kernel: ssrn_forward.1
$region0: #{ssrn_forward.1}
  #allocation0 [shape = 'u32[]', space=smem, size = 0x4, offset = 0x4, fixed_abs, tag = 'smem constant byte address 0x4 - core index']
  #allocation1 [shape = 'u32[144,128]{1,0:T(1,128)}', space=vmem, size = 0x12000, scoped, tag = 'internal scratch']
  %s0 = inlined_call_operand.vmem [shape: f32[162,16], index: 0, kind: input, shape index: {}]
  %s1 = inlined_call_operand.vmem [shape: f32[16,120], index: 1, kind: input, shape index: {}]
  %s2 = inlined_call_operand.vmem [shape: f32[120,120], index: 2, kind: input, shape index: {}]
  %s3 = inlined_call_operand.vmem [shape: f32[120,120], index: 3, kind: input, shape index: {}]
  %s4 = inlined_call_operand.vmem [shape: f32[120,128], index: 4, kind: input, shape index: {}]
  %s5 = inlined_call_operand.vmem [shape: f32[1152,24], index: 5, kind: input, shape index: {}]
  %s6 = inlined_call_operand.vmem [shape: f32[216,24], index: 6, kind: input, shape index: {}]
  %s7 = inlined_call_operand.vmem [shape: f32[216,24], index: 7, kind: input, shape index: {}]
  %s8 = inlined_call_operand.vmem [shape: f32[24,24], index: 8, kind: input, shape index: {}]
  %s9 = inlined_call_operand.vmem [shape: f32[24,5], index: 9, kind: input, shape index: {}]
  %s10 = inlined_call_operand.vmem [shape: f32[81,61], index: 10, kind: input, shape index: {}]
  %s11 = inlined_call_operand.vmem [shape: f32[24,120], index: 11, kind: input, shape index: {}]
  %s12 = inlined_call_operand.vmem [shape: f32[3,120], index: 12, kind: input, shape index: {}]
  %s13 = inlined_call_operand.vmem [shape: f32[16,24], index: 13, kind: input, shape index: {}]
  %s14 = inlined_call_operand.vmem [shape: f32[3,128], index: 14, kind: input, shape index: {}]
  %s15 = inlined_call_operand.vmem [shape: f32[1,5], index: 15, kind: input, shape index: {}]
  %s16 = inlined_call_operand.hbm [shape: f32[2,5], index: 16, kind: output, shape index: {}]
  %s17 = sld [smem:[#allocation0]]
  $region74: #{ssrn_forward.1} parent=0
    _
  %s19 = ssub.s32 1, %s17
  %s20 = scalar_select 0, %s19, %s17
  $region1: #{ssrn_forward.1} parent=0
    #allocation2 [shape = 'u8[1024]{0}', space=vmem, size = 0x400, scoped, tag = 'output window, operand 0, single buffered']
    #allocation3 [shape = 's32[1]{0}', space=sflag, size = 0x4, scoped, tag = 'scoped memory for ssrn_forward.1']
    %21 = vsyncpa [#allocation3], 0
    // Predicated region
    $region2: #{ssrn_forward.1} parent=1 // pred_check
      _
    $region3: #{ssrn_forward.1} parent=1 // pred_check_branch
      %23 = sbr.rel (0) target = $region5
    $region4: #{ssrn_forward.1} parent=1 // pred_region
      _
    $region5: #{ssrn_forward.1} parent=1 // pred_fallthru
      _
    // Predicated region
    $region6: #{ssrn_forward.1} parent=1 // pred_check
      _
    $region7: #{ssrn_forward.1} parent=1 // pred_check_branch
      %25 = sbr.rel (0) target = $region9
    $region8: #{ssrn_forward.1} parent=1 // pred_region
      _
    $region9: #{ssrn_forward.1} parent=1 // pred_fallthru
      _
    // Predicated region
    $region10: #{ssrn_forward.1} parent=1 // pred_check
      _
    $region11: #{ssrn_forward.1} parent=1 // pred_check_branch
      %27 = sbr.rel (0) target = $region13
    $region12: #{ssrn_forward.1} parent=1 // pred_region
      _
    $region13: #{ssrn_forward.1} parent=1 // pred_fallthru
      _
    // Predicated region
    $region14: #{ssrn_forward.1} parent=1 // pred_check
      _
    $region15: #{ssrn_forward.1} parent=1 // pred_check_branch
      %29 = sbr.rel (0) target = $region17
    $region16: #{ssrn_forward.1} parent=1 // pred_region
      _
    $region17: #{ssrn_forward.1} parent=1 // pred_fallthru
      _
    // Predicated region
    $region18: #{ssrn_forward.1} parent=1 // pred_check
      _
    $region19: #{ssrn_forward.1} parent=1 // pred_check_branch
      %31 = sbr.rel (0) target = $region21
    $region20: #{ssrn_forward.1} parent=1 // pred_region
      _
    $region21: #{ssrn_forward.1} parent=1 // pred_fallthru
      _
    // Predicated region
    $region22: #{ssrn_forward.1} parent=1 // pred_check
      _
    $region23: #{ssrn_forward.1} parent=1 // pred_check_branch
      %33 = sbr.rel (0) target = $region25
    $region24: #{ssrn_forward.1} parent=1 // pred_region
      _
    $region25: #{ssrn_forward.1} parent=1 // pred_fallthru
      _
    // Predicated region
    $region26: #{ssrn_forward.1} parent=1 // pred_check
      _
    $region27: #{ssrn_forward.1} parent=1 // pred_check_branch
      %35 = sbr.rel (0) target = $region29
    $region28: #{ssrn_forward.1} parent=1 // pred_region
      _
    $region29: #{ssrn_forward.1} parent=1 // pred_fallthru
      _
    // Predicated region
    $region30: #{ssrn_forward.1} parent=1 // pred_check
      _
    $region31: #{ssrn_forward.1} parent=1 // pred_check_branch
      %37 = sbr.rel (0) target = $region33
    $region32: #{ssrn_forward.1} parent=1 // pred_region
      _
    $region33: #{ssrn_forward.1} parent=1 // pred_fallthru
      _
    // Predicated region
    $region34: #{ssrn_forward.1} parent=1 // pred_check
      _
    $region35: #{ssrn_forward.1} parent=1 // pred_check_branch
      %39 = sbr.rel (0) target = $region37
    $region36: #{ssrn_forward.1} parent=1 // pred_region
      _
    $region37: #{ssrn_forward.1} parent=1 // pred_fallthru
      _
    // Predicated region
    $region38: #{ssrn_forward.1} parent=1 // pred_check
      _
    $region39: #{ssrn_forward.1} parent=1 // pred_check_branch
      %41 = sbr.rel (0) target = $region41
    $region40: #{ssrn_forward.1} parent=1 // pred_region
      _
    $region41: #{ssrn_forward.1} parent=1 // pred_fallthru
      _
    // Predicated region
    $region42: #{ssrn_forward.1} parent=1 // pred_check
      _
    $region43: #{ssrn_forward.1} parent=1 // pred_check_branch
      %43 = sbr.rel (0) target = $region45
    $region44: #{ssrn_forward.1} parent=1 // pred_region
      _
    $region45: #{ssrn_forward.1} parent=1 // pred_fallthru
      _
    // Predicated region
    $region46: #{ssrn_forward.1} parent=1 // pred_check
      _
    $region47: #{ssrn_forward.1} parent=1 // pred_check_branch
      %45 = sbr.rel (0) target = $region49
    $region48: #{ssrn_forward.1} parent=1 // pred_region
      _
    $region49: #{ssrn_forward.1} parent=1 // pred_fallthru
      _
    // Predicated region
    $region50: #{ssrn_forward.1} parent=1 // pred_check
      _
    $region51: #{ssrn_forward.1} parent=1 // pred_check_branch
      %47 = sbr.rel (0) target = $region53
    $region52: #{ssrn_forward.1} parent=1 // pred_region
      _
    $region53: #{ssrn_forward.1} parent=1 // pred_fallthru
      _
    // Predicated region
    $region54: #{ssrn_forward.1} parent=1 // pred_check
      _
    $region55: #{ssrn_forward.1} parent=1 // pred_check_branch
      %49 = sbr.rel (0) target = $region57
    $region56: #{ssrn_forward.1} parent=1 // pred_region
      _
    $region57: #{ssrn_forward.1} parent=1 // pred_fallthru
      _
    // Predicated region
    $region58: #{ssrn_forward.1} parent=1 // pred_check
      _
    $region59: #{ssrn_forward.1} parent=1 // pred_check_branch
      %51 = sbr.rel (0) target = $region61
    $region60: #{ssrn_forward.1} parent=1 // pred_region
      _
    $region61: #{ssrn_forward.1} parent=1 // pred_fallthru
      _
    // Predicated region
    $region62: #{ssrn_forward.1} parent=1 // pred_check
      _
    $region63: #{ssrn_forward.1} parent=1 // pred_check_branch
      %53 = sbr.rel (0) target = $region65
    $region64: #{ssrn_forward.1} parent=1 // pred_region
      _
    $region65: #{ssrn_forward.1} parent=1 // pred_fallthru
      _
    %v54 = vld [vmem:[%s13] sm:$0xff]
    %v55 = vld [vmem:[%s13 + $0x8] sm:$0xff]
    %v56 = vld [vmem:[%s14] sm:$0x7]
    %v57 = vld [vmem:[%s12] sm:$0x7]
    %v58 = vld [vmem:[%s11] sm:$0xff]
    %v59 = vld [vmem:[%s11 + $0x8] sm:$0xff]
    %v60 = vld [vmem:[%s11 + $0x10] sm:$0xff]
    %v61 = vld [vmem:[%s10] sm:$0xff]
    %v62 = vld [vmem:[%s10 + $0x8] sm:$0xff]
    %v63 = vld [vmem:[%s10 + $0x10] sm:$0xff]
    %v64 = vld [vmem:[%s10 + $0x18] sm:$0xff]
    %v65 = vld [vmem:[%s10 + $0x20] sm:$0xff]
    %v66 = vld [vmem:[%s10 + $0x28] sm:$0xff]
    %v67 = vld [vmem:[%s10 + $0x30] sm:$0xff]
    %v68 = vld [vmem:[%s10 + $0x38] sm:$0xff]
    %v69 = vld [vmem:[%s10 + $0x40] sm:$0xff]
    %v70 = vld [vmem:[%s10 + $0x48] sm:$0xff]
    %v71 = vld [vmem:[%s10 + $0x50] sm:$0x1]
    %v72 = vld [vmem:[%s15] sm:$0x1]
    %v73 = vld [vmem:[%s9] sm:$0xff]
    %v74 = vld [vmem:[%s9 + $0x8] sm:$0xff]
    %v75 = vld [vmem:[%s9 + $0x10] sm:$0xff]
    %v76 = vld [vmem:[%s8] sm:$0xff]
    %v77 = vld [vmem:[%s8 + $0x8] sm:$0xff]
    %v78 = vld [vmem:[%s8 + $0x10] sm:$0xff]
    %v79 = vld [vmem:[%s5] sm:$0xff]
    %v80 = vld [vmem:[%s5 + $0x8] sm:$0xff]
    %v81 = vld [vmem:[%s5 + $0x10] sm:$0xff]
    %v82 = vld [vmem:[%s5 + $0x18] sm:$0xff]
    %v83 = vld [vmem:[%s5 + $0x20] sm:$0xff]
    %v84 = vld [vmem:[%s5 + $0x28] sm:$0xff]
    %v85 = vld [vmem:[%s5 + $0x30] sm:$0xff]
    %v86 = vld [vmem:[%s5 + $0x38] sm:$0xff]
    %v87 = vld [vmem:[%s5 + $0x40] sm:$0xff]
    %v88 = vld [vmem:[%s5 + $0x48] sm:$0xff]
    %v89 = vld [vmem:[%s5 + $0x50] sm:$0xff]
    %v90 = vld [vmem:[%s5 + $0x58] sm:$0xff]
    %v91 = vld [vmem:[%s5 + $0x60] sm:$0xff]
    %v92 = vld [vmem:[%s5 + $0x68] sm:$0xff]
    %v93 = vld [vmem:[%s5 + $0x70] sm:$0xff]
    %v94 = vld [vmem:[%s5 + $0x78] sm:$0xff]
    %v95 = vld [vmem:[%s5 + $0x80] sm:$0xff]
    %v96 = vld [vmem:[%s5 + $0x88] sm:$0xff]
    %v97 = vld [vmem:[%s5 + $0x90] sm:$0xff]
    %v98 = vld [vmem:[%s5 + $0x98] sm:$0xff]
    %v99 = vld [vmem:[%s5 + $0xa0] sm:$0xff]
    %v100 = vld [vmem:[%s5 + $0xa8] sm:$0xff]
    %v101 = vld [vmem:[%s5 + $0xb0] sm:$0xff]
    %v102 = vld [vmem:[%s5 + $0xb8] sm:$0xff]
    %v103 = vld [vmem:[%s5 + $0xc0] sm:$0xff]
    %v104 = vld [vmem:[%s5 + $0xc8] sm:$0xff]
    %v105 = vld [vmem:[%s5 + $0xd0] sm:$0xff]
    %v106 = vld [vmem:[%s5 + $0xd8] sm:$0xff]
    %v107 = vld [vmem:[%s5 + $0xe0] sm:$0xff]
    %v108 = vld [vmem:[%s5 + $0xe8] sm:$0xff]
    %v109 = vld [vmem:[%s5 + $0xf0] sm:$0xff]
    %v110 = vld [vmem:[%s5 + $0xf8] sm:$0xff]
    %v111 = vld [vmem:[%s5 + $0x100] sm:$0xff]
    %v112 = vld [vmem:[%s5 + $0x108] sm:$0xff]
    %v113 = vld [vmem:[%s5 + $0x110] sm:$0xff]
    %v114 = vld [vmem:[%s5 + $0x118] sm:$0xff]
    %v115 = vld [vmem:[%s5 + $0x120] sm:$0xff]
    %v116 = vld [vmem:[%s5 + $0x128] sm:$0xff]
    %v117 = vld [vmem:[%s5 + $0x130] sm:$0xff]
    %v118 = vld [vmem:[%s5 + $0x138] sm:$0xff]
    %v119 = vld [vmem:[%s5 + $0x140] sm:$0xff]
    %v120 = vld [vmem:[%s5 + $0x148] sm:$0xff]
    %v121 = vld [vmem:[%s5 + $0x150] sm:$0xff]
    %v122 = vld [vmem:[%s5 + $0x158] sm:$0xff]
    %v123 = vld [vmem:[%s5 + $0x160] sm:$0xff]
    %v124 = vld [vmem:[%s5 + $0x168] sm:$0xff]
    %v125 = vld [vmem:[%s5 + $0x170] sm:$0xff]
    %v126 = vld [vmem:[%s5 + $0x178] sm:$0xff]
    %v127 = vld [vmem:[%s5 + $0x180] sm:$0xff]
    %v128 = vld [vmem:[%s5 + $0x188] sm:$0xff]
    %v129 = vld [vmem:[%s5 + $0x190] sm:$0xff]
    %v130 = vld [vmem:[%s5 + $0x198] sm:$0xff]
    %v131 = vld [vmem:[%s5 + $0x1a0] sm:$0xff]
    %v132 = vld [vmem:[%s5 + $0x1a8] sm:$0xff]
    %v133 = vld [vmem:[%s5 + $0x1b0] sm:$0xff]
    %v134 = vld [vmem:[%s5 + $0x1b8] sm:$0xff]
    %v135 = vld [vmem:[%s5 + $0x1c0] sm:$0xff]
    %v136 = vld [vmem:[%s5 + $0x1c8] sm:$0xff]
    %v137 = vld [vmem:[%s5 + $0x1d0] sm:$0xff]
    %v138 = vld [vmem:[%s5 + $0x1d8] sm:$0xff]
    %v139 = vld [vmem:[%s5 + $0x1e0] sm:$0xff]
    %v140 = vld [vmem:[%s5 + $0x1e8] sm:$0xff]
    %v141 = vld [vmem:[%s5 + $0x1f0] sm:$0xff]
    %v142 = vld [vmem:[%s5 + $0x1f8] sm:$0xff]
    %v143 = vld [vmem:[%s5 + $0x200] sm:$0xff]
    %v144 = vld [vmem:[%s5 + $0x208] sm:$0xff]
    %v145 = vld [vmem:[%s5 + $0x210] sm:$0xff]
    %v146 = vld [vmem:[%s5 + $0x218] sm:$0xff]
    %v147 = vld [vmem:[%s5 + $0x220] sm:$0xff]
    %v148 = vld [vmem:[%s5 + $0x228] sm:$0xff]
    %v149 = vld [vmem:[%s5 + $0x230] sm:$0xff]
    %v150 = vld [vmem:[%s5 + $0x238] sm:$0xff]
    %v151 = vld [vmem:[%s5 + $0x240] sm:$0xff]
    %v152 = vld [vmem:[%s5 + $0x248] sm:$0xff]
    %v153 = vld [vmem:[%s5 + $0x250] sm:$0xff]
    %v154 = vld [vmem:[%s5 + $0x258] sm:$0xff]
    %v155 = vld [vmem:[%s5 + $0x260] sm:$0xff]
    %v156 = vld [vmem:[%s5 + $0x268] sm:$0xff]
    %v157 = vld [vmem:[%s5 + $0x270] sm:$0xff]
    %v158 = vld [vmem:[%s5 + $0x278] sm:$0xff]
    %v159 = vld [vmem:[%s5 + $0x280] sm:$0xff]
    %v160 = vld [vmem:[%s5 + $0x288] sm:$0xff]
    %v161 = vld [vmem:[%s5 + $0x290] sm:$0xff]
    %v162 = vld [vmem:[%s5 + $0x298] sm:$0xff]
    %v163 = vld [vmem:[%s5 + $0x2a0] sm:$0xff]
    %v164 = vld [vmem:[%s5 + $0x2a8] sm:$0xff]
    %v165 = vld [vmem:[%s5 + $0x2b0] sm:$0xff]
    %v166 = vld [vmem:[%s5 + $0x2b8] sm:$0xff]
    %v167 = vld [vmem:[%s5 + $0x2c0] sm:$0xff]
    %v168 = vld [vmem:[%s5 + $0x2c8] sm:$0xff]
    %v169 = vld [vmem:[%s5 + $0x2d0] sm:$0xff]
    %v170 = vld [vmem:[%s5 + $0x2d8] sm:$0xff]
    %v171 = vld [vmem:[%s5 + $0x2e0] sm:$0xff]
    %v172 = vld [vmem:[%s5 + $0x2e8] sm:$0xff]
    %v173 = vld [vmem:[%s5 + $0x2f0] sm:$0xff]
    %v174 = vld [vmem:[%s5 + $0x2f8] sm:$0xff]
    %v175 = vld [vmem:[%s5 + $0x300] sm:$0xff]
    %v176 = vld [vmem:[%s5 + $0x308] sm:$0xff]
    %v177 = vld [vmem:[%s5 + $0x310] sm:$0xff]
    %v178 = vld [vmem:[%s5 + $0x318] sm:$0xff]
    %v179 = vld [vmem:[%s5 + $0x320] sm:$0xff]
    %v180 = vld [vmem:[%s5 + $0x328] sm:$0xff]
    %v181 = vld [vmem:[%s5 + $0x330] sm:$0xff]
    %v182 = vld [vmem:[%s5 + $0x338] sm:$0xff]
    %v183 = vld [vmem:[%s5 + $0x340] sm:$0xff]
    %v184 = vld [vmem:[%s5 + $0x348] sm:$0xff]
    %v185 = vld [vmem:[%s5 + $0x350] sm:$0xff]
    %v186 = vld [vmem:[%s5 + $0x358] sm:$0xff]
    %v187 = vld [vmem:[%s5 + $0x360] sm:$0xff]
    %v188 = vld [vmem:[%s5 + $0x368] sm:$0xff]
    %v189 = vld [vmem:[%s5 + $0x370] sm:$0xff]
    %v190 = vld [vmem:[%s5 + $0x378] sm:$0xff]
    %v191 = vld [vmem:[%s5 + $0x380] sm:$0xff]
    %v192 = vld [vmem:[%s5 + $0x388] sm:$0xff]
    %v193 = vld [vmem:[%s5 + $0x390] sm:$0xff]
    %v194 = vld [vmem:[%s5 + $0x398] sm:$0xff]
    %v195 = vld [vmem:[%s5 + $0x3a0] sm:$0xff]
    %v196 = vld [vmem:[%s5 + $0x3a8] sm:$0xff]
    %v197 = vld [vmem:[%s5 + $0x3b0] sm:$0xff]
    %v198 = vld [vmem:[%s5 + $0x3b8] sm:$0xff]
    %v199 = vld [vmem:[%s5 + $0x3c0] sm:$0xff]
    %v200 = vld [vmem:[%s5 + $0x3c8] sm:$0xff]
    %v201 = vld [vmem:[%s5 + $0x3d0] sm:$0xff]
    %v202 = vld [vmem:[%s5 + $0x3d8] sm:$0xff]
    %v203 = vld [vmem:[%s5 + $0x3e0] sm:$0xff]
    %v204 = vld [vmem:[%s5 + $0x3e8] sm:$0xff]
    %v205 = vld [vmem:[%s5 + $0x3f0] sm:$0xff]
    %v206 = vld [vmem:[%s5 + $0x3f8] sm:$0xff]
    %v207 = vld [vmem:[%s5 + $0x400] sm:$0xff]
    %v208 = vld [vmem:[%s5 + $0x408] sm:$0xff]
    %v209 = vld [vmem:[%s5 + $0x410] sm:$0xff]
    %v210 = vld [vmem:[%s5 + $0x418] sm:$0xff]
    %v211 = vld [vmem:[%s5 + $0x420] sm:$0xff]
    %v212 = vld [vmem:[%s5 + $0x428] sm:$0xff]
    %v213 = vld [vmem:[%s5 + $0x430] sm:$0xff]
    %v214 = vld [vmem:[%s5 + $0x438] sm:$0xff]
    %v215 = vld [vmem:[%s5 + $0x440] sm:$0xff]
    %v216 = vld [vmem:[%s5 + $0x448] sm:$0xff]
    %v217 = vld [vmem:[%s5 + $0x450] sm:$0xff]
    %v218 = vld [vmem:[%s5 + $0x458] sm:$0xff]
    %v219 = vld [vmem:[%s5 + $0x460] sm:$0xff]
    %v220 = vld [vmem:[%s5 + $0x468] sm:$0xff]
    %v221 = vld [vmem:[%s5 + $0x470] sm:$0xff]
    %v222 = vld [vmem:[%s5 + $0x478] sm:$0xff]
    %v223 = vld [vmem:[%s6] sm:$0xff]
    %v224 = vld [vmem:[%s6 + $0x8] sm:$0xff]
    %v225 = vld [vmem:[%s6 + $0x10] sm:$0xff]
    %v226 = vld [vmem:[%s6 + $0x18] sm:$0xff]
    %v227 = vld [vmem:[%s6 + $0x20] sm:$0xff]
    %v228 = vld [vmem:[%s6 + $0x28] sm:$0xff]
    %v229 = vld [vmem:[%s6 + $0x30] sm:$0xff]
    %v230 = vld [vmem:[%s6 + $0x38] sm:$0xff]
    %v231 = vld [vmem:[%s6 + $0x40] sm:$0xff]
    %v232 = vld [vmem:[%s6 + $0x48] sm:$0xff]
    %v233 = vld [vmem:[%s6 + $0x50] sm:$0xff]
    %v234 = vld [vmem:[%s6 + $0x58] sm:$0xff]
    %v235 = vld [vmem:[%s6 + $0x60] sm:$0xff]
    %v236 = vld [vmem:[%s6 + $0x68] sm:$0xff]
    %v237 = vld [vmem:[%s6 + $0x70] sm:$0xff]
    %v238 = vld [vmem:[%s6 + $0x78] sm:$0xff]
    %v239 = vld [vmem:[%s6 + $0x80] sm:$0xff]
    %v240 = vld [vmem:[%s6 + $0x88] sm:$0xff]
    %v241 = vld [vmem:[%s6 + $0x90] sm:$0xff]
    %v242 = vld [vmem:[%s6 + $0x98] sm:$0xff]
    %v243 = vld [vmem:[%s6 + $0xa0] sm:$0xff]
    %v244 = vld [vmem:[%s6 + $0xa8] sm:$0xff]
    %v245 = vld [vmem:[%s6 + $0xb0] sm:$0xff]
    %v246 = vld [vmem:[%s6 + $0xb8] sm:$0xff]
    %v247 = vld [vmem:[%s6 + $0xc0] sm:$0xff]
    %v248 = vld [vmem:[%s6 + $0xc8] sm:$0xff]
    %v249 = vld [vmem:[%s6 + $0xd0] sm:$0xff]
    %v250 = vld [vmem:[%s7] sm:$0xff]
    %v251 = vld [vmem:[%s7 + $0x8] sm:$0xff]
    %v252 = vld [vmem:[%s7 + $0x10] sm:$0xff]
    %v253 = vld [vmem:[%s7 + $0x18] sm:$0xff]
    %v254 = vld [vmem:[%s7 + $0x20] sm:$0xff]
    %v255 = vld [vmem:[%s7 + $0x28] sm:$0xff]
    %v256 = vld [vmem:[%s7 + $0x30] sm:$0xff]
    %v257 = vld [vmem:[%s7 + $0x38] sm:$0xff]
    %v258 = vld [vmem:[%s7 + $0x40] sm:$0xff]
    %v259 = vld [vmem:[%s7 + $0x48] sm:$0xff]
    %v260 = vld [vmem:[%s7 + $0x50] sm:$0xff]
    %v261 = vld [vmem:[%s7 + $0x58] sm:$0xff]
    %v262 = vld [vmem:[%s7 + $0x60] sm:$0xff]
    %v263 = vld [vmem:[%s7 + $0x68] sm:$0xff]
    %v264 = vld [vmem:[%s7 + $0x70] sm:$0xff]
    %v265 = vld [vmem:[%s7 + $0x78] sm:$0xff]
    %v266 = vld [vmem:[%s7 + $0x80] sm:$0xff]
    %v267 = vld [vmem:[%s7 + $0x88] sm:$0xff]
    %v268 = vld [vmem:[%s7 + $0x90] sm:$0xff]
    %v269 = vld [vmem:[%s7 + $0x98] sm:$0xff]
    %v270 = vld [vmem:[%s7 + $0xa0] sm:$0xff]
    %v271 = vld [vmem:[%s7 + $0xa8] sm:$0xff]
    %v272 = vld [vmem:[%s7 + $0xb0] sm:$0xff]
    %v273 = vld [vmem:[%s7 + $0xb8] sm:$0xff]
    %v274 = vld [vmem:[%s7 + $0xc0] sm:$0xff]
    %v275 = vld [vmem:[%s7 + $0xc8] sm:$0xff]
    %v276 = vld [vmem:[%s7 + $0xd0] sm:$0xff]
    %v277 = vld [vmem:[%s0] sm:$0xff]
    %v278 = vld [vmem:[%s0 + $0x8] sm:$0xff]
    %v279 = vld [vmem:[%s0 + $0x10] sm:$0xff]
    %v280 = vld [vmem:[%s0 + $0x18] sm:$0xff]
    %v281 = vld [vmem:[%s0 + $0x20] sm:$0xff]
    %v282 = vld [vmem:[%s0 + $0x28] sm:$0xff]
    %v283 = vld [vmem:[%s0 + $0x30] sm:$0xff]
    %v284 = vld [vmem:[%s0 + $0x38] sm:$0xff]
    %v285 = vld [vmem:[%s0 + $0x40] sm:$0xff]
    %v286 = vld [vmem:[%s0 + $0x48] sm:$0xff]
    %v287 = vld [vmem:[%s0 + $0x50] sm:$0xff]
    %v288 = vld [vmem:[%s0 + $0x58] sm:$0xff]
    %v289 = vld [vmem:[%s0 + $0x60] sm:$0xff]
    %v290 = vld [vmem:[%s0 + $0x68] sm:$0xff]
    %v291 = vld [vmem:[%s0 + $0x70] sm:$0xff]
    %v292 = vld [vmem:[%s0 + $0x78] sm:$0xff]
    %v293 = vld [vmem:[%s0 + $0x80] sm:$0xff]
    %v294 = vld [vmem:[%s0 + $0x88] sm:$0xff]
    %v295 = vld [vmem:[%s0 + $0x90] sm:$0xff]
    %v296 = vld [vmem:[%s0 + $0x98] sm:$0xff]
    %v297 = vld [vmem:[%s0 + $0xa0] sm:$0x3]
    %v298 = vld [vmem:[%s1] sm:$0xff]
    %v299 = vld [vmem:[%s1 + $0x8] sm:$0xff]
    %v300 = vlaneseq
    %v301 = vshrl.u32 %v300, 7
    %v302 = vsub.s32 0, %v301
    %v303 = vrot.slane %v57, %v302
    %vm304 = vcmask 130048
    %v306 = vsel %vm304, %v277, 0
    %v309 = vsel %vm304, %v278, 0
    %v312 = vsel %vm304, %v279, 0
    %v315 = vsel %vm304, %v280, 0
    %v318 = vsel %vm304, %v281, 0
    %v321 = vsel %vm304, %v282, 0
    %v324 = vsel %vm304, %v283, 0
    %v327 = vsel %vm304, %v284, 0
    %v330 = vsel %vm304, %v285, 0
    %v333 = vsel %vm304, %v286, 0
    %v336 = vsel %vm304, %v287, 0
    %v339 = vsel %vm304, %v288, 0
    %v342 = vsel %vm304, %v289, 0
    %v345 = vsel %vm304, %v290, 0
    %v348 = vsel %vm304, %v291, 0
    %v351 = vsel %vm304, %v292, 0
    %v354 = vsel %vm304, %v293, 0
    %v357 = vsel %vm304, %v294, 0
    %v360 = vsel %vm304, %v295, 0
    %v363 = vsel %vm304, %v296, 0
    %v366 = vsel %vm304, %v297, 0
    %368 = vmatprep.subr.mxu0 0.0
    %369 = vmatpush1.msra.mxu0 0.0
    %370 = vmatprep.subr.mxu0 0.0
    %371 = vmatpush1.msra.mxu0 0.0
    %372 = vmatprep.subr.mxu0 0.0
    %373 = vmatpush1.msra.mxu0 0.0
    %374 = vmatprep.subr.mxu0 0.0
    %375 = vmatpush1.msra.mxu0 0.0
    %376 = vmatprep.subr.mxu0 0.0
    %377 = vmatpush1.msra.mxu0 0.0
    %378 = vmatprep.subr.mxu0 0.0
    %379 = vmatpush1.msra.mxu0 0.0
    %380 = vmatprep.subr.mxu0 0.0
    %381 = vmatpush1.msra.mxu0 0.0
    %382 = vmatprep.subr.mxu0 0.0
    %383 = vmatpush1.msra.mxu0 0.0
    %384 = vmatprep.subr.mxu0 0.0
    %385 = vmatpush1.msra.mxu0 0.0
    %386 = vmatprep.subr.mxu0 0.0
    %387 = vmatpush1.msra.mxu0 0.0
    %388 = vmatprep.subr.mxu0 0.0
    %389 = vmatpush1.msra.mxu0 0.0
    %390 = vmatprep.subr.mxu0 0.0
    %391 = vmatpush1.msra.mxu0 0.0
    %392 = vmatprep.subr.mxu0 0.0
    %393 = vmatpush1.msra.mxu0 0.0
    %394 = vmatprep.subr.mxu0 0.0
    %395 = vmatpush1.msra.mxu0 0.0
    %396 = vmatprep.subr.mxu0 0.0
    %397 = vmatpush1.msra.mxu0 %v299
    %398 = vmatprep.subr.mxu0 0.0
    %399 = vmatpush1.msra.mxu0 %v298
    %400 = vmatprep.subr.mxu0 0.0
    %401 = vmatpush2.msra.mxu0 0.0
    %402 = vmatprep.subr.mxu0 0.0
    %403 = vmatpush2.msra.mxu0 0.0
    %404 = vmatprep.subr.mxu0 0.0
    %405 = vmatpush2.msra.mxu0 0.0
    %406 = vmatprep.subr.mxu0 0.0
    %407 = vmatpush2.msra.mxu0 0.0
    %408 = vmatprep.subr.mxu0 0.0
    %409 = vmatpush2.msra.mxu0 0.0
    %410 = vmatprep.subr.mxu0 0.0
    %411 = vmatpush2.msra.mxu0 0.0
    %412 = vmatprep.subr.mxu0 0.0
    %413 = vmatpush2.msra.mxu0 0.0
    %414 = vmatprep.subr.mxu0 0.0
    %415 = vmatpush2.msra.mxu0 0.0
    %416 = vmatprep.subr.mxu0 0.0
    %417 = vmatpush2.msra.mxu0 0.0
    %418 = vmatprep.subr.mxu0 0.0
    %419 = vmatpush2.msra.mxu0 0.0
    %420 = vmatprep.subr.mxu0 0.0
    %421 = vmatpush2.msra.mxu0 0.0
    %422 = vmatprep.subr.mxu0 0.0
    %423 = vmatpush2.msra.mxu0 0.0
    %424 = vmatprep.subr.mxu0 0.0
    %425 = vmatpush2.msra.mxu0 0.0
    %426 = vmatprep.subr.mxu0 0.0
    %427 = vmatpush2.msra.mxu0 0.0
    %428 = vmatprep.subr.mxu0 0.0
    %429 = vmatpush2.msra.mxu0 0.0
    %430 = vmatprep.subr.mxu0 0.0
    %431 = vmatpush2.msra.mxu0 0.0
    %432 = vmatprep.mubr.f32.mxu0 0.0
    %433 = vmatmul.mubr.f32.gmra.mxu0 %v306
    %v434 = vpop.f32.mrf.mxu0
    %v435 = vadd.f32 %v303, %v434
    %v436 = vpop.f32.mrf.mxu0
    %437 = vmatprep.mubr.f32.mxu0 0.0
    %438 = vmatmul.mubr.f32.gmra.mxu0 %v309
    %v439 = vpop.f32.mrf.mxu0
    %v440 = vadd.f32 %v303, %v439
    %v441 = vpop.f32.mrf.mxu0
    %442 = vmatprep.mubr.f32.mxu0 0.0
    %443 = vmatmul.mubr.f32.gmra.mxu0 %v312
    %v444 = vpop.f32.mrf.mxu0
    %v445 = vadd.f32 %v303, %v444
    %v446 = vpop.f32.mrf.mxu0
    %447 = vmatprep.mubr.f32.mxu0 0.0
    %448 = vmatmul.mubr.f32.gmra.mxu0 %v315
    %v449 = vpop.f32.mrf.mxu0
    %v450 = vadd.f32 %v303, %v449
    %v451 = vpop.f32.mrf.mxu0
    %452 = vmatprep.mubr.f32.mxu0 0.0
    %453 = vmatmul.mubr.f32.gmra.mxu0 %v318
    %v454 = vpop.f32.mrf.mxu0
    %v455 = vadd.f32 %v303, %v454
    %v456 = vpop.f32.mrf.mxu0
    %457 = vmatprep.mubr.f32.mxu0 0.0
    %458 = vmatmul.mubr.f32.gmra.mxu0 %v321
    %v459 = vpop.f32.mrf.mxu0
    %v460 = vadd.f32 %v303, %v459
    %v461 = vpop.f32.mrf.mxu0
    %462 = vmatprep.mubr.f32.mxu0 0.0
    %463 = vmatmul.mubr.f32.gmra.mxu0 %v324
    %v464 = vpop.f32.mrf.mxu0
    %v465 = vadd.f32 %v303, %v464
    %v466 = vpop.f32.mrf.mxu0
    %467 = vmatprep.mubr.f32.mxu0 0.0
    %468 = vmatmul.mubr.f32.gmra.mxu0 %v327
    %v469 = vpop.f32.mrf.mxu0
    %v470 = vadd.f32 %v303, %v469
    %v471 = vpop.f32.mrf.mxu0
    %472 = vmatprep.mubr.f32.mxu0 0.0
    %473 = vmatmul.mubr.f32.gmra.mxu0 %v330
    %v474 = vpop.f32.mrf.mxu0
    %v475 = vadd.f32 %v303, %v474
    %v476 = vpop.f32.mrf.mxu0
    %477 = vmatprep.mubr.f32.mxu0 0.0
    %478 = vmatmul.mubr.f32.gmra.mxu0 %v333
    %v479 = vpop.f32.mrf.mxu0
    %v480 = vadd.f32 %v303, %v479
    %v481 = vpop.f32.mrf.mxu0
    %482 = vmatprep.mubr.f32.mxu0 0.0
    %483 = vmatmul.mubr.f32.gmra.mxu0 %v336
    %v484 = vpop.f32.mrf.mxu0
    %v485 = vadd.f32 %v303, %v484
    %v486 = vpop.f32.mrf.mxu0
    %487 = vmatprep.mubr.f32.mxu0 0.0
    %488 = vmatmul.mubr.f32.gmra.mxu0 %v339
    %v489 = vpop.f32.mrf.mxu0
    %v490 = vadd.f32 %v303, %v489
    %v491 = vpop.f32.mrf.mxu0
    %492 = vmatprep.mubr.f32.mxu0 0.0
    %493 = vmatmul.mubr.f32.gmra.mxu0 %v342
    %v494 = vpop.f32.mrf.mxu0
    %v495 = vadd.f32 %v303, %v494
    %v496 = vpop.f32.mrf.mxu0
    %497 = vmatprep.mubr.f32.mxu0 0.0
    %498 = vmatmul.mubr.f32.gmra.mxu0 %v345
    %v499 = vpop.f32.mrf.mxu0
    %v500 = vadd.f32 %v303, %v499
    %v501 = vpop.f32.mrf.mxu0
    %502 = vmatprep.mubr.f32.mxu0 0.0
    %503 = vmatmul.mubr.f32.gmra.mxu0 %v348
    %v504 = vpop.f32.mrf.mxu0
    %v505 = vadd.f32 %v303, %v504
    %v506 = vpop.f32.mrf.mxu0
    %507 = vmatprep.mubr.f32.mxu0 0.0
    %508 = vmatmul.mubr.f32.gmra.mxu0 %v351
    %v509 = vpop.f32.mrf.mxu0
    %v510 = vadd.f32 %v303, %v509
    %v511 = vpop.f32.mrf.mxu0
    %512 = vmatprep.mubr.f32.mxu0 0.0
    %513 = vmatmul.mubr.f32.gmra.mxu0 %v354
    %v514 = vpop.f32.mrf.mxu0
    %v515 = vadd.f32 %v303, %v514
    %v516 = vpop.f32.mrf.mxu0
    %517 = vmatprep.mubr.f32.mxu0 0.0
    %518 = vmatmul.mubr.f32.gmra.mxu0 %v357
    %v519 = vpop.f32.mrf.mxu0
    %v520 = vadd.f32 %v303, %v519
    %v521 = vpop.f32.mrf.mxu0
    %522 = vmatprep.mubr.f32.mxu0 0.0
    %523 = vmatmul.mubr.f32.gmra.mxu0 %v360
    %v524 = vpop.f32.mrf.mxu0
    %v525 = vadd.f32 %v303, %v524
    %v526 = vpop.f32.mrf.mxu0
    %527 = vmatprep.mubr.f32.mxu0 0.0
    %528 = vmatmul.mubr.f32.gmra.mxu0 %v363
    %v529 = vpop.f32.mrf.mxu0
    %v530 = vadd.f32 %v303, %v529
    %v531 = vpop.f32.mrf.mxu0
    %532 = vmatprep.mubr.f32.mxu0 0.0
    %533 = vmatmul.mubr.f32.gmra.mxu0 %v366
    %v534 = vpop.f32.mrf.mxu0
    %v535 = vadd.f32 %v303, %v534
    %v536 = vpop.f32.mrf.mxu0
    %537 = vdwg.mxu0
    %vm538 = vcmask 982016
    %v539 = vsel %vm538, %v435, 0.0
    %v540 = vsel %vm538, %v440, 0.0
    %v541 = vadd.f32 %v539, %v540
    %v542 = vsel %vm538, %v445, 0.0
    %v543 = vadd.f32 %v541, %v542
    %v544 = vsel %vm538, %v450, 0.0
    %v545 = vadd.f32 %v543, %v544
    %v546 = vsel %vm538, %v455, 0.0
    %v547 = vadd.f32 %v545, %v546
    %v548 = vsel %vm538, %v460, 0.0
    %v549 = vadd.f32 %v547, %v548
    %v550 = vsel %vm538, %v465, 0.0
    %v551 = vadd.f32 %v549, %v550
    %v552 = vsel %vm538, %v470, 0.0
    %v553 = vadd.f32 %v551, %v552
    %v554 = vsel %vm538, %v475, 0.0
    %v555 = vadd.f32 %v553, %v554
    %v556 = vsel %vm538, %v480, 0.0
    %v557 = vadd.f32 %v555, %v556
    %v558 = vsel %vm538, %v485, 0.0
    %v559 = vadd.f32 %v557, %v558
    %v560 = vsel %vm538, %v490, 0.0
    %v561 = vadd.f32 %v559, %v560
    %v562 = vsel %vm538, %v495, 0.0
    %v563 = vadd.f32 %v561, %v562
    %v564 = vsel %vm538, %v500, 0.0
    %v565 = vadd.f32 %v563, %v564
    %v566 = vsel %vm538, %v505, 0.0
    %v567 = vadd.f32 %v565, %v566
    %v568 = vsel %vm538, %v510, 0.0
    %v569 = vadd.f32 %v567, %v568
    %v570 = vsel %vm538, %v515, 0.0
    %v571 = vadd.f32 %v569, %v570
    %v572 = vsel %vm538, %v520, 0.0
    %v573 = vadd.f32 %v571, %v572
    %v574 = vsel %vm538, %v525, 0.0
    %v575 = vadd.f32 %v573, %v574
    %v576 = vsel %vm538, %v530, 0.0
    %v577 = vadd.f32 %v575, %v576
    %vm578 = vcmask 975872
    %v579 = vsel %vm578, %v535, 0.0
    %v580 = vadd.f32 %v577, %v579
    %v581 = vrot.slane %v580, 4
    %v582 = vadd.f32 %v580, %v581
    %v583 = vrot.slane %v582, 2
    %v584 = vadd.f32 %v582, %v583
    %v585 = vrot.slane %v584, 1
    %v586 = vadd.f32 %v584, %v585
    %v587 = vmul.f32 %v435, %v435
    %v588 = vmul.f32 %v440, %v440
    %v589 = vmul.f32 %v445, %v445
    %v590 = vmul.f32 %v450, %v450
    %v591 = vmul.f32 %v455, %v455
    %v592 = vmul.f32 %v460, %v460
    %v593 = vmul.f32 %v465, %v465
    %v594 = vmul.f32 %v470, %v470
    %v595 = vmul.f32 %v475, %v475
    %v596 = vmul.f32 %v480, %v480
    %v597 = vmul.f32 %v485, %v485
    %v598 = vmul.f32 %v490, %v490
    %v599 = vmul.f32 %v495, %v495
    %v600 = vmul.f32 %v500, %v500
    %v601 = vmul.f32 %v505, %v505
    %v602 = vmul.f32 %v510, %v510
    %v603 = vmul.f32 %v515, %v515
    %v604 = vmul.f32 %v520, %v520
    %v605 = vmul.f32 %v525, %v525
    %v606 = vmul.f32 %v530, %v530
    %v607 = vmul.f32 %v535, %v535
    %v608 = vsel %vm538, %v587, 0.0
    %v609 = vsel %vm538, %v588, 0.0
    %v610 = vadd.f32 %v608, %v609
    %v611 = vsel %vm538, %v589, 0.0
    %v612 = vadd.f32 %v610, %v611
    %v613 = vsel %vm538, %v590, 0.0
    %v614 = vadd.f32 %v612, %v613
    %v615 = vsel %vm538, %v591, 0.0
    %v616 = vadd.f32 %v614, %v615
    %v617 = vsel %vm538, %v592, 0.0
    %v618 = vadd.f32 %v616, %v617
    %v619 = vsel %vm538, %v593, 0.0
    %v620 = vadd.f32 %v618, %v619
    %v621 = vsel %vm538, %v594, 0.0
    %v622 = vadd.f32 %v620, %v621
    %v623 = vsel %vm538, %v595, 0.0
    %v624 = vadd.f32 %v622, %v623
    %v625 = vsel %vm538, %v596, 0.0
    %v626 = vadd.f32 %v624, %v625
    %v627 = vsel %vm538, %v597, 0.0
    %v628 = vadd.f32 %v626, %v627
    %v629 = vsel %vm538, %v598, 0.0
    %v630 = vadd.f32 %v628, %v629
    %v631 = vsel %vm538, %v599, 0.0
    %v632 = vadd.f32 %v630, %v631
    %v633 = vsel %vm538, %v600, 0.0
    %v634 = vadd.f32 %v632, %v633
    %v635 = vsel %vm538, %v601, 0.0
    %v636 = vadd.f32 %v634, %v635
    %v637 = vsel %vm538, %v602, 0.0
    %v638 = vadd.f32 %v636, %v637
    %v639 = vsel %vm538, %v603, 0.0
    %v640 = vadd.f32 %v638, %v639
    %v641 = vsel %vm538, %v604, 0.0
    %v642 = vadd.f32 %v640, %v641
    %v643 = vsel %vm538, %v605, 0.0
    %v644 = vadd.f32 %v642, %v643
    %v645 = vsel %vm538, %v606, 0.0
    %v646 = vadd.f32 %v644, %v645
    %v647 = vsel %vm578, %v607, 0.0
    %v648 = vadd.f32 %v646, %v647
    %v649 = vrot.slane %v648, 4
    %v650 = vadd.f32 %v648, %v649
    %v651 = vrot.slane %v650, 2
    %v652 = vadd.f32 %v650, %v651
    %v653 = vrot.slane %v652, 1
    %v654 = vadd.f32 %v652, %v653
    %656 = vrot.lane.b32.xlu0 %v586, 104
    %v657 = vpop.permute.xlu0 %656
    %v659 = vadd.f32 %v586, %v657
    %661 = vrot.lane.b32.xlu0 %v654, 104
    %v662 = vpop.permute.xlu0 %661
    %v664 = vadd.f32 %v654, %v662
    %665 = vrot.lane.b32.xlu0 %v586, 80
    %v666 = vpop.permute.xlu0 %665
    %v668 = vadd.f32 %v659, %v666
    %669 = vrot.lane.b32.xlu0 %v654, 80
    %v670 = vpop.permute.xlu0 %669
    %v672 = vadd.f32 %v664, %v670
    %673 = vrot.lane.b32.xlu0 %v586, 56
    %v674 = vpop.permute.xlu0 %673
    %v676 = vadd.f32 %v668, %v674
    %677 = vrot.lane.b32.xlu0 %v654, 56
    %v678 = vpop.permute.xlu0 %677
    %v680 = vadd.f32 %v672, %v678
    %681 = vrot.lane.b32.xlu0 %v586, 32
    %v682 = vpop.permute.xlu0 %681
    %v684 = vadd.f32 %v676, %v682
    %685 = vrot.lane.b32.xlu0 %v654, 32
    %v686 = vpop.permute.xlu0 %685
    %v688 = vadd.f32 %v680, %v686
    %v689 = vrcp.pop 810.0
    %v690 = vmul.f32 %v684, %v689
    %v691 = vmul.f32 %v688, %v689
    %v692 = vmul.f32 %v690, %v690
    %v693 = vsub.f32 %v691, %v692
    %v694 = vmax.f32 %v693, 0.0
    %v695 = vadd.f32 %v694, 1e-05
    %v696 = vrsqrt.pop %v695
    %v697 = vmul.f32 %v54, %v696
    %v698 = vmul.f32 %v690, %v697
    %v700 = vrot.slane %v698, 7
    %v702 = vsub.f32 %v54, %v700
    %vm703 = vcmask 195584
    %v705 = vsel %vm703, %v697, 0
    %707 = vmatprep.subr.mxu0 0.0
    %708 = vmatpush1.msra.mxu0 0.0
    %709 = vmatprep.subr.mxu0 0.0
    %710 = vmatpush1.msra.mxu0 0.0
    %711 = vmatprep.subr.mxu0 0.0
    %712 = vmatpush1.msra.mxu0 0.0
    %713 = vmatprep.subr.mxu0 0.0
    %714 = vmatpush1.msra.mxu0 0.0
    %715 = vmatprep.subr.mxu0 0.0
    %716 = vmatpush1.msra.mxu0 0.0
    %717 = vmatprep.subr.mxu0 0.0
    %718 = vmatpush1.msra.mxu0 0.0
    %719 = vmatprep.subr.mxu0 0.0
    %720 = vmatpush1.msra.mxu0 0.0
    %721 = vmatprep.subr.mxu0 0.0
    %722 = vmatpush1.msra.mxu0 0.0
    %723 = vmatprep.subr.mxu0 0.0
    %724 = vmatpush1.msra.mxu0 0.0
    %725 = vmatprep.subr.mxu0 0.0
    %726 = vmatpush1.msra.mxu0 0.0
    %727 = vmatprep.subr.mxu0 0.0
    %728 = vmatpush1.msra.mxu0 0.0
    %729 = vmatprep.subr.mxu0 0.0
    %730 = vmatpush1.msra.mxu0 0.0
    %731 = vmatprep.subr.mxu0 0.0
    %732 = vmatpush1.msra.mxu0 0.0
    %733 = vmatprep.subr.mxu0 0.0
    %734 = vmatpush1.msra.mxu0 %v60
    %735 = vmatprep.subr.mxu0 0.0
    %736 = vmatpush1.msra.mxu0 %v59
    %737 = vmatprep.subr.mxu0 0.0
    %738 = vmatpush1.msra.mxu0 %v58
    %739 = vmatprep.subr.mxu0 0.0
    %740 = vmatpush2.msra.mxu0 0.0
    %741 = vmatprep.subr.mxu0 0.0
    %742 = vmatpush2.msra.mxu0 0.0
    %743 = vmatprep.subr.mxu0 0.0
    %744 = vmatpush2.msra.mxu0 0.0
    %745 = vmatprep.subr.mxu0 0.0
    %746 = vmatpush2.msra.mxu0 0.0
    %747 = vmatprep.subr.mxu0 0.0
    %748 = vmatpush2.msra.mxu0 0.0
    %749 = vmatprep.subr.mxu0 0.0
    %750 = vmatpush2.msra.mxu0 0.0
    %751 = vmatprep.subr.mxu0 0.0
    %752 = vmatpush2.msra.mxu0 0.0
    %753 = vmatprep.subr.mxu0 0.0
    %754 = vmatpush2.msra.mxu0 0.0
    %755 = vmatprep.subr.mxu0 0.0
    %756 = vmatpush2.msra.mxu0 0.0
    %757 = vmatprep.subr.mxu0 0.0
    %758 = vmatpush2.msra.mxu0 0.0
    %759 = vmatprep.subr.mxu0 0.0
    %760 = vmatpush2.msra.mxu0 0.0
    %761 = vmatprep.subr.mxu0 0.0
    %762 = vmatpush2.msra.mxu0 0.0
    %763 = vmatprep.subr.mxu0 0.0
    %764 = vmatpush2.msra.mxu0 0.0
    %765 = vmatprep.subr.mxu0 0.0
    %766 = vmatpush2.msra.mxu0 0.0
    %767 = vmatprep.subr.mxu0 0.0
    %768 = vmatpush2.msra.mxu0 0.0
    %769 = vmatprep.subr.mxu0 0.0
    %770 = vmatpush2.msra.mxu0 0.0
    %771 = vmatprep.mubr.f32.mxu0 0.0
    %772 = vmatmul.mubr.f32.gmra.mxu0 %v705
    %v773 = vpop.f32.mrf.mxu0
    %v774 = vadd.f32 0.0, %v773
    %v775 = vpop.f32.mrf.mxu0
    %776 = vdwg.mxu0
    %v778 = vrot.slane %v702, 1
    %v779 = vsel %vm703, %v778, 0
    %781 = vmatprep.subr.mxu0 0.0
    %782 = vmatpush1.msra.mxu0 0.0
    %783 = vmatprep.subr.mxu0 0.0
    %784 = vmatpush1.msra.mxu0 0.0
    %785 = vmatprep.subr.mxu0 0.0
    %786 = vmatpush1.msra.mxu0 0.0
    %787 = vmatprep.subr.mxu0 0.0
    %788 = vmatpush1.msra.mxu0 0.0
    %789 = vmatprep.subr.mxu0 0.0
    %790 = vmatpush1.msra.mxu0 0.0
    %791 = vmatprep.subr.mxu0 0.0
    %792 = vmatpush1.msra.mxu0 0.0
    %793 = vmatprep.subr.mxu0 0.0
    %794 = vmatpush1.msra.mxu0 0.0
    %795 = vmatprep.subr.mxu0 0.0
    %796 = vmatpush1.msra.mxu0 0.0
    %797 = vmatprep.subr.mxu0 0.0
    %798 = vmatpush1.msra.mxu0 0.0
    %799 = vmatprep.subr.mxu0 0.0
    %800 = vmatpush1.msra.mxu0 0.0
    %801 = vmatprep.subr.mxu0 0.0
    %802 = vmatpush1.msra.mxu0 0.0
    %803 = vmatprep.subr.mxu0 0.0
    %804 = vmatpush1.msra.mxu0 0.0
    %805 = vmatprep.subr.mxu0 0.0
    %806 = vmatpush1.msra.mxu0 0.0
    %807 = vmatprep.subr.mxu0 0.0
    %808 = vmatpush1.msra.mxu0 %v60
    %809 = vmatprep.subr.mxu0 0.0
    %810 = vmatpush1.msra.mxu0 %v59
    %811 = vmatprep.subr.mxu0 0.0
    %812 = vmatpush1.msra.mxu0 %v58
    %813 = vmatprep.subr.mxu0 0.0
    %814 = vmatpush2.msra.mxu0 0.0
    %815 = vmatprep.subr.mxu0 0.0
    %816 = vmatpush2.msra.mxu0 0.0
    %817 = vmatprep.subr.mxu0 0.0
    %818 = vmatpush2.msra.mxu0 0.0
    %819 = vmatprep.subr.mxu0 0.0
    %820 = vmatpush2.msra.mxu0 0.0
    %821 = vmatprep.subr.mxu0 0.0
    %822 = vmatpush2.msra.mxu0 0.0
    %823 = vmatprep.subr.mxu0 0.0
    %824 = vmatpush2.msra.mxu0 0.0
    %825 = vmatprep.subr.mxu0 0.0
    %826 = vmatpush2.msra.mxu0 0.0
    %827 = vmatprep.subr.mxu0 0.0
    %828 = vmatpush2.msra.mxu0 0.0
    %829 = vmatprep.subr.mxu0 0.0
    %830 = vmatpush2.msra.mxu0 0.0
    %831 = vmatprep.subr.mxu0 0.0
    %832 = vmatpush2.msra.mxu0 0.0
    %833 = vmatprep.subr.mxu0 0.0
    %834 = vmatpush2.msra.mxu0 0.0
    %835 = vmatprep.subr.mxu0 0.0
    %836 = vmatpush2.msra.mxu0 0.0
    %837 = vmatprep.subr.mxu0 0.0
    %838 = vmatpush2.msra.mxu0 0.0
    %839 = vmatprep.subr.mxu0 0.0
    %840 = vmatpush2.msra.mxu0 0.0
    %841 = vmatprep.subr.mxu0 0.0
    %842 = vmatpush2.msra.mxu0 0.0
    %843 = vmatprep.subr.mxu0 0.0
    %844 = vmatpush2.msra.mxu0 0.0
    %845 = vmatprep.mubr.f32.mxu0 0.0
    %846 = vmatmul.mubr.f32.gmra.mxu0 %v779
    %v847 = vpop.f32.mrf.mxu0
    %v848 = vadd.f32 0.0, %v847
    %v849 = vpop.f32.mrf.mxu0
    %850 = vdwg.mxu0
    %v851 = vlaneseq
    %v852 = vshrl.u32 %v851, 7
    %v853 = vsub.s32 0, %v852
    %v854 = vrot.slane %v774, %v853
    %v855 = vmul.f32 %v435, %v854
    %v856 = vmul.f32 %v440, %v854
    %v857 = vmul.f32 %v445, %v854
    %v858 = vmul.f32 %v450, %v854
    %v859 = vmul.f32 %v455, %v854
    %v860 = vmul.f32 %v460, %v854
    %v861 = vmul.f32 %v465, %v854
    %v862 = vmul.f32 %v470, %v854
    %v863 = vmul.f32 %v475, %v854
    %v864 = vmul.f32 %v480, %v854
    %v865 = vmul.f32 %v485, %v854
    %v866 = vmul.f32 %v490, %v854
    %v867 = vmul.f32 %v495, %v854
    %v868 = vmul.f32 %v500, %v854
    %v869 = vmul.f32 %v505, %v854
    %v870 = vmul.f32 %v510, %v854
    %v871 = vmul.f32 %v515, %v854
    %v872 = vmul.f32 %v520, %v854
    %v873 = vmul.f32 %v525, %v854
    %v874 = vmul.f32 %v530, %v854
    %v875 = vmul.f32 %v535, %v854
    %v876 = vlaneseq
    %v877 = vshrl.u32 %v876, 7
    %v878 = vsub.s32 0, %v877
    %v879 = vrot.slane %v848, %v878
    %v880 = vadd.f32 %v855, %v879
    %v881 = vadd.f32 %v856, %v879
    %v882 = vadd.f32 %v857, %v879
    %v883 = vadd.f32 %v858, %v879
    %v884 = vadd.f32 %v859, %v879
    %v885 = vadd.f32 %v860, %v879
    %v886 = vadd.f32 %v861, %v879
    %v887 = vadd.f32 %v862, %v879
    %v888 = vadd.f32 %v863, %v879
    %v889 = vadd.f32 %v864, %v879
    %v890 = vadd.f32 %v865, %v879
    %v891 = vadd.f32 %v866, %v879
    %v892 = vadd.f32 %v867, %v879
    %v893 = vadd.f32 %v868, %v879
    %v894 = vadd.f32 %v869, %v879
    %v895 = vadd.f32 %v870, %v879
    %v896 = vadd.f32 %v871, %v879
    %v897 = vadd.f32 %v872, %v879
    %v898 = vadd.f32 %v873, %v879
    %v899 = vadd.f32 %v874, %v879
    %v900 = vadd.f32 %v875, %v879
    %v901 = vmax.f32 %v880, 0.0
    %v902 = vmax.f32 %v881, 0.0
    %v903 = vmax.f32 %v882, 0.0
    %v904 = vmax.f32 %v883, 0.0
    %v905 = vmax.f32 %v884, 0.0
    %v906 = vmax.f32 %v885, 0.0
    %v907 = vmax.f32 %v886, 0.0
    %v908 = vmax.f32 %v887, 0.0
    %v909 = vmax.f32 %v888, 0.0
    %v910 = vmax.f32 %v889, 0.0
    %v911 = vmax.f32 %v890, 0.0
    %v912 = vmax.f32 %v891, 0.0
    %v913 = vmax.f32 %v892, 0.0
    %v914 = vmax.f32 %v893, 0.0
    %v915 = vmax.f32 %v894, 0.0
    %v916 = vmax.f32 %v895, 0.0
    %v917 = vmax.f32 %v896, 0.0
    %v918 = vmax.f32 %v897, 0.0
    %v919 = vmax.f32 %v898, 0.0
    %v920 = vmax.f32 %v899, 0.0
    %v921 = vmax.f32 %v900, 0.0
    %v922 = vld [vmem:[%s2] sm:$0xff]
    %v923 = vld [vmem:[%s2 + $0x8] sm:$0xff]
    %v924 = vld [vmem:[%s2 + $0x10] sm:$0xff]
    %v925 = vld [vmem:[%s2 + $0x18] sm:$0xff]
    %v926 = vld [vmem:[%s2 + $0x20] sm:$0xff]
    %v927 = vld [vmem:[%s2 + $0x28] sm:$0xff]
    %v928 = vld [vmem:[%s2 + $0x30] sm:$0xff]
    %v929 = vld [vmem:[%s2 + $0x38] sm:$0xff]
    %v930 = vld [vmem:[%s2 + $0x40] sm:$0xff]
    %v931 = vld [vmem:[%s2 + $0x48] sm:$0xff]
    %v932 = vld [vmem:[%s2 + $0x50] sm:$0xff]
    %v933 = vld [vmem:[%s2 + $0x58] sm:$0xff]
    %v934 = vld [vmem:[%s2 + $0x60] sm:$0xff]
    %v935 = vld [vmem:[%s2 + $0x68] sm:$0xff]
    %v936 = vld [vmem:[%s2 + $0x70] sm:$0xff]
    %v937 = vlaneseq
    %v938 = vshrl.u32 %v937, 7
    %v939 = vsub.s32 1, %v938
    %v940 = vrot.slane %v57, %v939
    %v942 = vsel %vm538, %v901, 0
    %v945 = vsel %vm538, %v902, 0
    %v948 = vsel %vm538, %v903, 0
    %v951 = vsel %vm538, %v904, 0
    %v954 = vsel %vm538, %v905, 0
    %v957 = vsel %vm538, %v906, 0
    %v960 = vsel %vm538, %v907, 0
    %v963 = vsel %vm538, %v908, 0
    %v966 = vsel %vm538, %v909, 0
    %v969 = vsel %vm538, %v910, 0
    %v972 = vsel %vm538, %v911, 0
    %v975 = vsel %vm538, %v912, 0
    %v978 = vsel %vm538, %v913, 0
    %v981 = vsel %vm538, %v914, 0
    %v984 = vsel %vm538, %v915, 0
    %v987 = vsel %vm538, %v916, 0
    %v990 = vsel %vm538, %v917, 0
    %v993 = vsel %vm538, %v918, 0
    %v996 = vsel %vm538, %v919, 0
    %v999 = vsel %vm538, %v920, 0
    %v1002 = vsel %vm538, %v921, 0
    %1004 = vmatprep.subr.mxu0 0.0
    %1005 = vmatpush1.msra.mxu0 0.0
    %1006 = vmatprep.subr.mxu0 0.0
    %1007 = vmatpush1.msra.mxu0 %v936
    %1008 = vmatprep.subr.mxu0 0.0
    %1009 = vmatpush1.msra.mxu0 %v935
    %1010 = vmatprep.subr.mxu0 0.0
    %1011 = vmatpush1.msra.mxu0 %v934
    %1012 = vmatprep.subr.mxu0 0.0
    %1013 = vmatpush1.msra.mxu0 %v933
    %1014 = vmatprep.subr.mxu0 0.0
    %1015 = vmatpush1.msra.mxu0 %v932
    %1016 = vmatprep.subr.mxu0 0.0
    %1017 = vmatpush1.msra.mxu0 %v931
    %1018 = vmatprep.subr.mxu0 0.0
    %1019 = vmatpush1.msra.mxu0 %v930
    %1020 = vmatprep.subr.mxu0 0.0
    %1021 = vmatpush1.msra.mxu0 %v929
    %1022 = vmatprep.subr.mxu0 0.0
    %1023 = vmatpush1.msra.mxu0 %v928
    %1024 = vmatprep.subr.mxu0 0.0
    %1025 = vmatpush1.msra.mxu0 %v927
    %1026 = vmatprep.subr.mxu0 0.0
    %1027 = vmatpush1.msra.mxu0 %v926
    %1028 = vmatprep.subr.mxu0 0.0
    %1029 = vmatpush1.msra.mxu0 %v925
    %1030 = vmatprep.subr.mxu0 0.0
    %1031 = vmatpush1.msra.mxu0 %v924
    %1032 = vmatprep.subr.mxu0 0.0
    %1033 = vmatpush1.msra.mxu0 %v923
    %1034 = vmatprep.subr.mxu0 0.0
    %1035 = vmatpush1.msra.mxu0 %v922
    %1036 = vmatprep.subr.mxu0 0.0
    %1037 = vmatpush2.msra.mxu0 0.0
    %1038 = vmatprep.subr.mxu0 0.0
    %1039 = vmatpush2.msra.mxu0 0.0
    %1040 = vmatprep.subr.mxu0 0.0
    %1041 = vmatpush2.msra.mxu0 0.0
    %1042 = vmatprep.subr.mxu0 0.0
    %1043 = vmatpush2.msra.mxu0 0.0
    %1044 = vmatprep.subr.mxu0 0.0
    %1045 = vmatpush2.msra.mxu0 0.0
    %1046 = vmatprep.subr.mxu0 0.0
    %1047 = vmatpush2.msra.mxu0 0.0
    %1048 = vmatprep.subr.mxu0 0.0
    %1049 = vmatpush2.msra.mxu0 0.0
    %1050 = vmatprep.subr.mxu0 0.0
    %1051 = vmatpush2.msra.mxu0 0.0
    %1052 = vmatprep.subr.mxu0 0.0
    %1053 = vmatpush2.msra.mxu0 0.0
    %1054 = vmatprep.subr.mxu0 0.0
    %1055 = vmatpush2.msra.mxu0 0.0
    %1056 = vmatprep.subr.mxu0 0.0
    %1057 = vmatpush2.msra.mxu0 0.0
    %1058 = vmatprep.subr.mxu0 0.0
    %1059 = vmatpush2.msra.mxu0 0.0
    %1060 = vmatprep.subr.mxu0 0.0
    %1061 = vmatpush2.msra.mxu0 0.0
    %1062 = vmatprep.subr.mxu0 0.0
    %1063 = vmatpush2.msra.mxu0 0.0
    %1064 = vmatprep.subr.mxu0 0.0
    %1065 = vmatpush2.msra.mxu0 0.0
    %1066 = vmatprep.subr.mxu0 0.0
    %1067 = vmatpush2.msra.mxu0 0.0
    %1068 = vmatprep.mubr.f32.mxu0 0.0
    %1069 = vmatmul.mubr.f32.gmra.mxu0 %v942
    %v1070 = vpop.f32.mrf.mxu0
    %v1071 = vadd.f32 %v940, %v1070
    %v1072 = vpop.f32.mrf.mxu0
    %1073 = vmatprep.mubr.f32.mxu0 0.0
    %1074 = vmatmul.mubr.f32.gmra.mxu0 %v945
    %v1075 = vpop.f32.mrf.mxu0
    %v1076 = vadd.f32 %v940, %v1075
    %v1077 = vpop.f32.mrf.mxu0
    %1078 = vmatprep.mubr.f32.mxu0 0.0
    %1079 = vmatmul.mubr.f32.gmra.mxu0 %v948
    %v1080 = vpop.f32.mrf.mxu0
    %v1081 = vadd.f32 %v940, %v1080
    %v1082 = vpop.f32.mrf.mxu0
    %1083 = vmatprep.mubr.f32.mxu0 0.0
    %1084 = vmatmul.mubr.f32.gmra.mxu0 %v951
    %v1085 = vpop.f32.mrf.mxu0
    %v1086 = vadd.f32 %v940, %v1085
    %v1087 = vpop.f32.mrf.mxu0
    %1088 = vmatprep.mubr.f32.mxu0 0.0
    %1089 = vmatmul.mubr.f32.gmra.mxu0 %v954
    %v1090 = vpop.f32.mrf.mxu0
    %v1091 = vadd.f32 %v940, %v1090
    %v1092 = vpop.f32.mrf.mxu0
    %1093 = vmatprep.mubr.f32.mxu0 0.0
    %1094 = vmatmul.mubr.f32.gmra.mxu0 %v957
    %v1095 = vpop.f32.mrf.mxu0
    %v1096 = vadd.f32 %v940, %v1095
    %v1097 = vpop.f32.mrf.mxu0
    %1098 = vmatprep.mubr.f32.mxu0 0.0
    %1099 = vmatmul.mubr.f32.gmra.mxu0 %v960
    %v1100 = vpop.f32.mrf.mxu0
    %v1101 = vadd.f32 %v940, %v1100
    %v1102 = vpop.f32.mrf.mxu0
    %1103 = vmatprep.mubr.f32.mxu0 0.0
    %1104 = vmatmul.mubr.f32.gmra.mxu0 %v963
    %v1105 = vpop.f32.mrf.mxu0
    %v1106 = vadd.f32 %v940, %v1105
    %v1107 = vpop.f32.mrf.mxu0
    %1108 = vmatprep.mubr.f32.mxu0 0.0
    %1109 = vmatmul.mubr.f32.gmra.mxu0 %v966
    %v1110 = vpop.f32.mrf.mxu0
    %v1111 = vadd.f32 %v940, %v1110
    %v1112 = vpop.f32.mrf.mxu0
    %1113 = vmatprep.mubr.f32.mxu0 0.0
    %1114 = vmatmul.mubr.f32.gmra.mxu0 %v969
    %v1115 = vpop.f32.mrf.mxu0
    %v1116 = vadd.f32 %v940, %v1115
    %v1117 = vpop.f32.mrf.mxu0
    %1118 = vmatprep.mubr.f32.mxu0 0.0
    %1119 = vmatmul.mubr.f32.gmra.mxu0 %v972
    %v1120 = vpop.f32.mrf.mxu0
    %v1121 = vadd.f32 %v940, %v1120
    %v1122 = vpop.f32.mrf.mxu0
    %1123 = vmatprep.mubr.f32.mxu0 0.0
    %1124 = vmatmul.mubr.f32.gmra.mxu0 %v975
    %v1125 = vpop.f32.mrf.mxu0
    %v1126 = vadd.f32 %v940, %v1125
    %v1127 = vpop.f32.mrf.mxu0
    %1128 = vmatprep.mubr.f32.mxu0 0.0
    %1129 = vmatmul.mubr.f32.gmra.mxu0 %v978
    %v1130 = vpop.f32.mrf.mxu0
    %v1131 = vadd.f32 %v940, %v1130
    %v1132 = vpop.f32.mrf.mxu0
    %1133 = vmatprep.mubr.f32.mxu0 0.0
    %1134 = vmatmul.mubr.f32.gmra.mxu0 %v981
    %v1135 = vpop.f32.mrf.mxu0
    %v1136 = vadd.f32 %v940, %v1135
    %v1137 = vpop.f32.mrf.mxu0
    %1138 = vmatprep.mubr.f32.mxu0 0.0
    %1139 = vmatmul.mubr.f32.gmra.mxu0 %v984
    %v1140 = vpop.f32.mrf.mxu0
    %v1141 = vadd.f32 %v940, %v1140
    %v1142 = vpop.f32.mrf.mxu0
    %1143 = vmatprep.mubr.f32.mxu0 0.0
    %1144 = vmatmul.mubr.f32.gmra.mxu0 %v987
    %v1145 = vpop.f32.mrf.mxu0
    %v1146 = vadd.f32 %v940, %v1145
    %v1147 = vpop.f32.mrf.mxu0
    %1148 = vmatprep.mubr.f32.mxu0 0.0
    %1149 = vmatmul.mubr.f32.gmra.mxu0 %v990
    %v1150 = vpop.f32.mrf.mxu0
    %v1151 = vadd.f32 %v940, %v1150
    %v1152 = vpop.f32.mrf.mxu0
    %1153 = vmatprep.mubr.f32.mxu0 0.0
    %1154 = vmatmul.mubr.f32.gmra.mxu0 %v993
    %v1155 = vpop.f32.mrf.mxu0
    %v1156 = vadd.f32 %v940, %v1155
    %v1157 = vpop.f32.mrf.mxu0
    %1158 = vmatprep.mubr.f32.mxu0 0.0
    %1159 = vmatmul.mubr.f32.gmra.mxu0 %v996
    %v1160 = vpop.f32.mrf.mxu0
    %v1161 = vadd.f32 %v940, %v1160
    %v1162 = vpop.f32.mrf.mxu0
    %1163 = vmatprep.mubr.f32.mxu0 0.0
    %1164 = vmatmul.mubr.f32.gmra.mxu0 %v999
    %v1165 = vpop.f32.mrf.mxu0
    %v1166 = vadd.f32 %v940, %v1165
    %v1167 = vpop.f32.mrf.mxu0
    %1168 = vmatprep.mubr.f32.mxu0 0.0
    %1169 = vmatmul.mubr.f32.gmra.mxu0 %v1002
    %v1170 = vpop.f32.mrf.mxu0
    %v1171 = vadd.f32 %v940, %v1170
    %v1172 = vpop.f32.mrf.mxu0
    %1173 = vdwg.mxu0
    %v1174 = vsel %vm538, %v1071, 0.0
    %v1175 = vsel %vm538, %v1076, 0.0
    %v1176 = vadd.f32 %v1174, %v1175
    %v1177 = vsel %vm538, %v1081, 0.0
    %v1178 = vadd.f32 %v1176, %v1177
    %v1179 = vsel %vm538, %v1086, 0.0
    %v1180 = vadd.f32 %v1178, %v1179
    %v1181 = vsel %vm538, %v1091, 0.0
    %v1182 = vadd.f32 %v1180, %v1181
    %v1183 = vsel %vm538, %v1096, 0.0
    %v1184 = vadd.f32 %v1182, %v1183
    %v1185 = vsel %vm538, %v1101, 0.0
    %v1186 = vadd.f32 %v1184, %v1185
    %v1187 = vsel %vm538, %v1106, 0.0
    %v1188 = vadd.f32 %v1186, %v1187
    %v1189 = vsel %vm538, %v1111, 0.0
    %v1190 = vadd.f32 %v1188, %v1189
    %v1191 = vsel %vm538, %v1116, 0.0
    %v1192 = vadd.f32 %v1190, %v1191
    %v1193 = vsel %vm538, %v1121, 0.0
    %v1194 = vadd.f32 %v1192, %v1193
    %v1195 = vsel %vm538, %v1126, 0.0
    %v1196 = vadd.f32 %v1194, %v1195
    %v1197 = vsel %vm538, %v1131, 0.0
    %v1198 = vadd.f32 %v1196, %v1197
    %v1199 = vsel %vm538, %v1136, 0.0
    %v1200 = vadd.f32 %v1198, %v1199
    %v1201 = vsel %vm538, %v1141, 0.0
    %v1202 = vadd.f32 %v1200, %v1201
    %v1203 = vsel %vm538, %v1146, 0.0
    %v1204 = vadd.f32 %v1202, %v1203
    %v1205 = vsel %vm538, %v1151, 0.0
    %v1206 = vadd.f32 %v1204, %v1205
    %v1207 = vsel %vm538, %v1156, 0.0
    %v1208 = vadd.f32 %v1206, %v1207
    %v1209 = vsel %vm538, %v1161, 0.0
    %v1210 = vadd.f32 %v1208, %v1209
    %v1211 = vsel %vm538, %v1166, 0.0
    %v1212 = vadd.f32 %v1210, %v1211
    %v1213 = vsel %vm578, %v1171, 0.0
    %v1214 = vadd.f32 %v1212, %v1213
    %v1215 = vrot.slane %v1214, 4
    %v1216 = vadd.f32 %v1214, %v1215
    %v1217 = vrot.slane %v1216, 2
    %v1218 = vadd.f32 %v1216, %v1217
    %v1219 = vrot.slane %v1218, 1
    %v1220 = vadd.f32 %v1218, %v1219
    %v1221 = vmul.f32 %v1071, %v1071
    %v1222 = vmul.f32 %v1076, %v1076
    %v1223 = vmul.f32 %v1081, %v1081
    %v1224 = vmul.f32 %v1086, %v1086
    %v1225 = vmul.f32 %v1091, %v1091
    %v1226 = vmul.f32 %v1096, %v1096
    %v1227 = vmul.f32 %v1101, %v1101
    %v1228 = vmul.f32 %v1106, %v1106
    %v1229 = vmul.f32 %v1111, %v1111
    %v1230 = vmul.f32 %v1116, %v1116
    %v1231 = vmul.f32 %v1121, %v1121
    %v1232 = vmul.f32 %v1126, %v1126
    %v1233 = vmul.f32 %v1131, %v1131
    %v1234 = vmul.f32 %v1136, %v1136
    %v1235 = vmul.f32 %v1141, %v1141
    %v1236 = vmul.f32 %v1146, %v1146
    %v1237 = vmul.f32 %v1151, %v1151
    %v1238 = vmul.f32 %v1156, %v1156
    %v1239 = vmul.f32 %v1161, %v1161
    %v1240 = vmul.f32 %v1166, %v1166
    %v1241 = vmul.f32 %v1171, %v1171
    %v1242 = vsel %vm538, %v1221, 0.0
    %v1243 = vsel %vm538, %v1222, 0.0
    %v1244 = vadd.f32 %v1242, %v1243
    %v1245 = vsel %vm538, %v1223, 0.0
    %v1246 = vadd.f32 %v1244, %v1245
    %v1247 = vsel %vm538, %v1224, 0.0
    %v1248 = vadd.f32 %v1246, %v1247
    %v1249 = vsel %vm538, %v1225, 0.0
    %v1250 = vadd.f32 %v1248, %v1249
    %v1251 = vsel %vm538, %v1226, 0.0
    %v1252 = vadd.f32 %v1250, %v1251
    %v1253 = vsel %vm538, %v1227, 0.0
    %v1254 = vadd.f32 %v1252, %v1253
    %v1255 = vsel %vm538, %v1228, 0.0
    %v1256 = vadd.f32 %v1254, %v1255
    %v1257 = vsel %vm538, %v1229, 0.0
    %v1258 = vadd.f32 %v1256, %v1257
    %v1259 = vsel %vm538, %v1230, 0.0
    %v1260 = vadd.f32 %v1258, %v1259
    %v1261 = vsel %vm538, %v1231, 0.0
    %v1262 = vadd.f32 %v1260, %v1261
    %v1263 = vsel %vm538, %v1232, 0.0
    %v1264 = vadd.f32 %v1262, %v1263
    %v1265 = vsel %vm538, %v1233, 0.0
    %v1266 = vadd.f32 %v1264, %v1265
    %v1267 = vsel %vm538, %v1234, 0.0
    %v1268 = vadd.f32 %v1266, %v1267
    %v1269 = vsel %vm538, %v1235, 0.0
    %v1270 = vadd.f32 %v1268, %v1269
    %v1271 = vsel %vm538, %v1236, 0.0
    %v1272 = vadd.f32 %v1270, %v1271
    %v1273 = vsel %vm538, %v1237, 0.0
    %v1274 = vadd.f32 %v1272, %v1273
    %v1275 = vsel %vm538, %v1238, 0.0
    %v1276 = vadd.f32 %v1274, %v1275
    %v1277 = vsel %vm538, %v1239, 0.0
    %v1278 = vadd.f32 %v1276, %v1277
    %v1279 = vsel %vm538, %v1240, 0.0
    %v1280 = vadd.f32 %v1278, %v1279
    %v1281 = vsel %vm578, %v1241, 0.0
    %v1282 = vadd.f32 %v1280, %v1281
    %v1283 = vrot.slane %v1282, 4
    %v1284 = vadd.f32 %v1282, %v1283
    %v1285 = vrot.slane %v1284, 2
    %v1286 = vadd.f32 %v1284, %v1285
    %v1287 = vrot.slane %v1286, 1
    %v1288 = vadd.f32 %v1286, %v1287
    %1290 = vrot.lane.b32.xlu0 %v1220, 104
    %v1291 = vpop.permute.xlu0 %1290
    %v1293 = vadd.f32 %v1220, %v1291
    %1295 = vrot.lane.b32.xlu0 %v1288, 104
    %v1296 = vpop.permute.xlu0 %1295
    %v1298 = vadd.f32 %v1288, %v1296
    %1299 = vrot.lane.b32.xlu0 %v1220, 80
    %v1300 = vpop.permute.xlu0 %1299
    %v1302 = vadd.f32 %v1293, %v1300
    %1303 = vrot.lane.b32.xlu0 %v1288, 80
    %v1304 = vpop.permute.xlu0 %1303
    %v1306 = vadd.f32 %v1298, %v1304
    %1307 = vrot.lane.b32.xlu0 %v1220, 56
    %v1308 = vpop.permute.xlu0 %1307
    %v1310 = vadd.f32 %v1302, %v1308
    %1311 = vrot.lane.b32.xlu0 %v1288, 56
    %v1312 = vpop.permute.xlu0 %1311
    %v1314 = vadd.f32 %v1306, %v1312
    %1315 = vrot.lane.b32.xlu0 %v1220, 32
    %v1316 = vpop.permute.xlu0 %1315
    %v1318 = vadd.f32 %v1310, %v1316
    %1319 = vrot.lane.b32.xlu0 %v1288, 32
    %v1320 = vpop.permute.xlu0 %1319
    %v1322 = vadd.f32 %v1314, %v1320
    %v1323 = vmul.f32 %v1318, %v689
    %v1324 = vmul.f32 %v1322, %v689
    %v1325 = vmul.f32 %v1323, %v1323
    %v1326 = vsub.f32 %v1324, %v1325
    %v1327 = vmax.f32 %v1326, 0.0
    %v1328 = vadd.f32 %v1327, 1e-05
    %v1329 = vrsqrt.pop %v1328
    %v1331 = vrot.slane %v1329, 6
    %v1333 = vmul.f32 %v54, %v1331
    %v1335 = vrot.slane %v1333, 2
    %v1337 = vmul.f32 %v1323, %v1335
    %v1339 = vrot.slane %v1337, 5
    %v1341 = vsub.f32 %v54, %v1339
    %v1342 = vsel %vm703, %v1335, 0
    %1344 = vmatprep.subr.mxu0 0.0
    %1345 = vmatpush1.msra.mxu0 0.0
    %1346 = vmatprep.subr.mxu0 0.0
    %1347 = vmatpush1.msra.mxu0 0.0
    %1348 = vmatprep.subr.mxu0 0.0
    %1349 = vmatpush1.msra.mxu0 0.0
    %1350 = vmatprep.subr.mxu0 0.0
    %1351 = vmatpush1.msra.mxu0 0.0
    %1352 = vmatprep.subr.mxu0 0.0
    %1353 = vmatpush1.msra.mxu0 0.0
    %1354 = vmatprep.subr.mxu0 0.0
    %1355 = vmatpush1.msra.mxu0 0.0
    %1356 = vmatprep.subr.mxu0 0.0
    %1357 = vmatpush1.msra.mxu0 0.0
    %1358 = vmatprep.subr.mxu0 0.0
    %1359 = vmatpush1.msra.mxu0 0.0
    %1360 = vmatprep.subr.mxu0 0.0
    %1361 = vmatpush1.msra.mxu0 0.0
    %1362 = vmatprep.subr.mxu0 0.0
    %1363 = vmatpush1.msra.mxu0 0.0
    %1364 = vmatprep.subr.mxu0 0.0
    %1365 = vmatpush1.msra.mxu0 0.0
    %1366 = vmatprep.subr.mxu0 0.0
    %1367 = vmatpush1.msra.mxu0 0.0
    %1368 = vmatprep.subr.mxu0 0.0
    %1369 = vmatpush1.msra.mxu0 0.0
    %1370 = vmatprep.subr.mxu0 0.0
    %1371 = vmatpush1.msra.mxu0 %v60
    %1372 = vmatprep.subr.mxu0 0.0
    %1373 = vmatpush1.msra.mxu0 %v59
    %1374 = vmatprep.subr.mxu0 0.0
    %1375 = vmatpush1.msra.mxu0 %v58
    %1376 = vmatprep.subr.mxu0 0.0
    %1377 = vmatpush2.msra.mxu0 0.0
    %1378 = vmatprep.subr.mxu0 0.0
    %1379 = vmatpush2.msra.mxu0 0.0
    %1380 = vmatprep.subr.mxu0 0.0
    %1381 = vmatpush2.msra.mxu0 0.0
    %1382 = vmatprep.subr.mxu0 0.0
    %1383 = vmatpush2.msra.mxu0 0.0
    %1384 = vmatprep.subr.mxu0 0.0
    %1385 = vmatpush2.msra.mxu0 0.0
    %1386 = vmatprep.subr.mxu0 0.0
    %1387 = vmatpush2.msra.mxu0 0.0
    %1388 = vmatprep.subr.mxu0 0.0
    %1389 = vmatpush2.msra.mxu0 0.0
    %1390 = vmatprep.subr.mxu0 0.0
    %1391 = vmatpush2.msra.mxu0 0.0
    %1392 = vmatprep.subr.mxu0 0.0
    %1393 = vmatpush2.msra.mxu0 0.0
    %1394 = vmatprep.subr.mxu0 0.0
    %1395 = vmatpush2.msra.mxu0 0.0
    %1396 = vmatprep.subr.mxu0 0.0
    %1397 = vmatpush2.msra.mxu0 0.0
    %1398 = vmatprep.subr.mxu0 0.0
    %1399 = vmatpush2.msra.mxu0 0.0
    %1400 = vmatprep.subr.mxu0 0.0
    %1401 = vmatpush2.msra.mxu0 0.0
    %1402 = vmatprep.subr.mxu0 0.0
    %1403 = vmatpush2.msra.mxu0 0.0
    %1404 = vmatprep.subr.mxu0 0.0
    %1405 = vmatpush2.msra.mxu0 0.0
    %1406 = vmatprep.subr.mxu0 0.0
    %1407 = vmatpush2.msra.mxu0 0.0
    %1408 = vmatprep.mubr.f32.mxu0 0.0
    %1409 = vmatmul.mubr.f32.gmra.mxu0 %v1342
    %v1410 = vpop.f32.mrf.mxu0
    %v1411 = vadd.f32 0.0, %v1410
    %v1412 = vpop.f32.mrf.mxu0
    %1413 = vdwg.mxu0
    %v1415 = vrot.slane %v1341, 3
    %v1416 = vsel %vm703, %v1415, 0
    %1418 = vmatprep.subr.mxu0 0.0
    %1419 = vmatpush1.msra.mxu0 0.0
    %1420 = vmatprep.subr.mxu0 0.0
    %1421 = vmatpush1.msra.mxu0 0.0
    %1422 = vmatprep.subr.mxu0 0.0
    %1423 = vmatpush1.msra.mxu0 0.0
    %1424 = vmatprep.subr.mxu0 0.0
    %1425 = vmatpush1.msra.mxu0 0.0
    %1426 = vmatprep.subr.mxu0 0.0
    %1427 = vmatpush1.msra.mxu0 0.0
    %1428 = vmatprep.subr.mxu0 0.0
    %1429 = vmatpush1.msra.mxu0 0.0
    %1430 = vmatprep.subr.mxu0 0.0
    %1431 = vmatpush1.msra.mxu0 0.0
    %1432 = vmatprep.subr.mxu0 0.0
    %1433 = vmatpush1.msra.mxu0 0.0
    %1434 = vmatprep.subr.mxu0 0.0
    %1435 = vmatpush1.msra.mxu0 0.0
    %1436 = vmatprep.subr.mxu0 0.0
    %1437 = vmatpush1.msra.mxu0 0.0
    %1438 = vmatprep.subr.mxu0 0.0
    %1439 = vmatpush1.msra.mxu0 0.0
    %1440 = vmatprep.subr.mxu0 0.0
    %1441 = vmatpush1.msra.mxu0 0.0
    %1442 = vmatprep.subr.mxu0 0.0
    %1443 = vmatpush1.msra.mxu0 0.0
    %1444 = vmatprep.subr.mxu0 0.0
    %1445 = vmatpush1.msra.mxu0 %v60
    %1446 = vmatprep.subr.mxu0 0.0
    %1447 = vmatpush1.msra.mxu0 %v59
    %1448 = vmatprep.subr.mxu0 0.0
    %1449 = vmatpush1.msra.mxu0 %v58
    %1450 = vmatprep.subr.mxu0 0.0
    %1451 = vmatpush2.msra.mxu0 0.0
    %1452 = vmatprep.subr.mxu0 0.0
    %1453 = vmatpush2.msra.mxu0 0.0
    %1454 = vmatprep.subr.mxu0 0.0
    %1455 = vmatpush2.msra.mxu0 0.0
    %1456 = vmatprep.subr.mxu0 0.0
    %1457 = vmatpush2.msra.mxu0 0.0
    %1458 = vmatprep.subr.mxu0 0.0
    %1459 = vmatpush2.msra.mxu0 0.0
    %1460 = vmatprep.subr.mxu0 0.0
    %1461 = vmatpush2.msra.mxu0 0.0
    %1462 = vmatprep.subr.mxu0 0.0
    %1463 = vmatpush2.msra.mxu0 0.0
    %1464 = vmatprep.subr.mxu0 0.0
    %1465 = vmatpush2.msra.mxu0 0.0
    %1466 = vmatprep.subr.mxu0 0.0
    %1467 = vmatpush2.msra.mxu0 0.0
    %1468 = vmatprep.subr.mxu0 0.0
    %1469 = vmatpush2.msra.mxu0 0.0
    %1470 = vmatprep.subr.mxu0 0.0
    %1471 = vmatpush2.msra.mxu0 0.0
    %1472 = vmatprep.subr.mxu0 0.0
    %1473 = vmatpush2.msra.mxu0 0.0
    %1474 = vmatprep.subr.mxu0 0.0
    %1475 = vmatpush2.msra.mxu0 0.0
    %1476 = vmatprep.subr.mxu0 0.0
    %1477 = vmatpush2.msra.mxu0 0.0
    %1478 = vmatprep.subr.mxu0 0.0
    %1479 = vmatpush2.msra.mxu0 0.0
    %1480 = vmatprep.subr.mxu0 0.0
    %1481 = vmatpush2.msra.mxu0 0.0
    %1482 = vmatprep.mubr.f32.mxu0 0.0
    %1483 = vmatmul.mubr.f32.gmra.mxu0 %v1416
    %v1484 = vpop.f32.mrf.mxu0
    %v1485 = vadd.f32 0.0, %v1484
    %v1486 = vpop.f32.mrf.mxu0
    %1487 = vdwg.mxu0
    %v1488 = vlaneseq
    %v1489 = vshrl.u32 %v1488, 7
    %v1490 = vsub.s32 0, %v1489
    %v1491 = vrot.slane %v1411, %v1490
    %v1492 = vmul.f32 %v1071, %v1491
    %v1493 = vmul.f32 %v1076, %v1491
    %v1494 = vmul.f32 %v1081, %v1491
    %v1495 = vmul.f32 %v1086, %v1491
    %v1496 = vmul.f32 %v1091, %v1491
    %v1497 = vmul.f32 %v1096, %v1491
    %v1498 = vmul.f32 %v1101, %v1491
    %v1499 = vmul.f32 %v1106, %v1491
    %v1500 = vmul.f32 %v1111, %v1491
    %v1501 = vmul.f32 %v1116, %v1491
    %v1502 = vmul.f32 %v1121, %v1491
    %v1503 = vmul.f32 %v1126, %v1491
    %v1504 = vmul.f32 %v1131, %v1491
    %v1505 = vmul.f32 %v1136, %v1491
    %v1506 = vmul.f32 %v1141, %v1491
    %v1507 = vmul.f32 %v1146, %v1491
    %v1508 = vmul.f32 %v1151, %v1491
    %v1509 = vmul.f32 %v1156, %v1491
    %v1510 = vmul.f32 %v1161, %v1491
    %v1511 = vmul.f32 %v1166, %v1491
    %v1512 = vmul.f32 %v1171, %v1491
    %v1513 = vlaneseq
    %v1514 = vshrl.u32 %v1513, 7
    %v1515 = vsub.s32 0, %v1514
    %v1516 = vrot.slane %v1485, %v1515
    %v1517 = vadd.f32 %v1492, %v1516
    %v1518 = vadd.f32 %v1493, %v1516
    %v1519 = vadd.f32 %v1494, %v1516
    %v1520 = vadd.f32 %v1495, %v1516
    %v1521 = vadd.f32 %v1496, %v1516
    %v1522 = vadd.f32 %v1497, %v1516
    %v1523 = vadd.f32 %v1498, %v1516
    %v1524 = vadd.f32 %v1499, %v1516
    %v1525 = vadd.f32 %v1500, %v1516
    %v1526 = vadd.f32 %v1501, %v1516
    %v1527 = vadd.f32 %v1502, %v1516
    %v1528 = vadd.f32 %v1503, %v1516
    %v1529 = vadd.f32 %v1504, %v1516
    %v1530 = vadd.f32 %v1505, %v1516
    %v1531 = vadd.f32 %v1506, %v1516
    %v1532 = vadd.f32 %v1507, %v1516
    %v1533 = vadd.f32 %v1508, %v1516
    %v1534 = vadd.f32 %v1509, %v1516
    %v1535 = vadd.f32 %v1510, %v1516
    %v1536 = vadd.f32 %v1511, %v1516
    %v1537 = vadd.f32 %v1512, %v1516
    %v1538 = vmax.f32 %v1517, 0.0
    %v1539 = vmax.f32 %v1518, 0.0
    %v1540 = vmax.f32 %v1519, 0.0
    %v1541 = vmax.f32 %v1520, 0.0
    %v1542 = vmax.f32 %v1521, 0.0
    %v1543 = vmax.f32 %v1522, 0.0
    %v1544 = vmax.f32 %v1523, 0.0
    %v1545 = vmax.f32 %v1524, 0.0
    %v1546 = vmax.f32 %v1525, 0.0
    %v1547 = vmax.f32 %v1526, 0.0
    %v1548 = vmax.f32 %v1527, 0.0
    %v1549 = vmax.f32 %v1528, 0.0
    %v1550 = vmax.f32 %v1529, 0.0
    %v1551 = vmax.f32 %v1530, 0.0
    %v1552 = vmax.f32 %v1531, 0.0
    %v1553 = vmax.f32 %v1532, 0.0
    %v1554 = vmax.f32 %v1533, 0.0
    %v1555 = vmax.f32 %v1534, 0.0
    %v1556 = vmax.f32 %v1535, 0.0
    %v1557 = vmax.f32 %v1536, 0.0
    %v1558 = vmax.f32 %v1537, 0.0
    %v1559 = vld [vmem:[%s3] sm:$0xff]
    %v1560 = vld [vmem:[%s3 + $0x8] sm:$0xff]
    %v1561 = vld [vmem:[%s3 + $0x10] sm:$0xff]
    %v1562 = vld [vmem:[%s3 + $0x18] sm:$0xff]
    %v1563 = vld [vmem:[%s3 + $0x20] sm:$0xff]
    %v1564 = vld [vmem:[%s3 + $0x28] sm:$0xff]
    %v1565 = vld [vmem:[%s3 + $0x30] sm:$0xff]
    %v1566 = vld [vmem:[%s3 + $0x38] sm:$0xff]
    %v1567 = vld [vmem:[%s3 + $0x40] sm:$0xff]
    %v1568 = vld [vmem:[%s3 + $0x48] sm:$0xff]
    %v1569 = vld [vmem:[%s3 + $0x50] sm:$0xff]
    %v1570 = vld [vmem:[%s3 + $0x58] sm:$0xff]
    %v1571 = vld [vmem:[%s3 + $0x60] sm:$0xff]
    %v1572 = vld [vmem:[%s3 + $0x68] sm:$0xff]
    %v1573 = vld [vmem:[%s3 + $0x70] sm:$0xff]
    %v1574 = vlaneseq
    %v1575 = vshrl.u32 %v1574, 7
    %v1576 = vsub.s32 2, %v1575
    %v1577 = vrot.slane %v57, %v1576
    %v1579 = vsel %vm538, %v1538, 0
    %v1582 = vsel %vm538, %v1539, 0
    %v1585 = vsel %vm538, %v1540, 0
    %v1588 = vsel %vm538, %v1541, 0
    %v1591 = vsel %vm538, %v1542, 0
    %v1594 = vsel %vm538, %v1543, 0
    %v1597 = vsel %vm538, %v1544, 0
    %v1600 = vsel %vm538, %v1545, 0
    %v1603 = vsel %vm538, %v1546, 0
    %v1606 = vsel %vm538, %v1547, 0
    %v1609 = vsel %vm538, %v1548, 0
    %v1612 = vsel %vm538, %v1549, 0
    %v1615 = vsel %vm538, %v1550, 0
    %v1618 = vsel %vm538, %v1551, 0
    %v1621 = vsel %vm538, %v1552, 0
    %v1624 = vsel %vm538, %v1553, 0
    %v1627 = vsel %vm538, %v1554, 0
    %v1630 = vsel %vm538, %v1555, 0
    %v1633 = vsel %vm538, %v1556, 0
    %v1636 = vsel %vm538, %v1557, 0
    %v1639 = vsel %vm538, %v1558, 0
    %1641 = vmatprep.subr.mxu0 0.0
    %1642 = vmatpush1.msra.mxu0 0.0
    %1643 = vmatprep.subr.mxu0 0.0
    %1644 = vmatpush1.msra.mxu0 %v1573
    %1645 = vmatprep.subr.mxu0 0.0
    %1646 = vmatpush1.msra.mxu0 %v1572
    %1647 = vmatprep.subr.mxu0 0.0
    %1648 = vmatpush1.msra.mxu0 %v1571
    %1649 = vmatprep.subr.mxu0 0.0
    %1650 = vmatpush1.msra.mxu0 %v1570
    %1651 = vmatprep.subr.mxu0 0.0
    %1652 = vmatpush1.msra.mxu0 %v1569
    %1653 = vmatprep.subr.mxu0 0.0
    %1654 = vmatpush1.msra.mxu0 %v1568
    %1655 = vmatprep.subr.mxu0 0.0
    %1656 = vmatpush1.msra.mxu0 %v1567
    %1657 = vmatprep.subr.mxu0 0.0
    %1658 = vmatpush1.msra.mxu0 %v1566
    %1659 = vmatprep.subr.mxu0 0.0
    %1660 = vmatpush1.msra.mxu0 %v1565
    %1661 = vmatprep.subr.mxu0 0.0
    %1662 = vmatpush1.msra.mxu0 %v1564
    %1663 = vmatprep.subr.mxu0 0.0
    %1664 = vmatpush1.msra.mxu0 %v1563
    %1665 = vmatprep.subr.mxu0 0.0
    %1666 = vmatpush1.msra.mxu0 %v1562
    %1667 = vmatprep.subr.mxu0 0.0
    %1668 = vmatpush1.msra.mxu0 %v1561
    %1669 = vmatprep.subr.mxu0 0.0
    %1670 = vmatpush1.msra.mxu0 %v1560
    %1671 = vmatprep.subr.mxu0 0.0
    %1672 = vmatpush1.msra.mxu0 %v1559
    %1673 = vmatprep.subr.mxu0 0.0
    %1674 = vmatpush2.msra.mxu0 0.0
    %1675 = vmatprep.subr.mxu0 0.0
    %1676 = vmatpush2.msra.mxu0 0.0
    %1677 = vmatprep.subr.mxu0 0.0
    %1678 = vmatpush2.msra.mxu0 0.0
    %1679 = vmatprep.subr.mxu0 0.0
    %1680 = vmatpush2.msra.mxu0 0.0
    %1681 = vmatprep.subr.mxu0 0.0
    %1682 = vmatpush2.msra.mxu0 0.0
    %1683 = vmatprep.subr.mxu0 0.0
    %1684 = vmatpush2.msra.mxu0 0.0
    %1685 = vmatprep.subr.mxu0 0.0
    %1686 = vmatpush2.msra.mxu0 0.0
    %1687 = vmatprep.subr.mxu0 0.0
    %1688 = vmatpush2.msra.mxu0 0.0
    %1689 = vmatprep.subr.mxu0 0.0
    %1690 = vmatpush2.msra.mxu0 0.0
    %1691 = vmatprep.subr.mxu0 0.0
    %1692 = vmatpush2.msra.mxu0 0.0
    %1693 = vmatprep.subr.mxu0 0.0
    %1694 = vmatpush2.msra.mxu0 0.0
    %1695 = vmatprep.subr.mxu0 0.0
    %1696 = vmatpush2.msra.mxu0 0.0
    %1697 = vmatprep.subr.mxu0 0.0
    %1698 = vmatpush2.msra.mxu0 0.0
    %1699 = vmatprep.subr.mxu0 0.0
    %1700 = vmatpush2.msra.mxu0 0.0
    %1701 = vmatprep.subr.mxu0 0.0
    %1702 = vmatpush2.msra.mxu0 0.0
    %1703 = vmatprep.subr.mxu0 0.0
    %1704 = vmatpush2.msra.mxu0 0.0
    %1705 = vmatprep.mubr.f32.mxu0 0.0
    %1706 = vmatmul.mubr.f32.gmra.mxu0 %v1579
    %v1707 = vpop.f32.mrf.mxu0
    %v1708 = vadd.f32 %v1577, %v1707
    %v1709 = vpop.f32.mrf.mxu0
    %1710 = vmatprep.mubr.f32.mxu0 0.0
    %1711 = vmatmul.mubr.f32.gmra.mxu0 %v1582
    %v1712 = vpop.f32.mrf.mxu0
    %v1713 = vadd.f32 %v1577, %v1712
    %v1714 = vpop.f32.mrf.mxu0
    %1715 = vmatprep.mubr.f32.mxu0 0.0
    %1716 = vmatmul.mubr.f32.gmra.mxu0 %v1585
    %v1717 = vpop.f32.mrf.mxu0
    %v1718 = vadd.f32 %v1577, %v1717
    %v1719 = vpop.f32.mrf.mxu0
    %1720 = vmatprep.mubr.f32.mxu0 0.0
    %1721 = vmatmul.mubr.f32.gmra.mxu0 %v1588
    %v1722 = vpop.f32.mrf.mxu0
    %v1723 = vadd.f32 %v1577, %v1722
    %v1724 = vpop.f32.mrf.mxu0
    %1725 = vmatprep.mubr.f32.mxu0 0.0
    %1726 = vmatmul.mubr.f32.gmra.mxu0 %v1591
    %v1727 = vpop.f32.mrf.mxu0
    %v1728 = vadd.f32 %v1577, %v1727
    %v1729 = vpop.f32.mrf.mxu0
    %1730 = vmatprep.mubr.f32.mxu0 0.0
    %1731 = vmatmul.mubr.f32.gmra.mxu0 %v1594
    %v1732 = vpop.f32.mrf.mxu0
    %v1733 = vadd.f32 %v1577, %v1732
    %v1734 = vpop.f32.mrf.mxu0
    %1735 = vmatprep.mubr.f32.mxu0 0.0
    %1736 = vmatmul.mubr.f32.gmra.mxu0 %v1597
    %v1737 = vpop.f32.mrf.mxu0
    %v1738 = vadd.f32 %v1577, %v1737
    %v1739 = vpop.f32.mrf.mxu0
    %1740 = vmatprep.mubr.f32.mxu0 0.0
    %1741 = vmatmul.mubr.f32.gmra.mxu0 %v1600
    %v1742 = vpop.f32.mrf.mxu0
    %v1743 = vadd.f32 %v1577, %v1742
    %v1744 = vpop.f32.mrf.mxu0
    %1745 = vmatprep.mubr.f32.mxu0 0.0
    %1746 = vmatmul.mubr.f32.gmra.mxu0 %v1603
    %v1747 = vpop.f32.mrf.mxu0
    %v1748 = vadd.f32 %v1577, %v1747
    %v1749 = vpop.f32.mrf.mxu0
    %1750 = vmatprep.mubr.f32.mxu0 0.0
    %1751 = vmatmul.mubr.f32.gmra.mxu0 %v1606
    %v1752 = vpop.f32.mrf.mxu0
    %v1753 = vadd.f32 %v1577, %v1752
    %v1754 = vpop.f32.mrf.mxu0
    %1755 = vmatprep.mubr.f32.mxu0 0.0
    %1756 = vmatmul.mubr.f32.gmra.mxu0 %v1609
    %v1757 = vpop.f32.mrf.mxu0
    %v1758 = vadd.f32 %v1577, %v1757
    %v1759 = vpop.f32.mrf.mxu0
    %1760 = vmatprep.mubr.f32.mxu0 0.0
    %1761 = vmatmul.mubr.f32.gmra.mxu0 %v1612
    %v1762 = vpop.f32.mrf.mxu0
    %v1763 = vadd.f32 %v1577, %v1762
    %v1764 = vpop.f32.mrf.mxu0
    %1765 = vmatprep.mubr.f32.mxu0 0.0
    %1766 = vmatmul.mubr.f32.gmra.mxu0 %v1615
    %v1767 = vpop.f32.mrf.mxu0
    %v1768 = vadd.f32 %v1577, %v1767
    %v1769 = vpop.f32.mrf.mxu0
    %1770 = vmatprep.mubr.f32.mxu0 0.0
    %1771 = vmatmul.mubr.f32.gmra.mxu0 %v1618
    %v1772 = vpop.f32.mrf.mxu0
    %v1773 = vadd.f32 %v1577, %v1772
    %v1774 = vpop.f32.mrf.mxu0
    %1775 = vmatprep.mubr.f32.mxu0 0.0
    %1776 = vmatmul.mubr.f32.gmra.mxu0 %v1621
    %v1777 = vpop.f32.mrf.mxu0
    %v1778 = vadd.f32 %v1577, %v1777
    %v1779 = vpop.f32.mrf.mxu0
    %1780 = vmatprep.mubr.f32.mxu0 0.0
    %1781 = vmatmul.mubr.f32.gmra.mxu0 %v1624
    %v1782 = vpop.f32.mrf.mxu0
    %v1783 = vadd.f32 %v1577, %v1782
    %v1784 = vpop.f32.mrf.mxu0
    %1785 = vmatprep.mubr.f32.mxu0 0.0
    %1786 = vmatmul.mubr.f32.gmra.mxu0 %v1627
    %v1787 = vpop.f32.mrf.mxu0
    %v1788 = vadd.f32 %v1577, %v1787
    %v1789 = vpop.f32.mrf.mxu0
    %1790 = vmatprep.mubr.f32.mxu0 0.0
    %1791 = vmatmul.mubr.f32.gmra.mxu0 %v1630
    %v1792 = vpop.f32.mrf.mxu0
    %v1793 = vadd.f32 %v1577, %v1792
    %v1794 = vpop.f32.mrf.mxu0
    %1795 = vmatprep.mubr.f32.mxu0 0.0
    %1796 = vmatmul.mubr.f32.gmra.mxu0 %v1633
    %v1797 = vpop.f32.mrf.mxu0
    %v1798 = vadd.f32 %v1577, %v1797
    %v1799 = vpop.f32.mrf.mxu0
    %1800 = vmatprep.mubr.f32.mxu0 0.0
    %1801 = vmatmul.mubr.f32.gmra.mxu0 %v1636
    %v1802 = vpop.f32.mrf.mxu0
    %v1803 = vadd.f32 %v1577, %v1802
    %v1804 = vpop.f32.mrf.mxu0
    %1805 = vmatprep.mubr.f32.mxu0 0.0
    %1806 = vmatmul.mubr.f32.gmra.mxu0 %v1639
    %v1807 = vpop.f32.mrf.mxu0
    %v1808 = vadd.f32 %v1577, %v1807
    %v1809 = vpop.f32.mrf.mxu0
    %1810 = vdwg.mxu0
    %v1811 = vadd.f32 %v1708, %v901
    %v1812 = vadd.f32 %v1713, %v902
    %v1813 = vadd.f32 %v1718, %v903
    %v1814 = vadd.f32 %v1723, %v904
    %v1815 = vadd.f32 %v1728, %v905
    %v1816 = vadd.f32 %v1733, %v906
    %v1817 = vadd.f32 %v1738, %v907
    %v1818 = vadd.f32 %v1743, %v908
    %v1819 = vadd.f32 %v1748, %v909
    %v1820 = vadd.f32 %v1753, %v910
    %v1821 = vadd.f32 %v1758, %v911
    %v1822 = vadd.f32 %v1763, %v912
    %v1823 = vadd.f32 %v1768, %v913
    %v1824 = vadd.f32 %v1773, %v914
    %v1825 = vadd.f32 %v1778, %v915
    %v1826 = vadd.f32 %v1783, %v916
    %v1827 = vadd.f32 %v1788, %v917
    %v1828 = vadd.f32 %v1793, %v918
    %v1829 = vadd.f32 %v1798, %v919
    %v1830 = vadd.f32 %v1803, %v920
    %v1831 = vadd.f32 %v1808, %v921
    %v1832 = vsel %vm538, %v1811, 0.0
    %v1833 = vsel %vm538, %v1812, 0.0
    %v1834 = vadd.f32 %v1832, %v1833
    %v1835 = vsel %vm538, %v1813, 0.0
    %v1836 = vadd.f32 %v1834, %v1835
    %v1837 = vsel %vm538, %v1814, 0.0
    %v1838 = vadd.f32 %v1836, %v1837
    %v1839 = vsel %vm538, %v1815, 0.0
    %v1840 = vadd.f32 %v1838, %v1839
    %v1841 = vsel %vm538, %v1816, 0.0
    %v1842 = vadd.f32 %v1840, %v1841
    %v1843 = vsel %vm538, %v1817, 0.0
    %v1844 = vadd.f32 %v1842, %v1843
    %v1845 = vsel %vm538, %v1818, 0.0
    %v1846 = vadd.f32 %v1844, %v1845
    %v1847 = vsel %vm538, %v1819, 0.0
    %v1848 = vadd.f32 %v1846, %v1847
    %v1849 = vsel %vm538, %v1820, 0.0
    %v1850 = vadd.f32 %v1848, %v1849
    %v1851 = vsel %vm538, %v1821, 0.0
    %v1852 = vadd.f32 %v1850, %v1851
    %v1853 = vsel %vm538, %v1822, 0.0
    %v1854 = vadd.f32 %v1852, %v1853
    %v1855 = vsel %vm538, %v1823, 0.0
    %v1856 = vadd.f32 %v1854, %v1855
    %v1857 = vsel %vm538, %v1824, 0.0
    %v1858 = vadd.f32 %v1856, %v1857
    %v1859 = vsel %vm538, %v1825, 0.0
    %v1860 = vadd.f32 %v1858, %v1859
    %v1861 = vsel %vm538, %v1826, 0.0
    %v1862 = vadd.f32 %v1860, %v1861
    %v1863 = vsel %vm538, %v1827, 0.0
    %v1864 = vadd.f32 %v1862, %v1863
    %v1865 = vsel %vm538, %v1828, 0.0
    %v1866 = vadd.f32 %v1864, %v1865
    %v1867 = vsel %vm538, %v1829, 0.0
    %v1868 = vadd.f32 %v1866, %v1867
    %v1869 = vsel %vm538, %v1830, 0.0
    %v1870 = vadd.f32 %v1868, %v1869
    %v1871 = vsel %vm578, %v1831, 0.0
    %v1872 = vadd.f32 %v1870, %v1871
    %v1873 = vrot.slane %v1872, 4
    %v1874 = vadd.f32 %v1872, %v1873
    %v1875 = vrot.slane %v1874, 2
    %v1876 = vadd.f32 %v1874, %v1875
    %v1877 = vrot.slane %v1876, 1
    %v1878 = vadd.f32 %v1876, %v1877
    %v1879 = vmul.f32 %v1811, %v1811
    %v1880 = vmul.f32 %v1812, %v1812
    %v1881 = vmul.f32 %v1813, %v1813
    %v1882 = vmul.f32 %v1814, %v1814
    %v1883 = vmul.f32 %v1815, %v1815
    %v1884 = vmul.f32 %v1816, %v1816
    %v1885 = vmul.f32 %v1817, %v1817
    %v1886 = vmul.f32 %v1818, %v1818
    %v1887 = vmul.f32 %v1819, %v1819
    %v1888 = vmul.f32 %v1820, %v1820
    %v1889 = vmul.f32 %v1821, %v1821
    %v1890 = vmul.f32 %v1822, %v1822
    %v1891 = vmul.f32 %v1823, %v1823
    %v1892 = vmul.f32 %v1824, %v1824
    %v1893 = vmul.f32 %v1825, %v1825
    %v1894 = vmul.f32 %v1826, %v1826
    %v1895 = vmul.f32 %v1827, %v1827
    %v1896 = vmul.f32 %v1828, %v1828
    %v1897 = vmul.f32 %v1829, %v1829
    %v1898 = vmul.f32 %v1830, %v1830
    %v1899 = vmul.f32 %v1831, %v1831
    %v1900 = vsel %vm538, %v1879, 0.0
    %v1901 = vsel %vm538, %v1880, 0.0
    %v1902 = vadd.f32 %v1900, %v1901
    %v1903 = vsel %vm538, %v1881, 0.0
    %v1904 = vadd.f32 %v1902, %v1903
    %v1905 = vsel %vm538, %v1882, 0.0
    %v1906 = vadd.f32 %v1904, %v1905
    %v1907 = vsel %vm538, %v1883, 0.0
    %v1908 = vadd.f32 %v1906, %v1907
    %v1909 = vsel %vm538, %v1884, 0.0
    %v1910 = vadd.f32 %v1908, %v1909
    %v1911 = vsel %vm538, %v1885, 0.0
    %v1912 = vadd.f32 %v1910, %v1911
    %v1913 = vsel %vm538, %v1886, 0.0
    %v1914 = vadd.f32 %v1912, %v1913
    %v1915 = vsel %vm538, %v1887, 0.0
    %v1916 = vadd.f32 %v1914, %v1915
    %v1917 = vsel %vm538, %v1888, 0.0
    %v1918 = vadd.f32 %v1916, %v1917
    %v1919 = vsel %vm538, %v1889, 0.0
    %v1920 = vadd.f32 %v1918, %v1919
    %v1921 = vsel %vm538, %v1890, 0.0
    %v1922 = vadd.f32 %v1920, %v1921
    %v1923 = vsel %vm538, %v1891, 0.0
    %v1924 = vadd.f32 %v1922, %v1923
    %v1925 = vsel %vm538, %v1892, 0.0
    %v1926 = vadd.f32 %v1924, %v1925
    %v1927 = vsel %vm538, %v1893, 0.0
    %v1928 = vadd.f32 %v1926, %v1927
    %v1929 = vsel %vm538, %v1894, 0.0
    %v1930 = vadd.f32 %v1928, %v1929
    %v1931 = vsel %vm538, %v1895, 0.0
    %v1932 = vadd.f32 %v1930, %v1931
    %v1933 = vsel %vm538, %v1896, 0.0
    %v1934 = vadd.f32 %v1932, %v1933
    %v1935 = vsel %vm538, %v1897, 0.0
    %v1936 = vadd.f32 %v1934, %v1935
    %v1937 = vsel %vm538, %v1898, 0.0
    %v1938 = vadd.f32 %v1936, %v1937
    %v1939 = vsel %vm578, %v1899, 0.0
    %v1940 = vadd.f32 %v1938, %v1939
    %v1941 = vrot.slane %v1940, 4
    %v1942 = vadd.f32 %v1940, %v1941
    %v1943 = vrot.slane %v1942, 2
    %v1944 = vadd.f32 %v1942, %v1943
    %v1945 = vrot.slane %v1944, 1
    %v1946 = vadd.f32 %v1944, %v1945
    %1948 = vrot.lane.b32.xlu0 %v1878, 104
    %v1949 = vpop.permute.xlu0 %1948
    %v1951 = vadd.f32 %v1878, %v1949
    %1953 = vrot.lane.b32.xlu0 %v1946, 104
    %v1954 = vpop.permute.xlu0 %1953
    %v1956 = vadd.f32 %v1946, %v1954
    %1957 = vrot.lane.b32.xlu0 %v1878, 80
    %v1958 = vpop.permute.xlu0 %1957
    %v1960 = vadd.f32 %v1951, %v1958
    %1961 = vrot.lane.b32.xlu0 %v1946, 80
    %v1962 = vpop.permute.xlu0 %1961
    %v1964 = vadd.f32 %v1956, %v1962
    %1965 = vrot.lane.b32.xlu0 %v1878, 56
    %v1966 = vpop.permute.xlu0 %1965
    %v1968 = vadd.f32 %v1960, %v1966
    %1969 = vrot.lane.b32.xlu0 %v1946, 56
    %v1970 = vpop.permute.xlu0 %1969
    %v1972 = vadd.f32 %v1964, %v1970
    %1973 = vrot.lane.b32.xlu0 %v1878, 32
    %v1974 = vpop.permute.xlu0 %1973
    %v1976 = vadd.f32 %v1968, %v1974
    %1977 = vrot.lane.b32.xlu0 %v1946, 32
    %v1978 = vpop.permute.xlu0 %1977
    %v1980 = vadd.f32 %v1972, %v1978
    %v1981 = vmul.f32 %v1976, %v689
    %v1982 = vmul.f32 %v1980, %v689
    %v1983 = vmul.f32 %v1981, %v1981
    %v1984 = vsub.f32 %v1982, %v1983
    %v1985 = vmax.f32 %v1984, 0.0
    %v1986 = vadd.f32 %v1985, 1e-05
    %v1987 = vrsqrt.pop %v1986
    %v1989 = vrot.slane %v1987, 4
    %v1991 = vmul.f32 %v54, %v1989
    %v1993 = vrot.slane %v1991, 4
    %v1995 = vmul.f32 %v1981, %v1993
    %v1997 = vrot.slane %v1995, 3
    %v1999 = vsub.f32 %v54, %v1997
    %v2000 = vsel %vm703, %v1993, 0
    %2002 = vmatprep.subr.mxu0 0.0
    %2003 = vmatpush1.msra.mxu0 0.0
    %2004 = vmatprep.subr.mxu0 0.0
    %2005 = vmatpush1.msra.mxu0 0.0
    %2006 = vmatprep.subr.mxu0 0.0
    %2007 = vmatpush1.msra.mxu0 0.0
    %2008 = vmatprep.subr.mxu0 0.0
    %2009 = vmatpush1.msra.mxu0 0.0
    %2010 = vmatprep.subr.mxu0 0.0
    %2011 = vmatpush1.msra.mxu0 0.0
    %2012 = vmatprep.subr.mxu0 0.0
    %2013 = vmatpush1.msra.mxu0 0.0
    %2014 = vmatprep.subr.mxu0 0.0
    %2015 = vmatpush1.msra.mxu0 0.0
    %2016 = vmatprep.subr.mxu0 0.0
    %2017 = vmatpush1.msra.mxu0 0.0
    %2018 = vmatprep.subr.mxu0 0.0
    %2019 = vmatpush1.msra.mxu0 0.0
    %2020 = vmatprep.subr.mxu0 0.0
    %2021 = vmatpush1.msra.mxu0 0.0
    %2022 = vmatprep.subr.mxu0 0.0
    %2023 = vmatpush1.msra.mxu0 0.0
    %2024 = vmatprep.subr.mxu0 0.0
    %2025 = vmatpush1.msra.mxu0 0.0
    %2026 = vmatprep.subr.mxu0 0.0
    %2027 = vmatpush1.msra.mxu0 0.0
    %2028 = vmatprep.subr.mxu0 0.0
    %2029 = vmatpush1.msra.mxu0 %v60
    %2030 = vmatprep.subr.mxu0 0.0
    %2031 = vmatpush1.msra.mxu0 %v59
    %2032 = vmatprep.subr.mxu0 0.0
    %2033 = vmatpush1.msra.mxu0 %v58
    %2034 = vmatprep.subr.mxu0 0.0
    %2035 = vmatpush2.msra.mxu0 0.0
    %2036 = vmatprep.subr.mxu0 0.0
    %2037 = vmatpush2.msra.mxu0 0.0
    %2038 = vmatprep.subr.mxu0 0.0
    %2039 = vmatpush2.msra.mxu0 0.0
    %2040 = vmatprep.subr.mxu0 0.0
    %2041 = vmatpush2.msra.mxu0 0.0
    %2042 = vmatprep.subr.mxu0 0.0
    %2043 = vmatpush2.msra.mxu0 0.0
    %2044 = vmatprep.subr.mxu0 0.0
    %2045 = vmatpush2.msra.mxu0 0.0
    %2046 = vmatprep.subr.mxu0 0.0
    %2047 = vmatpush2.msra.mxu0 0.0
    %2048 = vmatprep.subr.mxu0 0.0
    %2049 = vmatpush2.msra.mxu0 0.0
    %2050 = vmatprep.subr.mxu0 0.0
    %2051 = vmatpush2.msra.mxu0 0.0
    %2052 = vmatprep.subr.mxu0 0.0
    %2053 = vmatpush2.msra.mxu0 0.0
    %2054 = vmatprep.subr.mxu0 0.0
    %2055 = vmatpush2.msra.mxu0 0.0
    %2056 = vmatprep.subr.mxu0 0.0
    %2057 = vmatpush2.msra.mxu0 0.0
    %2058 = vmatprep.subr.mxu0 0.0
    %2059 = vmatpush2.msra.mxu0 0.0
    %2060 = vmatprep.subr.mxu0 0.0
    %2061 = vmatpush2.msra.mxu0 0.0
    %2062 = vmatprep.subr.mxu0 0.0
    %2063 = vmatpush2.msra.mxu0 0.0
    %2064 = vmatprep.subr.mxu0 0.0
    %2065 = vmatpush2.msra.mxu0 0.0
    %2066 = vmatprep.mubr.f32.mxu0 0.0
    %2067 = vmatmul.mubr.f32.gmra.mxu0 %v2000
    %v2068 = vpop.f32.mrf.mxu0
    %v2069 = vadd.f32 0.0, %v2068
    %v2070 = vpop.f32.mrf.mxu0
    %2071 = vdwg.mxu0
    %v2073 = vrot.slane %v1999, 5
    %v2074 = vsel %vm703, %v2073, 0
    %2076 = vmatprep.subr.mxu0 0.0
    %2077 = vmatpush1.msra.mxu0 0.0
    %2078 = vmatprep.subr.mxu0 0.0
    %2079 = vmatpush1.msra.mxu0 0.0
    %2080 = vmatprep.subr.mxu0 0.0
    %2081 = vmatpush1.msra.mxu0 0.0
    %2082 = vmatprep.subr.mxu0 0.0
    %2083 = vmatpush1.msra.mxu0 0.0
    %2084 = vmatprep.subr.mxu0 0.0
    %2085 = vmatpush1.msra.mxu0 0.0
    %2086 = vmatprep.subr.mxu0 0.0
    %2087 = vmatpush1.msra.mxu0 0.0
    %2088 = vmatprep.subr.mxu0 0.0
    %2089 = vmatpush1.msra.mxu0 0.0
    %2090 = vmatprep.subr.mxu0 0.0
    %2091 = vmatpush1.msra.mxu0 0.0
    %2092 = vmatprep.subr.mxu0 0.0
    %2093 = vmatpush1.msra.mxu0 0.0
    %2094 = vmatprep.subr.mxu0 0.0
    %2095 = vmatpush1.msra.mxu0 0.0
    %2096 = vmatprep.subr.mxu0 0.0
    %2097 = vmatpush1.msra.mxu0 0.0
    %2098 = vmatprep.subr.mxu0 0.0
    %2099 = vmatpush1.msra.mxu0 0.0
    %2100 = vmatprep.subr.mxu0 0.0
    %2101 = vmatpush1.msra.mxu0 0.0
    %2102 = vmatprep.subr.mxu0 0.0
    %2103 = vmatpush1.msra.mxu0 %v60
    %2104 = vmatprep.subr.mxu0 0.0
    %2105 = vmatpush1.msra.mxu0 %v59
    %2106 = vmatprep.subr.mxu0 0.0
    %2107 = vmatpush1.msra.mxu0 %v58
    %2108 = vmatprep.subr.mxu0 0.0
    %2109 = vmatpush2.msra.mxu0 0.0
    %2110 = vmatprep.subr.mxu0 0.0
    %2111 = vmatpush2.msra.mxu0 0.0
    %2112 = vmatprep.subr.mxu0 0.0
    %2113 = vmatpush2.msra.mxu0 0.0
    %2114 = vmatprep.subr.mxu0 0.0
    %2115 = vmatpush2.msra.mxu0 0.0
    %2116 = vmatprep.subr.mxu0 0.0
    %2117 = vmatpush2.msra.mxu0 0.0
    %2118 = vmatprep.subr.mxu0 0.0
    %2119 = vmatpush2.msra.mxu0 0.0
    %2120 = vmatprep.subr.mxu0 0.0
    %2121 = vmatpush2.msra.mxu0 0.0
    %2122 = vmatprep.subr.mxu0 0.0
    %2123 = vmatpush2.msra.mxu0 0.0
    %2124 = vmatprep.subr.mxu0 0.0
    %2125 = vmatpush2.msra.mxu0 0.0
    %2126 = vmatprep.subr.mxu0 0.0
    %2127 = vmatpush2.msra.mxu0 0.0
    %2128 = vmatprep.subr.mxu0 0.0
    %2129 = vmatpush2.msra.mxu0 0.0
    %2130 = vmatprep.subr.mxu0 0.0
    %2131 = vmatpush2.msra.mxu0 0.0
    %2132 = vmatprep.subr.mxu0 0.0
    %2133 = vmatpush2.msra.mxu0 0.0
    %2134 = vmatprep.subr.mxu0 0.0
    %2135 = vmatpush2.msra.mxu0 0.0
    %2136 = vmatprep.subr.mxu0 0.0
    %2137 = vmatpush2.msra.mxu0 0.0
    %2138 = vmatprep.subr.mxu0 0.0
    %2139 = vmatpush2.msra.mxu0 0.0
    %2140 = vmatprep.mubr.f32.mxu0 0.0
    %2141 = vmatmul.mubr.f32.gmra.mxu0 %v2074
    %v2142 = vpop.f32.mrf.mxu0
    %v2143 = vadd.f32 0.0, %v2142
    %v2144 = vpop.f32.mrf.mxu0
    %2145 = vdwg.mxu0
    %v2146 = vlaneseq
    %v2147 = vshrl.u32 %v2146, 7
    %v2148 = vsub.s32 0, %v2147
    %v2149 = vrot.slane %v2069, %v2148
    %v2150 = vmul.f32 %v1811, %v2149
    %v2151 = vmul.f32 %v1812, %v2149
    %v2152 = vmul.f32 %v1813, %v2149
    %v2153 = vmul.f32 %v1814, %v2149
    %v2154 = vmul.f32 %v1815, %v2149
    %v2155 = vmul.f32 %v1816, %v2149
    %v2156 = vmul.f32 %v1817, %v2149
    %v2157 = vmul.f32 %v1818, %v2149
    %v2158 = vmul.f32 %v1819, %v2149
    %v2159 = vmul.f32 %v1820, %v2149
    %v2160 = vmul.f32 %v1821, %v2149
    %v2161 = vmul.f32 %v1822, %v2149
    %v2162 = vmul.f32 %v1823, %v2149
    %v2163 = vmul.f32 %v1824, %v2149
    %v2164 = vmul.f32 %v1825, %v2149
    %v2165 = vmul.f32 %v1826, %v2149
    %v2166 = vmul.f32 %v1827, %v2149
    %v2167 = vmul.f32 %v1828, %v2149
    %v2168 = vmul.f32 %v1829, %v2149
    %v2169 = vmul.f32 %v1830, %v2149
    %v2170 = vmul.f32 %v1831, %v2149
    %v2171 = vlaneseq
    %v2172 = vshrl.u32 %v2171, 7
    %v2173 = vsub.s32 0, %v2172
    %v2174 = vrot.slane %v2143, %v2173
    %v2175 = vadd.f32 %v2150, %v2174
    %v2176 = vadd.f32 %v2151, %v2174
    %v2177 = vadd.f32 %v2152, %v2174
    %v2178 = vadd.f32 %v2153, %v2174
    %v2179 = vadd.f32 %v2154, %v2174
    %v2180 = vadd.f32 %v2155, %v2174
    %v2181 = vadd.f32 %v2156, %v2174
    %v2182 = vadd.f32 %v2157, %v2174
    %v2183 = vadd.f32 %v2158, %v2174
    %v2184 = vadd.f32 %v2159, %v2174
    %v2185 = vadd.f32 %v2160, %v2174
    %v2186 = vadd.f32 %v2161, %v2174
    %v2187 = vadd.f32 %v2162, %v2174
    %v2188 = vadd.f32 %v2163, %v2174
    %v2189 = vadd.f32 %v2164, %v2174
    %v2190 = vadd.f32 %v2165, %v2174
    %v2191 = vadd.f32 %v2166, %v2174
    %v2192 = vadd.f32 %v2167, %v2174
    %v2193 = vadd.f32 %v2168, %v2174
    %v2194 = vadd.f32 %v2169, %v2174
    %v2195 = vadd.f32 %v2170, %v2174
    %v2196 = vmax.f32 %v2175, 0.0
    %v2197 = vmax.f32 %v2176, 0.0
    %v2198 = vmax.f32 %v2177, 0.0
    %v2199 = vmax.f32 %v2178, 0.0
    %v2200 = vmax.f32 %v2179, 0.0
    %v2201 = vmax.f32 %v2180, 0.0
    %v2202 = vmax.f32 %v2181, 0.0
    %v2203 = vmax.f32 %v2182, 0.0
    %v2204 = vmax.f32 %v2183, 0.0
    %v2205 = vmax.f32 %v2184, 0.0
    %v2206 = vmax.f32 %v2185, 0.0
    %v2207 = vmax.f32 %v2186, 0.0
    %v2208 = vmax.f32 %v2187, 0.0
    %v2209 = vmax.f32 %v2188, 0.0
    %v2210 = vmax.f32 %v2189, 0.0
    %v2211 = vmax.f32 %v2190, 0.0
    %v2212 = vmax.f32 %v2191, 0.0
    %v2213 = vmax.f32 %v2192, 0.0
    %v2214 = vmax.f32 %v2193, 0.0
    %v2215 = vmax.f32 %v2194, 0.0
    %v2216 = vmax.f32 %v2195, 0.0
    %v2217 = vld [vmem:[%s4] sm:$0xff]
    %v2218 = vld [vmem:[%s4 + $0x8] sm:$0xff]
    %v2219 = vld [vmem:[%s4 + $0x10] sm:$0xff]
    %v2220 = vld [vmem:[%s4 + $0x18] sm:$0xff]
    %v2221 = vld [vmem:[%s4 + $0x20] sm:$0xff]
    %v2222 = vld [vmem:[%s4 + $0x28] sm:$0xff]
    %v2223 = vld [vmem:[%s4 + $0x30] sm:$0xff]
    %v2224 = vld [vmem:[%s4 + $0x38] sm:$0xff]
    %v2225 = vld [vmem:[%s4 + $0x40] sm:$0xff]
    %v2226 = vld [vmem:[%s4 + $0x48] sm:$0xff]
    %v2227 = vld [vmem:[%s4 + $0x50] sm:$0xff]
    %v2228 = vld [vmem:[%s4 + $0x58] sm:$0xff]
    %v2229 = vld [vmem:[%s4 + $0x60] sm:$0xff]
    %v2230 = vld [vmem:[%s4 + $0x68] sm:$0xff]
    %v2231 = vld [vmem:[%s4 + $0x70] sm:$0xff]
    %v2232 = vlaneseq
    %v2233 = vshrl.u32 %v2232, 7
    %v2234 = vsub.s32 0, %v2233
    %v2235 = vrot.slane %v56, %v2234
    %v2237 = vsel %vm538, %v2196, 0
    %v2240 = vsel %vm538, %v2197, 0
    %v2243 = vsel %vm538, %v2198, 0
    %v2246 = vsel %vm538, %v2199, 0
    %v2249 = vsel %vm538, %v2200, 0
    %v2252 = vsel %vm538, %v2201, 0
    %v2255 = vsel %vm538, %v2202, 0
    %v2258 = vsel %vm538, %v2203, 0
    %v2261 = vsel %vm538, %v2204, 0
    %v2264 = vsel %vm538, %v2205, 0
    %v2267 = vsel %vm538, %v2206, 0
    %v2270 = vsel %vm538, %v2207, 0
    %v2273 = vsel %vm538, %v2208, 0
    %v2276 = vsel %vm538, %v2209, 0
    %v2279 = vsel %vm538, %v2210, 0
    %v2282 = vsel %vm538, %v2211, 0
    %v2285 = vsel %vm538, %v2212, 0
    %v2288 = vsel %vm538, %v2213, 0
    %v2291 = vsel %vm538, %v2214, 0
    %v2294 = vsel %vm538, %v2215, 0
    %v2297 = vsel %vm538, %v2216, 0
    %2299 = vmatprep.subr.mxu0 0.0
    %2300 = vmatpush1.msra.mxu0 0.0
    %2301 = vmatprep.subr.mxu0 0.0
    %2302 = vmatpush1.msra.mxu0 %v2231
    %2303 = vmatprep.subr.mxu0 0.0
    %2304 = vmatpush1.msra.mxu0 %v2230
    %2305 = vmatprep.subr.mxu0 0.0
    %2306 = vmatpush1.msra.mxu0 %v2229
    %2307 = vmatprep.subr.mxu0 0.0
    %2308 = vmatpush1.msra.mxu0 %v2228
    %2309 = vmatprep.subr.mxu0 0.0
    %2310 = vmatpush1.msra.mxu0 %v2227
    %2311 = vmatprep.subr.mxu0 0.0
    %2312 = vmatpush1.msra.mxu0 %v2226
    %2313 = vmatprep.subr.mxu0 0.0
    %2314 = vmatpush1.msra.mxu0 %v2225
    %2315 = vmatprep.subr.mxu0 0.0
    %2316 = vmatpush1.msra.mxu0 %v2224
    %2317 = vmatprep.subr.mxu0 0.0
    %2318 = vmatpush1.msra.mxu0 %v2223
    %2319 = vmatprep.subr.mxu0 0.0
    %2320 = vmatpush1.msra.mxu0 %v2222
    %2321 = vmatprep.subr.mxu0 0.0
    %2322 = vmatpush1.msra.mxu0 %v2221
    %2323 = vmatprep.subr.mxu0 0.0
    %2324 = vmatpush1.msra.mxu0 %v2220
    %2325 = vmatprep.subr.mxu0 0.0
    %2326 = vmatpush1.msra.mxu0 %v2219
    %2327 = vmatprep.subr.mxu0 0.0
    %2328 = vmatpush1.msra.mxu0 %v2218
    %2329 = vmatprep.subr.mxu0 0.0
    %2330 = vmatpush1.msra.mxu0 %v2217
    %2331 = vmatprep.subr.mxu0 0.0
    %2332 = vmatpush2.msra.mxu0 0.0
    %2333 = vmatprep.subr.mxu0 0.0
    %2334 = vmatpush2.msra.mxu0 0.0
    %2335 = vmatprep.subr.mxu0 0.0
    %2336 = vmatpush2.msra.mxu0 0.0
    %2337 = vmatprep.subr.mxu0 0.0
    %2338 = vmatpush2.msra.mxu0 0.0
    %2339 = vmatprep.subr.mxu0 0.0
    %2340 = vmatpush2.msra.mxu0 0.0
    %2341 = vmatprep.subr.mxu0 0.0
    %2342 = vmatpush2.msra.mxu0 0.0
    %2343 = vmatprep.subr.mxu0 0.0
    %2344 = vmatpush2.msra.mxu0 0.0
    %2345 = vmatprep.subr.mxu0 0.0
    %2346 = vmatpush2.msra.mxu0 0.0
    %2347 = vmatprep.subr.mxu0 0.0
    %2348 = vmatpush2.msra.mxu0 0.0
    %2349 = vmatprep.subr.mxu0 0.0
    %2350 = vmatpush2.msra.mxu0 0.0
    %2351 = vmatprep.subr.mxu0 0.0
    %2352 = vmatpush2.msra.mxu0 0.0
    %2353 = vmatprep.subr.mxu0 0.0
    %2354 = vmatpush2.msra.mxu0 0.0
    %2355 = vmatprep.subr.mxu0 0.0
    %2356 = vmatpush2.msra.mxu0 0.0
    %2357 = vmatprep.subr.mxu0 0.0
    %2358 = vmatpush2.msra.mxu0 0.0
    %2359 = vmatprep.subr.mxu0 0.0
    %2360 = vmatpush2.msra.mxu0 0.0
    %2361 = vmatprep.subr.mxu0 0.0
    %2362 = vmatpush2.msra.mxu0 0.0
    %2363 = vmatprep.mubr.f32.mxu0 0.0
    %2364 = vmatmul.mubr.f32.gmra.mxu0 %v2237
    %v2365 = vpop.f32.mrf.mxu0
    %v2366 = vadd.f32 %v2235, %v2365
    %v2367 = vpop.f32.mrf.mxu0
    %2368 = vmatprep.mubr.f32.mxu0 0.0
    %2369 = vmatmul.mubr.f32.gmra.mxu0 %v2240
    %v2370 = vpop.f32.mrf.mxu0
    %v2371 = vadd.f32 %v2235, %v2370
    %v2372 = vpop.f32.mrf.mxu0
    %2373 = vmatprep.mubr.f32.mxu0 0.0
    %2374 = vmatmul.mubr.f32.gmra.mxu0 %v2243
    %v2375 = vpop.f32.mrf.mxu0
    %v2376 = vadd.f32 %v2235, %v2375
    %v2377 = vpop.f32.mrf.mxu0
    %2378 = vmatprep.mubr.f32.mxu0 0.0
    %2379 = vmatmul.mubr.f32.gmra.mxu0 %v2246
    %v2380 = vpop.f32.mrf.mxu0
    %v2381 = vadd.f32 %v2235, %v2380
    %v2382 = vpop.f32.mrf.mxu0
    %2383 = vmatprep.mubr.f32.mxu0 0.0
    %2384 = vmatmul.mubr.f32.gmra.mxu0 %v2249
    %v2385 = vpop.f32.mrf.mxu0
    %v2386 = vadd.f32 %v2235, %v2385
    %v2387 = vpop.f32.mrf.mxu0
    %2388 = vmatprep.mubr.f32.mxu0 0.0
    %2389 = vmatmul.mubr.f32.gmra.mxu0 %v2252
    %v2390 = vpop.f32.mrf.mxu0
    %v2391 = vadd.f32 %v2235, %v2390
    %v2392 = vpop.f32.mrf.mxu0
    %2393 = vmatprep.mubr.f32.mxu0 0.0
    %2394 = vmatmul.mubr.f32.gmra.mxu0 %v2255
    %v2395 = vpop.f32.mrf.mxu0
    %v2396 = vadd.f32 %v2235, %v2395
    %v2397 = vpop.f32.mrf.mxu0
    %2398 = vmatprep.mubr.f32.mxu0 0.0
    %2399 = vmatmul.mubr.f32.gmra.mxu0 %v2258
    %v2400 = vpop.f32.mrf.mxu0
    %v2401 = vadd.f32 %v2235, %v2400
    %v2402 = vpop.f32.mrf.mxu0
    %2403 = vmatprep.mubr.f32.mxu0 0.0
    %2404 = vmatmul.mubr.f32.gmra.mxu0 %v2261
    %v2405 = vpop.f32.mrf.mxu0
    %v2406 = vadd.f32 %v2235, %v2405
    %v2407 = vpop.f32.mrf.mxu0
    %2408 = vmatprep.mubr.f32.mxu0 0.0
    %2409 = vmatmul.mubr.f32.gmra.mxu0 %v2264
    %v2410 = vpop.f32.mrf.mxu0
    %v2411 = vadd.f32 %v2235, %v2410
    %v2412 = vpop.f32.mrf.mxu0
    %2413 = vmatprep.mubr.f32.mxu0 0.0
    %2414 = vmatmul.mubr.f32.gmra.mxu0 %v2267
    %v2415 = vpop.f32.mrf.mxu0
    %v2416 = vadd.f32 %v2235, %v2415
    %v2417 = vpop.f32.mrf.mxu0
    %2418 = vmatprep.mubr.f32.mxu0 0.0
    %2419 = vmatmul.mubr.f32.gmra.mxu0 %v2270
    %v2420 = vpop.f32.mrf.mxu0
    %v2421 = vadd.f32 %v2235, %v2420
    %v2422 = vpop.f32.mrf.mxu0
    %2423 = vmatprep.mubr.f32.mxu0 0.0
    %2424 = vmatmul.mubr.f32.gmra.mxu0 %v2273
    %v2425 = vpop.f32.mrf.mxu0
    %v2426 = vadd.f32 %v2235, %v2425
    %v2427 = vpop.f32.mrf.mxu0
    %2428 = vmatprep.mubr.f32.mxu0 0.0
    %2429 = vmatmul.mubr.f32.gmra.mxu0 %v2276
    %v2430 = vpop.f32.mrf.mxu0
    %v2431 = vadd.f32 %v2235, %v2430
    %v2432 = vpop.f32.mrf.mxu0
    %2433 = vmatprep.mubr.f32.mxu0 0.0
    %2434 = vmatmul.mubr.f32.gmra.mxu0 %v2279
    %v2435 = vpop.f32.mrf.mxu0
    %v2436 = vadd.f32 %v2235, %v2435
    %v2437 = vpop.f32.mrf.mxu0
    %2438 = vmatprep.mubr.f32.mxu0 0.0
    %2439 = vmatmul.mubr.f32.gmra.mxu0 %v2282
    %v2440 = vpop.f32.mrf.mxu0
    %v2441 = vadd.f32 %v2235, %v2440
    %v2442 = vpop.f32.mrf.mxu0
    %2443 = vmatprep.mubr.f32.mxu0 0.0
    %2444 = vmatmul.mubr.f32.gmra.mxu0 %v2285
    %v2445 = vpop.f32.mrf.mxu0
    %v2446 = vadd.f32 %v2235, %v2445
    %v2447 = vpop.f32.mrf.mxu0
    %2448 = vmatprep.mubr.f32.mxu0 0.0
    %2449 = vmatmul.mubr.f32.gmra.mxu0 %v2288
    %v2450 = vpop.f32.mrf.mxu0
    %v2451 = vadd.f32 %v2235, %v2450
    %v2452 = vpop.f32.mrf.mxu0
    %2453 = vmatprep.mubr.f32.mxu0 0.0
    %2454 = vmatmul.mubr.f32.gmra.mxu0 %v2291
    %v2455 = vpop.f32.mrf.mxu0
    %v2456 = vadd.f32 %v2235, %v2455
    %v2457 = vpop.f32.mrf.mxu0
    %2458 = vmatprep.mubr.f32.mxu0 0.0
    %2459 = vmatmul.mubr.f32.gmra.mxu0 %v2294
    %v2460 = vpop.f32.mrf.mxu0
    %v2461 = vadd.f32 %v2235, %v2460
    %v2462 = vpop.f32.mrf.mxu0
    %2463 = vmatprep.mubr.f32.mxu0 0.0
    %2464 = vmatmul.mubr.f32.gmra.mxu0 %v2297
    %v2465 = vpop.f32.mrf.mxu0
    %v2466 = vadd.f32 %v2235, %v2465
    %v2467 = vpop.f32.mrf.mxu0
    %2468 = vdwg.mxu0
    %v2469 = vadd.f32 %v2366, %v2371
    %v2470 = vadd.f32 %v2469, %v2376
    %v2471 = vadd.f32 %v2470, %v2381
    %v2472 = vadd.f32 %v2471, %v2386
    %v2473 = vadd.f32 %v2472, %v2391
    %v2474 = vadd.f32 %v2473, %v2396
    %v2475 = vadd.f32 %v2474, %v2401
    %v2476 = vadd.f32 %v2475, %v2406
    %v2477 = vadd.f32 %v2476, %v2411
    %v2478 = vadd.f32 %v2477, %v2416
    %v2479 = vadd.f32 %v2478, %v2421
    %v2480 = vadd.f32 %v2479, %v2426
    %v2481 = vadd.f32 %v2480, %v2431
    %v2482 = vadd.f32 %v2481, %v2436
    %v2483 = vadd.f32 %v2482, %v2441
    %v2484 = vadd.f32 %v2483, %v2446
    %v2485 = vadd.f32 %v2484, %v2451
    %v2486 = vadd.f32 %v2485, %v2456
    %v2487 = vadd.f32 %v2486, %v2461
    %vm2488 = vcmask 1041408
    %v2489 = vsel %vm2488, %v2466, 0.0
    %v2490 = vadd.f32 %v2487, %v2489
    %v2491 = vrot.slane %v2490, 4
    %v2492 = vadd.f32 %v2490, %v2491
    %v2493 = vrot.slane %v2492, 2
    %v2494 = vadd.f32 %v2492, %v2493
    %v2495 = vrot.slane %v2494, 1
    %v2496 = vadd.f32 %v2494, %v2495
    %v2497 = vmul.f32 %v2366, %v2366
    %v2498 = vmul.f32 %v2371, %v2371
    %v2499 = vmul.f32 %v2376, %v2376
    %v2500 = vmul.f32 %v2381, %v2381
    %v2501 = vmul.f32 %v2386, %v2386
    %v2502 = vmul.f32 %v2391, %v2391
    %v2503 = vmul.f32 %v2396, %v2396
    %v2504 = vmul.f32 %v2401, %v2401
    %v2505 = vmul.f32 %v2406, %v2406
    %v2506 = vmul.f32 %v2411, %v2411
    %v2507 = vmul.f32 %v2416, %v2416
    %v2508 = vmul.f32 %v2421, %v2421
    %v2509 = vmul.f32 %v2426, %v2426
    %v2510 = vmul.f32 %v2431, %v2431
    %v2511 = vmul.f32 %v2436, %v2436
    %v2512 = vmul.f32 %v2441, %v2441
    %v2513 = vmul.f32 %v2446, %v2446
    %v2514 = vmul.f32 %v2451, %v2451
    %v2515 = vmul.f32 %v2456, %v2456
    %v2516 = vmul.f32 %v2461, %v2461
    %v2517 = vmul.f32 %v2466, %v2466
    %v2518 = vadd.f32 %v2497, %v2498
    %v2519 = vadd.f32 %v2518, %v2499
    %v2520 = vadd.f32 %v2519, %v2500
    %v2521 = vadd.f32 %v2520, %v2501
    %v2522 = vadd.f32 %v2521, %v2502
    %v2523 = vadd.f32 %v2522, %v2503
    %v2524 = vadd.f32 %v2523, %v2504
    %v2525 = vadd.f32 %v2524, %v2505
    %v2526 = vadd.f32 %v2525, %v2506
    %v2527 = vadd.f32 %v2526, %v2507
    %v2528 = vadd.f32 %v2527, %v2508
    %v2529 = vadd.f32 %v2528, %v2509
    %v2530 = vadd.f32 %v2529, %v2510
    %v2531 = vadd.f32 %v2530, %v2511
    %v2532 = vadd.f32 %v2531, %v2512
    %v2533 = vadd.f32 %v2532, %v2513
    %v2534 = vadd.f32 %v2533, %v2514
    %v2535 = vadd.f32 %v2534, %v2515
    %v2536 = vadd.f32 %v2535, %v2516
    %v2537 = vsel %vm2488, %v2517, 0.0
    %v2538 = vadd.f32 %v2536, %v2537
    %v2539 = vrot.slane %v2538, 4
    %v2540 = vadd.f32 %v2538, %v2539
    %v2541 = vrot.slane %v2540, 2
    %v2542 = vadd.f32 %v2540, %v2541
    %v2543 = vrot.slane %v2542, 1
    %v2544 = vadd.f32 %v2542, %v2543
    %v2545 = vrcp.pop 162.0
    %v2546 = vmul.f32 %v2496, %v2545
    %v2547 = vmul.f32 %v2544, %v2545
    %v2548 = vmul.f32 %v2546, %v2546
    %v2549 = vsub.f32 %v2547, %v2548
    %v2550 = vmax.f32 %v2549, 0.0
    %v2551 = vadd.f32 %v2550, 1e-05
    %v2552 = vrsqrt.pop %v2551
    %v2553 = vmul.f32 %v56, %v2552
    %v2554 = vmul.f32 %v2546, %v2553
    %v2556 = vrot.slane %v2554, 7
    %v2558 = vsub.f32 %v56, %v2556
    %v2559 = vlaneseq
    %v2560 = vshrl.u32 %v2559, 7
    %v2561 = vsub.s32 1, %v2560
    %v2562 = vrot.slane %v2553, %v2561
    %v2563 = vmul.f32 %v2366, %v2562
    %v2564 = vmul.f32 %v2371, %v2562
    %v2565 = vmul.f32 %v2376, %v2562
    %v2566 = vmul.f32 %v2381, %v2562
    %v2567 = vmul.f32 %v2386, %v2562
    %v2568 = vmul.f32 %v2391, %v2562
    %v2569 = vmul.f32 %v2396, %v2562
    %v2570 = vmul.f32 %v2401, %v2562
    %v2571 = vmul.f32 %v2406, %v2562
    %v2572 = vmul.f32 %v2411, %v2562
    %v2573 = vmul.f32 %v2416, %v2562
    %v2574 = vmul.f32 %v2421, %v2562
    %v2575 = vmul.f32 %v2426, %v2562
    %v2576 = vmul.f32 %v2431, %v2562
    %v2577 = vmul.f32 %v2436, %v2562
    %v2578 = vmul.f32 %v2441, %v2562
    %v2579 = vmul.f32 %v2446, %v2562
    %v2580 = vmul.f32 %v2451, %v2562
    %v2581 = vmul.f32 %v2456, %v2562
    %v2582 = vmul.f32 %v2461, %v2562
    %v2583 = vmul.f32 %v2466, %v2562
    %v2584 = vlaneseq
    %v2585 = vshrl.u32 %v2584, 7
    %v2586 = vsub.s32 2, %v2585
    %v2587 = vrot.slane %v2558, %v2586
    %v2588 = vadd.f32 %v2563, %v2587
    %v2589 = vadd.f32 %v2564, %v2587
    %v2590 = vadd.f32 %v2565, %v2587
    %v2591 = vadd.f32 %v2566, %v2587
    %v2592 = vadd.f32 %v2567, %v2587
    %v2593 = vadd.f32 %v2568, %v2587
    %v2594 = vadd.f32 %v2569, %v2587
    %v2595 = vadd.f32 %v2570, %v2587
    %v2596 = vadd.f32 %v2571, %v2587
    %v2597 = vadd.f32 %v2572, %v2587
    %v2598 = vadd.f32 %v2573, %v2587
    %v2599 = vadd.f32 %v2574, %v2587
    %v2600 = vadd.f32 %v2575, %v2587
    %v2601 = vadd.f32 %v2576, %v2587
    %v2602 = vadd.f32 %v2577, %v2587
    %v2603 = vadd.f32 %v2578, %v2587
    %v2604 = vadd.f32 %v2579, %v2587
    %v2605 = vadd.f32 %v2580, %v2587
    %v2606 = vadd.f32 %v2581, %v2587
    %v2607 = vadd.f32 %v2582, %v2587
    %v2608 = vadd.f32 %v2583, %v2587
    %v2609 = vmax.f32 %v2588, 0.0
    %v2610 = vmax.f32 %v2589, 0.0
    %v2611 = vmax.f32 %v2590, 0.0
    %v2612 = vmax.f32 %v2591, 0.0
    %v2613 = vmax.f32 %v2592, 0.0
    %v2614 = vmax.f32 %v2593, 0.0
    %v2615 = vmax.f32 %v2594, 0.0
    %v2616 = vmax.f32 %v2595, 0.0
    %v2617 = vmax.f32 %v2596, 0.0
    %v2618 = vmax.f32 %v2597, 0.0
    %v2619 = vmax.f32 %v2598, 0.0
    %v2620 = vmax.f32 %v2599, 0.0
    %v2621 = vmax.f32 %v2600, 0.0
    %v2622 = vmax.f32 %v2601, 0.0
    %v2623 = vmax.f32 %v2602, 0.0
    %v2624 = vmax.f32 %v2603, 0.0
    %v2625 = vmax.f32 %v2604, 0.0
    %v2626 = vmax.f32 %v2605, 0.0
    %v2627 = vmax.f32 %v2606, 0.0
    %v2628 = vmax.f32 %v2607, 0.0
    %v2629 = vmax.f32 %v2608, 0.0
    %v2630 = vlaneseq
    %v2631 = vshrl.u32 %v2630, 7
    %v2632 = vadd.s32 %v2631, 8
    %v2633 = vadd.s32 %v2631, 16
    %v2634 = vadd.s32 %v2631, 24
    %v2635 = vadd.s32 %v2631, 32
    %v2636 = vadd.s32 %v2631, 40
    %v2637 = vadd.s32 %v2631, 48
    %v2638 = vadd.s32 %v2631, 56
    %vm2639 = vcmp.ge.s32.totalorder %v2631, 9
    %vm2640 = vcmp.ge.s32.totalorder %v2632, 9
    %vm2641 = vcmp.ge.s32.totalorder %v2633, 9
    %vm2642 = vcmp.ge.s32.totalorder %v2634, 9
    %vm2643 = vcmp.ge.s32.totalorder %v2635, 9
    %vm2644 = vcmp.ge.s32.totalorder %v2636, 9
    %vm2645 = vcmp.ge.s32.totalorder %v2637, 9
    %vm2646 = vcmp.ge.s32.totalorder %v2638, 9
    %v2647 = vsel %vm2639, 1, 0
    %v2648 = vsel %vm2640, 1, 0
    %v2649 = vsel %vm2641, 1, 0
    %v2650 = vsel %vm2642, 1, 0
    %v2651 = vsel %vm2643, 1, 0
    %v2652 = vsel %vm2644, 1, 0
    %v2653 = vsel %vm2645, 1, 0
    %v2654 = vsel %vm2646, 1, 0
    %vm2655 = vcmp.ge.s32.totalorder %v2631, 18
    %vm2656 = vcmp.ge.s32.totalorder %v2632, 18
    %vm2657 = vcmp.ge.s32.totalorder %v2633, 18
    %vm2658 = vcmp.ge.s32.totalorder %v2634, 18
    %vm2659 = vcmp.ge.s32.totalorder %v2635, 18
    %vm2660 = vcmp.ge.s32.totalorder %v2636, 18
    %vm2661 = vcmp.ge.s32.totalorder %v2637, 18
    %vm2662 = vcmp.ge.s32.totalorder %v2638, 18
    %v2663 = vsel %vm2655, 1, 0
    %v2664 = vsel %vm2656, 1, 0
    %v2665 = vsel %vm2657, 1, 0
    %v2666 = vsel %vm2658, 1, 0
    %v2667 = vsel %vm2659, 1, 0
    %v2668 = vsel %vm2660, 1, 0
    %v2669 = vsel %vm2661, 1, 0
    %v2670 = vsel %vm2662, 1, 0
    %v2671 = vadd.s32 %v2647, %v2663
    %v2672 = vadd.s32 %v2648, %v2664
    %v2673 = vadd.s32 %v2649, %v2665
    %v2674 = vadd.s32 %v2650, %v2666
    %v2675 = vadd.s32 %v2651, %v2667
    %v2676 = vadd.s32 %v2652, %v2668
    %v2677 = vadd.s32 %v2653, %v2669
    %v2678 = vadd.s32 %v2654, %v2670
    %vm2679 = vcmp.ge.s32.totalorder %v2631, 27
    %vm2680 = vcmp.ge.s32.totalorder %v2632, 27
    %vm2681 = vcmp.ge.s32.totalorder %v2633, 27
    %vm2682 = vcmp.ge.s32.totalorder %v2634, 27
    %vm2683 = vcmp.ge.s32.totalorder %v2635, 27
    %vm2684 = vcmp.ge.s32.totalorder %v2636, 27
    %vm2685 = vcmp.ge.s32.totalorder %v2637, 27
    %vm2686 = vcmp.ge.s32.totalorder %v2638, 27
    %v2687 = vsel %vm2679, 1, 0
    %v2688 = vsel %vm2680, 1, 0
    %v2689 = vsel %vm2681, 1, 0
    %v2690 = vsel %vm2682, 1, 0
    %v2691 = vsel %vm2683, 1, 0
    %v2692 = vsel %vm2684, 1, 0
    %v2693 = vsel %vm2685, 1, 0
    %v2694 = vsel %vm2686, 1, 0
    %v2695 = vadd.s32 %v2671, %v2687
    %v2696 = vadd.s32 %v2672, %v2688
    %v2697 = vadd.s32 %v2673, %v2689
    %v2698 = vadd.s32 %v2674, %v2690
    %v2699 = vadd.s32 %v2675, %v2691
    %v2700 = vadd.s32 %v2676, %v2692
    %v2701 = vadd.s32 %v2677, %v2693
    %v2702 = vadd.s32 %v2678, %v2694
    %vm2703 = vcmp.ge.s32.totalorder %v2631, 36
    %vm2704 = vcmp.ge.s32.totalorder %v2632, 36
    %vm2705 = vcmp.ge.s32.totalorder %v2633, 36
    %vm2706 = vcmp.ge.s32.totalorder %v2634, 36
    %vm2707 = vcmp.ge.s32.totalorder %v2635, 36
    %vm2708 = vcmp.ge.s32.totalorder %v2636, 36
    %vm2709 = vcmp.ge.s32.totalorder %v2637, 36
    %vm2710 = vcmp.ge.s32.totalorder %v2638, 36
    %v2711 = vsel %vm2703, 1, 0
    %v2712 = vsel %vm2704, 1, 0
    %v2713 = vsel %vm2705, 1, 0
    %v2714 = vsel %vm2706, 1, 0
    %v2715 = vsel %vm2707, 1, 0
    %v2716 = vsel %vm2708, 1, 0
    %v2717 = vsel %vm2709, 1, 0
    %v2718 = vsel %vm2710, 1, 0
    %v2719 = vadd.s32 %v2695, %v2711
    %v2720 = vadd.s32 %v2696, %v2712
    %v2721 = vadd.s32 %v2697, %v2713
    %v2722 = vadd.s32 %v2698, %v2714
    %v2723 = vadd.s32 %v2699, %v2715
    %v2724 = vadd.s32 %v2700, %v2716
    %v2725 = vadd.s32 %v2701, %v2717
    %v2726 = vadd.s32 %v2702, %v2718
    %vm2727 = vcmp.ge.s32.totalorder %v2631, 45
    %vm2728 = vcmp.ge.s32.totalorder %v2632, 45
    %vm2729 = vcmp.ge.s32.totalorder %v2633, 45
    %vm2730 = vcmp.ge.s32.totalorder %v2634, 45
    %vm2731 = vcmp.ge.s32.totalorder %v2635, 45
    %vm2732 = vcmp.ge.s32.totalorder %v2636, 45
    %vm2733 = vcmp.ge.s32.totalorder %v2637, 45
    %vm2734 = vcmp.ge.s32.totalorder %v2638, 45
    %v2735 = vsel %vm2727, 1, 0
    %v2736 = vsel %vm2728, 1, 0
    %v2737 = vsel %vm2729, 1, 0
    %v2738 = vsel %vm2730, 1, 0
    %v2739 = vsel %vm2731, 1, 0
    %v2740 = vsel %vm2732, 1, 0
    %v2741 = vsel %vm2733, 1, 0
    %v2742 = vsel %vm2734, 1, 0
    %v2743 = vadd.s32 %v2719, %v2735
    %v2744 = vadd.s32 %v2720, %v2736
    %v2745 = vadd.s32 %v2721, %v2737
    %v2746 = vadd.s32 %v2722, %v2738
    %v2747 = vadd.s32 %v2723, %v2739
    %v2748 = vadd.s32 %v2724, %v2740
    %v2749 = vadd.s32 %v2725, %v2741
    %v2750 = vadd.s32 %v2726, %v2742
    %vm2751 = vcmp.ge.s32.totalorder %v2631, 54
    %vm2752 = vcmp.ge.s32.totalorder %v2632, 54
    %vm2753 = vcmp.ge.s32.totalorder %v2633, 54
    %vm2754 = vcmp.ge.s32.totalorder %v2634, 54
    %vm2755 = vcmp.ge.s32.totalorder %v2635, 54
    %vm2756 = vcmp.ge.s32.totalorder %v2636, 54
    %vm2757 = vcmp.ge.s32.totalorder %v2637, 54
    %vm2758 = vcmp.ge.s32.totalorder %v2638, 54
    %v2759 = vsel %vm2751, 1, 0
    %v2760 = vsel %vm2752, 1, 0
    %v2761 = vsel %vm2753, 1, 0
    %v2762 = vsel %vm2754, 1, 0
    %v2763 = vsel %vm2755, 1, 0
    %v2764 = vsel %vm2756, 1, 0
    %v2765 = vsel %vm2757, 1, 0
    %v2766 = vsel %vm2758, 1, 0
    %v2767 = vadd.s32 %v2743, %v2759
    %v2768 = vadd.s32 %v2744, %v2760
    %v2769 = vadd.s32 %v2745, %v2761
    %v2770 = vadd.s32 %v2746, %v2762
    %v2771 = vadd.s32 %v2747, %v2763
    %v2772 = vadd.s32 %v2748, %v2764
    %v2773 = vadd.s32 %v2749, %v2765
    %v2774 = vadd.s32 %v2750, %v2766
    %v2775 = vmul.u32 %v2767, 9
    %v2776 = vmul.u32 %v2768, 9
    %v2777 = vmul.u32 %v2769, 9
    %v2778 = vmul.u32 %v2770, 9
    %v2779 = vmul.u32 %v2771, 9
    %v2780 = vmul.u32 %v2772, 9
    %v2781 = vmul.u32 %v2773, 9
    %v2782 = vmul.u32 %v2774, 9
    %v2783 = vsub.s32 %v2631, %v2775
    %v2784 = vsub.s32 %v2632, %v2776
    %v2785 = vsub.s32 %v2633, %v2777
    %v2786 = vsub.s32 %v2634, %v2778
    %v2787 = vsub.s32 %v2635, %v2779
    %v2788 = vsub.s32 %v2636, %v2780
    %v2789 = vsub.s32 %v2637, %v2781
    %v2790 = vsub.s32 %v2638, %v2782
    %vm2791 = vcmp.le.s32.totalorder %v2783, 6
    %vm2792 = vcmp.le.s32.totalorder %v2784, 6
    %vm2793 = vcmp.le.s32.totalorder %v2785, 6
    %vm2794 = vcmp.le.s32.totalorder %v2786, 6
    %vm2795 = vcmp.le.s32.totalorder %v2787, 6
    %vm2796 = vcmp.le.s32.totalorder %v2788, 6
    %vm2797 = vcmp.le.s32.totalorder %v2789, 6
    %vm2798 = vcmp.le.s32.totalorder %v2790, 6
    %v2799 = vsel %vm2791, 1, 0
    %v2800 = vsel %vm2792, 1, 0
    %v2801 = vsel %vm2793, 1, 0
    %v2802 = vsel %vm2794, 1, 0
    %v2803 = vsel %vm2795, 1, 0
    %v2804 = vsel %vm2796, 1, 0
    %v2805 = vsel %vm2797, 1, 0
    %v2806 = vsel %vm2798, 1, 0
    %v2807 = vcvt.s32.f32 %v2799
    %v2808 = vcvt.s32.f32 %v2800
    %v2809 = vcvt.s32.f32 %v2801
    %v2810 = vcvt.s32.f32 %v2802
    %v2811 = vcvt.s32.f32 %v2803
    %v2812 = vcvt.s32.f32 %v2804
    %v2813 = vcvt.s32.f32 %v2805
    %v2814 = vcvt.s32.f32 %v2806
    %vm2823 = vcmask 1046528
    %v2824 = vrot.slane %v2609, 1
    %v2825 = vrot.slane %v2610, 1
    %v2826 = vsel %vm2823, %v2824, %v2825
    %v2827 = vrot.slane %v2611, 1
    %v2828 = vsel %vm2823, %v2825, %v2827
    %v2829 = vrot.slane %v2612, 1
    %v2830 = vsel %vm2823, %v2827, %v2829
    %v2831 = vrot.slane %v2613, 1
    %v2832 = vsel %vm2823, %v2829, %v2831
    %v2833 = vrot.slane %v2614, 1
    %v2834 = vsel %vm2823, %v2831, %v2833
    %v2835 = vrot.slane %v2615, 1
    %v2836 = vsel %vm2823, %v2833, %v2835
    %v2837 = vrot.slane %v2616, 1
    %v2838 = vsel %vm2823, %v2835, %v2837
    %vm2847 = vcmask 1045504
    %v2848 = vrot.slane %v2609, 2
    %v2849 = vrot.slane %v2610, 2
    %v2850 = vsel %vm2847, %v2848, %v2849
    %v2851 = vrot.slane %v2611, 2
    %v2852 = vsel %vm2847, %v2849, %v2851
    %v2853 = vrot.slane %v2612, 2
    %v2854 = vsel %vm2847, %v2851, %v2853
    %v2855 = vrot.slane %v2613, 2
    %v2856 = vsel %vm2847, %v2853, %v2855
    %v2857 = vrot.slane %v2614, 2
    %v2858 = vsel %vm2847, %v2855, %v2857
    %v2859 = vrot.slane %v2615, 2
    %v2860 = vsel %vm2847, %v2857, %v2859
    %v2861 = vrot.slane %v2616, 2
    %v2862 = vsel %vm2847, %v2859, %v2861
    %v2872 = vrot.slane %v2617, 1
    %v2873 = vsel %vm2823, %v2837, %v2872
    %v2876 = vrot.slane %v2617, 2
    %v2877 = vsel %vm2847, %v2861, %v2876
    %vm2880 = vcmask 1044480
    %v2881 = vrot.slane %v2610, 3
    %v2882 = vrot.slane %v2611, 3
    %v2883 = vsel %vm2880, %v2881, %v2882
    %v2884 = vrot.slane %v2612, 3
    %v2885 = vsel %vm2880, %v2882, %v2884
    %v2886 = vrot.slane %v2613, 3
    %v2887 = vsel %vm2880, %v2884, %v2886
    %v2888 = vrot.slane %v2614, 3
    %v2889 = vsel %vm2880, %v2886, %v2888
    %v2890 = vrot.slane %v2615, 3
    %v2891 = vsel %vm2880, %v2888, %v2890
    %v2892 = vrot.slane %v2616, 3
    %v2893 = vsel %vm2880, %v2890, %v2892
    %v2894 = vrot.slane %v2617, 3
    %v2895 = vsel %vm2880, %v2892, %v2894
    %v2905 = vrot.slane %v2618, 2
    %v2906 = vsel %vm2847, %v2876, %v2905
    %v2909 = vrot.slane %v2618, 3
    %v2910 = vsel %vm2880, %v2894, %v2909
    %vm2914 = vcmask 1043456
    %v2915 = vrot.slane %v2611, 4
    %v2916 = vrot.slane %v2612, 4
    %v2917 = vsel %vm2914, %v2915, %v2916
    %v2918 = vrot.slane %v2613, 4
    %v2919 = vsel %vm2914, %v2916, %v2918
    %v2920 = vrot.slane %v2614, 4
    %v2921 = vsel %vm2914, %v2918, %v2920
    %v2922 = vrot.slane %v2615, 4
    %v2923 = vsel %vm2914, %v2920, %v2922
    %v2924 = vrot.slane %v2616, 4
    %v2925 = vsel %vm2914, %v2922, %v2924
    %v2926 = vrot.slane %v2617, 4
    %v2927 = vsel %vm2914, %v2924, %v2926
    %v2928 = vrot.slane %v2618, 4
    %v2929 = vsel %vm2914, %v2926, %v2928
    %v2930 = vrot.slane %v2619, 4
    %v2931 = vsel %vm2914, %v2928, %v2930
    %v2940 = vlaneseq
    %v2941 = vshrl.u32 %v2940, 7
    %v2942 = vsub.s32 4, %v2941
    %v2943 = vrot.slane %v55, %v2942
    %2944 = vmatprep.subr.mxu0 0.0
    %2945 = vmatpush1.msra.mxu0 %v94
    %2946 = vmatprep.subr.mxu0 0.0
    %2947 = vmatpush1.msra.mxu0 %v93
    %2948 = vmatprep.subr.mxu0 0.0
    %2949 = vmatpush1.msra.mxu0 %v92
    %2950 = vmatprep.subr.mxu0 0.0
    %2951 = vmatpush1.msra.mxu0 %v91
    %2952 = vmatprep.subr.mxu0 0.0
    %2953 = vmatpush1.msra.mxu0 %v90
    %2954 = vmatprep.subr.mxu0 0.0
    %2955 = vmatpush1.msra.mxu0 %v89
    %2956 = vmatprep.subr.mxu0 0.0
    %2957 = vmatpush1.msra.mxu0 %v88
    %2958 = vmatprep.subr.mxu0 0.0
    %2959 = vmatpush1.msra.mxu0 %v87
    %2960 = vmatprep.subr.mxu0 0.0
    %2961 = vmatpush1.msra.mxu0 %v86
    %2962 = vmatprep.subr.mxu0 0.0
    %2963 = vmatpush1.msra.mxu0 %v85
    %2964 = vmatprep.subr.mxu0 0.0
    %2965 = vmatpush1.msra.mxu0 %v84
    %2966 = vmatprep.subr.mxu0 0.0
    %2967 = vmatpush1.msra.mxu0 %v83
    %2968 = vmatprep.subr.mxu0 0.0
    %2969 = vmatpush1.msra.mxu0 %v82
    %2970 = vmatprep.subr.mxu0 0.0
    %2971 = vmatpush1.msra.mxu0 %v81
    %2972 = vmatprep.subr.mxu0 0.0
    %2973 = vmatpush1.msra.mxu0 %v80
    %2974 = vmatprep.subr.mxu0 0.0
    %2975 = vmatpush1.msra.mxu0 %v79
    %2976 = vmatprep.subr.mxu0 0.0
    %2977 = vmatpush2.msra.mxu0 %v110
    %2978 = vmatprep.subr.mxu0 0.0
    %2979 = vmatpush2.msra.mxu0 %v109
    %2980 = vmatprep.subr.mxu0 0.0
    %2981 = vmatpush2.msra.mxu0 %v108
    %2982 = vmatprep.subr.mxu0 0.0
    %2983 = vmatpush2.msra.mxu0 %v107
    %2984 = vmatprep.subr.mxu0 0.0
    %2985 = vmatpush2.msra.mxu0 %v106
    %2986 = vmatprep.subr.mxu0 0.0
    %2987 = vmatpush2.msra.mxu0 %v105
    %2988 = vmatprep.subr.mxu0 0.0
    %2989 = vmatpush2.msra.mxu0 %v104
    %2990 = vmatprep.subr.mxu0 0.0
    %2991 = vmatpush2.msra.mxu0 %v103
    %2992 = vmatprep.subr.mxu0 0.0
    %2993 = vmatpush2.msra.mxu0 %v102
    %2994 = vmatprep.subr.mxu0 0.0
    %2995 = vmatpush2.msra.mxu0 %v101
    %2996 = vmatprep.subr.mxu0 0.0
    %2997 = vmatpush2.msra.mxu0 %v100
    %2998 = vmatprep.subr.mxu0 0.0
    %2999 = vmatpush2.msra.mxu0 %v99
    %3000 = vmatprep.subr.mxu0 0.0
    %3001 = vmatpush2.msra.mxu0 %v98
    %3002 = vmatprep.subr.mxu0 0.0
    %3003 = vmatpush2.msra.mxu0 %v97
    %3004 = vmatprep.subr.mxu0 0.0
    %3005 = vmatpush2.msra.mxu0 %v96
    %3006 = vmatprep.subr.mxu0 0.0
    %3007 = vmatpush2.msra.mxu0 %v95
    %3008 = vmatprep.mubr.f32.mxu0 %v2826
    %3009 = vmatmul.mubr.f32.gmra.mxu0 %v2609
    %v3010 = vpop.f32.mrf.mxu0
    %v3011 = vadd.f32 %v2943, %v3010
    %v3012 = vpop.f32.mrf.mxu0
    %3013 = vmatprep.mubr.f32.mxu0 %v2828
    %3014 = vmatmul.mubr.f32.gmra.mxu0 %v2610
    %v3015 = vpop.f32.mrf.mxu0
    %v3016 = vadd.f32 %v2943, %v3015
    %v3017 = vpop.f32.mrf.mxu0
    %3018 = vmatprep.mubr.f32.mxu0 %v2830
    %3019 = vmatmul.mubr.f32.gmra.mxu0 %v2611
    %v3020 = vpop.f32.mrf.mxu0
    %v3021 = vadd.f32 %v2943, %v3020
    %v3022 = vpop.f32.mrf.mxu0
    %3023 = vmatprep.mubr.f32.mxu0 %v2832
    %3024 = vmatmul.mubr.f32.gmra.mxu0 %v2612
    %v3025 = vpop.f32.mrf.mxu0
    %v3026 = vadd.f32 %v2943, %v3025
    %v3027 = vpop.f32.mrf.mxu0
    %3028 = vmatprep.mubr.f32.mxu0 %v2834
    %3029 = vmatmul.mubr.f32.gmra.mxu0 %v2613
    %v3030 = vpop.f32.mrf.mxu0
    %v3031 = vadd.f32 %v2943, %v3030
    %v3032 = vpop.f32.mrf.mxu0
    %3033 = vmatprep.mubr.f32.mxu0 %v2836
    %3034 = vmatmul.mubr.f32.gmra.mxu0 %v2614
    %v3035 = vpop.f32.mrf.mxu0
    %v3036 = vadd.f32 %v2943, %v3035
    %v3037 = vpop.f32.mrf.mxu0
    %3038 = vmatprep.mubr.f32.mxu0 %v2838
    %3039 = vmatmul.mubr.f32.gmra.mxu0 %v2615
    %v3040 = vpop.f32.mrf.mxu0
    %v3041 = vadd.f32 %v2943, %v3040
    %v3042 = vpop.f32.mrf.mxu0
    %3043 = vmatprep.mubr.f32.mxu0 %v2837
    %3044 = vmatmul.mubr.f32.gmra.mxu0 %v2616
    %v3045 = vpop.f32.mrf.mxu0
    %v3046 = vadd.f32 %v2943, %v3045
    %v3047 = vpop.f32.mrf.mxu0
    %3048 = vdwg.mxu0
    %3049 = vmatprep.subr.mxu0 0.0
    %3050 = vmatpush1.msra.mxu0 %v126
    %3051 = vmatprep.subr.mxu0 0.0
    %3052 = vmatpush1.msra.mxu0 %v125
    %3053 = vmatprep.subr.mxu0 0.0
    %3054 = vmatpush1.msra.mxu0 %v124
    %3055 = vmatprep.subr.mxu0 0.0
    %3056 = vmatpush1.msra.mxu0 %v123
    %3057 = vmatprep.subr.mxu0 0.0
    %3058 = vmatpush1.msra.mxu0 %v122
    %3059 = vmatprep.subr.mxu0 0.0
    %3060 = vmatpush1.msra.mxu0 %v121
    %3061 = vmatprep.subr.mxu0 0.0
    %3062 = vmatpush1.msra.mxu0 %v120
    %3063 = vmatprep.subr.mxu0 0.0
    %3064 = vmatpush1.msra.mxu0 %v119
    %3065 = vmatprep.subr.mxu0 0.0
    %3066 = vmatpush1.msra.mxu0 %v118
    %3067 = vmatprep.subr.mxu0 0.0
    %3068 = vmatpush1.msra.mxu0 %v117
    %3069 = vmatprep.subr.mxu0 0.0
    %3070 = vmatpush1.msra.mxu0 %v116
    %3071 = vmatprep.subr.mxu0 0.0
    %3072 = vmatpush1.msra.mxu0 %v115
    %3073 = vmatprep.subr.mxu0 0.0
    %3074 = vmatpush1.msra.mxu0 %v114
    %3075 = vmatprep.subr.mxu0 0.0
    %3076 = vmatpush1.msra.mxu0 %v113
    %3077 = vmatprep.subr.mxu0 0.0
    %3078 = vmatpush1.msra.mxu0 %v112
    %3079 = vmatprep.subr.mxu0 0.0
    %3080 = vmatpush1.msra.mxu0 %v111
    %3081 = vmatprep.subr.mxu0 0.0
    %3082 = vmatpush2.msra.mxu0 %v142
    %3083 = vmatprep.subr.mxu0 0.0
    %3084 = vmatpush2.msra.mxu0 %v141
    %3085 = vmatprep.subr.mxu0 0.0
    %3086 = vmatpush2.msra.mxu0 %v140
    %3087 = vmatprep.subr.mxu0 0.0
    %3088 = vmatpush2.msra.mxu0 %v139
    %3089 = vmatprep.subr.mxu0 0.0
    %3090 = vmatpush2.msra.mxu0 %v138
    %3091 = vmatprep.subr.mxu0 0.0
    %3092 = vmatpush2.msra.mxu0 %v137
    %3093 = vmatprep.subr.mxu0 0.0
    %3094 = vmatpush2.msra.mxu0 %v136
    %3095 = vmatprep.subr.mxu0 0.0
    %3096 = vmatpush2.msra.mxu0 %v135
    %3097 = vmatprep.subr.mxu0 0.0
    %3098 = vmatpush2.msra.mxu0 %v134
    %3099 = vmatprep.subr.mxu0 0.0
    %3100 = vmatpush2.msra.mxu0 %v133
    %3101 = vmatprep.subr.mxu0 0.0
    %3102 = vmatpush2.msra.mxu0 %v132
    %3103 = vmatprep.subr.mxu0 0.0
    %3104 = vmatpush2.msra.mxu0 %v131
    %3105 = vmatprep.subr.mxu0 0.0
    %3106 = vmatpush2.msra.mxu0 %v130
    %3107 = vmatprep.subr.mxu0 0.0
    %3108 = vmatpush2.msra.mxu0 %v129
    %3109 = vmatprep.subr.mxu0 0.0
    %3110 = vmatpush2.msra.mxu0 %v128
    %3111 = vmatprep.subr.mxu0 0.0
    %3112 = vmatpush2.msra.mxu0 %v127
    %3113 = vmatprep.mubr.f32.mxu0 %v2828
    %3114 = vmatmul.mubr.f32.gmra.mxu0 %v2850
    %v3115 = vpop.f32.mrf.mxu0
    %v3116 = vadd.f32 %v3011, %v3115
    %v3117 = vpop.f32.mrf.mxu0
    %3118 = vmatprep.mubr.f32.mxu0 %v2830
    %3119 = vmatmul.mubr.f32.gmra.mxu0 %v2852
    %v3120 = vpop.f32.mrf.mxu0
    %v3121 = vadd.f32 %v3016, %v3120
    %v3122 = vpop.f32.mrf.mxu0
    %3123 = vmatprep.mubr.f32.mxu0 %v2832
    %3124 = vmatmul.mubr.f32.gmra.mxu0 %v2854
    %v3125 = vpop.f32.mrf.mxu0
    %v3126 = vadd.f32 %v3021, %v3125
    %v3127 = vpop.f32.mrf.mxu0
    %3128 = vmatprep.mubr.f32.mxu0 %v2834
    %3129 = vmatmul.mubr.f32.gmra.mxu0 %v2856
    %v3130 = vpop.f32.mrf.mxu0
    %v3131 = vadd.f32 %v3026, %v3130
    %v3132 = vpop.f32.mrf.mxu0
    %3133 = vmatprep.mubr.f32.mxu0 %v2836
    %3134 = vmatmul.mubr.f32.gmra.mxu0 %v2858
    %v3135 = vpop.f32.mrf.mxu0
    %v3136 = vadd.f32 %v3031, %v3135
    %v3137 = vpop.f32.mrf.mxu0
    %3138 = vmatprep.mubr.f32.mxu0 %v2838
    %3139 = vmatmul.mubr.f32.gmra.mxu0 %v2860
    %v3140 = vpop.f32.mrf.mxu0
    %v3141 = vadd.f32 %v3036, %v3140
    %v3142 = vpop.f32.mrf.mxu0
    %3143 = vmatprep.mubr.f32.mxu0 %v2873
    %3144 = vmatmul.mubr.f32.gmra.mxu0 %v2862
    %v3145 = vpop.f32.mrf.mxu0
    %v3146 = vadd.f32 %v3041, %v3145
    %v3147 = vpop.f32.mrf.mxu0
    %3148 = vmatprep.mubr.f32.mxu0 %v2872
    %3149 = vmatmul.mubr.f32.gmra.mxu0 %v2861
    %v3150 = vpop.f32.mrf.mxu0
    %v3151 = vadd.f32 %v3046, %v3150
    %v3152 = vpop.f32.mrf.mxu0
    %3153 = vdwg.mxu0
    %3154 = vmatprep.subr.mxu0 0.0
    %3155 = vmatpush1.msra.mxu0 %v158
    %3156 = vmatprep.subr.mxu0 0.0
    %3157 = vmatpush1.msra.mxu0 %v157
    %3158 = vmatprep.subr.mxu0 0.0
    %3159 = vmatpush1.msra.mxu0 %v156
    %3160 = vmatprep.subr.mxu0 0.0
    %3161 = vmatpush1.msra.mxu0 %v155
    %3162 = vmatprep.subr.mxu0 0.0
    %3163 = vmatpush1.msra.mxu0 %v154
    %3164 = vmatprep.subr.mxu0 0.0
    %3165 = vmatpush1.msra.mxu0 %v153
    %3166 = vmatprep.subr.mxu0 0.0
    %3167 = vmatpush1.msra.mxu0 %v152
    %3168 = vmatprep.subr.mxu0 0.0
    %3169 = vmatpush1.msra.mxu0 %v151
    %3170 = vmatprep.subr.mxu0 0.0
    %3171 = vmatpush1.msra.mxu0 %v150
    %3172 = vmatprep.subr.mxu0 0.0
    %3173 = vmatpush1.msra.mxu0 %v149
    %3174 = vmatprep.subr.mxu0 0.0
    %3175 = vmatpush1.msra.mxu0 %v148
    %3176 = vmatprep.subr.mxu0 0.0
    %3177 = vmatpush1.msra.mxu0 %v147
    %3178 = vmatprep.subr.mxu0 0.0
    %3179 = vmatpush1.msra.mxu0 %v146
    %3180 = vmatprep.subr.mxu0 0.0
    %3181 = vmatpush1.msra.mxu0 %v145
    %3182 = vmatprep.subr.mxu0 0.0
    %3183 = vmatpush1.msra.mxu0 %v144
    %3184 = vmatprep.subr.mxu0 0.0
    %3185 = vmatpush1.msra.mxu0 %v143
    %3186 = vmatprep.subr.mxu0 0.0
    %3187 = vmatpush2.msra.mxu0 %v174
    %3188 = vmatprep.subr.mxu0 0.0
    %3189 = vmatpush2.msra.mxu0 %v173
    %3190 = vmatprep.subr.mxu0 0.0
    %3191 = vmatpush2.msra.mxu0 %v172
    %3192 = vmatprep.subr.mxu0 0.0
    %3193 = vmatpush2.msra.mxu0 %v171
    %3194 = vmatprep.subr.mxu0 0.0
    %3195 = vmatpush2.msra.mxu0 %v170
    %3196 = vmatprep.subr.mxu0 0.0
    %3197 = vmatpush2.msra.mxu0 %v169
    %3198 = vmatprep.subr.mxu0 0.0
    %3199 = vmatpush2.msra.mxu0 %v168
    %3200 = vmatprep.subr.mxu0 0.0
    %3201 = vmatpush2.msra.mxu0 %v167
    %3202 = vmatprep.subr.mxu0 0.0
    %3203 = vmatpush2.msra.mxu0 %v166
    %3204 = vmatprep.subr.mxu0 0.0
    %3205 = vmatpush2.msra.mxu0 %v165
    %3206 = vmatprep.subr.mxu0 0.0
    %3207 = vmatpush2.msra.mxu0 %v164
    %3208 = vmatprep.subr.mxu0 0.0
    %3209 = vmatpush2.msra.mxu0 %v163
    %3210 = vmatprep.subr.mxu0 0.0
    %3211 = vmatpush2.msra.mxu0 %v162
    %3212 = vmatprep.subr.mxu0 0.0
    %3213 = vmatpush2.msra.mxu0 %v161
    %3214 = vmatprep.subr.mxu0 0.0
    %3215 = vmatpush2.msra.mxu0 %v160
    %3216 = vmatprep.subr.mxu0 0.0
    %3217 = vmatpush2.msra.mxu0 %v159
    %3218 = vmatprep.mubr.f32.mxu0 %v2883
    %3219 = vmatmul.mubr.f32.gmra.mxu0 %v2852
    %v3220 = vpop.f32.mrf.mxu0
    %v3221 = vadd.f32 %v3116, %v3220
    %v3222 = vpop.f32.mrf.mxu0
    %3223 = vmatprep.mubr.f32.mxu0 %v2885
    %3224 = vmatmul.mubr.f32.gmra.mxu0 %v2854
    %v3225 = vpop.f32.mrf.mxu0
    %v3226 = vadd.f32 %v3121, %v3225
    %v3227 = vpop.f32.mrf.mxu0
    %3228 = vmatprep.mubr.f32.mxu0 %v2887
    %3229 = vmatmul.mubr.f32.gmra.mxu0 %v2856
    %v3230 = vpop.f32.mrf.mxu0
    %v3231 = vadd.f32 %v3126, %v3230
    %v3232 = vpop.f32.mrf.mxu0
    %3233 = vmatprep.mubr.f32.mxu0 %v2889
    %3234 = vmatmul.mubr.f32.gmra.mxu0 %v2858
    %v3235 = vpop.f32.mrf.mxu0
    %v3236 = vadd.f32 %v3131, %v3235
    %v3237 = vpop.f32.mrf.mxu0
    %3238 = vmatprep.mubr.f32.mxu0 %v2891
    %3239 = vmatmul.mubr.f32.gmra.mxu0 %v2860
    %v3240 = vpop.f32.mrf.mxu0
    %v3241 = vadd.f32 %v3136, %v3240
    %v3242 = vpop.f32.mrf.mxu0
    %3243 = vmatprep.mubr.f32.mxu0 %v2893
    %3244 = vmatmul.mubr.f32.gmra.mxu0 %v2862
    %v3245 = vpop.f32.mrf.mxu0
    %v3246 = vadd.f32 %v3141, %v3245
    %v3247 = vpop.f32.mrf.mxu0
    %3248 = vmatprep.mubr.f32.mxu0 %v2895
    %3249 = vmatmul.mubr.f32.gmra.mxu0 %v2877
    %v3250 = vpop.f32.mrf.mxu0
    %v3251 = vadd.f32 %v3146, %v3250
    %v3252 = vpop.f32.mrf.mxu0
    %3253 = vmatprep.mubr.f32.mxu0 %v2894
    %3254 = vmatmul.mubr.f32.gmra.mxu0 %v2876
    %v3255 = vpop.f32.mrf.mxu0
    %v3256 = vadd.f32 %v3151, %v3255
    %v3257 = vpop.f32.mrf.mxu0
    %3258 = vdwg.mxu0
    %3259 = vmatprep.subr.mxu0 0.0
    %3260 = vmatpush1.msra.mxu0 %v190
    %3261 = vmatprep.subr.mxu0 0.0
    %3262 = vmatpush1.msra.mxu0 %v189
    %3263 = vmatprep.subr.mxu0 0.0
    %3264 = vmatpush1.msra.mxu0 %v188
    %3265 = vmatprep.subr.mxu0 0.0
    %3266 = vmatpush1.msra.mxu0 %v187
    %3267 = vmatprep.subr.mxu0 0.0
    %3268 = vmatpush1.msra.mxu0 %v186
    %3269 = vmatprep.subr.mxu0 0.0
    %3270 = vmatpush1.msra.mxu0 %v185
    %3271 = vmatprep.subr.mxu0 0.0
    %3272 = vmatpush1.msra.mxu0 %v184
    %3273 = vmatprep.subr.mxu0 0.0
    %3274 = vmatpush1.msra.mxu0 %v183
    %3275 = vmatprep.subr.mxu0 0.0
    %3276 = vmatpush1.msra.mxu0 %v182
    %3277 = vmatprep.subr.mxu0 0.0
    %3278 = vmatpush1.msra.mxu0 %v181
    %3279 = vmatprep.subr.mxu0 0.0
    %3280 = vmatpush1.msra.mxu0 %v180
    %3281 = vmatprep.subr.mxu0 0.0
    %3282 = vmatpush1.msra.mxu0 %v179
    %3283 = vmatprep.subr.mxu0 0.0
    %3284 = vmatpush1.msra.mxu0 %v178
    %3285 = vmatprep.subr.mxu0 0.0
    %3286 = vmatpush1.msra.mxu0 %v177
    %3287 = vmatprep.subr.mxu0 0.0
    %3288 = vmatpush1.msra.mxu0 %v176
    %3289 = vmatprep.subr.mxu0 0.0
    %3290 = vmatpush1.msra.mxu0 %v175
    %3291 = vmatprep.subr.mxu0 0.0
    %3292 = vmatpush2.msra.mxu0 %v206
    %3293 = vmatprep.subr.mxu0 0.0
    %3294 = vmatpush2.msra.mxu0 %v205
    %3295 = vmatprep.subr.mxu0 0.0
    %3296 = vmatpush2.msra.mxu0 %v204
    %3297 = vmatprep.subr.mxu0 0.0
    %3298 = vmatpush2.msra.mxu0 %v203
    %3299 = vmatprep.subr.mxu0 0.0
    %3300 = vmatpush2.msra.mxu0 %v202
    %3301 = vmatprep.subr.mxu0 0.0
    %3302 = vmatpush2.msra.mxu0 %v201
    %3303 = vmatprep.subr.mxu0 0.0
    %3304 = vmatpush2.msra.mxu0 %v200
    %3305 = vmatprep.subr.mxu0 0.0
    %3306 = vmatpush2.msra.mxu0 %v199
    %3307 = vmatprep.subr.mxu0 0.0
    %3308 = vmatpush2.msra.mxu0 %v198
    %3309 = vmatprep.subr.mxu0 0.0
    %3310 = vmatpush2.msra.mxu0 %v197
    %3311 = vmatprep.subr.mxu0 0.0
    %3312 = vmatpush2.msra.mxu0 %v196
    %3313 = vmatprep.subr.mxu0 0.0
    %3314 = vmatpush2.msra.mxu0 %v195
    %3315 = vmatprep.subr.mxu0 0.0
    %3316 = vmatpush2.msra.mxu0 %v194
    %3317 = vmatprep.subr.mxu0 0.0
    %3318 = vmatpush2.msra.mxu0 %v193
    %3319 = vmatprep.subr.mxu0 0.0
    %3320 = vmatpush2.msra.mxu0 %v192
    %3321 = vmatprep.subr.mxu0 0.0
    %3322 = vmatpush2.msra.mxu0 %v191
    %3323 = vmatprep.mubr.f32.mxu0 %v2885
    %3324 = vmatmul.mubr.f32.gmra.mxu0 %v2854
    %v3325 = vpop.f32.mrf.mxu0
    %v3326 = vadd.f32 %v3221, %v3325
    %v3327 = vpop.f32.mrf.mxu0
    %3328 = vmatprep.mubr.f32.mxu0 %v2887
    %3329 = vmatmul.mubr.f32.gmra.mxu0 %v2856
    %v3330 = vpop.f32.mrf.mxu0
    %v3331 = vadd.f32 %v3226, %v3330
    %v3332 = vpop.f32.mrf.mxu0
    %3333 = vmatprep.mubr.f32.mxu0 %v2889
    %3334 = vmatmul.mubr.f32.gmra.mxu0 %v2858
    %v3335 = vpop.f32.mrf.mxu0
    %v3336 = vadd.f32 %v3231, %v3335
    %v3337 = vpop.f32.mrf.mxu0
    %3338 = vmatprep.mubr.f32.mxu0 %v2891
    %3339 = vmatmul.mubr.f32.gmra.mxu0 %v2860
    %v3340 = vpop.f32.mrf.mxu0
    %v3341 = vadd.f32 %v3236, %v3340
    %v3342 = vpop.f32.mrf.mxu0
    %3343 = vmatprep.mubr.f32.mxu0 %v2893
    %3344 = vmatmul.mubr.f32.gmra.mxu0 %v2862
    %v3345 = vpop.f32.mrf.mxu0
    %v3346 = vadd.f32 %v3241, %v3345
    %v3347 = vpop.f32.mrf.mxu0
    %3348 = vmatprep.mubr.f32.mxu0 %v2895
    %3349 = vmatmul.mubr.f32.gmra.mxu0 %v2877
    %v3350 = vpop.f32.mrf.mxu0
    %v3351 = vadd.f32 %v3246, %v3350
    %v3352 = vpop.f32.mrf.mxu0
    %3353 = vmatprep.mubr.f32.mxu0 %v2910
    %3354 = vmatmul.mubr.f32.gmra.mxu0 %v2906
    %v3355 = vpop.f32.mrf.mxu0
    %v3356 = vadd.f32 %v3251, %v3355
    %v3357 = vpop.f32.mrf.mxu0
    %3358 = vmatprep.mubr.f32.mxu0 %v2909
    %3359 = vmatmul.mubr.f32.gmra.mxu0 %v2905
    %v3360 = vpop.f32.mrf.mxu0
    %v3361 = vadd.f32 %v3256, %v3360
    %v3362 = vpop.f32.mrf.mxu0
    %3363 = vdwg.mxu0
    %3364 = vmatprep.subr.mxu0 0.0
    %3365 = vmatpush1.msra.mxu0 %v222
    %3366 = vmatprep.subr.mxu0 0.0
    %3367 = vmatpush1.msra.mxu0 %v221
    %3368 = vmatprep.subr.mxu0 0.0
    %3369 = vmatpush1.msra.mxu0 %v220
    %3370 = vmatprep.subr.mxu0 0.0
    %3371 = vmatpush1.msra.mxu0 %v219
    %3372 = vmatprep.subr.mxu0 0.0
    %3373 = vmatpush1.msra.mxu0 %v218
    %3374 = vmatprep.subr.mxu0 0.0
    %3375 = vmatpush1.msra.mxu0 %v217
    %3376 = vmatprep.subr.mxu0 0.0
    %3377 = vmatpush1.msra.mxu0 %v216
    %3378 = vmatprep.subr.mxu0 0.0
    %3379 = vmatpush1.msra.mxu0 %v215
    %3380 = vmatprep.subr.mxu0 0.0
    %3381 = vmatpush1.msra.mxu0 %v214
    %3382 = vmatprep.subr.mxu0 0.0
    %3383 = vmatpush1.msra.mxu0 %v213
    %3384 = vmatprep.subr.mxu0 0.0
    %3385 = vmatpush1.msra.mxu0 %v212
    %3386 = vmatprep.subr.mxu0 0.0
    %3387 = vmatpush1.msra.mxu0 %v211
    %3388 = vmatprep.subr.mxu0 0.0
    %3389 = vmatpush1.msra.mxu0 %v210
    %3390 = vmatprep.subr.mxu0 0.0
    %3391 = vmatpush1.msra.mxu0 %v209
    %3392 = vmatprep.subr.mxu0 0.0
    %3393 = vmatpush1.msra.mxu0 %v208
    %3394 = vmatprep.subr.mxu0 0.0
    %3395 = vmatpush1.msra.mxu0 %v207
    %3396 = vmatprep.subr.mxu0 0.0
    %3397 = vmatpush2.msra.mxu0 0.0
    %3398 = vmatprep.subr.mxu0 0.0
    %3399 = vmatpush2.msra.mxu0 0.0
    %3400 = vmatprep.subr.mxu0 0.0
    %3401 = vmatpush2.msra.mxu0 0.0
    %3402 = vmatprep.subr.mxu0 0.0
    %3403 = vmatpush2.msra.mxu0 0.0
    %3404 = vmatprep.subr.mxu0 0.0
    %3405 = vmatpush2.msra.mxu0 0.0
    %3406 = vmatprep.subr.mxu0 0.0
    %3407 = vmatpush2.msra.mxu0 0.0
    %3408 = vmatprep.subr.mxu0 0.0
    %3409 = vmatpush2.msra.mxu0 0.0
    %3410 = vmatprep.subr.mxu0 0.0
    %3411 = vmatpush2.msra.mxu0 0.0
    %3412 = vmatprep.subr.mxu0 0.0
    %3413 = vmatpush2.msra.mxu0 0.0
    %3414 = vmatprep.subr.mxu0 0.0
    %3415 = vmatpush2.msra.mxu0 0.0
    %3416 = vmatprep.subr.mxu0 0.0
    %3417 = vmatpush2.msra.mxu0 0.0
    %3418 = vmatprep.subr.mxu0 0.0
    %3419 = vmatpush2.msra.mxu0 0.0
    %3420 = vmatprep.subr.mxu0 0.0
    %3421 = vmatpush2.msra.mxu0 0.0
    %3422 = vmatprep.subr.mxu0 0.0
    %3423 = vmatpush2.msra.mxu0 0.0
    %3424 = vmatprep.subr.mxu0 0.0
    %3425 = vmatpush2.msra.mxu0 0.0
    %3426 = vmatprep.subr.mxu0 0.0
    %3427 = vmatpush2.msra.mxu0 0.0
    %3428 = vmatprep.mubr.f32.mxu0 0.0
    %3429 = vmatmul.mubr.f32.gmra.mxu0 %v2917
    %v3430 = vpop.f32.mrf.mxu0
    %v3431 = vadd.f32 %v3326, %v3430
    %v3432 = vpop.f32.mrf.mxu0
    %3433 = vmatprep.mubr.f32.mxu0 0.0
    %3434 = vmatmul.mubr.f32.gmra.mxu0 %v2919
    %v3435 = vpop.f32.mrf.mxu0
    %v3436 = vadd.f32 %v3331, %v3435
    %v3437 = vpop.f32.mrf.mxu0
    %3438 = vmatprep.mubr.f32.mxu0 0.0
    %3439 = vmatmul.mubr.f32.gmra.mxu0 %v2921
    %v3440 = vpop.f32.mrf.mxu0
    %v3441 = vadd.f32 %v3336, %v3440
    %v3442 = vpop.f32.mrf.mxu0
    %3443 = vmatprep.mubr.f32.mxu0 0.0
    %3444 = vmatmul.mubr.f32.gmra.mxu0 %v2923
    %v3445 = vpop.f32.mrf.mxu0
    %v3446 = vadd.f32 %v3341, %v3445
    %v3447 = vpop.f32.mrf.mxu0
    %3448 = vmatprep.mubr.f32.mxu0 0.0
    %3449 = vmatmul.mubr.f32.gmra.mxu0 %v2925
    %v3450 = vpop.f32.mrf.mxu0
    %v3451 = vadd.f32 %v3346, %v3450
    %v3452 = vpop.f32.mrf.mxu0
    %3453 = vmatprep.mubr.f32.mxu0 0.0
    %3454 = vmatmul.mubr.f32.gmra.mxu0 %v2927
    %v3455 = vpop.f32.mrf.mxu0
    %v3456 = vadd.f32 %v3351, %v3455
    %v3457 = vpop.f32.mrf.mxu0
    %3458 = vmatprep.mubr.f32.mxu0 0.0
    %3459 = vmatmul.mubr.f32.gmra.mxu0 %v2929
    %v3460 = vpop.f32.mrf.mxu0
    %v3461 = vadd.f32 %v3356, %v3460
    %v3462 = vpop.f32.mrf.mxu0
    %3463 = vmatprep.mubr.f32.mxu0 0.0
    %3464 = vmatmul.mubr.f32.gmra.mxu0 %v2931
    %v3465 = vpop.f32.mrf.mxu0
    %v3466 = vadd.f32 %v3361, %v3465
    %v3467 = vpop.f32.mrf.mxu0
    %3468 = vdwg.mxu0
    %v3476 = vrot.slane %v2619, 1
    %v3477 = vrot.slane %v2620, 1
    %v3478 = vsel %vm2823, %v3476, %v3477
    %v3479 = vrot.slane %v2621, 1
    %v3480 = vsel %vm2823, %v3477, %v3479
    %v3481 = vrot.slane %v2622, 1
    %v3482 = vsel %vm2823, %v3479, %v3481
    %v3483 = vrot.slane %v2623, 1
    %v3484 = vsel %vm2823, %v3481, %v3483
    %v3485 = vrot.slane %v2624, 1
    %v3486 = vsel %vm2823, %v3483, %v3485
    %v3487 = vrot.slane %v2625, 1
    %v3488 = vsel %vm2823, %v3485, %v3487
    %v3489 = vrot.slane %v2626, 1
    %v3490 = vsel %vm2823, %v3487, %v3489
    %v3491 = vrot.slane %v2619, 2
    %v3492 = vrot.slane %v2620, 2
    %v3493 = vsel %vm2847, %v3491, %v3492
    %v3494 = vrot.slane %v2621, 2
    %v3495 = vsel %vm2847, %v3492, %v3494
    %v3496 = vrot.slane %v2622, 2
    %v3497 = vsel %vm2847, %v3494, %v3496
    %v3498 = vrot.slane %v2623, 2
    %v3499 = vsel %vm2847, %v3496, %v3498
    %v3500 = vrot.slane %v2624, 2
    %v3501 = vsel %vm2847, %v3498, %v3500
    %v3502 = vrot.slane %v2625, 2
    %v3503 = vsel %vm2847, %v3500, %v3502
    %v3504 = vrot.slane %v2626, 2
    %v3505 = vsel %vm2847, %v3502, %v3504
    %v3507 = vrot.slane %v2627, 1
    %v3508 = vsel %vm2823, %v3489, %v3507
    %v3509 = vrot.slane %v2627, 2
    %v3510 = vsel %vm2847, %v3504, %v3509
    %v3512 = vrot.slane %v2620, 3
    %v3513 = vrot.slane %v2621, 3
    %v3514 = vsel %vm2880, %v3512, %v3513
    %v3515 = vrot.slane %v2622, 3
    %v3516 = vsel %vm2880, %v3513, %v3515
    %v3517 = vrot.slane %v2623, 3
    %v3518 = vsel %vm2880, %v3515, %v3517
    %v3519 = vrot.slane %v2624, 3
    %v3520 = vsel %vm2880, %v3517, %v3519
    %v3521 = vrot.slane %v2625, 3
    %v3522 = vsel %vm2880, %v3519, %v3521
    %v3523 = vrot.slane %v2626, 3
    %v3524 = vsel %vm2880, %v3521, %v3523
    %v3525 = vrot.slane %v2627, 3
    %v3526 = vsel %vm2880, %v3523, %v3525
    %v3527 = vrot.slane %v2628, 3
    %v3528 = vsel %vm2880, %v3525, %v3527
    %v3529 = vrot.slane %v2628, 2
    %v3530 = vsel %vm2847, %v3509, %v3529
    %v3532 = vrot.slane %v2629, 3
    %v3533 = vsel %vm2880, %v3527, %v3532
    %v3534 = vrot.slane %v2621, 4
    %v3535 = vrot.slane %v2622, 4
    %v3536 = vsel %vm2914, %v3534, %v3535
    %v3537 = vrot.slane %v2623, 4
    %v3538 = vsel %vm2914, %v3535, %v3537
    %v3539 = vrot.slane %v2624, 4
    %v3540 = vsel %vm2914, %v3537, %v3539
    %v3541 = vrot.slane %v2625, 4
    %v3542 = vsel %vm2914, %v3539, %v3541
    %v3543 = vrot.slane %v2626, 4
    %v3544 = vsel %vm2914, %v3541, %v3543
    %v3545 = vrot.slane %v2627, 4
    %v3546 = vsel %vm2914, %v3543, %v3545
    %v3547 = vrot.slane %v2628, 4
    %v3548 = vsel %vm2914, %v3545, %v3547
    %v3549 = vrot.slane %v2629, 4
    %v3550 = vsel %vm2914, %v3547, %v3549
    %v3551 = vrot.slane %v3478, 1
    %v3552 = vrot.slane %v3480, 1
    %v3553 = vsel %vm2823, %v3551, %v3552
    %v3554 = vrot.slane %v3493, 1
    %v3555 = vrot.slane %v3495, 1
    %v3556 = vsel %vm2823, %v3554, %v3555
    %v3557 = vrot.slane %v3482, 1
    %v3558 = vsel %vm2823, %v3552, %v3557
    %v3559 = vrot.slane %v3497, 1
    %v3560 = vsel %vm2823, %v3555, %v3559
    %v3561 = vrot.slane %v3514, 1
    %v3562 = vrot.slane %v3516, 1
    %v3563 = vsel %vm2823, %v3561, %v3562
    %v3564 = vrot.slane %v3499, 1
    %v3565 = vsel %vm2823, %v3559, %v3564
    %v3566 = vrot.slane %v3518, 1
    %v3567 = vsel %vm2823, %v3562, %v3566
    %v3568 = vrot.slane %v3536, 1
    %v3569 = vrot.slane %v3538, 1
    %v3570 = vsel %vm2823, %v3568, %v3569
    %v3571 = vrot.slane %v3484, 1
    %v3572 = vsel %vm2823, %v3557, %v3571
    %v3573 = vrot.slane %v3501, 1
    %v3574 = vsel %vm2823, %v3564, %v3573
    %v3575 = vrot.slane %v3520, 1
    %v3576 = vsel %vm2823, %v3566, %v3575
    %v3577 = vrot.slane %v3540, 1
    %v3578 = vsel %vm2823, %v3569, %v3577
    %v3579 = vrot.slane %v3486, 1
    %v3580 = vsel %vm2823, %v3571, %v3579
    %v3581 = vrot.slane %v3503, 1
    %v3582 = vsel %vm2823, %v3573, %v3581
    %v3583 = vrot.slane %v3522, 1
    %v3584 = vsel %vm2823, %v3575, %v3583
    %v3585 = vrot.slane %v3542, 1
    %v3586 = vsel %vm2823, %v3577, %v3585
    %v3587 = vrot.slane %v3488, 1
    %v3588 = vsel %vm2823, %v3579, %v3587
    %v3589 = vrot.slane %v3505, 1
    %v3590 = vsel %vm2823, %v3581, %v3589
    %v3591 = vrot.slane %v3524, 1
    %v3592 = vsel %vm2823, %v3583, %v3591
    %v3593 = vrot.slane %v3544, 1
    %v3594 = vsel %vm2823, %v3585, %v3593
    %v3595 = vrot.slane %v3490, 1
    %v3596 = vsel %vm2823, %v3587, %v3595
    %v3597 = vrot.slane %v3510, 1
    %v3598 = vsel %vm2823, %v3589, %v3597
    %v3599 = vrot.slane %v3526, 1
    %v3600 = vsel %vm2823, %v3591, %v3599
    %v3601 = vrot.slane %v3546, 1
    %v3602 = vsel %vm2823, %v3593, %v3601
    %v3603 = vrot.slane %v3508, 1
    %v3604 = vsel %vm2823, %v3595, %v3603
    %v3605 = vrot.slane %v3530, 1
    %v3606 = vsel %vm2823, %v3597, %v3605
    %v3607 = vrot.slane %v3528, 1
    %v3608 = vsel %vm2823, %v3599, %v3607
    %v3609 = vrot.slane %v3548, 1
    %v3610 = vsel %vm2823, %v3601, %v3609
    %v3611 = vrot.slane %v3489, 1
    %v3612 = vsel %vm2823, %v3595, %v3611
    %v3613 = vrot.slane %v3504, 1
    %v3614 = vsel %vm2823, %v3589, %v3613
    %v3615 = vrot.slane %v3507, 1
    %v3616 = vsel %vm2823, %v3603, %v3615
    %v3617 = vrot.slane %v3509, 1
    %v3618 = vsel %vm2823, %v3597, %v3617
    %v3619 = vrot.slane %v3529, 1
    %v3620 = vsel %vm2823, %v3605, %v3619
    %v3621 = vrot.slane %v3533, 1
    %v3622 = vsel %vm2823, %v3607, %v3621
    %v3623 = vrot.slane %v3550, 1
    %v3624 = vsel %vm2823, %v3609, %v3623
    %3676 = vmatprep.subr.mxu0 0.0
    %3677 = vmatpush1.msra.mxu0 %v94
    %3678 = vmatprep.subr.mxu0 0.0
    %3679 = vmatpush1.msra.mxu0 %v93
    %3680 = vmatprep.subr.mxu0 0.0
    %3681 = vmatpush1.msra.mxu0 %v92
    %3682 = vmatprep.subr.mxu0 0.0
    %3683 = vmatpush1.msra.mxu0 %v91
    %3684 = vmatprep.subr.mxu0 0.0
    %3685 = vmatpush1.msra.mxu0 %v90
    %3686 = vmatprep.subr.mxu0 0.0
    %3687 = vmatpush1.msra.mxu0 %v89
    %3688 = vmatprep.subr.mxu0 0.0
    %3689 = vmatpush1.msra.mxu0 %v88
    %3690 = vmatprep.subr.mxu0 0.0
    %3691 = vmatpush1.msra.mxu0 %v87
    %3692 = vmatprep.subr.mxu0 0.0
    %3693 = vmatpush1.msra.mxu0 %v86
    %3694 = vmatprep.subr.mxu0 0.0
    %3695 = vmatpush1.msra.mxu0 %v85
    %3696 = vmatprep.subr.mxu0 0.0
    %3697 = vmatpush1.msra.mxu0 %v84
    %3698 = vmatprep.subr.mxu0 0.0
    %3699 = vmatpush1.msra.mxu0 %v83
    %3700 = vmatprep.subr.mxu0 0.0
    %3701 = vmatpush1.msra.mxu0 %v82
    %3702 = vmatprep.subr.mxu0 0.0
    %3703 = vmatpush1.msra.mxu0 %v81
    %3704 = vmatprep.subr.mxu0 0.0
    %3705 = vmatpush1.msra.mxu0 %v80
    %3706 = vmatprep.subr.mxu0 0.0
    %3707 = vmatpush1.msra.mxu0 %v79
    %3708 = vmatprep.subr.mxu0 0.0
    %3709 = vmatpush2.msra.mxu0 %v110
    %3710 = vmatprep.subr.mxu0 0.0
    %3711 = vmatpush2.msra.mxu0 %v109
    %3712 = vmatprep.subr.mxu0 0.0
    %3713 = vmatpush2.msra.mxu0 %v108
    %3714 = vmatprep.subr.mxu0 0.0
    %3715 = vmatpush2.msra.mxu0 %v107
    %3716 = vmatprep.subr.mxu0 0.0
    %3717 = vmatpush2.msra.mxu0 %v106
    %3718 = vmatprep.subr.mxu0 0.0
    %3719 = vmatpush2.msra.mxu0 %v105
    %3720 = vmatprep.subr.mxu0 0.0
    %3721 = vmatpush2.msra.mxu0 %v104
    %3722 = vmatprep.subr.mxu0 0.0
    %3723 = vmatpush2.msra.mxu0 %v103
    %3724 = vmatprep.subr.mxu0 0.0
    %3725 = vmatpush2.msra.mxu0 %v102
    %3726 = vmatprep.subr.mxu0 0.0
    %3727 = vmatpush2.msra.mxu0 %v101
    %3728 = vmatprep.subr.mxu0 0.0
    %3729 = vmatpush2.msra.mxu0 %v100
    %3730 = vmatprep.subr.mxu0 0.0
    %3731 = vmatpush2.msra.mxu0 %v99
    %3732 = vmatprep.subr.mxu0 0.0
    %3733 = vmatpush2.msra.mxu0 %v98
    %3734 = vmatprep.subr.mxu0 0.0
    %3735 = vmatpush2.msra.mxu0 %v97
    %3736 = vmatprep.subr.mxu0 0.0
    %3737 = vmatpush2.msra.mxu0 %v96
    %3738 = vmatprep.subr.mxu0 0.0
    %3739 = vmatpush2.msra.mxu0 %v95
    %3740 = vmatprep.mubr.f32.mxu0 %v3553
    %3741 = vmatmul.mubr.f32.gmra.mxu0 %v3478
    %v3742 = vpop.f32.mrf.mxu0
    %v3743 = vadd.f32 %v2943, %v3742
    %v3744 = vpop.f32.mrf.mxu0
    %3745 = vmatprep.mubr.f32.mxu0 %v3558
    %3746 = vmatmul.mubr.f32.gmra.mxu0 %v3480
    %v3747 = vpop.f32.mrf.mxu0
    %v3748 = vadd.f32 %v2943, %v3747
    %v3749 = vpop.f32.mrf.mxu0
    %3750 = vmatprep.mubr.f32.mxu0 %v3572
    %3751 = vmatmul.mubr.f32.gmra.mxu0 %v3482
    %v3752 = vpop.f32.mrf.mxu0
    %v3753 = vadd.f32 %v2943, %v3752
    %v3754 = vpop.f32.mrf.mxu0
    %3755 = vmatprep.mubr.f32.mxu0 %v3580
    %3756 = vmatmul.mubr.f32.gmra.mxu0 %v3484
    %v3757 = vpop.f32.mrf.mxu0
    %v3758 = vadd.f32 %v2943, %v3757
    %v3759 = vpop.f32.mrf.mxu0
    %3760 = vmatprep.mubr.f32.mxu0 %v3588
    %3761 = vmatmul.mubr.f32.gmra.mxu0 %v3486
    %v3762 = vpop.f32.mrf.mxu0
    %v3763 = vadd.f32 %v2943, %v3762
    %v3764 = vpop.f32.mrf.mxu0
    %3765 = vmatprep.mubr.f32.mxu0 %v3596
    %3766 = vmatmul.mubr.f32.gmra.mxu0 %v3488
    %v3767 = vpop.f32.mrf.mxu0
    %v3768 = vadd.f32 %v2943, %v3767
    %v3769 = vpop.f32.mrf.mxu0
    %3770 = vmatprep.mubr.f32.mxu0 %v3612
    %3771 = vmatmul.mubr.f32.gmra.mxu0 %v3490
    %v3772 = vpop.f32.mrf.mxu0
    %v3773 = vadd.f32 %v2943, %v3772
    %v3774 = vpop.f32.mrf.mxu0
    %3775 = vmatprep.mubr.f32.mxu0 %v3611
    %3776 = vmatmul.mubr.f32.gmra.mxu0 %v3489
    %v3777 = vpop.f32.mrf.mxu0
    %v3778 = vadd.f32 %v2943, %v3777
    %v3779 = vpop.f32.mrf.mxu0
    %3780 = vdwg.mxu0
    %3781 = vmatprep.subr.mxu0 0.0
    %3782 = vmatpush1.msra.mxu0 %v126
    %3783 = vmatprep.subr.mxu0 0.0
    %3784 = vmatpush1.msra.mxu0 %v125
    %3785 = vmatprep.subr.mxu0 0.0
    %3786 = vmatpush1.msra.mxu0 %v124
    %3787 = vmatprep.subr.mxu0 0.0
    %3788 = vmatpush1.msra.mxu0 %v123
    %3789 = vmatprep.subr.mxu0 0.0
    %3790 = vmatpush1.msra.mxu0 %v122
    %3791 = vmatprep.subr.mxu0 0.0
    %3792 = vmatpush1.msra.mxu0 %v121
    %3793 = vmatprep.subr.mxu0 0.0
    %3794 = vmatpush1.msra.mxu0 %v120
    %3795 = vmatprep.subr.mxu0 0.0
    %3796 = vmatpush1.msra.mxu0 %v119
    %3797 = vmatprep.subr.mxu0 0.0
    %3798 = vmatpush1.msra.mxu0 %v118
    %3799 = vmatprep.subr.mxu0 0.0
    %3800 = vmatpush1.msra.mxu0 %v117
    %3801 = vmatprep.subr.mxu0 0.0
    %3802 = vmatpush1.msra.mxu0 %v116
    %3803 = vmatprep.subr.mxu0 0.0
    %3804 = vmatpush1.msra.mxu0 %v115
    %3805 = vmatprep.subr.mxu0 0.0
    %3806 = vmatpush1.msra.mxu0 %v114
    %3807 = vmatprep.subr.mxu0 0.0
    %3808 = vmatpush1.msra.mxu0 %v113
    %3809 = vmatprep.subr.mxu0 0.0
    %3810 = vmatpush1.msra.mxu0 %v112
    %3811 = vmatprep.subr.mxu0 0.0
    %3812 = vmatpush1.msra.mxu0 %v111
    %3813 = vmatprep.subr.mxu0 0.0
    %3814 = vmatpush2.msra.mxu0 %v142
    %3815 = vmatprep.subr.mxu0 0.0
    %3816 = vmatpush2.msra.mxu0 %v141
    %3817 = vmatprep.subr.mxu0 0.0
    %3818 = vmatpush2.msra.mxu0 %v140
    %3819 = vmatprep.subr.mxu0 0.0
    %3820 = vmatpush2.msra.mxu0 %v139
    %3821 = vmatprep.subr.mxu0 0.0
    %3822 = vmatpush2.msra.mxu0 %v138
    %3823 = vmatprep.subr.mxu0 0.0
    %3824 = vmatpush2.msra.mxu0 %v137
    %3825 = vmatprep.subr.mxu0 0.0
    %3826 = vmatpush2.msra.mxu0 %v136
    %3827 = vmatprep.subr.mxu0 0.0
    %3828 = vmatpush2.msra.mxu0 %v135
    %3829 = vmatprep.subr.mxu0 0.0
    %3830 = vmatpush2.msra.mxu0 %v134
    %3831 = vmatprep.subr.mxu0 0.0
    %3832 = vmatpush2.msra.mxu0 %v133
    %3833 = vmatprep.subr.mxu0 0.0
    %3834 = vmatpush2.msra.mxu0 %v132
    %3835 = vmatprep.subr.mxu0 0.0
    %3836 = vmatpush2.msra.mxu0 %v131
    %3837 = vmatprep.subr.mxu0 0.0
    %3838 = vmatpush2.msra.mxu0 %v130
    %3839 = vmatprep.subr.mxu0 0.0
    %3840 = vmatpush2.msra.mxu0 %v129
    %3841 = vmatprep.subr.mxu0 0.0
    %3842 = vmatpush2.msra.mxu0 %v128
    %3843 = vmatprep.subr.mxu0 0.0
    %3844 = vmatpush2.msra.mxu0 %v127
    %3845 = vmatprep.mubr.f32.mxu0 %v3558
    %3846 = vmatmul.mubr.f32.gmra.mxu0 %v3556
    %v3847 = vpop.f32.mrf.mxu0
    %v3848 = vadd.f32 %v3743, %v3847
    %v3849 = vpop.f32.mrf.mxu0
    %3850 = vmatprep.mubr.f32.mxu0 %v3572
    %3851 = vmatmul.mubr.f32.gmra.mxu0 %v3560
    %v3852 = vpop.f32.mrf.mxu0
    %v3853 = vadd.f32 %v3748, %v3852
    %v3854 = vpop.f32.mrf.mxu0
    %3855 = vmatprep.mubr.f32.mxu0 %v3580
    %3856 = vmatmul.mubr.f32.gmra.mxu0 %v3565
    %v3857 = vpop.f32.mrf.mxu0
    %v3858 = vadd.f32 %v3753, %v3857
    %v3859 = vpop.f32.mrf.mxu0
    %3860 = vmatprep.mubr.f32.mxu0 %v3588
    %3861 = vmatmul.mubr.f32.gmra.mxu0 %v3574
    %v3862 = vpop.f32.mrf.mxu0
    %v3863 = vadd.f32 %v3758, %v3862
    %v3864 = vpop.f32.mrf.mxu0
    %3865 = vmatprep.mubr.f32.mxu0 %v3596
    %3866 = vmatmul.mubr.f32.gmra.mxu0 %v3582
    %v3867 = vpop.f32.mrf.mxu0
    %v3868 = vadd.f32 %v3763, %v3867
    %v3869 = vpop.f32.mrf.mxu0
    %3870 = vmatprep.mubr.f32.mxu0 %v3604
    %3871 = vmatmul.mubr.f32.gmra.mxu0 %v3590
    %v3872 = vpop.f32.mrf.mxu0
    %v3873 = vadd.f32 %v3768, %v3872
    %v3874 = vpop.f32.mrf.mxu0
    %3875 = vmatprep.mubr.f32.mxu0 %v3616
    %3876 = vmatmul.mubr.f32.gmra.mxu0 %v3614
    %v3877 = vpop.f32.mrf.mxu0
    %v3878 = vadd.f32 %v3773, %v3877
    %v3879 = vpop.f32.mrf.mxu0
    %3880 = vmatprep.mubr.f32.mxu0 %v3615
    %3881 = vmatmul.mubr.f32.gmra.mxu0 %v3613
    %v3882 = vpop.f32.mrf.mxu0
    %v3883 = vadd.f32 %v3778, %v3882
    %v3884 = vpop.f32.mrf.mxu0
    %3885 = vdwg.mxu0
    %3886 = vmatprep.subr.mxu0 0.0
    %3887 = vmatpush1.msra.mxu0 %v158
    %3888 = vmatprep.subr.mxu0 0.0
    %3889 = vmatpush1.msra.mxu0 %v157
    %3890 = vmatprep.subr.mxu0 0.0
    %3891 = vmatpush1.msra.mxu0 %v156
    %3892 = vmatprep.subr.mxu0 0.0
    %3893 = vmatpush1.msra.mxu0 %v155
    %3894 = vmatprep.subr.mxu0 0.0
    %3895 = vmatpush1.msra.mxu0 %v154
    %3896 = vmatprep.subr.mxu0 0.0
    %3897 = vmatpush1.msra.mxu0 %v153
    %3898 = vmatprep.subr.mxu0 0.0
    %3899 = vmatpush1.msra.mxu0 %v152
    %3900 = vmatprep.subr.mxu0 0.0
    %3901 = vmatpush1.msra.mxu0 %v151
    %3902 = vmatprep.subr.mxu0 0.0
    %3903 = vmatpush1.msra.mxu0 %v150
    %3904 = vmatprep.subr.mxu0 0.0
    %3905 = vmatpush1.msra.mxu0 %v149
    %3906 = vmatprep.subr.mxu0 0.0
    %3907 = vmatpush1.msra.mxu0 %v148
    %3908 = vmatprep.subr.mxu0 0.0
    %3909 = vmatpush1.msra.mxu0 %v147
    %3910 = vmatprep.subr.mxu0 0.0
    %3911 = vmatpush1.msra.mxu0 %v146
    %3912 = vmatprep.subr.mxu0 0.0
    %3913 = vmatpush1.msra.mxu0 %v145
    %3914 = vmatprep.subr.mxu0 0.0
    %3915 = vmatpush1.msra.mxu0 %v144
    %3916 = vmatprep.subr.mxu0 0.0
    %3917 = vmatpush1.msra.mxu0 %v143
    %3918 = vmatprep.subr.mxu0 0.0
    %3919 = vmatpush2.msra.mxu0 %v174
    %3920 = vmatprep.subr.mxu0 0.0
    %3921 = vmatpush2.msra.mxu0 %v173
    %3922 = vmatprep.subr.mxu0 0.0
    %3923 = vmatpush2.msra.mxu0 %v172
    %3924 = vmatprep.subr.mxu0 0.0
    %3925 = vmatpush2.msra.mxu0 %v171
    %3926 = vmatprep.subr.mxu0 0.0
    %3927 = vmatpush2.msra.mxu0 %v170
    %3928 = vmatprep.subr.mxu0 0.0
    %3929 = vmatpush2.msra.mxu0 %v169
    %3930 = vmatprep.subr.mxu0 0.0
    %3931 = vmatpush2.msra.mxu0 %v168
    %3932 = vmatprep.subr.mxu0 0.0
    %3933 = vmatpush2.msra.mxu0 %v167
    %3934 = vmatprep.subr.mxu0 0.0
    %3935 = vmatpush2.msra.mxu0 %v166
    %3936 = vmatprep.subr.mxu0 0.0
    %3937 = vmatpush2.msra.mxu0 %v165
    %3938 = vmatprep.subr.mxu0 0.0
    %3939 = vmatpush2.msra.mxu0 %v164
    %3940 = vmatprep.subr.mxu0 0.0
    %3941 = vmatpush2.msra.mxu0 %v163
    %3942 = vmatprep.subr.mxu0 0.0
    %3943 = vmatpush2.msra.mxu0 %v162
    %3944 = vmatprep.subr.mxu0 0.0
    %3945 = vmatpush2.msra.mxu0 %v161
    %3946 = vmatprep.subr.mxu0 0.0
    %3947 = vmatpush2.msra.mxu0 %v160
    %3948 = vmatprep.subr.mxu0 0.0
    %3949 = vmatpush2.msra.mxu0 %v159
    %3950 = vmatprep.mubr.f32.mxu0 %v3563
    %3951 = vmatmul.mubr.f32.gmra.mxu0 %v3560
    %v3952 = vpop.f32.mrf.mxu0
    %v3953 = vadd.f32 %v3848, %v3952
    %v3954 = vpop.f32.mrf.mxu0
    %3955 = vmatprep.mubr.f32.mxu0 %v3567
    %3956 = vmatmul.mubr.f32.gmra.mxu0 %v3565
    %v3957 = vpop.f32.mrf.mxu0
    %v3958 = vadd.f32 %v3853, %v3957
    %v3959 = vpop.f32.mrf.mxu0
    %3960 = vmatprep.mubr.f32.mxu0 %v3576
    %3961 = vmatmul.mubr.f32.gmra.mxu0 %v3574
    %v3962 = vpop.f32.mrf.mxu0
    %v3963 = vadd.f32 %v3858, %v3962
    %v3964 = vpop.f32.mrf.mxu0
    %3965 = vmatprep.mubr.f32.mxu0 %v3584
    %3966 = vmatmul.mubr.f32.gmra.mxu0 %v3582
    %v3967 = vpop.f32.mrf.mxu0
    %v3968 = vadd.f32 %v3863, %v3967
    %v3969 = vpop.f32.mrf.mxu0
    %3970 = vmatprep.mubr.f32.mxu0 %v3592
    %3971 = vmatmul.mubr.f32.gmra.mxu0 %v3590
    %v3972 = vpop.f32.mrf.mxu0
    %v3973 = vadd.f32 %v3868, %v3972
    %v3974 = vpop.f32.mrf.mxu0
    %3975 = vmatprep.mubr.f32.mxu0 %v3600
    %3976 = vmatmul.mubr.f32.gmra.mxu0 %v3598
    %v3977 = vpop.f32.mrf.mxu0
    %v3978 = vadd.f32 %v3873, %v3977
    %v3979 = vpop.f32.mrf.mxu0
    %3980 = vmatprep.mubr.f32.mxu0 %v3608
    %3981 = vmatmul.mubr.f32.gmra.mxu0 %v3618
    %v3982 = vpop.f32.mrf.mxu0
    %v3983 = vadd.f32 %v3878, %v3982
    %v3984 = vpop.f32.mrf.mxu0
    %3985 = vmatprep.mubr.f32.mxu0 %v3607
    %3986 = vmatmul.mubr.f32.gmra.mxu0 %v3617
    %v3987 = vpop.f32.mrf.mxu0
    %v3988 = vadd.f32 %v3883, %v3987
    %v3989 = vpop.f32.mrf.mxu0
    %3990 = vdwg.mxu0
    %3991 = vmatprep.subr.mxu0 0.0
    %3992 = vmatpush1.msra.mxu0 %v190
    %3993 = vmatprep.subr.mxu0 0.0
    %3994 = vmatpush1.msra.mxu0 %v189
    %3995 = vmatprep.subr.mxu0 0.0
    %3996 = vmatpush1.msra.mxu0 %v188
    %3997 = vmatprep.subr.mxu0 0.0
    %3998 = vmatpush1.msra.mxu0 %v187
    %3999 = vmatprep.subr.mxu0 0.0
    %4000 = vmatpush1.msra.mxu0 %v186
    %4001 = vmatprep.subr.mxu0 0.0
    %4002 = vmatpush1.msra.mxu0 %v185
    %4003 = vmatprep.subr.mxu0 0.0
    %4004 = vmatpush1.msra.mxu0 %v184
    %4005 = vmatprep.subr.mxu0 0.0
    %4006 = vmatpush1.msra.mxu0 %v183
    %4007 = vmatprep.subr.mxu0 0.0
    %4008 = vmatpush1.msra.mxu0 %v182
    %4009 = vmatprep.subr.mxu0 0.0
    %4010 = vmatpush1.msra.mxu0 %v181
    %4011 = vmatprep.subr.mxu0 0.0
    %4012 = vmatpush1.msra.mxu0 %v180
    %4013 = vmatprep.subr.mxu0 0.0
    %4014 = vmatpush1.msra.mxu0 %v179
    %4015 = vmatprep.subr.mxu0 0.0
    %4016 = vmatpush1.msra.mxu0 %v178
    %4017 = vmatprep.subr.mxu0 0.0
    %4018 = vmatpush1.msra.mxu0 %v177
    %4019 = vmatprep.subr.mxu0 0.0
    %4020 = vmatpush1.msra.mxu0 %v176
    %4021 = vmatprep.subr.mxu0 0.0
    %4022 = vmatpush1.msra.mxu0 %v175
    %4023 = vmatprep.subr.mxu0 0.0
    %4024 = vmatpush2.msra.mxu0 %v206
    %4025 = vmatprep.subr.mxu0 0.0
    %4026 = vmatpush2.msra.mxu0 %v205
    %4027 = vmatprep.subr.mxu0 0.0
    %4028 = vmatpush2.msra.mxu0 %v204
    %4029 = vmatprep.subr.mxu0 0.0
    %4030 = vmatpush2.msra.mxu0 %v203
    %4031 = vmatprep.subr.mxu0 0.0
    %4032 = vmatpush2.msra.mxu0 %v202
    %4033 = vmatprep.subr.mxu0 0.0
    %4034 = vmatpush2.msra.mxu0 %v201
    %4035 = vmatprep.subr.mxu0 0.0
    %4036 = vmatpush2.msra.mxu0 %v200
    %4037 = vmatprep.subr.mxu0 0.0
    %4038 = vmatpush2.msra.mxu0 %v199
    %4039 = vmatprep.subr.mxu0 0.0
    %4040 = vmatpush2.msra.mxu0 %v198
    %4041 = vmatprep.subr.mxu0 0.0
    %4042 = vmatpush2.msra.mxu0 %v197
    %4043 = vmatprep.subr.mxu0 0.0
    %4044 = vmatpush2.msra.mxu0 %v196
    %4045 = vmatprep.subr.mxu0 0.0
    %4046 = vmatpush2.msra.mxu0 %v195
    %4047 = vmatprep.subr.mxu0 0.0
    %4048 = vmatpush2.msra.mxu0 %v194
    %4049 = vmatprep.subr.mxu0 0.0
    %4050 = vmatpush2.msra.mxu0 %v193
    %4051 = vmatprep.subr.mxu0 0.0
    %4052 = vmatpush2.msra.mxu0 %v192
    %4053 = vmatprep.subr.mxu0 0.0
    %4054 = vmatpush2.msra.mxu0 %v191
    %4055 = vmatprep.mubr.f32.mxu0 %v3567
    %4056 = vmatmul.mubr.f32.gmra.mxu0 %v3565
    %v4057 = vpop.f32.mrf.mxu0
    %v4058 = vadd.f32 %v3953, %v4057
    %v4059 = vpop.f32.mrf.mxu0
    %4060 = vmatprep.mubr.f32.mxu0 %v3576
    %4061 = vmatmul.mubr.f32.gmra.mxu0 %v3574
    %v4062 = vpop.f32.mrf.mxu0
    %v4063 = vadd.f32 %v3958, %v4062
    %v4064 = vpop.f32.mrf.mxu0
    %4065 = vmatprep.mubr.f32.mxu0 %v3584
    %4066 = vmatmul.mubr.f32.gmra.mxu0 %v3582
    %v4067 = vpop.f32.mrf.mxu0
    %v4068 = vadd.f32 %v3963, %v4067
    %v4069 = vpop.f32.mrf.mxu0
    %4070 = vmatprep.mubr.f32.mxu0 %v3592
    %4071 = vmatmul.mubr.f32.gmra.mxu0 %v3590
    %v4072 = vpop.f32.mrf.mxu0
    %v4073 = vadd.f32 %v3968, %v4072
    %v4074 = vpop.f32.mrf.mxu0
    %4075 = vmatprep.mubr.f32.mxu0 %v3600
    %4076 = vmatmul.mubr.f32.gmra.mxu0 %v3598
    %v4077 = vpop.f32.mrf.mxu0
    %v4078 = vadd.f32 %v3973, %v4077
    %v4079 = vpop.f32.mrf.mxu0
    %4080 = vmatprep.mubr.f32.mxu0 %v3608
    %4081 = vmatmul.mubr.f32.gmra.mxu0 %v3606
    %v4082 = vpop.f32.mrf.mxu0
    %v4083 = vadd.f32 %v3978, %v4082
    %v4084 = vpop.f32.mrf.mxu0
    %4085 = vmatprep.mubr.f32.mxu0 %v3622
    %4086 = vmatmul.mubr.f32.gmra.mxu0 %v3620
    %v4087 = vpop.f32.mrf.mxu0
    %v4088 = vadd.f32 %v3983, %v4087
    %v4089 = vpop.f32.mrf.mxu0
    %4090 = vmatprep.mubr.f32.mxu0 %v3621
    %4091 = vmatmul.mubr.f32.gmra.mxu0 %v3619
    %v4092 = vpop.f32.mrf.mxu0
    %v4093 = vadd.f32 %v3988, %v4092
    %v4094 = vpop.f32.mrf.mxu0
    %4095 = vdwg.mxu0
    %4096 = vmatprep.subr.mxu0 0.0
    %4097 = vmatpush1.msra.mxu0 %v222
    %4098 = vmatprep.subr.mxu0 0.0
    %4099 = vmatpush1.msra.mxu0 %v221
    %4100 = vmatprep.subr.mxu0 0.0
    %4101 = vmatpush1.msra.mxu0 %v220
    %4102 = vmatprep.subr.mxu0 0.0
    %4103 = vmatpush1.msra.mxu0 %v219
    %4104 = vmatprep.subr.mxu0 0.0
    %4105 = vmatpush1.msra.mxu0 %v218
    %4106 = vmatprep.subr.mxu0 0.0
    %4107 = vmatpush1.msra.mxu0 %v217
    %4108 = vmatprep.subr.mxu0 0.0
    %4109 = vmatpush1.msra.mxu0 %v216
    %4110 = vmatprep.subr.mxu0 0.0
    %4111 = vmatpush1.msra.mxu0 %v215
    %4112 = vmatprep.subr.mxu0 0.0
    %4113 = vmatpush1.msra.mxu0 %v214
    %4114 = vmatprep.subr.mxu0 0.0
    %4115 = vmatpush1.msra.mxu0 %v213
    %4116 = vmatprep.subr.mxu0 0.0
    %4117 = vmatpush1.msra.mxu0 %v212
    %4118 = vmatprep.subr.mxu0 0.0
    %4119 = vmatpush1.msra.mxu0 %v211
    %4120 = vmatprep.subr.mxu0 0.0
    %4121 = vmatpush1.msra.mxu0 %v210
    %4122 = vmatprep.subr.mxu0 0.0
    %4123 = vmatpush1.msra.mxu0 %v209
    %4124 = vmatprep.subr.mxu0 0.0
    %4125 = vmatpush1.msra.mxu0 %v208
    %4126 = vmatprep.subr.mxu0 0.0
    %4127 = vmatpush1.msra.mxu0 %v207
    %4128 = vmatprep.subr.mxu0 0.0
    %4129 = vmatpush2.msra.mxu0 0.0
    %4130 = vmatprep.subr.mxu0 0.0
    %4131 = vmatpush2.msra.mxu0 0.0
    %4132 = vmatprep.subr.mxu0 0.0
    %4133 = vmatpush2.msra.mxu0 0.0
    %4134 = vmatprep.subr.mxu0 0.0
    %4135 = vmatpush2.msra.mxu0 0.0
    %4136 = vmatprep.subr.mxu0 0.0
    %4137 = vmatpush2.msra.mxu0 0.0
    %4138 = vmatprep.subr.mxu0 0.0
    %4139 = vmatpush2.msra.mxu0 0.0
    %4140 = vmatprep.subr.mxu0 0.0
    %4141 = vmatpush2.msra.mxu0 0.0
    %4142 = vmatprep.subr.mxu0 0.0
    %4143 = vmatpush2.msra.mxu0 0.0
    %4144 = vmatprep.subr.mxu0 0.0
    %4145 = vmatpush2.msra.mxu0 0.0
    %4146 = vmatprep.subr.mxu0 0.0
    %4147 = vmatpush2.msra.mxu0 0.0
    %4148 = vmatprep.subr.mxu0 0.0
    %4149 = vmatpush2.msra.mxu0 0.0
    %4150 = vmatprep.subr.mxu0 0.0
    %4151 = vmatpush2.msra.mxu0 0.0
    %4152 = vmatprep.subr.mxu0 0.0
    %4153 = vmatpush2.msra.mxu0 0.0
    %4154 = vmatprep.subr.mxu0 0.0
    %4155 = vmatpush2.msra.mxu0 0.0
    %4156 = vmatprep.subr.mxu0 0.0
    %4157 = vmatpush2.msra.mxu0 0.0
    %4158 = vmatprep.subr.mxu0 0.0
    %4159 = vmatpush2.msra.mxu0 0.0
    %4160 = vmatprep.mubr.f32.mxu0 0.0
    %4161 = vmatmul.mubr.f32.gmra.mxu0 %v3570
    %v4162 = vpop.f32.mrf.mxu0
    %v4163 = vadd.f32 %v4058, %v4162
    %v4164 = vpop.f32.mrf.mxu0
    %4165 = vmatprep.mubr.f32.mxu0 0.0
    %4166 = vmatmul.mubr.f32.gmra.mxu0 %v3578
    %v4167 = vpop.f32.mrf.mxu0
    %v4168 = vadd.f32 %v4063, %v4167
    %v4169 = vpop.f32.mrf.mxu0
    %4170 = vmatprep.mubr.f32.mxu0 0.0
    %4171 = vmatmul.mubr.f32.gmra.mxu0 %v3586
    %v4172 = vpop.f32.mrf.mxu0
    %v4173 = vadd.f32 %v4068, %v4172
    %v4174 = vpop.f32.mrf.mxu0
    %4175 = vmatprep.mubr.f32.mxu0 0.0
    %4176 = vmatmul.mubr.f32.gmra.mxu0 %v3594
    %v4177 = vpop.f32.mrf.mxu0
    %v4178 = vadd.f32 %v4073, %v4177
    %v4179 = vpop.f32.mrf.mxu0
    %4180 = vmatprep.mubr.f32.mxu0 0.0
    %4181 = vmatmul.mubr.f32.gmra.mxu0 %v3602
    %v4182 = vpop.f32.mrf.mxu0
    %v4183 = vadd.f32 %v4078, %v4182
    %v4184 = vpop.f32.mrf.mxu0
    %4185 = vmatprep.mubr.f32.mxu0 0.0
    %4186 = vmatmul.mubr.f32.gmra.mxu0 %v3610
    %v4187 = vpop.f32.mrf.mxu0
    %v4188 = vadd.f32 %v4083, %v4187
    %v4189 = vpop.f32.mrf.mxu0
    %4190 = vmatprep.mubr.f32.mxu0 0.0
    %4191 = vmatmul.mubr.f32.gmra.mxu0 %v3624
    %v4192 = vpop.f32.mrf.mxu0
    %v4193 = vadd.f32 %v4088, %v4192
    %v4194 = vpop.f32.mrf.mxu0
    %4195 = vmatprep.mubr.f32.mxu0 0.0
    %4196 = vmatmul.mubr.f32.gmra.mxu0 %v3623
    %v4197 = vpop.f32.mrf.mxu0
    %v4198 = vadd.f32 %v4093, %v4197
    %v4199 = vpop.f32.mrf.mxu0
    %4200 = vdwg.mxu0
    %v4201 = vmul.f32 %v3431, %v2807
    %v4202 = vmul.f32 %v3436, %v2808
    %v4203 = vmul.f32 %v3441, %v2809
    %v4204 = vmul.f32 %v3446, %v2810
    %v4205 = vmul.f32 %v3451, %v2811
    %v4206 = vmul.f32 %v3456, %v2812
    %v4207 = vmul.f32 %v3461, %v2813
    %v4208 = vmul.f32 %v3466, %v2814
    %v4209 = vsel %vm703, %v4201, 0.0
    %v4210 = vsel %vm703, %v4202, 0.0
    %v4211 = vadd.f32 %v4209, %v4210
    %v4212 = vsel %vm703, %v4203, 0.0
    %v4213 = vadd.f32 %v4211, %v4212
    %v4214 = vsel %vm703, %v4204, 0.0
    %v4215 = vadd.f32 %v4213, %v4214
    %v4216 = vsel %vm703, %v4205, 0.0
    %v4217 = vadd.f32 %v4215, %v4216
    %v4218 = vsel %vm703, %v4206, 0.0
    %v4219 = vadd.f32 %v4217, %v4218
    %v4220 = vsel %vm703, %v4207, 0.0
    %v4221 = vadd.f32 %v4219, %v4220
    %vm4222 = vcmask 192512
    %v4223 = vsel %vm4222, %v4208, 0.0
    %v4224 = vadd.f32 %v4221, %v4223
    %v4225 = vrot.slane %v4224, 4
    %v4226 = vadd.f32 %v4224, %v4225
    %v4227 = vrot.slane %v4226, 2
    %v4228 = vadd.f32 %v4226, %v4227
    %v4229 = vrot.slane %v4228, 1
    %v4230 = vadd.f32 %v4228, %v4229
    %v4231 = vadd.f32 %v4230, 0.0
    %v4232 = vmul.f32 %v4201, %v3431
    %v4233 = vmul.f32 %v4202, %v3436
    %v4234 = vmul.f32 %v4203, %v3441
    %v4235 = vmul.f32 %v4204, %v3446
    %v4236 = vmul.f32 %v4205, %v3451
    %v4237 = vmul.f32 %v4206, %v3456
    %v4238 = vmul.f32 %v4207, %v3461
    %v4239 = vmul.f32 %v4208, %v3466
    %v4240 = vsel %vm703, %v4232, 0.0
    %v4241 = vsel %vm703, %v4233, 0.0
    %v4242 = vadd.f32 %v4240, %v4241
    %v4243 = vsel %vm703, %v4234, 0.0
    %v4244 = vadd.f32 %v4242, %v4243
    %v4245 = vsel %vm703, %v4235, 0.0
    %v4246 = vadd.f32 %v4244, %v4245
    %v4247 = vsel %vm703, %v4236, 0.0
    %v4248 = vadd.f32 %v4246, %v4247
    %v4249 = vsel %vm703, %v4237, 0.0
    %v4250 = vadd.f32 %v4248, %v4249
    %v4251 = vsel %vm703, %v4238, 0.0
    %v4252 = vadd.f32 %v4250, %v4251
    %v4253 = vsel %vm4222, %v4239, 0.0
    %v4254 = vadd.f32 %v4252, %v4253
    %v4255 = vrot.slane %v4254, 4
    %v4256 = vadd.f32 %v4254, %v4255
    %v4257 = vrot.slane %v4256, 2
    %v4258 = vadd.f32 %v4256, %v4257
    %v4259 = vrot.slane %v4258, 1
    %v4260 = vadd.f32 %v4258, %v4259
    %v4261 = vadd.f32 %v4260, 0.0
    %v4262 = vmul.f32 %v4163, %v2807
    %v4263 = vmul.f32 %v4168, %v2808
    %v4264 = vmul.f32 %v4173, %v2809
    %v4265 = vmul.f32 %v4178, %v2810
    %v4266 = vmul.f32 %v4183, %v2811
    %v4267 = vmul.f32 %v4188, %v2812
    %v4268 = vmul.f32 %v4193, %v2813
    %v4269 = vmul.f32 %v4198, %v2814
    %v4270 = vsel %vm703, %v4262, 0.0
    %v4271 = vsel %vm703, %v4263, 0.0
    %v4272 = vadd.f32 %v4270, %v4271
    %v4273 = vsel %vm703, %v4264, 0.0
    %v4274 = vadd.f32 %v4272, %v4273
    %v4275 = vsel %vm703, %v4265, 0.0
    %v4276 = vadd.f32 %v4274, %v4275
    %v4277 = vsel %vm703, %v4266, 0.0
    %v4278 = vadd.f32 %v4276, %v4277
    %v4279 = vsel %vm703, %v4267, 0.0
    %v4280 = vadd.f32 %v4278, %v4279
    %v4281 = vsel %vm703, %v4268, 0.0
    %v4282 = vadd.f32 %v4280, %v4281
    %v4283 = vsel %vm4222, %v4269, 0.0
    %v4284 = vadd.f32 %v4282, %v4283
    %v4285 = vrot.slane %v4284, 4
    %v4286 = vadd.f32 %v4284, %v4285
    %v4287 = vrot.slane %v4286, 2
    %v4288 = vadd.f32 %v4286, %v4287
    %v4289 = vrot.slane %v4288, 1
    %v4290 = vadd.f32 %v4288, %v4289
    %v4291 = vadd.f32 %v4231, %v4290
    %v4292 = vmul.f32 %v4262, %v4163
    %v4293 = vmul.f32 %v4263, %v4168
    %v4294 = vmul.f32 %v4264, %v4173
    %v4295 = vmul.f32 %v4265, %v4178
    %v4296 = vmul.f32 %v4266, %v4183
    %v4297 = vmul.f32 %v4267, %v4188
    %v4298 = vmul.f32 %v4268, %v4193
    %v4299 = vmul.f32 %v4269, %v4198
    %v4300 = vsel %vm703, %v4292, 0.0
    %v4301 = vsel %vm703, %v4293, 0.0
    %v4302 = vadd.f32 %v4300, %v4301
    %v4303 = vsel %vm703, %v4294, 0.0
    %v4304 = vadd.f32 %v4302, %v4303
    %v4305 = vsel %vm703, %v4295, 0.0
    %v4306 = vadd.f32 %v4304, %v4305
    %v4307 = vsel %vm703, %v4296, 0.0
    %v4308 = vadd.f32 %v4306, %v4307
    %v4309 = vsel %vm703, %v4297, 0.0
    %v4310 = vadd.f32 %v4308, %v4309
    %v4311 = vsel %vm703, %v4298, 0.0
    %v4312 = vadd.f32 %v4310, %v4311
    %v4313 = vsel %vm4222, %v4299, 0.0
    %v4314 = vadd.f32 %v4312, %v4313
    %v4315 = vrot.slane %v4314, 4
    %v4316 = vadd.f32 %v4314, %v4315
    %v4317 = vrot.slane %v4316, 2
    %v4318 = vadd.f32 %v4316, %v4317
    %v4319 = vrot.slane %v4318, 1
    %v4320 = vadd.f32 %v4318, %v4319
    %v4321 = vadd.f32 %v4261, %v4320
    %v4322 = vrcp.pop 98.0
    %v4323 = vmul.f32 %v4291, %v4322
    %v4324 = vmul.f32 %v4321, %v4322
    %v4325 = vmul.f32 %v4323, %v4323
    %v4326 = vsub.f32 %v4324, %v4325
    %v4327 = vmax.f32 %v4326, 0.0
    %v4328 = vadd.f32 %v4327, 1e-05
    %v4329 = vrsqrt.pop %v4328
    %v4330 = vmul.f32 %v54, %v4329
    %v4331 = vmul.f32 %v4323, %v4330
    %v4333 = vrot.slane %v4331, 7
    %v4335 = vsub.f32 %v54, %v4333
    %v4336 = vlaneseq
    %v4337 = vshrl.u32 %v4336, 7
    %v4338 = vsub.s32 6, %v4337
    %v4339 = vrot.slane %v4330, %v4338
    %v4340 = vmul.f32 %v3431, %v4339
    %v4341 = vmul.f32 %v3436, %v4339
    %v4342 = vmul.f32 %v3441, %v4339
    %v4343 = vmul.f32 %v3446, %v4339
    %v4344 = vmul.f32 %v3451, %v4339
    %v4345 = vmul.f32 %v3456, %v4339
    %v4346 = vmul.f32 %v3461, %v4339
    %v4347 = vmul.f32 %v3466, %v4339
    %v4348 = vlaneseq
    %v4349 = vshrl.u32 %v4348, 7
    %v4350 = vsub.s32 7, %v4349
    %v4351 = vrot.slane %v4335, %v4350
    %v4352 = vadd.f32 %v4340, %v4351
    %v4353 = vadd.f32 %v4341, %v4351
    %v4354 = vadd.f32 %v4342, %v4351
    %v4355 = vadd.f32 %v4343, %v4351
    %v4356 = vadd.f32 %v4344, %v4351
    %v4357 = vadd.f32 %v4345, %v4351
    %v4358 = vadd.f32 %v4346, %v4351
    %v4359 = vadd.f32 %v4347, %v4351
    %v4360 = vmax.f32 %v4352, 0.0
    %v4361 = vmax.f32 %v4353, 0.0
    %v4362 = vmax.f32 %v4354, 0.0
    %v4363 = vmax.f32 %v4355, 0.0
    %v4364 = vmax.f32 %v4356, 0.0
    %v4365 = vmax.f32 %v4357, 0.0
    %v4366 = vmax.f32 %v4358, 0.0
    %v4367 = vmax.f32 %v4359, 0.0
    %v4368 = vmul.f32 %v4163, %v4339
    %v4369 = vmul.f32 %v4168, %v4339
    %v4370 = vmul.f32 %v4173, %v4339
    %v4371 = vmul.f32 %v4178, %v4339
    %v4372 = vmul.f32 %v4183, %v4339
    %v4373 = vmul.f32 %v4188, %v4339
    %v4374 = vmul.f32 %v4193, %v4339
    %v4375 = vmul.f32 %v4198, %v4339
    %v4376 = vadd.f32 %v4368, %v4351
    %v4377 = vadd.f32 %v4369, %v4351
    %v4378 = vadd.f32 %v4370, %v4351
    %v4379 = vadd.f32 %v4371, %v4351
    %v4380 = vadd.f32 %v4372, %v4351
    %v4381 = vadd.f32 %v4373, %v4351
    %v4382 = vadd.f32 %v4374, %v4351
    %v4383 = vadd.f32 %v4375, %v4351
    %v4384 = vmax.f32 %v4376, 0.0
    %v4385 = vmax.f32 %v4377, 0.0
    %v4386 = vmax.f32 %v4378, 0.0
    %v4387 = vmax.f32 %v4379, 0.0
    %v4388 = vmax.f32 %v4380, 0.0
    %v4389 = vmax.f32 %v4381, 0.0
    %v4390 = vmax.f32 %v4382, 0.0
    %v4391 = vmax.f32 %v4383, 0.0
    %v4392 = vlaneseq
    %v4393 = vshrl.u32 %v4392, 7
    %v4394 = vsub.s32 7, %v4393
    %v4395 = vrot.slane %v55, %v4394
    %v4397 = vsel %vm703, %v4360, 0
    %v4400 = vsel %vm703, %v4361, 0
    %v4403 = vsel %vm703, %v4362, 0
    %v4406 = vsel %vm703, %v4363, 0
    %v4409 = vsel %vm703, %v4364, 0
    %v4412 = vsel %vm703, %v4365, 0
    %v4415 = vsel %vm703, %v4366, 0
    %v4418 = vsel %vm703, %v4367, 0
    %4420 = vmatprep.subr.mxu0 0.0
    %4421 = vmatpush1.msra.mxu0 0.0
    %4422 = vmatprep.subr.mxu0 0.0
    %4423 = vmatpush1.msra.mxu0 0.0
    %4424 = vmatprep.subr.mxu0 0.0
    %4425 = vmatpush1.msra.mxu0 0.0
    %4426 = vmatprep.subr.mxu0 0.0
    %4427 = vmatpush1.msra.mxu0 0.0
    %4428 = vmatprep.subr.mxu0 0.0
    %4429 = vmatpush1.msra.mxu0 0.0
    %4430 = vmatprep.subr.mxu0 0.0
    %4431 = vmatpush1.msra.mxu0 0.0
    %4432 = vmatprep.subr.mxu0 0.0
    %4433 = vmatpush1.msra.mxu0 0.0
    %4434 = vmatprep.subr.mxu0 0.0
    %4435 = vmatpush1.msra.mxu0 0.0
    %4436 = vmatprep.subr.mxu0 0.0
    %4437 = vmatpush1.msra.mxu0 0.0
    %4438 = vmatprep.subr.mxu0 0.0
    %4439 = vmatpush1.msra.mxu0 0.0
    %4440 = vmatprep.subr.mxu0 0.0
    %4441 = vmatpush1.msra.mxu0 0.0
    %4442 = vmatprep.subr.mxu0 0.0
    %4443 = vmatpush1.msra.mxu0 0.0
    %4444 = vmatprep.subr.mxu0 0.0
    %4445 = vmatpush1.msra.mxu0 0.0
    %4446 = vmatprep.subr.mxu0 0.0
    %4447 = vmatpush1.msra.mxu0 %v78
    %4448 = vmatprep.subr.mxu0 0.0
    %4449 = vmatpush1.msra.mxu0 %v77
    %4450 = vmatprep.subr.mxu0 0.0
    %4451 = vmatpush1.msra.mxu0 %v76
    %4452 = vmatprep.subr.mxu0 0.0
    %4453 = vmatpush2.msra.mxu0 0.0
    %4454 = vmatprep.subr.mxu0 0.0
    %4455 = vmatpush2.msra.mxu0 0.0
    %4456 = vmatprep.subr.mxu0 0.0
    %4457 = vmatpush2.msra.mxu0 0.0
    %4458 = vmatprep.subr.mxu0 0.0
    %4459 = vmatpush2.msra.mxu0 0.0
    %4460 = vmatprep.subr.mxu0 0.0
    %4461 = vmatpush2.msra.mxu0 0.0
    %4462 = vmatprep.subr.mxu0 0.0
    %4463 = vmatpush2.msra.mxu0 0.0
    %4464 = vmatprep.subr.mxu0 0.0
    %4465 = vmatpush2.msra.mxu0 0.0
    %4466 = vmatprep.subr.mxu0 0.0
    %4467 = vmatpush2.msra.mxu0 0.0
    %4468 = vmatprep.subr.mxu0 0.0
    %4469 = vmatpush2.msra.mxu0 0.0
    %4470 = vmatprep.subr.mxu0 0.0
    %4471 = vmatpush2.msra.mxu0 0.0
    %4472 = vmatprep.subr.mxu0 0.0
    %4473 = vmatpush2.msra.mxu0 0.0
    %4474 = vmatprep.subr.mxu0 0.0
    %4475 = vmatpush2.msra.mxu0 0.0
    %4476 = vmatprep.subr.mxu0 0.0
    %4477 = vmatpush2.msra.mxu0 0.0
    %4478 = vmatprep.subr.mxu0 0.0
    %4479 = vmatpush2.msra.mxu0 0.0
    %4480 = vmatprep.subr.mxu0 0.0
    %4481 = vmatpush2.msra.mxu0 0.0
    %4482 = vmatprep.subr.mxu0 0.0
    %4483 = vmatpush2.msra.mxu0 0.0
    %4484 = vmatprep.mubr.f32.mxu0 0.0
    %4485 = vmatmul.mubr.f32.gmra.mxu0 %v4397
    %v4486 = vpop.f32.mrf.mxu0
    %v4487 = vadd.f32 %v4395, %v4486
    %v4488 = vpop.f32.mrf.mxu0
    %4489 = vmatprep.mubr.f32.mxu0 0.0
    %4490 = vmatmul.mubr.f32.gmra.mxu0 %v4400
    %v4491 = vpop.f32.mrf.mxu0
    %v4492 = vadd.f32 %v4395, %v4491
    %v4493 = vpop.f32.mrf.mxu0
    %4494 = vmatprep.mubr.f32.mxu0 0.0
    %4495 = vmatmul.mubr.f32.gmra.mxu0 %v4403
    %v4496 = vpop.f32.mrf.mxu0
    %v4497 = vadd.f32 %v4395, %v4496
    %v4498 = vpop.f32.mrf.mxu0
    %4499 = vmatprep.mubr.f32.mxu0 0.0
    %4500 = vmatmul.mubr.f32.gmra.mxu0 %v4406
    %v4501 = vpop.f32.mrf.mxu0
    %v4502 = vadd.f32 %v4395, %v4501
    %v4503 = vpop.f32.mrf.mxu0
    %4504 = vmatprep.mubr.f32.mxu0 0.0
    %4505 = vmatmul.mubr.f32.gmra.mxu0 %v4409
    %v4506 = vpop.f32.mrf.mxu0
    %v4507 = vadd.f32 %v4395, %v4506
    %v4508 = vpop.f32.mrf.mxu0
    %4509 = vmatprep.mubr.f32.mxu0 0.0
    %4510 = vmatmul.mubr.f32.gmra.mxu0 %v4412
    %v4511 = vpop.f32.mrf.mxu0
    %v4512 = vadd.f32 %v4395, %v4511
    %v4513 = vpop.f32.mrf.mxu0
    %4514 = vmatprep.mubr.f32.mxu0 0.0
    %4515 = vmatmul.mubr.f32.gmra.mxu0 %v4415
    %v4516 = vpop.f32.mrf.mxu0
    %v4517 = vadd.f32 %v4395, %v4516
    %v4518 = vpop.f32.mrf.mxu0
    %4519 = vmatprep.mubr.f32.mxu0 0.0
    %4520 = vmatmul.mubr.f32.gmra.mxu0 %v4418
    %v4521 = vpop.f32.mrf.mxu0
    %v4522 = vadd.f32 %v4395, %v4521
    %v4523 = vpop.f32.mrf.mxu0
    %4524 = vdwg.mxu0
    %v4526 = vsel %vm703, %v4384, 0
    %v4529 = vsel %vm703, %v4385, 0
    %v4532 = vsel %vm703, %v4386, 0
    %v4535 = vsel %vm703, %v4387, 0
    %v4538 = vsel %vm703, %v4388, 0
    %v4541 = vsel %vm703, %v4389, 0
    %v4544 = vsel %vm703, %v4390, 0
    %v4547 = vsel %vm703, %v4391, 0
    %4549 = vmatprep.subr.mxu0 0.0
    %4550 = vmatpush1.msra.mxu0 0.0
    %4551 = vmatprep.subr.mxu0 0.0
    %4552 = vmatpush1.msra.mxu0 0.0
    %4553 = vmatprep.subr.mxu0 0.0
    %4554 = vmatpush1.msra.mxu0 0.0
    %4555 = vmatprep.subr.mxu0 0.0
    %4556 = vmatpush1.msra.mxu0 0.0
    %4557 = vmatprep.subr.mxu0 0.0
    %4558 = vmatpush1.msra.mxu0 0.0
    %4559 = vmatprep.subr.mxu0 0.0
    %4560 = vmatpush1.msra.mxu0 0.0
    %4561 = vmatprep.subr.mxu0 0.0
    %4562 = vmatpush1.msra.mxu0 0.0
    %4563 = vmatprep.subr.mxu0 0.0
    %4564 = vmatpush1.msra.mxu0 0.0
    %4565 = vmatprep.subr.mxu0 0.0
    %4566 = vmatpush1.msra.mxu0 0.0
    %4567 = vmatprep.subr.mxu0 0.0
    %4568 = vmatpush1.msra.mxu0 0.0
    %4569 = vmatprep.subr.mxu0 0.0
    %4570 = vmatpush1.msra.mxu0 0.0
    %4571 = vmatprep.subr.mxu0 0.0
    %4572 = vmatpush1.msra.mxu0 0.0
    %4573 = vmatprep.subr.mxu0 0.0
    %4574 = vmatpush1.msra.mxu0 0.0
    %4575 = vmatprep.subr.mxu0 0.0
    %4576 = vmatpush1.msra.mxu0 %v78
    %4577 = vmatprep.subr.mxu0 0.0
    %4578 = vmatpush1.msra.mxu0 %v77
    %4579 = vmatprep.subr.mxu0 0.0
    %4580 = vmatpush1.msra.mxu0 %v76
    %4581 = vmatprep.subr.mxu0 0.0
    %4582 = vmatpush2.msra.mxu0 0.0
    %4583 = vmatprep.subr.mxu0 0.0
    %4584 = vmatpush2.msra.mxu0 0.0
    %4585 = vmatprep.subr.mxu0 0.0
    %4586 = vmatpush2.msra.mxu0 0.0
    %4587 = vmatprep.subr.mxu0 0.0
    %4588 = vmatpush2.msra.mxu0 0.0
    %4589 = vmatprep.subr.mxu0 0.0
    %4590 = vmatpush2.msra.mxu0 0.0
    %4591 = vmatprep.subr.mxu0 0.0
    %4592 = vmatpush2.msra.mxu0 0.0
    %4593 = vmatprep.subr.mxu0 0.0
    %4594 = vmatpush2.msra.mxu0 0.0
    %4595 = vmatprep.subr.mxu0 0.0
    %4596 = vmatpush2.msra.mxu0 0.0
    %4597 = vmatprep.subr.mxu0 0.0
    %4598 = vmatpush2.msra.mxu0 0.0
    %4599 = vmatprep.subr.mxu0 0.0
    %4600 = vmatpush2.msra.mxu0 0.0
    %4601 = vmatprep.subr.mxu0 0.0
    %4602 = vmatpush2.msra.mxu0 0.0
    %4603 = vmatprep.subr.mxu0 0.0
    %4604 = vmatpush2.msra.mxu0 0.0
    %4605 = vmatprep.subr.mxu0 0.0
    %4606 = vmatpush2.msra.mxu0 0.0
    %4607 = vmatprep.subr.mxu0 0.0
    %4608 = vmatpush2.msra.mxu0 0.0
    %4609 = vmatprep.subr.mxu0 0.0
    %4610 = vmatpush2.msra.mxu0 0.0
    %4611 = vmatprep.subr.mxu0 0.0
    %4612 = vmatpush2.msra.mxu0 0.0
    %4613 = vmatprep.mubr.f32.mxu0 0.0
    %4614 = vmatmul.mubr.f32.gmra.mxu0 %v4526
    %v4615 = vpop.f32.mrf.mxu0
    %v4616 = vadd.f32 %v4395, %v4615
    %v4617 = vpop.f32.mrf.mxu0
    %4618 = vmatprep.mubr.f32.mxu0 0.0
    %4619 = vmatmul.mubr.f32.gmra.mxu0 %v4529
    %v4620 = vpop.f32.mrf.mxu0
    %v4621 = vadd.f32 %v4395, %v4620
    %v4622 = vpop.f32.mrf.mxu0
    %4623 = vmatprep.mubr.f32.mxu0 0.0
    %4624 = vmatmul.mubr.f32.gmra.mxu0 %v4532
    %v4625 = vpop.f32.mrf.mxu0
    %v4626 = vadd.f32 %v4395, %v4625
    %v4627 = vpop.f32.mrf.mxu0
    %4628 = vmatprep.mubr.f32.mxu0 0.0
    %4629 = vmatmul.mubr.f32.gmra.mxu0 %v4535
    %v4630 = vpop.f32.mrf.mxu0
    %v4631 = vadd.f32 %v4395, %v4630
    %v4632 = vpop.f32.mrf.mxu0
    %4633 = vmatprep.mubr.f32.mxu0 0.0
    %4634 = vmatmul.mubr.f32.gmra.mxu0 %v4538
    %v4635 = vpop.f32.mrf.mxu0
    %v4636 = vadd.f32 %v4395, %v4635
    %v4637 = vpop.f32.mrf.mxu0
    %4638 = vmatprep.mubr.f32.mxu0 0.0
    %4639 = vmatmul.mubr.f32.gmra.mxu0 %v4541
    %v4640 = vpop.f32.mrf.mxu0
    %v4641 = vadd.f32 %v4395, %v4640
    %v4642 = vpop.f32.mrf.mxu0
    %4643 = vmatprep.mubr.f32.mxu0 0.0
    %4644 = vmatmul.mubr.f32.gmra.mxu0 %v4544
    %v4645 = vpop.f32.mrf.mxu0
    %v4646 = vadd.f32 %v4395, %v4645
    %v4647 = vpop.f32.mrf.mxu0
    %4648 = vmatprep.mubr.f32.mxu0 0.0
    %4649 = vmatmul.mubr.f32.gmra.mxu0 %v4547
    %v4650 = vpop.f32.mrf.mxu0
    %v4651 = vadd.f32 %v4395, %v4650
    %v4652 = vpop.f32.mrf.mxu0
    %4653 = vdwg.mxu0
    %vm4654 = vcmask 498688
    %v4656 = vsel %vm4654, %v61, 0
    %v4659 = vsel %vm4654, %v62, 0
    %v4662 = vsel %vm4654, %v63, 0
    %v4665 = vsel %vm4654, %v64, 0
    %v4668 = vsel %vm4654, %v65, 0
    %v4671 = vsel %vm4654, %v66, 0
    %v4674 = vsel %vm4654, %v67, 0
    %v4677 = vsel %vm4654, %v68, 0
    %v4680 = vsel %vm4654, %v69, 0
    %v4683 = vsel %vm4654, %v70, 0
    %v4686 = vsel %vm4654, %v71, 0
    %v4688 = vsel %vm2880, %v4367, 0
    %4690 = vmatprep.subr.mxu0 0.0
    %4691 = vmatpush1.msra.mxu0 0.0
    %4692 = vmatprep.subr.mxu0 0.0
    %4693 = vmatpush1.msra.mxu0 0.0
    %4694 = vmatprep.subr.mxu0 0.0
    %4695 = vmatpush1.msra.mxu0 0.0
    %4696 = vmatprep.subr.mxu0 0.0
    %4697 = vmatpush1.msra.mxu0 0.0
    %4698 = vmatprep.subr.mxu0 0.0
    %4699 = vmatpush1.msra.mxu0 0.0
    %4700 = vmatprep.subr.mxu0 0.0
    %4701 = vmatpush1.msra.mxu0 0.0
    %4702 = vmatprep.subr.mxu0 0.0
    %4703 = vmatpush1.msra.mxu0 0.0
    %4704 = vmatprep.subr.mxu0 0.0
    %4705 = vmatpush1.msra.mxu0 0.0
    %4706 = vmatprep.subr.mxu0 0.0
    %4707 = vmatpush1.msra.mxu0 %v4688
    %4708 = vmatprep.subr.mxu0 0.0
    %4709 = vmatpush1.msra.mxu0 %v4366
    %4710 = vmatprep.subr.mxu0 0.0
    %4711 = vmatpush1.msra.mxu0 %v4365
    %4712 = vmatprep.subr.mxu0 0.0
    %4713 = vmatpush1.msra.mxu0 %v4364
    %4714 = vmatprep.subr.mxu0 0.0
    %4715 = vmatpush1.msra.mxu0 %v4363
    %4716 = vmatprep.subr.mxu0 0.0
    %4717 = vmatpush1.msra.mxu0 %v4362
    %4718 = vmatprep.subr.mxu0 0.0
    %4719 = vmatpush1.msra.mxu0 %v4361
    %4720 = vmatprep.subr.mxu0 0.0
    %4721 = vmatpush1.msra.mxu0 %v4360
    %4722 = vmatprep.subr.mxu0 0.0
    %4723 = vmatpush2.msra.mxu0 0.0
    %4724 = vmatprep.subr.mxu0 0.0
    %4725 = vmatpush2.msra.mxu0 0.0
    %4726 = vmatprep.subr.mxu0 0.0
    %4727 = vmatpush2.msra.mxu0 0.0
    %4728 = vmatprep.subr.mxu0 0.0
    %4729 = vmatpush2.msra.mxu0 0.0
    %4730 = vmatprep.subr.mxu0 0.0
    %4731 = vmatpush2.msra.mxu0 0.0
    %4732 = vmatprep.subr.mxu0 0.0
    %4733 = vmatpush2.msra.mxu0 0.0
    %4734 = vmatprep.subr.mxu0 0.0
    %4735 = vmatpush2.msra.mxu0 0.0
    %4736 = vmatprep.subr.mxu0 0.0
    %4737 = vmatpush2.msra.mxu0 0.0
    %4738 = vmatprep.subr.mxu0 0.0
    %4739 = vmatpush2.msra.mxu0 0.0
    %4740 = vmatprep.subr.mxu0 0.0
    %4741 = vmatpush2.msra.mxu0 0.0
    %4742 = vmatprep.subr.mxu0 0.0
    %4743 = vmatpush2.msra.mxu0 0.0
    %4744 = vmatprep.subr.mxu0 0.0
    %4745 = vmatpush2.msra.mxu0 0.0
    %4746 = vmatprep.subr.mxu0 0.0
    %4747 = vmatpush2.msra.mxu0 0.0
    %4748 = vmatprep.subr.mxu0 0.0
    %4749 = vmatpush2.msra.mxu0 0.0
    %4750 = vmatprep.subr.mxu0 0.0
    %4751 = vmatpush2.msra.mxu0 0.0
    %4752 = vmatprep.subr.mxu0 0.0
    %4753 = vmatpush2.msra.mxu0 0.0
    %4754 = vmatprep.mubr.f32.mxu0 0.0
    %4755 = vmatmul.mubr.f32.gmra.mxu0 %v4656
    %v4756 = vpop.f32.mrf.mxu0
    %v4757 = vadd.f32 0.0, %v4756
    %v4758 = vpop.f32.mrf.mxu0
    %4759 = vmatprep.mubr.f32.mxu0 0.0
    %4760 = vmatmul.mubr.f32.gmra.mxu0 %v4659
    %v4761 = vpop.f32.mrf.mxu0
    %v4762 = vadd.f32 0.0, %v4761
    %v4763 = vpop.f32.mrf.mxu0
    %4764 = vmatprep.mubr.f32.mxu0 0.0
    %4765 = vmatmul.mubr.f32.gmra.mxu0 %v4662
    %v4766 = vpop.f32.mrf.mxu0
    %v4767 = vadd.f32 0.0, %v4766
    %v4768 = vpop.f32.mrf.mxu0
    %4769 = vmatprep.mubr.f32.mxu0 0.0
    %4770 = vmatmul.mubr.f32.gmra.mxu0 %v4665
    %v4771 = vpop.f32.mrf.mxu0
    %v4772 = vadd.f32 0.0, %v4771
    %v4773 = vpop.f32.mrf.mxu0
    %4774 = vmatprep.mubr.f32.mxu0 0.0
    %4775 = vmatmul.mubr.f32.gmra.mxu0 %v4668
    %v4776 = vpop.f32.mrf.mxu0
    %v4777 = vadd.f32 0.0, %v4776
    %v4778 = vpop.f32.mrf.mxu0
    %4779 = vmatprep.mubr.f32.mxu0 0.0
    %4780 = vmatmul.mubr.f32.gmra.mxu0 %v4671
    %v4781 = vpop.f32.mrf.mxu0
    %v4782 = vadd.f32 0.0, %v4781
    %v4783 = vpop.f32.mrf.mxu0
    %4784 = vmatprep.mubr.f32.mxu0 0.0
    %4785 = vmatmul.mubr.f32.gmra.mxu0 %v4674
    %v4786 = vpop.f32.mrf.mxu0
    %v4787 = vadd.f32 0.0, %v4786
    %v4788 = vpop.f32.mrf.mxu0
    %4789 = vmatprep.mubr.f32.mxu0 0.0
    %4790 = vmatmul.mubr.f32.gmra.mxu0 %v4677
    %v4791 = vpop.f32.mrf.mxu0
    %v4792 = vadd.f32 0.0, %v4791
    %v4793 = vpop.f32.mrf.mxu0
    %4794 = vmatprep.mubr.f32.mxu0 0.0
    %4795 = vmatmul.mubr.f32.gmra.mxu0 %v4680
    %v4796 = vpop.f32.mrf.mxu0
    %v4797 = vadd.f32 0.0, %v4796
    %v4798 = vpop.f32.mrf.mxu0
    %4799 = vmatprep.mubr.f32.mxu0 0.0
    %4800 = vmatmul.mubr.f32.gmra.mxu0 %v4683
    %v4801 = vpop.f32.mrf.mxu0
    %v4802 = vadd.f32 0.0, %v4801
    %v4803 = vpop.f32.mrf.mxu0
    %4804 = vmatprep.mubr.f32.mxu0 0.0
    %4805 = vmatmul.mubr.f32.gmra.mxu0 %v4686
    %v4806 = vpop.f32.mrf.mxu0
    %v4807 = vadd.f32 0.0, %v4806
    %v4808 = vpop.f32.mrf.mxu0
    %4809 = vdwg.mxu0
    %v4818 = vrot.slane %v4757, 1
    %v4819 = vrot.slane %v4762, 1
    %v4820 = vsel %vm2823, %v4818, %v4819
    %v4821 = vrot.slane %v4767, 1
    %v4822 = vsel %vm2823, %v4819, %v4821
    %v4823 = vrot.slane %v4772, 1
    %v4824 = vsel %vm2823, %v4821, %v4823
    %v4825 = vrot.slane %v4777, 1
    %v4826 = vsel %vm2823, %v4823, %v4825
    %v4827 = vrot.slane %v4782, 1
    %v4828 = vsel %vm2823, %v4825, %v4827
    %v4829 = vrot.slane %v4787, 1
    %v4830 = vsel %vm2823, %v4827, %v4829
    %v4831 = vrot.slane %v4792, 1
    %v4832 = vsel %vm2823, %v4829, %v4831
    %v4833 = vsel %vm703, %v4820, 0
    %v4835 = vsel %vm703, %v4822, 0
    %v4837 = vsel %vm703, %v4824, 0
    %v4839 = vsel %vm703, %v4826, 0
    %v4841 = vsel %vm703, %v4828, 0
    %v4843 = vsel %vm703, %v4830, 0
    %v4845 = vsel %vm703, %v4832, 0
    %v4847 = vsel %vm703, %v4831, 0
    %4849 = vmatprep.subr.mxu0 0.0
    %4850 = vmatpush1.msra.mxu0 0.0
    %4851 = vmatprep.subr.mxu0 0.0
    %4852 = vmatpush1.msra.mxu0 0.0
    %4853 = vmatprep.subr.mxu0 0.0
    %4854 = vmatpush1.msra.mxu0 0.0
    %4855 = vmatprep.subr.mxu0 0.0
    %4856 = vmatpush1.msra.mxu0 0.0
    %4857 = vmatprep.subr.mxu0 0.0
    %4858 = vmatpush1.msra.mxu0 0.0
    %4859 = vmatprep.subr.mxu0 0.0
    %4860 = vmatpush1.msra.mxu0 0.0
    %4861 = vmatprep.subr.mxu0 0.0
    %4862 = vmatpush1.msra.mxu0 0.0
    %4863 = vmatprep.subr.mxu0 0.0
    %4864 = vmatpush1.msra.mxu0 0.0
    %4865 = vmatprep.subr.mxu0 0.0
    %4866 = vmatpush1.msra.mxu0 0.0
    %4867 = vmatprep.subr.mxu0 0.0
    %4868 = vmatpush1.msra.mxu0 0.0
    %4869 = vmatprep.subr.mxu0 0.0
    %4870 = vmatpush1.msra.mxu0 0.0
    %4871 = vmatprep.subr.mxu0 0.0
    %4872 = vmatpush1.msra.mxu0 0.0
    %4873 = vmatprep.subr.mxu0 0.0
    %4874 = vmatpush1.msra.mxu0 0.0
    %4875 = vmatprep.subr.mxu0 0.0
    %4876 = vmatpush1.msra.mxu0 %v228
    %4877 = vmatprep.subr.mxu0 0.0
    %4878 = vmatpush1.msra.mxu0 %v227
    %4879 = vmatprep.subr.mxu0 0.0
    %4880 = vmatpush1.msra.mxu0 %v226
    %4881 = vmatprep.subr.mxu0 0.0
    %4882 = vmatpush2.msra.mxu0 0.0
    %4883 = vmatprep.subr.mxu0 0.0
    %4884 = vmatpush2.msra.mxu0 0.0
    %4885 = vmatprep.subr.mxu0 0.0
    %4886 = vmatpush2.msra.mxu0 0.0
    %4887 = vmatprep.subr.mxu0 0.0
    %4888 = vmatpush2.msra.mxu0 0.0
    %4889 = vmatprep.subr.mxu0 0.0
    %4890 = vmatpush2.msra.mxu0 0.0
    %4891 = vmatprep.subr.mxu0 0.0
    %4892 = vmatpush2.msra.mxu0 0.0
    %4893 = vmatprep.subr.mxu0 0.0
    %4894 = vmatpush2.msra.mxu0 0.0
    %4895 = vmatprep.subr.mxu0 0.0
    %4896 = vmatpush2.msra.mxu0 0.0
    %4897 = vmatprep.subr.mxu0 0.0
    %4898 = vmatpush2.msra.mxu0 0.0
    %4899 = vmatprep.subr.mxu0 0.0
    %4900 = vmatpush2.msra.mxu0 0.0
    %4901 = vmatprep.subr.mxu0 0.0
    %4902 = vmatpush2.msra.mxu0 0.0
    %4903 = vmatprep.subr.mxu0 0.0
    %4904 = vmatpush2.msra.mxu0 0.0
    %4905 = vmatprep.subr.mxu0 0.0
    %4906 = vmatpush2.msra.mxu0 0.0
    %4907 = vmatprep.subr.mxu0 0.0
    %4908 = vmatpush2.msra.mxu0 0.0
    %4909 = vmatprep.subr.mxu0 0.0
    %4910 = vmatpush2.msra.mxu0 0.0
    %4911 = vmatprep.subr.mxu0 0.0
    %4912 = vmatpush2.msra.mxu0 0.0
    %4913 = vmatprep.mubr.f32.mxu0 0.0
    %4914 = vmatmul.mubr.f32.gmra.mxu0 %v4833
    %v4915 = vpop.f32.mrf.mxu0
    %v4916 = vadd.f32 0.0, %v4915
    %v4917 = vpop.f32.mrf.mxu0
    %4918 = vmatprep.mubr.f32.mxu0 0.0
    %4919 = vmatmul.mubr.f32.gmra.mxu0 %v4835
    %v4920 = vpop.f32.mrf.mxu0
    %v4921 = vadd.f32 0.0, %v4920
    %v4922 = vpop.f32.mrf.mxu0
    %4923 = vmatprep.mubr.f32.mxu0 0.0
    %4924 = vmatmul.mubr.f32.gmra.mxu0 %v4837
    %v4925 = vpop.f32.mrf.mxu0
    %v4926 = vadd.f32 0.0, %v4925
    %v4927 = vpop.f32.mrf.mxu0
    %4928 = vmatprep.mubr.f32.mxu0 0.0
    %4929 = vmatmul.mubr.f32.gmra.mxu0 %v4839
    %v4930 = vpop.f32.mrf.mxu0
    %v4931 = vadd.f32 0.0, %v4930
    %v4932 = vpop.f32.mrf.mxu0
    %4933 = vmatprep.mubr.f32.mxu0 0.0
    %4934 = vmatmul.mubr.f32.gmra.mxu0 %v4841
    %v4935 = vpop.f32.mrf.mxu0
    %v4936 = vadd.f32 0.0, %v4935
    %v4937 = vpop.f32.mrf.mxu0
    %4938 = vmatprep.mubr.f32.mxu0 0.0
    %4939 = vmatmul.mubr.f32.gmra.mxu0 %v4843
    %v4940 = vpop.f32.mrf.mxu0
    %v4941 = vadd.f32 0.0, %v4940
    %v4942 = vpop.f32.mrf.mxu0
    %4943 = vmatprep.mubr.f32.mxu0 0.0
    %4944 = vmatmul.mubr.f32.gmra.mxu0 %v4845
    %v4945 = vpop.f32.mrf.mxu0
    %v4946 = vadd.f32 0.0, %v4945
    %v4947 = vpop.f32.mrf.mxu0
    %4948 = vmatprep.mubr.f32.mxu0 0.0
    %4949 = vmatmul.mubr.f32.gmra.mxu0 %v4847
    %v4950 = vpop.f32.mrf.mxu0
    %v4951 = vadd.f32 0.0, %v4950
    %v4952 = vpop.f32.mrf.mxu0
    %4953 = vdwg.mxu0
    %v4954 = vsel %vm703, %v4757, 0
    %v4956 = vsel %vm703, %v4762, 0
    %v4958 = vsel %vm703, %v4767, 0
    %v4960 = vsel %vm703, %v4772, 0
    %v4962 = vsel %vm703, %v4777, 0
    %v4964 = vsel %vm703, %v4782, 0
    %v4966 = vsel %vm703, %v4787, 0
    %v4968 = vsel %vm703, %v4792, 0
    %4970 = vmatprep.subr.mxu0 0.0
    %4971 = vmatpush1.msra.mxu0 0.0
    %4972 = vmatprep.subr.mxu0 0.0
    %4973 = vmatpush1.msra.mxu0 0.0
    %4974 = vmatprep.subr.mxu0 0.0
    %4975 = vmatpush1.msra.mxu0 0.0
    %4976 = vmatprep.subr.mxu0 0.0
    %4977 = vmatpush1.msra.mxu0 0.0
    %4978 = vmatprep.subr.mxu0 0.0
    %4979 = vmatpush1.msra.mxu0 0.0
    %4980 = vmatprep.subr.mxu0 0.0
    %4981 = vmatpush1.msra.mxu0 0.0
    %4982 = vmatprep.subr.mxu0 0.0
    %4983 = vmatpush1.msra.mxu0 0.0
    %4984 = vmatprep.subr.mxu0 0.0
    %4985 = vmatpush1.msra.mxu0 0.0
    %4986 = vmatprep.subr.mxu0 0.0
    %4987 = vmatpush1.msra.mxu0 0.0
    %4988 = vmatprep.subr.mxu0 0.0
    %4989 = vmatpush1.msra.mxu0 0.0
    %4990 = vmatprep.subr.mxu0 0.0
    %4991 = vmatpush1.msra.mxu0 0.0
    %4992 = vmatprep.subr.mxu0 0.0
    %4993 = vmatpush1.msra.mxu0 0.0
    %4994 = vmatprep.subr.mxu0 0.0
    %4995 = vmatpush1.msra.mxu0 0.0
    %4996 = vmatprep.subr.mxu0 0.0
    %4997 = vmatpush1.msra.mxu0 %v225
    %4998 = vmatprep.subr.mxu0 0.0
    %4999 = vmatpush1.msra.mxu0 %v224
    %5000 = vmatprep.subr.mxu0 0.0
    %5001 = vmatpush1.msra.mxu0 %v223
    %5002 = vmatprep.subr.mxu0 0.0
    %5003 = vmatpush2.msra.mxu0 0.0
    %5004 = vmatprep.subr.mxu0 0.0
    %5005 = vmatpush2.msra.mxu0 0.0
    %5006 = vmatprep.subr.mxu0 0.0
    %5007 = vmatpush2.msra.mxu0 0.0
    %5008 = vmatprep.subr.mxu0 0.0
    %5009 = vmatpush2.msra.mxu0 0.0
    %5010 = vmatprep.subr.mxu0 0.0
    %5011 = vmatpush2.msra.mxu0 0.0
    %5012 = vmatprep.subr.mxu0 0.0
    %5013 = vmatpush2.msra.mxu0 0.0
    %5014 = vmatprep.subr.mxu0 0.0
    %5015 = vmatpush2.msra.mxu0 0.0
    %5016 = vmatprep.subr.mxu0 0.0
    %5017 = vmatpush2.msra.mxu0 0.0
    %5018 = vmatprep.subr.mxu0 0.0
    %5019 = vmatpush2.msra.mxu0 0.0
    %5020 = vmatprep.subr.mxu0 0.0
    %5021 = vmatpush2.msra.mxu0 0.0
    %5022 = vmatprep.subr.mxu0 0.0
    %5023 = vmatpush2.msra.mxu0 0.0
    %5024 = vmatprep.subr.mxu0 0.0
    %5025 = vmatpush2.msra.mxu0 0.0
    %5026 = vmatprep.subr.mxu0 0.0
    %5027 = vmatpush2.msra.mxu0 0.0
    %5028 = vmatprep.subr.mxu0 0.0
    %5029 = vmatpush2.msra.mxu0 0.0
    %5030 = vmatprep.subr.mxu0 0.0
    %5031 = vmatpush2.msra.mxu0 0.0
    %5032 = vmatprep.subr.mxu0 0.0
    %5033 = vmatpush2.msra.mxu0 0.0
    %5034 = vmatprep.mubr.f32.mxu0 0.0
    %5035 = vmatmul.mubr.f32.gmra.mxu0 %v4954
    %v5036 = vpop.f32.mrf.mxu0
    %v5037 = vadd.f32 %v4916, %v5036
    %v5038 = vpop.f32.mrf.mxu0
    %5039 = vmatprep.mubr.f32.mxu0 0.0
    %5040 = vmatmul.mubr.f32.gmra.mxu0 %v4956
    %v5041 = vpop.f32.mrf.mxu0
    %v5042 = vadd.f32 %v4921, %v5041
    %v5043 = vpop.f32.mrf.mxu0
    %5044 = vmatprep.mubr.f32.mxu0 0.0
    %5045 = vmatmul.mubr.f32.gmra.mxu0 %v4958
    %v5046 = vpop.f32.mrf.mxu0
    %v5047 = vadd.f32 %v4926, %v5046
    %v5048 = vpop.f32.mrf.mxu0
    %5049 = vmatprep.mubr.f32.mxu0 0.0
    %5050 = vmatmul.mubr.f32.gmra.mxu0 %v4960
    %v5051 = vpop.f32.mrf.mxu0
    %v5052 = vadd.f32 %v4931, %v5051
    %v5053 = vpop.f32.mrf.mxu0
    %5054 = vmatprep.mubr.f32.mxu0 0.0
    %5055 = vmatmul.mubr.f32.gmra.mxu0 %v4962
    %v5056 = vpop.f32.mrf.mxu0
    %v5057 = vadd.f32 %v4936, %v5056
    %v5058 = vpop.f32.mrf.mxu0
    %5059 = vmatprep.mubr.f32.mxu0 0.0
    %5060 = vmatmul.mubr.f32.gmra.mxu0 %v4964
    %v5061 = vpop.f32.mrf.mxu0
    %v5062 = vadd.f32 %v4941, %v5061
    %v5063 = vpop.f32.mrf.mxu0
    %5064 = vmatprep.mubr.f32.mxu0 0.0
    %5065 = vmatmul.mubr.f32.gmra.mxu0 %v4966
    %v5066 = vpop.f32.mrf.mxu0
    %v5067 = vadd.f32 %v4946, %v5066
    %v5068 = vpop.f32.mrf.mxu0
    %5069 = vmatprep.mubr.f32.mxu0 0.0
    %5070 = vmatmul.mubr.f32.gmra.mxu0 %v4968
    %v5071 = vpop.f32.mrf.mxu0
    %v5072 = vadd.f32 %v4951, %v5071
    %v5073 = vpop.f32.mrf.mxu0
    %5074 = vdwg.mxu0
    %v5075 = vrot.slane %v4757, 2
    %v5076 = vrot.slane %v4762, 2
    %v5077 = vsel %vm2847, %v5075, %v5076
    %v5078 = vrot.slane %v4767, 2
    %v5079 = vsel %vm2847, %v5076, %v5078
    %v5080 = vrot.slane %v4772, 2
    %v5081 = vsel %vm2847, %v5078, %v5080
    %v5082 = vrot.slane %v4777, 2
    %v5083 = vsel %vm2847, %v5080, %v5082
    %v5084 = vrot.slane %v4782, 2
    %v5085 = vsel %vm2847, %v5082, %v5084
    %v5086 = vrot.slane %v4787, 2
    %v5087 = vsel %vm2847, %v5084, %v5086
    %v5088 = vrot.slane %v4792, 2
    %v5089 = vsel %vm2847, %v5086, %v5088
    %v5090 = vsel %vm703, %v5077, 0
    %v5092 = vsel %vm703, %v5079, 0
    %v5094 = vsel %vm703, %v5081, 0
    %v5096 = vsel %vm703, %v5083, 0
    %v5098 = vsel %vm703, %v5085, 0
    %v5100 = vsel %vm703, %v5087, 0
    %v5102 = vsel %vm703, %v5089, 0
    %v5104 = vsel %vm703, %v5088, 0
    %5106 = vmatprep.subr.mxu0 0.0
    %5107 = vmatpush1.msra.mxu0 0.0
    %5108 = vmatprep.subr.mxu0 0.0
    %5109 = vmatpush1.msra.mxu0 0.0
    %5110 = vmatprep.subr.mxu0 0.0
    %5111 = vmatpush1.msra.mxu0 0.0
    %5112 = vmatprep.subr.mxu0 0.0
    %5113 = vmatpush1.msra.mxu0 0.0
    %5114 = vmatprep.subr.mxu0 0.0
    %5115 = vmatpush1.msra.mxu0 0.0
    %5116 = vmatprep.subr.mxu0 0.0
    %5117 = vmatpush1.msra.mxu0 0.0
    %5118 = vmatprep.subr.mxu0 0.0
    %5119 = vmatpush1.msra.mxu0 0.0
    %5120 = vmatprep.subr.mxu0 0.0
    %5121 = vmatpush1.msra.mxu0 0.0
    %5122 = vmatprep.subr.mxu0 0.0
    %5123 = vmatpush1.msra.mxu0 0.0
    %5124 = vmatprep.subr.mxu0 0.0
    %5125 = vmatpush1.msra.mxu0 0.0
    %5126 = vmatprep.subr.mxu0 0.0
    %5127 = vmatpush1.msra.mxu0 0.0
    %5128 = vmatprep.subr.mxu0 0.0
    %5129 = vmatpush1.msra.mxu0 0.0
    %5130 = vmatprep.subr.mxu0 0.0
    %5131 = vmatpush1.msra.mxu0 0.0
    %5132 = vmatprep.subr.mxu0 0.0
    %5133 = vmatpush1.msra.mxu0 %v231
    %5134 = vmatprep.subr.mxu0 0.0
    %5135 = vmatpush1.msra.mxu0 %v230
    %5136 = vmatprep.subr.mxu0 0.0
    %5137 = vmatpush1.msra.mxu0 %v229
    %5138 = vmatprep.subr.mxu0 0.0
    %5139 = vmatpush2.msra.mxu0 0.0
    %5140 = vmatprep.subr.mxu0 0.0
    %5141 = vmatpush2.msra.mxu0 0.0
    %5142 = vmatprep.subr.mxu0 0.0
    %5143 = vmatpush2.msra.mxu0 0.0
    %5144 = vmatprep.subr.mxu0 0.0
    %5145 = vmatpush2.msra.mxu0 0.0
    %5146 = vmatprep.subr.mxu0 0.0
    %5147 = vmatpush2.msra.mxu0 0.0
    %5148 = vmatprep.subr.mxu0 0.0
    %5149 = vmatpush2.msra.mxu0 0.0
    %5150 = vmatprep.subr.mxu0 0.0
    %5151 = vmatpush2.msra.mxu0 0.0
    %5152 = vmatprep.subr.mxu0 0.0
    %5153 = vmatpush2.msra.mxu0 0.0
    %5154 = vmatprep.subr.mxu0 0.0
    %5155 = vmatpush2.msra.mxu0 0.0
    %5156 = vmatprep.subr.mxu0 0.0
    %5157 = vmatpush2.msra.mxu0 0.0
    %5158 = vmatprep.subr.mxu0 0.0
    %5159 = vmatpush2.msra.mxu0 0.0
    %5160 = vmatprep.subr.mxu0 0.0
    %5161 = vmatpush2.msra.mxu0 0.0
    %5162 = vmatprep.subr.mxu0 0.0
    %5163 = vmatpush2.msra.mxu0 0.0
    %5164 = vmatprep.subr.mxu0 0.0
    %5165 = vmatpush2.msra.mxu0 0.0
    %5166 = vmatprep.subr.mxu0 0.0
    %5167 = vmatpush2.msra.mxu0 0.0
    %5168 = vmatprep.subr.mxu0 0.0
    %5169 = vmatpush2.msra.mxu0 0.0
    %5170 = vmatprep.mubr.f32.mxu0 0.0
    %5171 = vmatmul.mubr.f32.gmra.mxu0 %v5090
    %v5172 = vpop.f32.mrf.mxu0
    %v5173 = vadd.f32 0.0, %v5172
    %v5174 = vpop.f32.mrf.mxu0
    %5175 = vmatprep.mubr.f32.mxu0 0.0
    %5176 = vmatmul.mubr.f32.gmra.mxu0 %v5092
    %v5177 = vpop.f32.mrf.mxu0
    %v5178 = vadd.f32 0.0, %v5177
    %v5179 = vpop.f32.mrf.mxu0
    %5180 = vmatprep.mubr.f32.mxu0 0.0
    %5181 = vmatmul.mubr.f32.gmra.mxu0 %v5094
    %v5182 = vpop.f32.mrf.mxu0
    %v5183 = vadd.f32 0.0, %v5182
    %v5184 = vpop.f32.mrf.mxu0
    %5185 = vmatprep.mubr.f32.mxu0 0.0
    %5186 = vmatmul.mubr.f32.gmra.mxu0 %v5096
    %v5187 = vpop.f32.mrf.mxu0
    %v5188 = vadd.f32 0.0, %v5187
    %v5189 = vpop.f32.mrf.mxu0
    %5190 = vmatprep.mubr.f32.mxu0 0.0
    %5191 = vmatmul.mubr.f32.gmra.mxu0 %v5098
    %v5192 = vpop.f32.mrf.mxu0
    %v5193 = vadd.f32 0.0, %v5192
    %v5194 = vpop.f32.mrf.mxu0
    %5195 = vmatprep.mubr.f32.mxu0 0.0
    %5196 = vmatmul.mubr.f32.gmra.mxu0 %v5100
    %v5197 = vpop.f32.mrf.mxu0
    %v5198 = vadd.f32 0.0, %v5197
    %v5199 = vpop.f32.mrf.mxu0
    %5200 = vmatprep.mubr.f32.mxu0 0.0
    %5201 = vmatmul.mubr.f32.gmra.mxu0 %v5102
    %v5202 = vpop.f32.mrf.mxu0
    %v5203 = vadd.f32 0.0, %v5202
    %v5204 = vpop.f32.mrf.mxu0
    %5205 = vmatprep.mubr.f32.mxu0 0.0
    %5206 = vmatmul.mubr.f32.gmra.mxu0 %v5104
    %v5207 = vpop.f32.mrf.mxu0
    %v5208 = vadd.f32 0.0, %v5207
    %v5209 = vpop.f32.mrf.mxu0
    %5210 = vdwg.mxu0
    %v5211 = vadd.f32 %v5037, %v5173
    %v5212 = vadd.f32 %v5042, %v5178
    %v5213 = vadd.f32 %v5047, %v5183
    %v5214 = vadd.f32 %v5052, %v5188
    %v5215 = vadd.f32 %v5057, %v5193
    %v5216 = vadd.f32 %v5062, %v5198
    %v5217 = vadd.f32 %v5067, %v5203
    %v5218 = vadd.f32 %v5072, %v5208
    %v5220 = vrot.slane %v4797, 1
    %v5221 = vsel %vm2823, %v4831, %v5220
    %v5222 = vsel %vm703, %v5221, 0
    %v5224 = vsel %vm703, %v5220, 0
    %5226 = vmatprep.subr.mxu0 0.0
    %5227 = vmatpush1.msra.mxu0 0.0
    %5228 = vmatprep.subr.mxu0 0.0
    %5229 = vmatpush1.msra.mxu0 0.0
    %5230 = vmatprep.subr.mxu0 0.0
    %5231 = vmatpush1.msra.mxu0 0.0
    %5232 = vmatprep.subr.mxu0 0.0
    %5233 = vmatpush1.msra.mxu0 0.0
    %5234 = vmatprep.subr.mxu0 0.0
    %5235 = vmatpush1.msra.mxu0 0.0
    %5236 = vmatprep.subr.mxu0 0.0
    %5237 = vmatpush1.msra.mxu0 0.0
    %5238 = vmatprep.subr.mxu0 0.0
    %5239 = vmatpush1.msra.mxu0 0.0
    %5240 = vmatprep.subr.mxu0 0.0
    %5241 = vmatpush1.msra.mxu0 0.0
    %5242 = vmatprep.subr.mxu0 0.0
    %5243 = vmatpush1.msra.mxu0 0.0
    %5244 = vmatprep.subr.mxu0 0.0
    %5245 = vmatpush1.msra.mxu0 0.0
    %5246 = vmatprep.subr.mxu0 0.0
    %5247 = vmatpush1.msra.mxu0 0.0
    %5248 = vmatprep.subr.mxu0 0.0
    %5249 = vmatpush1.msra.mxu0 0.0
    %5250 = vmatprep.subr.mxu0 0.0
    %5251 = vmatpush1.msra.mxu0 0.0
    %5252 = vmatprep.subr.mxu0 0.0
    %5253 = vmatpush1.msra.mxu0 %v234
    %5254 = vmatprep.subr.mxu0 0.0
    %5255 = vmatpush1.msra.mxu0 %v233
    %5256 = vmatprep.subr.mxu0 0.0
    %5257 = vmatpush1.msra.mxu0 %v232
    %5258 = vmatprep.subr.mxu0 0.0
    %5259 = vmatpush2.msra.mxu0 0.0
    %5260 = vmatprep.subr.mxu0 0.0
    %5261 = vmatpush2.msra.mxu0 0.0
    %5262 = vmatprep.subr.mxu0 0.0
    %5263 = vmatpush2.msra.mxu0 0.0
    %5264 = vmatprep.subr.mxu0 0.0
    %5265 = vmatpush2.msra.mxu0 0.0
    %5266 = vmatprep.subr.mxu0 0.0
    %5267 = vmatpush2.msra.mxu0 0.0
    %5268 = vmatprep.subr.mxu0 0.0
    %5269 = vmatpush2.msra.mxu0 0.0
    %5270 = vmatprep.subr.mxu0 0.0
    %5271 = vmatpush2.msra.mxu0 0.0
    %5272 = vmatprep.subr.mxu0 0.0
    %5273 = vmatpush2.msra.mxu0 0.0
    %5274 = vmatprep.subr.mxu0 0.0
    %5275 = vmatpush2.msra.mxu0 0.0
    %5276 = vmatprep.subr.mxu0 0.0
    %5277 = vmatpush2.msra.mxu0 0.0
    %5278 = vmatprep.subr.mxu0 0.0
    %5279 = vmatpush2.msra.mxu0 0.0
    %5280 = vmatprep.subr.mxu0 0.0
    %5281 = vmatpush2.msra.mxu0 0.0
    %5282 = vmatprep.subr.mxu0 0.0
    %5283 = vmatpush2.msra.mxu0 0.0
    %5284 = vmatprep.subr.mxu0 0.0
    %5285 = vmatpush2.msra.mxu0 0.0
    %5286 = vmatprep.subr.mxu0 0.0
    %5287 = vmatpush2.msra.mxu0 0.0
    %5288 = vmatprep.subr.mxu0 0.0
    %5289 = vmatpush2.msra.mxu0 0.0
    %5290 = vmatprep.mubr.f32.mxu0 0.0
    %5291 = vmatmul.mubr.f32.gmra.mxu0 %v4835
    %v5292 = vpop.f32.mrf.mxu0
    %v5293 = vadd.f32 0.0, %v5292
    %v5294 = vpop.f32.mrf.mxu0
    %5295 = vmatprep.mubr.f32.mxu0 0.0
    %5296 = vmatmul.mubr.f32.gmra.mxu0 %v4837
    %v5297 = vpop.f32.mrf.mxu0
    %v5298 = vadd.f32 0.0, %v5297
    %v5299 = vpop.f32.mrf.mxu0
    %5300 = vmatprep.mubr.f32.mxu0 0.0
    %5301 = vmatmul.mubr.f32.gmra.mxu0 %v4839
    %v5302 = vpop.f32.mrf.mxu0
    %v5303 = vadd.f32 0.0, %v5302
    %v5304 = vpop.f32.mrf.mxu0
    %5305 = vmatprep.mubr.f32.mxu0 0.0
    %5306 = vmatmul.mubr.f32.gmra.mxu0 %v4841
    %v5307 = vpop.f32.mrf.mxu0
    %v5308 = vadd.f32 0.0, %v5307
    %v5309 = vpop.f32.mrf.mxu0
    %5310 = vmatprep.mubr.f32.mxu0 0.0
    %5311 = vmatmul.mubr.f32.gmra.mxu0 %v4843
    %v5312 = vpop.f32.mrf.mxu0
    %v5313 = vadd.f32 0.0, %v5312
    %v5314 = vpop.f32.mrf.mxu0
    %5315 = vmatprep.mubr.f32.mxu0 0.0
    %5316 = vmatmul.mubr.f32.gmra.mxu0 %v4845
    %v5317 = vpop.f32.mrf.mxu0
    %v5318 = vadd.f32 0.0, %v5317
    %v5319 = vpop.f32.mrf.mxu0
    %5320 = vmatprep.mubr.f32.mxu0 0.0
    %5321 = vmatmul.mubr.f32.gmra.mxu0 %v5222
    %v5322 = vpop.f32.mrf.mxu0
    %v5323 = vadd.f32 0.0, %v5322
    %v5324 = vpop.f32.mrf.mxu0
    %5325 = vmatprep.mubr.f32.mxu0 0.0
    %5326 = vmatmul.mubr.f32.gmra.mxu0 %v5224
    %v5327 = vpop.f32.mrf.mxu0
    %v5328 = vadd.f32 0.0, %v5327
    %v5329 = vpop.f32.mrf.mxu0
    %5330 = vdwg.mxu0
    %v5331 = vadd.f32 %v5211, %v5293
    %v5332 = vadd.f32 %v5212, %v5298
    %v5333 = vadd.f32 %v5213, %v5303
    %v5334 = vadd.f32 %v5214, %v5308
    %v5335 = vadd.f32 %v5215, %v5313
    %v5336 = vadd.f32 %v5216, %v5318
    %v5337 = vadd.f32 %v5217, %v5323
    %v5338 = vadd.f32 %v5218, %v5328
    %v5339 = vrot.slane %v4797, 2
    %v5340 = vsel %vm2847, %v5088, %v5339
    %v5341 = vsel %vm703, %v5340, 0
    %v5343 = vsel %vm703, %v5339, 0
    %5345 = vmatprep.subr.mxu0 0.0
    %5346 = vmatpush1.msra.mxu0 0.0
    %5347 = vmatprep.subr.mxu0 0.0
    %5348 = vmatpush1.msra.mxu0 0.0
    %5349 = vmatprep.subr.mxu0 0.0
    %5350 = vmatpush1.msra.mxu0 0.0
    %5351 = vmatprep.subr.mxu0 0.0
    %5352 = vmatpush1.msra.mxu0 0.0
    %5353 = vmatprep.subr.mxu0 0.0
    %5354 = vmatpush1.msra.mxu0 0.0
    %5355 = vmatprep.subr.mxu0 0.0
    %5356 = vmatpush1.msra.mxu0 0.0
    %5357 = vmatprep.subr.mxu0 0.0
    %5358 = vmatpush1.msra.mxu0 0.0
    %5359 = vmatprep.subr.mxu0 0.0
    %5360 = vmatpush1.msra.mxu0 0.0
    %5361 = vmatprep.subr.mxu0 0.0
    %5362 = vmatpush1.msra.mxu0 0.0
    %5363 = vmatprep.subr.mxu0 0.0
    %5364 = vmatpush1.msra.mxu0 0.0
    %5365 = vmatprep.subr.mxu0 0.0
    %5366 = vmatpush1.msra.mxu0 0.0
    %5367 = vmatprep.subr.mxu0 0.0
    %5368 = vmatpush1.msra.mxu0 0.0
    %5369 = vmatprep.subr.mxu0 0.0
    %5370 = vmatpush1.msra.mxu0 0.0
    %5371 = vmatprep.subr.mxu0 0.0
    %5372 = vmatpush1.msra.mxu0 %v237
    %5373 = vmatprep.subr.mxu0 0.0
    %5374 = vmatpush1.msra.mxu0 %v236
    %5375 = vmatprep.subr.mxu0 0.0
    %5376 = vmatpush1.msra.mxu0 %v235
    %5377 = vmatprep.subr.mxu0 0.0
    %5378 = vmatpush2.msra.mxu0 0.0
    %5379 = vmatprep.subr.mxu0 0.0
    %5380 = vmatpush2.msra.mxu0 0.0
    %5381 = vmatprep.subr.mxu0 0.0
    %5382 = vmatpush2.msra.mxu0 0.0
    %5383 = vmatprep.subr.mxu0 0.0
    %5384 = vmatpush2.msra.mxu0 0.0
    %5385 = vmatprep.subr.mxu0 0.0
    %5386 = vmatpush2.msra.mxu0 0.0
    %5387 = vmatprep.subr.mxu0 0.0
    %5388 = vmatpush2.msra.mxu0 0.0
    %5389 = vmatprep.subr.mxu0 0.0
    %5390 = vmatpush2.msra.mxu0 0.0
    %5391 = vmatprep.subr.mxu0 0.0
    %5392 = vmatpush2.msra.mxu0 0.0
    %5393 = vmatprep.subr.mxu0 0.0
    %5394 = vmatpush2.msra.mxu0 0.0
    %5395 = vmatprep.subr.mxu0 0.0
    %5396 = vmatpush2.msra.mxu0 0.0
    %5397 = vmatprep.subr.mxu0 0.0
    %5398 = vmatpush2.msra.mxu0 0.0
    %5399 = vmatprep.subr.mxu0 0.0
    %5400 = vmatpush2.msra.mxu0 0.0
    %5401 = vmatprep.subr.mxu0 0.0
    %5402 = vmatpush2.msra.mxu0 0.0
    %5403 = vmatprep.subr.mxu0 0.0
    %5404 = vmatpush2.msra.mxu0 0.0
    %5405 = vmatprep.subr.mxu0 0.0
    %5406 = vmatpush2.msra.mxu0 0.0
    %5407 = vmatprep.subr.mxu0 0.0
    %5408 = vmatpush2.msra.mxu0 0.0
    %5409 = vmatprep.mubr.f32.mxu0 0.0
    %5410 = vmatmul.mubr.f32.gmra.mxu0 %v5092
    %v5411 = vpop.f32.mrf.mxu0
    %v5412 = vadd.f32 0.0, %v5411
    %v5413 = vpop.f32.mrf.mxu0
    %5414 = vmatprep.mubr.f32.mxu0 0.0
    %5415 = vmatmul.mubr.f32.gmra.mxu0 %v5094
    %v5416 = vpop.f32.mrf.mxu0
    %v5417 = vadd.f32 0.0, %v5416
    %v5418 = vpop.f32.mrf.mxu0
    %5419 = vmatprep.mubr.f32.mxu0 0.0
    %5420 = vmatmul.mubr.f32.gmra.mxu0 %v5096
    %v5421 = vpop.f32.mrf.mxu0
    %v5422 = vadd.f32 0.0, %v5421
    %v5423 = vpop.f32.mrf.mxu0
    %5424 = vmatprep.mubr.f32.mxu0 0.0
    %5425 = vmatmul.mubr.f32.gmra.mxu0 %v5098
    %v5426 = vpop.f32.mrf.mxu0
    %v5427 = vadd.f32 0.0, %v5426
    %v5428 = vpop.f32.mrf.mxu0
    %5429 = vmatprep.mubr.f32.mxu0 0.0
    %5430 = vmatmul.mubr.f32.gmra.mxu0 %v5100
    %v5431 = vpop.f32.mrf.mxu0
    %v5432 = vadd.f32 0.0, %v5431
    %v5433 = vpop.f32.mrf.mxu0
    %5434 = vmatprep.mubr.f32.mxu0 0.0
    %5435 = vmatmul.mubr.f32.gmra.mxu0 %v5102
    %v5436 = vpop.f32.mrf.mxu0
    %v5437 = vadd.f32 0.0, %v5436
    %v5438 = vpop.f32.mrf.mxu0
    %5439 = vmatprep.mubr.f32.mxu0 0.0
    %5440 = vmatmul.mubr.f32.gmra.mxu0 %v5341
    %v5441 = vpop.f32.mrf.mxu0
    %v5442 = vadd.f32 0.0, %v5441
    %v5443 = vpop.f32.mrf.mxu0
    %5444 = vmatprep.mubr.f32.mxu0 0.0
    %5445 = vmatmul.mubr.f32.gmra.mxu0 %v5343
    %v5446 = vpop.f32.mrf.mxu0
    %v5447 = vadd.f32 0.0, %v5446
    %v5448 = vpop.f32.mrf.mxu0
    %5449 = vdwg.mxu0
    %v5450 = vadd.f32 %v5331, %v5412
    %v5451 = vadd.f32 %v5332, %v5417
    %v5452 = vadd.f32 %v5333, %v5422
    %v5453 = vadd.f32 %v5334, %v5427
    %v5454 = vadd.f32 %v5335, %v5432
    %v5455 = vadd.f32 %v5336, %v5437
    %v5456 = vadd.f32 %v5337, %v5442
    %v5457 = vadd.f32 %v5338, %v5447
    %v5458 = vrot.slane %v4762, 3
    %v5459 = vrot.slane %v4767, 3
    %v5460 = vsel %vm2880, %v5458, %v5459
    %v5461 = vrot.slane %v4772, 3
    %v5462 = vsel %vm2880, %v5459, %v5461
    %v5463 = vrot.slane %v4777, 3
    %v5464 = vsel %vm2880, %v5461, %v5463
    %v5465 = vrot.slane %v4782, 3
    %v5466 = vsel %vm2880, %v5463, %v5465
    %v5467 = vrot.slane %v4787, 3
    %v5468 = vsel %vm2880, %v5465, %v5467
    %v5469 = vrot.slane %v4792, 3
    %v5470 = vsel %vm2880, %v5467, %v5469
    %v5471 = vrot.slane %v4797, 3
    %v5472 = vsel %vm2880, %v5469, %v5471
    %v5473 = vsel %vm703, %v5460, 0
    %v5475 = vsel %vm703, %v5462, 0
    %v5477 = vsel %vm703, %v5464, 0
    %v5479 = vsel %vm703, %v5466, 0
    %v5481 = vsel %vm703, %v5468, 0
    %v5483 = vsel %vm703, %v5470, 0
    %v5485 = vsel %vm703, %v5472, 0
    %v5487 = vsel %vm703, %v5471, 0
    %5489 = vmatprep.subr.mxu0 0.0
    %5490 = vmatpush1.msra.mxu0 0.0
    %5491 = vmatprep.subr.mxu0 0.0
    %5492 = vmatpush1.msra.mxu0 0.0
    %5493 = vmatprep.subr.mxu0 0.0
    %5494 = vmatpush1.msra.mxu0 0.0
    %5495 = vmatprep.subr.mxu0 0.0
    %5496 = vmatpush1.msra.mxu0 0.0
    %5497 = vmatprep.subr.mxu0 0.0
    %5498 = vmatpush1.msra.mxu0 0.0
    %5499 = vmatprep.subr.mxu0 0.0
    %5500 = vmatpush1.msra.mxu0 0.0
    %5501 = vmatprep.subr.mxu0 0.0
    %5502 = vmatpush1.msra.mxu0 0.0
    %5503 = vmatprep.subr.mxu0 0.0
    %5504 = vmatpush1.msra.mxu0 0.0
    %5505 = vmatprep.subr.mxu0 0.0
    %5506 = vmatpush1.msra.mxu0 0.0
    %5507 = vmatprep.subr.mxu0 0.0
    %5508 = vmatpush1.msra.mxu0 0.0
    %5509 = vmatprep.subr.mxu0 0.0
    %5510 = vmatpush1.msra.mxu0 0.0
    %5511 = vmatprep.subr.mxu0 0.0
    %5512 = vmatpush1.msra.mxu0 0.0
    %5513 = vmatprep.subr.mxu0 0.0
    %5514 = vmatpush1.msra.mxu0 0.0
    %5515 = vmatprep.subr.mxu0 0.0
    %5516 = vmatpush1.msra.mxu0 %v240
    %5517 = vmatprep.subr.mxu0 0.0
    %5518 = vmatpush1.msra.mxu0 %v239
    %5519 = vmatprep.subr.mxu0 0.0
    %5520 = vmatpush1.msra.mxu0 %v238
    %5521 = vmatprep.subr.mxu0 0.0
    %5522 = vmatpush2.msra.mxu0 0.0
    %5523 = vmatprep.subr.mxu0 0.0
    %5524 = vmatpush2.msra.mxu0 0.0
    %5525 = vmatprep.subr.mxu0 0.0
    %5526 = vmatpush2.msra.mxu0 0.0
    %5527 = vmatprep.subr.mxu0 0.0
    %5528 = vmatpush2.msra.mxu0 0.0
    %5529 = vmatprep.subr.mxu0 0.0
    %5530 = vmatpush2.msra.mxu0 0.0
    %5531 = vmatprep.subr.mxu0 0.0
    %5532 = vmatpush2.msra.mxu0 0.0
    %5533 = vmatprep.subr.mxu0 0.0
    %5534 = vmatpush2.msra.mxu0 0.0
    %5535 = vmatprep.subr.mxu0 0.0
    %5536 = vmatpush2.msra.mxu0 0.0
    %5537 = vmatprep.subr.mxu0 0.0
    %5538 = vmatpush2.msra.mxu0 0.0
    %5539 = vmatprep.subr.mxu0 0.0
    %5540 = vmatpush2.msra.mxu0 0.0
    %5541 = vmatprep.subr.mxu0 0.0
    %5542 = vmatpush2.msra.mxu0 0.0
    %5543 = vmatprep.subr.mxu0 0.0
    %5544 = vmatpush2.msra.mxu0 0.0
    %5545 = vmatprep.subr.mxu0 0.0
    %5546 = vmatpush2.msra.mxu0 0.0
    %5547 = vmatprep.subr.mxu0 0.0
    %5548 = vmatpush2.msra.mxu0 0.0
    %5549 = vmatprep.subr.mxu0 0.0
    %5550 = vmatpush2.msra.mxu0 0.0
    %5551 = vmatprep.subr.mxu0 0.0
    %5552 = vmatpush2.msra.mxu0 0.0
    %5553 = vmatprep.mubr.f32.mxu0 0.0
    %5554 = vmatmul.mubr.f32.gmra.mxu0 %v5473
    %v5555 = vpop.f32.mrf.mxu0
    %v5556 = vadd.f32 0.0, %v5555
    %v5557 = vpop.f32.mrf.mxu0
    %5558 = vmatprep.mubr.f32.mxu0 0.0
    %5559 = vmatmul.mubr.f32.gmra.mxu0 %v5475
    %v5560 = vpop.f32.mrf.mxu0
    %v5561 = vadd.f32 0.0, %v5560
    %v5562 = vpop.f32.mrf.mxu0
    %5563 = vmatprep.mubr.f32.mxu0 0.0
    %5564 = vmatmul.mubr.f32.gmra.mxu0 %v5477
    %v5565 = vpop.f32.mrf.mxu0
    %v5566 = vadd.f32 0.0, %v5565
    %v5567 = vpop.f32.mrf.mxu0
    %5568 = vmatprep.mubr.f32.mxu0 0.0
    %5569 = vmatmul.mubr.f32.gmra.mxu0 %v5479
    %v5570 = vpop.f32.mrf.mxu0
    %v5571 = vadd.f32 0.0, %v5570
    %v5572 = vpop.f32.mrf.mxu0
    %5573 = vmatprep.mubr.f32.mxu0 0.0
    %5574 = vmatmul.mubr.f32.gmra.mxu0 %v5481
    %v5575 = vpop.f32.mrf.mxu0
    %v5576 = vadd.f32 0.0, %v5575
    %v5577 = vpop.f32.mrf.mxu0
    %5578 = vmatprep.mubr.f32.mxu0 0.0
    %5579 = vmatmul.mubr.f32.gmra.mxu0 %v5483
    %v5580 = vpop.f32.mrf.mxu0
    %v5581 = vadd.f32 0.0, %v5580
    %v5582 = vpop.f32.mrf.mxu0
    %5583 = vmatprep.mubr.f32.mxu0 0.0
    %5584 = vmatmul.mubr.f32.gmra.mxu0 %v5485
    %v5585 = vpop.f32.mrf.mxu0
    %v5586 = vadd.f32 0.0, %v5585
    %v5587 = vpop.f32.mrf.mxu0
    %5588 = vmatprep.mubr.f32.mxu0 0.0
    %5589 = vmatmul.mubr.f32.gmra.mxu0 %v5487
    %v5590 = vpop.f32.mrf.mxu0
    %v5591 = vadd.f32 0.0, %v5590
    %v5592 = vpop.f32.mrf.mxu0
    %5593 = vdwg.mxu0
    %v5594 = vadd.f32 %v5450, %v5556
    %v5595 = vadd.f32 %v5451, %v5561
    %v5596 = vadd.f32 %v5452, %v5566
    %v5597 = vadd.f32 %v5453, %v5571
    %v5598 = vadd.f32 %v5454, %v5576
    %v5599 = vadd.f32 %v5455, %v5581
    %v5600 = vadd.f32 %v5456, %v5586
    %v5601 = vadd.f32 %v5457, %v5591
    %v5603 = vrot.slane %v4802, 2
    %v5604 = vsel %vm2847, %v5339, %v5603
    %v5605 = vsel %vm703, %v5604, 0
    %v5607 = vsel %vm703, %v5603, 0
    %5609 = vmatprep.subr.mxu0 0.0
    %5610 = vmatpush1.msra.mxu0 0.0
    %5611 = vmatprep.subr.mxu0 0.0
    %5612 = vmatpush1.msra.mxu0 0.0
    %5613 = vmatprep.subr.mxu0 0.0
    %5614 = vmatpush1.msra.mxu0 0.0
    %5615 = vmatprep.subr.mxu0 0.0
    %5616 = vmatpush1.msra.mxu0 0.0
    %5617 = vmatprep.subr.mxu0 0.0
    %5618 = vmatpush1.msra.mxu0 0.0
    %5619 = vmatprep.subr.mxu0 0.0
    %5620 = vmatpush1.msra.mxu0 0.0
    %5621 = vmatprep.subr.mxu0 0.0
    %5622 = vmatpush1.msra.mxu0 0.0
    %5623 = vmatprep.subr.mxu0 0.0
    %5624 = vmatpush1.msra.mxu0 0.0
    %5625 = vmatprep.subr.mxu0 0.0
    %5626 = vmatpush1.msra.mxu0 0.0
    %5627 = vmatprep.subr.mxu0 0.0
    %5628 = vmatpush1.msra.mxu0 0.0
    %5629 = vmatprep.subr.mxu0 0.0
    %5630 = vmatpush1.msra.mxu0 0.0
    %5631 = vmatprep.subr.mxu0 0.0
    %5632 = vmatpush1.msra.mxu0 0.0
    %5633 = vmatprep.subr.mxu0 0.0
    %5634 = vmatpush1.msra.mxu0 0.0
    %5635 = vmatprep.subr.mxu0 0.0
    %5636 = vmatpush1.msra.mxu0 %v243
    %5637 = vmatprep.subr.mxu0 0.0
    %5638 = vmatpush1.msra.mxu0 %v242
    %5639 = vmatprep.subr.mxu0 0.0
    %5640 = vmatpush1.msra.mxu0 %v241
    %5641 = vmatprep.subr.mxu0 0.0
    %5642 = vmatpush2.msra.mxu0 0.0
    %5643 = vmatprep.subr.mxu0 0.0
    %5644 = vmatpush2.msra.mxu0 0.0
    %5645 = vmatprep.subr.mxu0 0.0
    %5646 = vmatpush2.msra.mxu0 0.0
    %5647 = vmatprep.subr.mxu0 0.0
    %5648 = vmatpush2.msra.mxu0 0.0
    %5649 = vmatprep.subr.mxu0 0.0
    %5650 = vmatpush2.msra.mxu0 0.0
    %5651 = vmatprep.subr.mxu0 0.0
    %5652 = vmatpush2.msra.mxu0 0.0
    %5653 = vmatprep.subr.mxu0 0.0
    %5654 = vmatpush2.msra.mxu0 0.0
    %5655 = vmatprep.subr.mxu0 0.0
    %5656 = vmatpush2.msra.mxu0 0.0
    %5657 = vmatprep.subr.mxu0 0.0
    %5658 = vmatpush2.msra.mxu0 0.0
    %5659 = vmatprep.subr.mxu0 0.0
    %5660 = vmatpush2.msra.mxu0 0.0
    %5661 = vmatprep.subr.mxu0 0.0
    %5662 = vmatpush2.msra.mxu0 0.0
    %5663 = vmatprep.subr.mxu0 0.0
    %5664 = vmatpush2.msra.mxu0 0.0
    %5665 = vmatprep.subr.mxu0 0.0
    %5666 = vmatpush2.msra.mxu0 0.0
    %5667 = vmatprep.subr.mxu0 0.0
    %5668 = vmatpush2.msra.mxu0 0.0
    %5669 = vmatprep.subr.mxu0 0.0
    %5670 = vmatpush2.msra.mxu0 0.0
    %5671 = vmatprep.subr.mxu0 0.0
    %5672 = vmatpush2.msra.mxu0 0.0
    %5673 = vmatprep.mubr.f32.mxu0 0.0
    %5674 = vmatmul.mubr.f32.gmra.mxu0 %v5094
    %v5675 = vpop.f32.mrf.mxu0
    %v5676 = vadd.f32 0.0, %v5675
    %v5677 = vpop.f32.mrf.mxu0
    %5678 = vmatprep.mubr.f32.mxu0 0.0
    %5679 = vmatmul.mubr.f32.gmra.mxu0 %v5096
    %v5680 = vpop.f32.mrf.mxu0
    %v5681 = vadd.f32 0.0, %v5680
    %v5682 = vpop.f32.mrf.mxu0
    %5683 = vmatprep.mubr.f32.mxu0 0.0
    %5684 = vmatmul.mubr.f32.gmra.mxu0 %v5098
    %v5685 = vpop.f32.mrf.mxu0
    %v5686 = vadd.f32 0.0, %v5685
    %v5687 = vpop.f32.mrf.mxu0
    %5688 = vmatprep.mubr.f32.mxu0 0.0
    %5689 = vmatmul.mubr.f32.gmra.mxu0 %v5100
    %v5690 = vpop.f32.mrf.mxu0
    %v5691 = vadd.f32 0.0, %v5690
    %v5692 = vpop.f32.mrf.mxu0
    %5693 = vmatprep.mubr.f32.mxu0 0.0
    %5694 = vmatmul.mubr.f32.gmra.mxu0 %v5102
    %v5695 = vpop.f32.mrf.mxu0
    %v5696 = vadd.f32 0.0, %v5695
    %v5697 = vpop.f32.mrf.mxu0
    %5698 = vmatprep.mubr.f32.mxu0 0.0
    %5699 = vmatmul.mubr.f32.gmra.mxu0 %v5341
    %v5700 = vpop.f32.mrf.mxu0
    %v5701 = vadd.f32 0.0, %v5700
    %v5702 = vpop.f32.mrf.mxu0
    %5703 = vmatprep.mubr.f32.mxu0 0.0
    %5704 = vmatmul.mubr.f32.gmra.mxu0 %v5605
    %v5705 = vpop.f32.mrf.mxu0
    %v5706 = vadd.f32 0.0, %v5705
    %v5707 = vpop.f32.mrf.mxu0
    %5708 = vmatprep.mubr.f32.mxu0 0.0
    %5709 = vmatmul.mubr.f32.gmra.mxu0 %v5607
    %v5710 = vpop.f32.mrf.mxu0
    %v5711 = vadd.f32 0.0, %v5710
    %v5712 = vpop.f32.mrf.mxu0
    %5713 = vdwg.mxu0
    %v5714 = vadd.f32 %v5594, %v5676
    %v5715 = vadd.f32 %v5595, %v5681
    %v5716 = vadd.f32 %v5596, %v5686
    %v5717 = vadd.f32 %v5597, %v5691
    %v5718 = vadd.f32 %v5598, %v5696
    %v5719 = vadd.f32 %v5599, %v5701
    %v5720 = vadd.f32 %v5600, %v5706
    %v5721 = vadd.f32 %v5601, %v5711
    %v5722 = vrot.slane %v4802, 3
    %v5723 = vsel %vm2880, %v5471, %v5722
    %v5724 = vsel %vm703, %v5723, 0
    %v5726 = vsel %vm703, %v5722, 0
    %5728 = vmatprep.subr.mxu0 0.0
    %5729 = vmatpush1.msra.mxu0 0.0
    %5730 = vmatprep.subr.mxu0 0.0
    %5731 = vmatpush1.msra.mxu0 0.0
    %5732 = vmatprep.subr.mxu0 0.0
    %5733 = vmatpush1.msra.mxu0 0.0
    %5734 = vmatprep.subr.mxu0 0.0
    %5735 = vmatpush1.msra.mxu0 0.0
    %5736 = vmatprep.subr.mxu0 0.0
    %5737 = vmatpush1.msra.mxu0 0.0
    %5738 = vmatprep.subr.mxu0 0.0
    %5739 = vmatpush1.msra.mxu0 0.0
    %5740 = vmatprep.subr.mxu0 0.0
    %5741 = vmatpush1.msra.mxu0 0.0
    %5742 = vmatprep.subr.mxu0 0.0
    %5743 = vmatpush1.msra.mxu0 0.0
    %5744 = vmatprep.subr.mxu0 0.0
    %5745 = vmatpush1.msra.mxu0 0.0
    %5746 = vmatprep.subr.mxu0 0.0
    %5747 = vmatpush1.msra.mxu0 0.0
    %5748 = vmatprep.subr.mxu0 0.0
    %5749 = vmatpush1.msra.mxu0 0.0
    %5750 = vmatprep.subr.mxu0 0.0
    %5751 = vmatpush1.msra.mxu0 0.0
    %5752 = vmatprep.subr.mxu0 0.0
    %5753 = vmatpush1.msra.mxu0 0.0
    %5754 = vmatprep.subr.mxu0 0.0
    %5755 = vmatpush1.msra.mxu0 %v246
    %5756 = vmatprep.subr.mxu0 0.0
    %5757 = vmatpush1.msra.mxu0 %v245
    %5758 = vmatprep.subr.mxu0 0.0
    %5759 = vmatpush1.msra.mxu0 %v244
    %5760 = vmatprep.subr.mxu0 0.0
    %5761 = vmatpush2.msra.mxu0 0.0
    %5762 = vmatprep.subr.mxu0 0.0
    %5763 = vmatpush2.msra.mxu0 0.0
    %5764 = vmatprep.subr.mxu0 0.0
    %5765 = vmatpush2.msra.mxu0 0.0
    %5766 = vmatprep.subr.mxu0 0.0
    %5767 = vmatpush2.msra.mxu0 0.0
    %5768 = vmatprep.subr.mxu0 0.0
    %5769 = vmatpush2.msra.mxu0 0.0
    %5770 = vmatprep.subr.mxu0 0.0
    %5771 = vmatpush2.msra.mxu0 0.0
    %5772 = vmatprep.subr.mxu0 0.0
    %5773 = vmatpush2.msra.mxu0 0.0
    %5774 = vmatprep.subr.mxu0 0.0
    %5775 = vmatpush2.msra.mxu0 0.0
    %5776 = vmatprep.subr.mxu0 0.0
    %5777 = vmatpush2.msra.mxu0 0.0
    %5778 = vmatprep.subr.mxu0 0.0
    %5779 = vmatpush2.msra.mxu0 0.0
    %5780 = vmatprep.subr.mxu0 0.0
    %5781 = vmatpush2.msra.mxu0 0.0
    %5782 = vmatprep.subr.mxu0 0.0
    %5783 = vmatpush2.msra.mxu0 0.0
    %5784 = vmatprep.subr.mxu0 0.0
    %5785 = vmatpush2.msra.mxu0 0.0
    %5786 = vmatprep.subr.mxu0 0.0
    %5787 = vmatpush2.msra.mxu0 0.0
    %5788 = vmatprep.subr.mxu0 0.0
    %5789 = vmatpush2.msra.mxu0 0.0
    %5790 = vmatprep.subr.mxu0 0.0
    %5791 = vmatpush2.msra.mxu0 0.0
    %5792 = vmatprep.mubr.f32.mxu0 0.0
    %5793 = vmatmul.mubr.f32.gmra.mxu0 %v5475
    %v5794 = vpop.f32.mrf.mxu0
    %v5795 = vadd.f32 0.0, %v5794
    %v5796 = vpop.f32.mrf.mxu0
    %5797 = vmatprep.mubr.f32.mxu0 0.0
    %5798 = vmatmul.mubr.f32.gmra.mxu0 %v5477
    %v5799 = vpop.f32.mrf.mxu0
    %v5800 = vadd.f32 0.0, %v5799
    %v5801 = vpop.f32.mrf.mxu0
    %5802 = vmatprep.mubr.f32.mxu0 0.0
    %5803 = vmatmul.mubr.f32.gmra.mxu0 %v5479
    %v5804 = vpop.f32.mrf.mxu0
    %v5805 = vadd.f32 0.0, %v5804
    %v5806 = vpop.f32.mrf.mxu0
    %5807 = vmatprep.mubr.f32.mxu0 0.0
    %5808 = vmatmul.mubr.f32.gmra.mxu0 %v5481
    %v5809 = vpop.f32.mrf.mxu0
    %v5810 = vadd.f32 0.0, %v5809
    %v5811 = vpop.f32.mrf.mxu0
    %5812 = vmatprep.mubr.f32.mxu0 0.0
    %5813 = vmatmul.mubr.f32.gmra.mxu0 %v5483
    %v5814 = vpop.f32.mrf.mxu0
    %v5815 = vadd.f32 0.0, %v5814
    %v5816 = vpop.f32.mrf.mxu0
    %5817 = vmatprep.mubr.f32.mxu0 0.0
    %5818 = vmatmul.mubr.f32.gmra.mxu0 %v5485
    %v5819 = vpop.f32.mrf.mxu0
    %v5820 = vadd.f32 0.0, %v5819
    %v5821 = vpop.f32.mrf.mxu0
    %5822 = vmatprep.mubr.f32.mxu0 0.0
    %5823 = vmatmul.mubr.f32.gmra.mxu0 %v5724
    %v5824 = vpop.f32.mrf.mxu0
    %v5825 = vadd.f32 0.0, %v5824
    %v5826 = vpop.f32.mrf.mxu0
    %5827 = vmatprep.mubr.f32.mxu0 0.0
    %5828 = vmatmul.mubr.f32.gmra.mxu0 %v5726
    %v5829 = vpop.f32.mrf.mxu0
    %v5830 = vadd.f32 0.0, %v5829
    %v5831 = vpop.f32.mrf.mxu0
    %5832 = vdwg.mxu0
    %v5833 = vadd.f32 %v5714, %v5795
    %v5834 = vadd.f32 %v5715, %v5800
    %v5835 = vadd.f32 %v5716, %v5805
    %v5836 = vadd.f32 %v5717, %v5810
    %v5837 = vadd.f32 %v5718, %v5815
    %v5838 = vadd.f32 %v5719, %v5820
    %v5839 = vadd.f32 %v5720, %v5825
    %v5840 = vadd.f32 %v5721, %v5830
    %v5842 = vrot.slane %v4767, 4
    %v5843 = vrot.slane %v4772, 4
    %v5844 = vsel %vm2914, %v5842, %v5843
    %v5845 = vrot.slane %v4777, 4
    %v5846 = vsel %vm2914, %v5843, %v5845
    %v5847 = vrot.slane %v4782, 4
    %v5848 = vsel %vm2914, %v5845, %v5847
    %v5849 = vrot.slane %v4787, 4
    %v5850 = vsel %vm2914, %v5847, %v5849
    %v5851 = vrot.slane %v4792, 4
    %v5852 = vsel %vm2914, %v5849, %v5851
    %v5853 = vrot.slane %v4797, 4
    %v5854 = vsel %vm2914, %v5851, %v5853
    %v5855 = vrot.slane %v4802, 4
    %v5856 = vsel %vm2914, %v5853, %v5855
    %v5857 = vrot.slane %v4807, 4
    %v5858 = vsel %vm2914, %v5855, %v5857
    %v5859 = vsel %vm703, %v5844, 0
    %v5861 = vsel %vm703, %v5846, 0
    %v5863 = vsel %vm703, %v5848, 0
    %v5865 = vsel %vm703, %v5850, 0
    %v5867 = vsel %vm703, %v5852, 0
    %v5869 = vsel %vm703, %v5854, 0
    %v5871 = vsel %vm703, %v5856, 0
    %v5873 = vsel %vm703, %v5858, 0
    %5875 = vmatprep.subr.mxu0 0.0
    %5876 = vmatpush1.msra.mxu0 0.0
    %5877 = vmatprep.subr.mxu0 0.0
    %5878 = vmatpush1.msra.mxu0 0.0
    %5879 = vmatprep.subr.mxu0 0.0
    %5880 = vmatpush1.msra.mxu0 0.0
    %5881 = vmatprep.subr.mxu0 0.0
    %5882 = vmatpush1.msra.mxu0 0.0
    %5883 = vmatprep.subr.mxu0 0.0
    %5884 = vmatpush1.msra.mxu0 0.0
    %5885 = vmatprep.subr.mxu0 0.0
    %5886 = vmatpush1.msra.mxu0 0.0
    %5887 = vmatprep.subr.mxu0 0.0
    %5888 = vmatpush1.msra.mxu0 0.0
    %5889 = vmatprep.subr.mxu0 0.0
    %5890 = vmatpush1.msra.mxu0 0.0
    %5891 = vmatprep.subr.mxu0 0.0
    %5892 = vmatpush1.msra.mxu0 0.0
    %5893 = vmatprep.subr.mxu0 0.0
    %5894 = vmatpush1.msra.mxu0 0.0
    %5895 = vmatprep.subr.mxu0 0.0
    %5896 = vmatpush1.msra.mxu0 0.0
    %5897 = vmatprep.subr.mxu0 0.0
    %5898 = vmatpush1.msra.mxu0 0.0
    %5899 = vmatprep.subr.mxu0 0.0
    %5900 = vmatpush1.msra.mxu0 0.0
    %5901 = vmatprep.subr.mxu0 0.0
    %5902 = vmatpush1.msra.mxu0 %v249
    %5903 = vmatprep.subr.mxu0 0.0
    %5904 = vmatpush1.msra.mxu0 %v248
    %5905 = vmatprep.subr.mxu0 0.0
    %5906 = vmatpush1.msra.mxu0 %v247
    %5907 = vmatprep.subr.mxu0 0.0
    %5908 = vmatpush2.msra.mxu0 0.0
    %5909 = vmatprep.subr.mxu0 0.0
    %5910 = vmatpush2.msra.mxu0 0.0
    %5911 = vmatprep.subr.mxu0 0.0
    %5912 = vmatpush2.msra.mxu0 0.0
    %5913 = vmatprep.subr.mxu0 0.0
    %5914 = vmatpush2.msra.mxu0 0.0
    %5915 = vmatprep.subr.mxu0 0.0
    %5916 = vmatpush2.msra.mxu0 0.0
    %5917 = vmatprep.subr.mxu0 0.0
    %5918 = vmatpush2.msra.mxu0 0.0
    %5919 = vmatprep.subr.mxu0 0.0
    %5920 = vmatpush2.msra.mxu0 0.0
    %5921 = vmatprep.subr.mxu0 0.0
    %5922 = vmatpush2.msra.mxu0 0.0
    %5923 = vmatprep.subr.mxu0 0.0
    %5924 = vmatpush2.msra.mxu0 0.0
    %5925 = vmatprep.subr.mxu0 0.0
    %5926 = vmatpush2.msra.mxu0 0.0
    %5927 = vmatprep.subr.mxu0 0.0
    %5928 = vmatpush2.msra.mxu0 0.0
    %5929 = vmatprep.subr.mxu0 0.0
    %5930 = vmatpush2.msra.mxu0 0.0
    %5931 = vmatprep.subr.mxu0 0.0
    %5932 = vmatpush2.msra.mxu0 0.0
    %5933 = vmatprep.subr.mxu0 0.0
    %5934 = vmatpush2.msra.mxu0 0.0
    %5935 = vmatprep.subr.mxu0 0.0
    %5936 = vmatpush2.msra.mxu0 0.0
    %5937 = vmatprep.subr.mxu0 0.0
    %5938 = vmatpush2.msra.mxu0 0.0
    %5939 = vmatprep.mubr.f32.mxu0 0.0
    %5940 = vmatmul.mubr.f32.gmra.mxu0 %v5859
    %v5941 = vpop.f32.mrf.mxu0
    %v5942 = vadd.f32 0.0, %v5941
    %v5943 = vpop.f32.mrf.mxu0
    %5944 = vmatprep.mubr.f32.mxu0 0.0
    %5945 = vmatmul.mubr.f32.gmra.mxu0 %v5861
    %v5946 = vpop.f32.mrf.mxu0
    %v5947 = vadd.f32 0.0, %v5946
    %v5948 = vpop.f32.mrf.mxu0
    %5949 = vmatprep.mubr.f32.mxu0 0.0
    %5950 = vmatmul.mubr.f32.gmra.mxu0 %v5863
    %v5951 = vpop.f32.mrf.mxu0
    %v5952 = vadd.f32 0.0, %v5951
    %v5953 = vpop.f32.mrf.mxu0
    %5954 = vmatprep.mubr.f32.mxu0 0.0
    %5955 = vmatmul.mubr.f32.gmra.mxu0 %v5865
    %v5956 = vpop.f32.mrf.mxu0
    %v5957 = vadd.f32 0.0, %v5956
    %v5958 = vpop.f32.mrf.mxu0
    %5959 = vmatprep.mubr.f32.mxu0 0.0
    %5960 = vmatmul.mubr.f32.gmra.mxu0 %v5867
    %v5961 = vpop.f32.mrf.mxu0
    %v5962 = vadd.f32 0.0, %v5961
    %v5963 = vpop.f32.mrf.mxu0
    %5964 = vmatprep.mubr.f32.mxu0 0.0
    %5965 = vmatmul.mubr.f32.gmra.mxu0 %v5869
    %v5966 = vpop.f32.mrf.mxu0
    %v5967 = vadd.f32 0.0, %v5966
    %v5968 = vpop.f32.mrf.mxu0
    %5969 = vmatprep.mubr.f32.mxu0 0.0
    %5970 = vmatmul.mubr.f32.gmra.mxu0 %v5871
    %v5971 = vpop.f32.mrf.mxu0
    %v5972 = vadd.f32 0.0, %v5971
    %v5973 = vpop.f32.mrf.mxu0
    %5974 = vmatprep.mubr.f32.mxu0 0.0
    %5975 = vmatmul.mubr.f32.gmra.mxu0 %v5873
    %v5976 = vpop.f32.mrf.mxu0
    %v5977 = vadd.f32 0.0, %v5976
    %v5978 = vpop.f32.mrf.mxu0
    %5979 = vdwg.mxu0
    %v5980 = vadd.f32 %v5833, %v5942
    %v5981 = vadd.f32 %v5834, %v5947
    %v5982 = vadd.f32 %v5835, %v5952
    %v5983 = vadd.f32 %v5836, %v5957
    %v5984 = vadd.f32 %v5837, %v5962
    %v5985 = vadd.f32 %v5838, %v5967
    %v5986 = vadd.f32 %v5839, %v5972
    %v5987 = vadd.f32 %v5840, %v5977
    %v5988 = vlaneseq
    %v5989 = vshrl.u32 %v5988, 7
    %v5990 = vsub.s32 5, %v5989
    %v5991 = vrot.slane %v55, %v5990
    %v5992 = vadd.f32 %v5980, %v5991
    %v5993 = vadd.f32 %v5981, %v5991
    %v5994 = vadd.f32 %v5982, %v5991
    %v5995 = vadd.f32 %v5983, %v5991
    %v5996 = vadd.f32 %v5984, %v5991
    %v5997 = vadd.f32 %v5985, %v5991
    %v5998 = vadd.f32 %v5986, %v5991
    %v5999 = vadd.f32 %v5987, %v5991
    %v6000 = vsel %vm2880, %v4391, 0
    %6002 = vmatprep.subr.mxu0 0.0
    %6003 = vmatpush1.msra.mxu0 0.0
    %6004 = vmatprep.subr.mxu0 0.0
    %6005 = vmatpush1.msra.mxu0 0.0
    %6006 = vmatprep.subr.mxu0 0.0
    %6007 = vmatpush1.msra.mxu0 0.0
    %6008 = vmatprep.subr.mxu0 0.0
    %6009 = vmatpush1.msra.mxu0 0.0
    %6010 = vmatprep.subr.mxu0 0.0
    %6011 = vmatpush1.msra.mxu0 0.0
    %6012 = vmatprep.subr.mxu0 0.0
    %6013 = vmatpush1.msra.mxu0 0.0
    %6014 = vmatprep.subr.mxu0 0.0
    %6015 = vmatpush1.msra.mxu0 0.0
    %6016 = vmatprep.subr.mxu0 0.0
    %6017 = vmatpush1.msra.mxu0 0.0
    %6018 = vmatprep.subr.mxu0 0.0
    %6019 = vmatpush1.msra.mxu0 %v6000
    %6020 = vmatprep.subr.mxu0 0.0
    %6021 = vmatpush1.msra.mxu0 %v4390
    %6022 = vmatprep.subr.mxu0 0.0
    %6023 = vmatpush1.msra.mxu0 %v4389
    %6024 = vmatprep.subr.mxu0 0.0
    %6025 = vmatpush1.msra.mxu0 %v4388
    %6026 = vmatprep.subr.mxu0 0.0
    %6027 = vmatpush1.msra.mxu0 %v4387
    %6028 = vmatprep.subr.mxu0 0.0
    %6029 = vmatpush1.msra.mxu0 %v4386
    %6030 = vmatprep.subr.mxu0 0.0
    %6031 = vmatpush1.msra.mxu0 %v4385
    %6032 = vmatprep.subr.mxu0 0.0
    %6033 = vmatpush1.msra.mxu0 %v4384
    %6034 = vmatprep.subr.mxu0 0.0
    %6035 = vmatpush2.msra.mxu0 0.0
    %6036 = vmatprep.subr.mxu0 0.0
    %6037 = vmatpush2.msra.mxu0 0.0
    %6038 = vmatprep.subr.mxu0 0.0
    %6039 = vmatpush2.msra.mxu0 0.0
    %6040 = vmatprep.subr.mxu0 0.0
    %6041 = vmatpush2.msra.mxu0 0.0
    %6042 = vmatprep.subr.mxu0 0.0
    %6043 = vmatpush2.msra.mxu0 0.0
    %6044 = vmatprep.subr.mxu0 0.0
    %6045 = vmatpush2.msra.mxu0 0.0
    %6046 = vmatprep.subr.mxu0 0.0
    %6047 = vmatpush2.msra.mxu0 0.0
    %6048 = vmatprep.subr.mxu0 0.0
    %6049 = vmatpush2.msra.mxu0 0.0
    %6050 = vmatprep.subr.mxu0 0.0
    %6051 = vmatpush2.msra.mxu0 0.0
    %6052 = vmatprep.subr.mxu0 0.0
    %6053 = vmatpush2.msra.mxu0 0.0
    %6054 = vmatprep.subr.mxu0 0.0
    %6055 = vmatpush2.msra.mxu0 0.0
    %6056 = vmatprep.subr.mxu0 0.0
    %6057 = vmatpush2.msra.mxu0 0.0
    %6058 = vmatprep.subr.mxu0 0.0
    %6059 = vmatpush2.msra.mxu0 0.0
    %6060 = vmatprep.subr.mxu0 0.0
    %6061 = vmatpush2.msra.mxu0 0.0
    %6062 = vmatprep.subr.mxu0 0.0
    %6063 = vmatpush2.msra.mxu0 0.0
    %6064 = vmatprep.subr.mxu0 0.0
    %6065 = vmatpush2.msra.mxu0 0.0
    %6066 = vmatprep.mubr.f32.mxu0 0.0
    %6067 = vmatmul.mubr.f32.gmra.mxu0 %v4656
    %v6068 = vpop.f32.mrf.mxu0
    %v6069 = vadd.f32 0.0, %v6068
    %v6070 = vpop.f32.mrf.mxu0
    %6071 = vmatprep.mubr.f32.mxu0 0.0
    %6072 = vmatmul.mubr.f32.gmra.mxu0 %v4659
    %v6073 = vpop.f32.mrf.mxu0
    %v6074 = vadd.f32 0.0, %v6073
    %v6075 = vpop.f32.mrf.mxu0
    %6076 = vmatprep.mubr.f32.mxu0 0.0
    %6077 = vmatmul.mubr.f32.gmra.mxu0 %v4662
    %v6078 = vpop.f32.mrf.mxu0
    %v6079 = vadd.f32 0.0, %v6078
    %v6080 = vpop.f32.mrf.mxu0
    %6081 = vmatprep.mubr.f32.mxu0 0.0
    %6082 = vmatmul.mubr.f32.gmra.mxu0 %v4665
    %v6083 = vpop.f32.mrf.mxu0
    %v6084 = vadd.f32 0.0, %v6083
    %v6085 = vpop.f32.mrf.mxu0
    %6086 = vmatprep.mubr.f32.mxu0 0.0
    %6087 = vmatmul.mubr.f32.gmra.mxu0 %v4668
    %v6088 = vpop.f32.mrf.mxu0
    %v6089 = vadd.f32 0.0, %v6088
    %v6090 = vpop.f32.mrf.mxu0
    %6091 = vmatprep.mubr.f32.mxu0 0.0
    %6092 = vmatmul.mubr.f32.gmra.mxu0 %v4671
    %v6093 = vpop.f32.mrf.mxu0
    %v6094 = vadd.f32 0.0, %v6093
    %v6095 = vpop.f32.mrf.mxu0
    %6096 = vmatprep.mubr.f32.mxu0 0.0
    %6097 = vmatmul.mubr.f32.gmra.mxu0 %v4674
    %v6098 = vpop.f32.mrf.mxu0
    %v6099 = vadd.f32 0.0, %v6098
    %v6100 = vpop.f32.mrf.mxu0
    %6101 = vmatprep.mubr.f32.mxu0 0.0
    %6102 = vmatmul.mubr.f32.gmra.mxu0 %v4677
    %v6103 = vpop.f32.mrf.mxu0
    %v6104 = vadd.f32 0.0, %v6103
    %v6105 = vpop.f32.mrf.mxu0
    %6106 = vmatprep.mubr.f32.mxu0 0.0
    %6107 = vmatmul.mubr.f32.gmra.mxu0 %v4680
    %v6108 = vpop.f32.mrf.mxu0
    %v6109 = vadd.f32 0.0, %v6108
    %v6110 = vpop.f32.mrf.mxu0
    %6111 = vmatprep.mubr.f32.mxu0 0.0
    %6112 = vmatmul.mubr.f32.gmra.mxu0 %v4683
    %v6113 = vpop.f32.mrf.mxu0
    %v6114 = vadd.f32 0.0, %v6113
    %v6115 = vpop.f32.mrf.mxu0
    %6116 = vmatprep.mubr.f32.mxu0 0.0
    %6117 = vmatmul.mubr.f32.gmra.mxu0 %v4686
    %v6118 = vpop.f32.mrf.mxu0
    %v6119 = vadd.f32 0.0, %v6118
    %v6120 = vpop.f32.mrf.mxu0
    %6121 = vdwg.mxu0
    %v6130 = vrot.slane %v6069, 1
    %v6131 = vrot.slane %v6074, 1
    %v6132 = vsel %vm2823, %v6130, %v6131
    %v6133 = vrot.slane %v6079, 1
    %v6134 = vsel %vm2823, %v6131, %v6133
    %v6135 = vrot.slane %v6084, 1
    %v6136 = vsel %vm2823, %v6133, %v6135
    %v6137 = vrot.slane %v6089, 1
    %v6138 = vsel %vm2823, %v6135, %v6137
    %v6139 = vrot.slane %v6094, 1
    %v6140 = vsel %vm2823, %v6137, %v6139
    %v6141 = vrot.slane %v6099, 1
    %v6142 = vsel %vm2823, %v6139, %v6141
    %v6143 = vrot.slane %v6104, 1
    %v6144 = vsel %vm2823, %v6141, %v6143
    %v6145 = vsel %vm703, %v6132, 0
    %v6147 = vsel %vm703, %v6134, 0
    %v6149 = vsel %vm703, %v6136, 0
    %v6151 = vsel %vm703, %v6138, 0
    %v6153 = vsel %vm703, %v6140, 0
    %v6155 = vsel %vm703, %v6142, 0
    %v6157 = vsel %vm703, %v6144, 0
    %v6159 = vsel %vm703, %v6143, 0
    %6161 = vmatprep.subr.mxu0 0.0
    %6162 = vmatpush1.msra.mxu0 0.0
    %6163 = vmatprep.subr.mxu0 0.0
    %6164 = vmatpush1.msra.mxu0 0.0
    %6165 = vmatprep.subr.mxu0 0.0
    %6166 = vmatpush1.msra.mxu0 0.0
    %6167 = vmatprep.subr.mxu0 0.0
    %6168 = vmatpush1.msra.mxu0 0.0
    %6169 = vmatprep.subr.mxu0 0.0
    %6170 = vmatpush1.msra.mxu0 0.0
    %6171 = vmatprep.subr.mxu0 0.0
    %6172 = vmatpush1.msra.mxu0 0.0
    %6173 = vmatprep.subr.mxu0 0.0
    %6174 = vmatpush1.msra.mxu0 0.0
    %6175 = vmatprep.subr.mxu0 0.0
    %6176 = vmatpush1.msra.mxu0 0.0
    %6177 = vmatprep.subr.mxu0 0.0
    %6178 = vmatpush1.msra.mxu0 0.0
    %6179 = vmatprep.subr.mxu0 0.0
    %6180 = vmatpush1.msra.mxu0 0.0
    %6181 = vmatprep.subr.mxu0 0.0
    %6182 = vmatpush1.msra.mxu0 0.0
    %6183 = vmatprep.subr.mxu0 0.0
    %6184 = vmatpush1.msra.mxu0 0.0
    %6185 = vmatprep.subr.mxu0 0.0
    %6186 = vmatpush1.msra.mxu0 0.0
    %6187 = vmatprep.subr.mxu0 0.0
    %6188 = vmatpush1.msra.mxu0 %v228
    %6189 = vmatprep.subr.mxu0 0.0
    %6190 = vmatpush1.msra.mxu0 %v227
    %6191 = vmatprep.subr.mxu0 0.0
    %6192 = vmatpush1.msra.mxu0 %v226
    %6193 = vmatprep.subr.mxu0 0.0
    %6194 = vmatpush2.msra.mxu0 0.0
    %6195 = vmatprep.subr.mxu0 0.0
    %6196 = vmatpush2.msra.mxu0 0.0
    %6197 = vmatprep.subr.mxu0 0.0
    %6198 = vmatpush2.msra.mxu0 0.0
    %6199 = vmatprep.subr.mxu0 0.0
    %6200 = vmatpush2.msra.mxu0 0.0
    %6201 = vmatprep.subr.mxu0 0.0
    %6202 = vmatpush2.msra.mxu0 0.0
    %6203 = vmatprep.subr.mxu0 0.0
    %6204 = vmatpush2.msra.mxu0 0.0
    %6205 = vmatprep.subr.mxu0 0.0
    %6206 = vmatpush2.msra.mxu0 0.0
    %6207 = vmatprep.subr.mxu0 0.0
    %6208 = vmatpush2.msra.mxu0 0.0
    %6209 = vmatprep.subr.mxu0 0.0
    %6210 = vmatpush2.msra.mxu0 0.0
    %6211 = vmatprep.subr.mxu0 0.0
    %6212 = vmatpush2.msra.mxu0 0.0
    %6213 = vmatprep.subr.mxu0 0.0
    %6214 = vmatpush2.msra.mxu0 0.0
    %6215 = vmatprep.subr.mxu0 0.0
    %6216 = vmatpush2.msra.mxu0 0.0
    %6217 = vmatprep.subr.mxu0 0.0
    %6218 = vmatpush2.msra.mxu0 0.0
    %6219 = vmatprep.subr.mxu0 0.0
    %6220 = vmatpush2.msra.mxu0 0.0
    %6221 = vmatprep.subr.mxu0 0.0
    %6222 = vmatpush2.msra.mxu0 0.0
    %6223 = vmatprep.subr.mxu0 0.0
    %6224 = vmatpush2.msra.mxu0 0.0
    %6225 = vmatprep.mubr.f32.mxu0 0.0
    %6226 = vmatmul.mubr.f32.gmra.mxu0 %v6145
    %v6227 = vpop.f32.mrf.mxu0
    %v6228 = vadd.f32 0.0, %v6227
    %v6229 = vpop.f32.mrf.mxu0
    %6230 = vmatprep.mubr.f32.mxu0 0.0
    %6231 = vmatmul.mubr.f32.gmra.mxu0 %v6147
    %v6232 = vpop.f32.mrf.mxu0
    %v6233 = vadd.f32 0.0, %v6232
    %v6234 = vpop.f32.mrf.mxu0
    %6235 = vmatprep.mubr.f32.mxu0 0.0
    %6236 = vmatmul.mubr.f32.gmra.mxu0 %v6149
    %v6237 = vpop.f32.mrf.mxu0
    %v6238 = vadd.f32 0.0, %v6237
    %v6239 = vpop.f32.mrf.mxu0
    %6240 = vmatprep.mubr.f32.mxu0 0.0
    %6241 = vmatmul.mubr.f32.gmra.mxu0 %v6151
    %v6242 = vpop.f32.mrf.mxu0
    %v6243 = vadd.f32 0.0, %v6242
    %v6244 = vpop.f32.mrf.mxu0
    %6245 = vmatprep.mubr.f32.mxu0 0.0
    %6246 = vmatmul.mubr.f32.gmra.mxu0 %v6153
    %v6247 = vpop.f32.mrf.mxu0
    %v6248 = vadd.f32 0.0, %v6247
    %v6249 = vpop.f32.mrf.mxu0
    %6250 = vmatprep.mubr.f32.mxu0 0.0
    %6251 = vmatmul.mubr.f32.gmra.mxu0 %v6155
    %v6252 = vpop.f32.mrf.mxu0
    %v6253 = vadd.f32 0.0, %v6252
    %v6254 = vpop.f32.mrf.mxu0
    %6255 = vmatprep.mubr.f32.mxu0 0.0
    %6256 = vmatmul.mubr.f32.gmra.mxu0 %v6157
    %v6257 = vpop.f32.mrf.mxu0
    %v6258 = vadd.f32 0.0, %v6257
    %v6259 = vpop.f32.mrf.mxu0
    %6260 = vmatprep.mubr.f32.mxu0 0.0
    %6261 = vmatmul.mubr.f32.gmra.mxu0 %v6159
    %v6262 = vpop.f32.mrf.mxu0
    %v6263 = vadd.f32 0.0, %v6262
    %v6264 = vpop.f32.mrf.mxu0
    %6265 = vdwg.mxu0
    %v6266 = vsel %vm703, %v6069, 0
    %v6268 = vsel %vm703, %v6074, 0
    %v6270 = vsel %vm703, %v6079, 0
    %v6272 = vsel %vm703, %v6084, 0
    %v6274 = vsel %vm703, %v6089, 0
    %v6276 = vsel %vm703, %v6094, 0
    %v6278 = vsel %vm703, %v6099, 0
    %v6280 = vsel %vm703, %v6104, 0
    %6282 = vmatprep.subr.mxu0 0.0
    %6283 = vmatpush1.msra.mxu0 0.0
    %6284 = vmatprep.subr.mxu0 0.0
    %6285 = vmatpush1.msra.mxu0 0.0
    %6286 = vmatprep.subr.mxu0 0.0
    %6287 = vmatpush1.msra.mxu0 0.0
    %6288 = vmatprep.subr.mxu0 0.0
    %6289 = vmatpush1.msra.mxu0 0.0
    %6290 = vmatprep.subr.mxu0 0.0
    %6291 = vmatpush1.msra.mxu0 0.0
    %6292 = vmatprep.subr.mxu0 0.0
    %6293 = vmatpush1.msra.mxu0 0.0
    %6294 = vmatprep.subr.mxu0 0.0
    %6295 = vmatpush1.msra.mxu0 0.0
    %6296 = vmatprep.subr.mxu0 0.0
    %6297 = vmatpush1.msra.mxu0 0.0
    %6298 = vmatprep.subr.mxu0 0.0
    %6299 = vmatpush1.msra.mxu0 0.0
    %6300 = vmatprep.subr.mxu0 0.0
    %6301 = vmatpush1.msra.mxu0 0.0
    %6302 = vmatprep.subr.mxu0 0.0
    %6303 = vmatpush1.msra.mxu0 0.0
    %6304 = vmatprep.subr.mxu0 0.0
    %6305 = vmatpush1.msra.mxu0 0.0
    %6306 = vmatprep.subr.mxu0 0.0
    %6307 = vmatpush1.msra.mxu0 0.0
    %6308 = vmatprep.subr.mxu0 0.0
    %6309 = vmatpush1.msra.mxu0 %v225
    %6310 = vmatprep.subr.mxu0 0.0
    %6311 = vmatpush1.msra.mxu0 %v224
    %6312 = vmatprep.subr.mxu0 0.0
    %6313 = vmatpush1.msra.mxu0 %v223
    %6314 = vmatprep.subr.mxu0 0.0
    %6315 = vmatpush2.msra.mxu0 0.0
    %6316 = vmatprep.subr.mxu0 0.0
    %6317 = vmatpush2.msra.mxu0 0.0
    %6318 = vmatprep.subr.mxu0 0.0
    %6319 = vmatpush2.msra.mxu0 0.0
    %6320 = vmatprep.subr.mxu0 0.0
    %6321 = vmatpush2.msra.mxu0 0.0
    %6322 = vmatprep.subr.mxu0 0.0
    %6323 = vmatpush2.msra.mxu0 0.0
    %6324 = vmatprep.subr.mxu0 0.0
    %6325 = vmatpush2.msra.mxu0 0.0
    %6326 = vmatprep.subr.mxu0 0.0
    %6327 = vmatpush2.msra.mxu0 0.0
    %6328 = vmatprep.subr.mxu0 0.0
    %6329 = vmatpush2.msra.mxu0 0.0
    %6330 = vmatprep.subr.mxu0 0.0
    %6331 = vmatpush2.msra.mxu0 0.0
    %6332 = vmatprep.subr.mxu0 0.0
    %6333 = vmatpush2.msra.mxu0 0.0
    %6334 = vmatprep.subr.mxu0 0.0
    %6335 = vmatpush2.msra.mxu0 0.0
    %6336 = vmatprep.subr.mxu0 0.0
    %6337 = vmatpush2.msra.mxu0 0.0
    %6338 = vmatprep.subr.mxu0 0.0
    %6339 = vmatpush2.msra.mxu0 0.0
    %6340 = vmatprep.subr.mxu0 0.0
    %6341 = vmatpush2.msra.mxu0 0.0
    %6342 = vmatprep.subr.mxu0 0.0
    %6343 = vmatpush2.msra.mxu0 0.0
    %6344 = vmatprep.subr.mxu0 0.0
    %6345 = vmatpush2.msra.mxu0 0.0
    %6346 = vmatprep.mubr.f32.mxu0 0.0
    %6347 = vmatmul.mubr.f32.gmra.mxu0 %v6266
    %v6348 = vpop.f32.mrf.mxu0
    %v6349 = vadd.f32 %v6228, %v6348
    %v6350 = vpop.f32.mrf.mxu0
    %6351 = vmatprep.mubr.f32.mxu0 0.0
    %6352 = vmatmul.mubr.f32.gmra.mxu0 %v6268
    %v6353 = vpop.f32.mrf.mxu0
    %v6354 = vadd.f32 %v6233, %v6353
    %v6355 = vpop.f32.mrf.mxu0
    %6356 = vmatprep.mubr.f32.mxu0 0.0
    %6357 = vmatmul.mubr.f32.gmra.mxu0 %v6270
    %v6358 = vpop.f32.mrf.mxu0
    %v6359 = vadd.f32 %v6238, %v6358
    %v6360 = vpop.f32.mrf.mxu0
    %6361 = vmatprep.mubr.f32.mxu0 0.0
    %6362 = vmatmul.mubr.f32.gmra.mxu0 %v6272
    %v6363 = vpop.f32.mrf.mxu0
    %v6364 = vadd.f32 %v6243, %v6363
    %v6365 = vpop.f32.mrf.mxu0
    %6366 = vmatprep.mubr.f32.mxu0 0.0
    %6367 = vmatmul.mubr.f32.gmra.mxu0 %v6274
    %v6368 = vpop.f32.mrf.mxu0
    %v6369 = vadd.f32 %v6248, %v6368
    %v6370 = vpop.f32.mrf.mxu0
    %6371 = vmatprep.mubr.f32.mxu0 0.0
    %6372 = vmatmul.mubr.f32.gmra.mxu0 %v6276
    %v6373 = vpop.f32.mrf.mxu0
    %v6374 = vadd.f32 %v6253, %v6373
    %v6375 = vpop.f32.mrf.mxu0
    %6376 = vmatprep.mubr.f32.mxu0 0.0
    %6377 = vmatmul.mubr.f32.gmra.mxu0 %v6278
    %v6378 = vpop.f32.mrf.mxu0
    %v6379 = vadd.f32 %v6258, %v6378
    %v6380 = vpop.f32.mrf.mxu0
    %6381 = vmatprep.mubr.f32.mxu0 0.0
    %6382 = vmatmul.mubr.f32.gmra.mxu0 %v6280
    %v6383 = vpop.f32.mrf.mxu0
    %v6384 = vadd.f32 %v6263, %v6383
    %v6385 = vpop.f32.mrf.mxu0
    %6386 = vdwg.mxu0
    %v6387 = vrot.slane %v6069, 2
    %v6388 = vrot.slane %v6074, 2
    %v6389 = vsel %vm2847, %v6387, %v6388
    %v6390 = vrot.slane %v6079, 2
    %v6391 = vsel %vm2847, %v6388, %v6390
    %v6392 = vrot.slane %v6084, 2
    %v6393 = vsel %vm2847, %v6390, %v6392
    %v6394 = vrot.slane %v6089, 2
    %v6395 = vsel %vm2847, %v6392, %v6394
    %v6396 = vrot.slane %v6094, 2
    %v6397 = vsel %vm2847, %v6394, %v6396
    %v6398 = vrot.slane %v6099, 2
    %v6399 = vsel %vm2847, %v6396, %v6398
    %v6400 = vrot.slane %v6104, 2
    %v6401 = vsel %vm2847, %v6398, %v6400
    %v6402 = vsel %vm703, %v6389, 0
    %v6404 = vsel %vm703, %v6391, 0
    %v6406 = vsel %vm703, %v6393, 0
    %v6408 = vsel %vm703, %v6395, 0
    %v6410 = vsel %vm703, %v6397, 0
    %v6412 = vsel %vm703, %v6399, 0
    %v6414 = vsel %vm703, %v6401, 0
    %v6416 = vsel %vm703, %v6400, 0
    %6418 = vmatprep.subr.mxu0 0.0
    %6419 = vmatpush1.msra.mxu0 0.0
    %6420 = vmatprep.subr.mxu0 0.0
    %6421 = vmatpush1.msra.mxu0 0.0
    %6422 = vmatprep.subr.mxu0 0.0
    %6423 = vmatpush1.msra.mxu0 0.0
    %6424 = vmatprep.subr.mxu0 0.0
    %6425 = vmatpush1.msra.mxu0 0.0
    %6426 = vmatprep.subr.mxu0 0.0
    %6427 = vmatpush1.msra.mxu0 0.0
    %6428 = vmatprep.subr.mxu0 0.0
    %6429 = vmatpush1.msra.mxu0 0.0
    %6430 = vmatprep.subr.mxu0 0.0
    %6431 = vmatpush1.msra.mxu0 0.0
    %6432 = vmatprep.subr.mxu0 0.0
    %6433 = vmatpush1.msra.mxu0 0.0
    %6434 = vmatprep.subr.mxu0 0.0
    %6435 = vmatpush1.msra.mxu0 0.0
    %6436 = vmatprep.subr.mxu0 0.0
    %6437 = vmatpush1.msra.mxu0 0.0
    %6438 = vmatprep.subr.mxu0 0.0
    %6439 = vmatpush1.msra.mxu0 0.0
    %6440 = vmatprep.subr.mxu0 0.0
    %6441 = vmatpush1.msra.mxu0 0.0
    %6442 = vmatprep.subr.mxu0 0.0
    %6443 = vmatpush1.msra.mxu0 0.0
    %6444 = vmatprep.subr.mxu0 0.0
    %6445 = vmatpush1.msra.mxu0 %v231
    %6446 = vmatprep.subr.mxu0 0.0
    %6447 = vmatpush1.msra.mxu0 %v230
    %6448 = vmatprep.subr.mxu0 0.0
    %6449 = vmatpush1.msra.mxu0 %v229
    %6450 = vmatprep.subr.mxu0 0.0
    %6451 = vmatpush2.msra.mxu0 0.0
    %6452 = vmatprep.subr.mxu0 0.0
    %6453 = vmatpush2.msra.mxu0 0.0
    %6454 = vmatprep.subr.mxu0 0.0
    %6455 = vmatpush2.msra.mxu0 0.0
    %6456 = vmatprep.subr.mxu0 0.0
    %6457 = vmatpush2.msra.mxu0 0.0
    %6458 = vmatprep.subr.mxu0 0.0
    %6459 = vmatpush2.msra.mxu0 0.0
    %6460 = vmatprep.subr.mxu0 0.0
    %6461 = vmatpush2.msra.mxu0 0.0
    %6462 = vmatprep.subr.mxu0 0.0
    %6463 = vmatpush2.msra.mxu0 0.0
    %6464 = vmatprep.subr.mxu0 0.0
    %6465 = vmatpush2.msra.mxu0 0.0
    %6466 = vmatprep.subr.mxu0 0.0
    %6467 = vmatpush2.msra.mxu0 0.0
    %6468 = vmatprep.subr.mxu0 0.0
    %6469 = vmatpush2.msra.mxu0 0.0
    %6470 = vmatprep.subr.mxu0 0.0
    %6471 = vmatpush2.msra.mxu0 0.0
    %6472 = vmatprep.subr.mxu0 0.0
    %6473 = vmatpush2.msra.mxu0 0.0
    %6474 = vmatprep.subr.mxu0 0.0
    %6475 = vmatpush2.msra.mxu0 0.0
    %6476 = vmatprep.subr.mxu0 0.0
    %6477 = vmatpush2.msra.mxu0 0.0
    %6478 = vmatprep.subr.mxu0 0.0
    %6479 = vmatpush2.msra.mxu0 0.0
    %6480 = vmatprep.subr.mxu0 0.0
    %6481 = vmatpush2.msra.mxu0 0.0
    %6482 = vmatprep.mubr.f32.mxu0 0.0
    %6483 = vmatmul.mubr.f32.gmra.mxu0 %v6402
    %v6484 = vpop.f32.mrf.mxu0
    %v6485 = vadd.f32 0.0, %v6484
    %v6486 = vpop.f32.mrf.mxu0
    %6487 = vmatprep.mubr.f32.mxu0 0.0
    %6488 = vmatmul.mubr.f32.gmra.mxu0 %v6404
    %v6489 = vpop.f32.mrf.mxu0
    %v6490 = vadd.f32 0.0, %v6489
    %v6491 = vpop.f32.mrf.mxu0
    %6492 = vmatprep.mubr.f32.mxu0 0.0
    %6493 = vmatmul.mubr.f32.gmra.mxu0 %v6406
    %v6494 = vpop.f32.mrf.mxu0
    %v6495 = vadd.f32 0.0, %v6494
    %v6496 = vpop.f32.mrf.mxu0
    %6497 = vmatprep.mubr.f32.mxu0 0.0
    %6498 = vmatmul.mubr.f32.gmra.mxu0 %v6408
    %v6499 = vpop.f32.mrf.mxu0
    %v6500 = vadd.f32 0.0, %v6499
    %v6501 = vpop.f32.mrf.mxu0
    %6502 = vmatprep.mubr.f32.mxu0 0.0
    %6503 = vmatmul.mubr.f32.gmra.mxu0 %v6410
    %v6504 = vpop.f32.mrf.mxu0
    %v6505 = vadd.f32 0.0, %v6504
    %v6506 = vpop.f32.mrf.mxu0
    %6507 = vmatprep.mubr.f32.mxu0 0.0
    %6508 = vmatmul.mubr.f32.gmra.mxu0 %v6412
    %v6509 = vpop.f32.mrf.mxu0
    %v6510 = vadd.f32 0.0, %v6509
    %v6511 = vpop.f32.mrf.mxu0
    %6512 = vmatprep.mubr.f32.mxu0 0.0
    %6513 = vmatmul.mubr.f32.gmra.mxu0 %v6414
    %v6514 = vpop.f32.mrf.mxu0
    %v6515 = vadd.f32 0.0, %v6514
    %v6516 = vpop.f32.mrf.mxu0
    %6517 = vmatprep.mubr.f32.mxu0 0.0
    %6518 = vmatmul.mubr.f32.gmra.mxu0 %v6416
    %v6519 = vpop.f32.mrf.mxu0
    %v6520 = vadd.f32 0.0, %v6519
    %v6521 = vpop.f32.mrf.mxu0
    %6522 = vdwg.mxu0
    %v6523 = vadd.f32 %v6349, %v6485
    %v6524 = vadd.f32 %v6354, %v6490
    %v6525 = vadd.f32 %v6359, %v6495
    %v6526 = vadd.f32 %v6364, %v6500
    %v6527 = vadd.f32 %v6369, %v6505
    %v6528 = vadd.f32 %v6374, %v6510
    %v6529 = vadd.f32 %v6379, %v6515
    %v6530 = vadd.f32 %v6384, %v6520
    %v6532 = vrot.slane %v6109, 1
    %v6533 = vsel %vm2823, %v6143, %v6532
    %v6534 = vsel %vm703, %v6533, 0
    %v6536 = vsel %vm703, %v6532, 0
    %6538 = vmatprep.subr.mxu0 0.0
    %6539 = vmatpush1.msra.mxu0 0.0
    %6540 = vmatprep.subr.mxu0 0.0
    %6541 = vmatpush1.msra.mxu0 0.0
    %6542 = vmatprep.subr.mxu0 0.0
    %6543 = vmatpush1.msra.mxu0 0.0
    %6544 = vmatprep.subr.mxu0 0.0
    %6545 = vmatpush1.msra.mxu0 0.0
    %6546 = vmatprep.subr.mxu0 0.0
    %6547 = vmatpush1.msra.mxu0 0.0
    %6548 = vmatprep.subr.mxu0 0.0
    %6549 = vmatpush1.msra.mxu0 0.0
    %6550 = vmatprep.subr.mxu0 0.0
    %6551 = vmatpush1.msra.mxu0 0.0
    %6552 = vmatprep.subr.mxu0 0.0
    %6553 = vmatpush1.msra.mxu0 0.0
    %6554 = vmatprep.subr.mxu0 0.0
    %6555 = vmatpush1.msra.mxu0 0.0
    %6556 = vmatprep.subr.mxu0 0.0
    %6557 = vmatpush1.msra.mxu0 0.0
    %6558 = vmatprep.subr.mxu0 0.0
    %6559 = vmatpush1.msra.mxu0 0.0
    %6560 = vmatprep.subr.mxu0 0.0
    %6561 = vmatpush1.msra.mxu0 0.0
    %6562 = vmatprep.subr.mxu0 0.0
    %6563 = vmatpush1.msra.mxu0 0.0
    %6564 = vmatprep.subr.mxu0 0.0
    %6565 = vmatpush1.msra.mxu0 %v234
    %6566 = vmatprep.subr.mxu0 0.0
    %6567 = vmatpush1.msra.mxu0 %v233
    %6568 = vmatprep.subr.mxu0 0.0
    %6569 = vmatpush1.msra.mxu0 %v232
    %6570 = vmatprep.subr.mxu0 0.0
    %6571 = vmatpush2.msra.mxu0 0.0
    %6572 = vmatprep.subr.mxu0 0.0
    %6573 = vmatpush2.msra.mxu0 0.0
    %6574 = vmatprep.subr.mxu0 0.0
    %6575 = vmatpush2.msra.mxu0 0.0
    %6576 = vmatprep.subr.mxu0 0.0
    %6577 = vmatpush2.msra.mxu0 0.0
    %6578 = vmatprep.subr.mxu0 0.0
    %6579 = vmatpush2.msra.mxu0 0.0
    %6580 = vmatprep.subr.mxu0 0.0
    %6581 = vmatpush2.msra.mxu0 0.0
    %6582 = vmatprep.subr.mxu0 0.0
    %6583 = vmatpush2.msra.mxu0 0.0
    %6584 = vmatprep.subr.mxu0 0.0
    %6585 = vmatpush2.msra.mxu0 0.0
    %6586 = vmatprep.subr.mxu0 0.0
    %6587 = vmatpush2.msra.mxu0 0.0
    %6588 = vmatprep.subr.mxu0 0.0
    %6589 = vmatpush2.msra.mxu0 0.0
    %6590 = vmatprep.subr.mxu0 0.0
    %6591 = vmatpush2.msra.mxu0 0.0
    %6592 = vmatprep.subr.mxu0 0.0
    %6593 = vmatpush2.msra.mxu0 0.0
    %6594 = vmatprep.subr.mxu0 0.0
    %6595 = vmatpush2.msra.mxu0 0.0
    %6596 = vmatprep.subr.mxu0 0.0
    %6597 = vmatpush2.msra.mxu0 0.0
    %6598 = vmatprep.subr.mxu0 0.0
    %6599 = vmatpush2.msra.mxu0 0.0
    %6600 = vmatprep.subr.mxu0 0.0
    %6601 = vmatpush2.msra.mxu0 0.0
    %6602 = vmatprep.mubr.f32.mxu0 0.0
    %6603 = vmatmul.mubr.f32.gmra.mxu0 %v6147
    %v6604 = vpop.f32.mrf.mxu0
    %v6605 = vadd.f32 0.0, %v6604
    %v6606 = vpop.f32.mrf.mxu0
    %6607 = vmatprep.mubr.f32.mxu0 0.0
    %6608 = vmatmul.mubr.f32.gmra.mxu0 %v6149
    %v6609 = vpop.f32.mrf.mxu0
    %v6610 = vadd.f32 0.0, %v6609
    %v6611 = vpop.f32.mrf.mxu0
    %6612 = vmatprep.mubr.f32.mxu0 0.0
    %6613 = vmatmul.mubr.f32.gmra.mxu0 %v6151
    %v6614 = vpop.f32.mrf.mxu0
    %v6615 = vadd.f32 0.0, %v6614
    %v6616 = vpop.f32.mrf.mxu0
    %6617 = vmatprep.mubr.f32.mxu0 0.0
    %6618 = vmatmul.mubr.f32.gmra.mxu0 %v6153
    %v6619 = vpop.f32.mrf.mxu0
    %v6620 = vadd.f32 0.0, %v6619
    %v6621 = vpop.f32.mrf.mxu0
    %6622 = vmatprep.mubr.f32.mxu0 0.0
    %6623 = vmatmul.mubr.f32.gmra.mxu0 %v6155
    %v6624 = vpop.f32.mrf.mxu0
    %v6625 = vadd.f32 0.0, %v6624
    %v6626 = vpop.f32.mrf.mxu0
    %6627 = vmatprep.mubr.f32.mxu0 0.0
    %6628 = vmatmul.mubr.f32.gmra.mxu0 %v6157
    %v6629 = vpop.f32.mrf.mxu0
    %v6630 = vadd.f32 0.0, %v6629
    %v6631 = vpop.f32.mrf.mxu0
    %6632 = vmatprep.mubr.f32.mxu0 0.0
    %6633 = vmatmul.mubr.f32.gmra.mxu0 %v6534
    %v6634 = vpop.f32.mrf.mxu0
    %v6635 = vadd.f32 0.0, %v6634
    %v6636 = vpop.f32.mrf.mxu0
    %6637 = vmatprep.mubr.f32.mxu0 0.0
    %6638 = vmatmul.mubr.f32.gmra.mxu0 %v6536
    %v6639 = vpop.f32.mrf.mxu0
    %v6640 = vadd.f32 0.0, %v6639
    %v6641 = vpop.f32.mrf.mxu0
    %6642 = vdwg.mxu0
    %v6643 = vadd.f32 %v6523, %v6605
    %v6644 = vadd.f32 %v6524, %v6610
    %v6645 = vadd.f32 %v6525, %v6615
    %v6646 = vadd.f32 %v6526, %v6620
    %v6647 = vadd.f32 %v6527, %v6625
    %v6648 = vadd.f32 %v6528, %v6630
    %v6649 = vadd.f32 %v6529, %v6635
    %v6650 = vadd.f32 %v6530, %v6640
    %v6651 = vrot.slane %v6109, 2
    %v6652 = vsel %vm2847, %v6400, %v6651
    %v6653 = vsel %vm703, %v6652, 0
    %v6655 = vsel %vm703, %v6651, 0
    %6657 = vmatprep.subr.mxu0 0.0
    %6658 = vmatpush1.msra.mxu0 0.0
    %6659 = vmatprep.subr.mxu0 0.0
    %6660 = vmatpush1.msra.mxu0 0.0
    %6661 = vmatprep.subr.mxu0 0.0
    %6662 = vmatpush1.msra.mxu0 0.0
    %6663 = vmatprep.subr.mxu0 0.0
    %6664 = vmatpush1.msra.mxu0 0.0
    %6665 = vmatprep.subr.mxu0 0.0
    %6666 = vmatpush1.msra.mxu0 0.0
    %6667 = vmatprep.subr.mxu0 0.0
    %6668 = vmatpush1.msra.mxu0 0.0
    %6669 = vmatprep.subr.mxu0 0.0
    %6670 = vmatpush1.msra.mxu0 0.0
    %6671 = vmatprep.subr.mxu0 0.0
    %6672 = vmatpush1.msra.mxu0 0.0
    %6673 = vmatprep.subr.mxu0 0.0
    %6674 = vmatpush1.msra.mxu0 0.0
    %6675 = vmatprep.subr.mxu0 0.0
    %6676 = vmatpush1.msra.mxu0 0.0
    %6677 = vmatprep.subr.mxu0 0.0
    %6678 = vmatpush1.msra.mxu0 0.0
    %6679 = vmatprep.subr.mxu0 0.0
    %6680 = vmatpush1.msra.mxu0 0.0
    %6681 = vmatprep.subr.mxu0 0.0
    %6682 = vmatpush1.msra.mxu0 0.0
    %6683 = vmatprep.subr.mxu0 0.0
    %6684 = vmatpush1.msra.mxu0 %v237
    %6685 = vmatprep.subr.mxu0 0.0
    %6686 = vmatpush1.msra.mxu0 %v236
    %6687 = vmatprep.subr.mxu0 0.0
    %6688 = vmatpush1.msra.mxu0 %v235
    %6689 = vmatprep.subr.mxu0 0.0
    %6690 = vmatpush2.msra.mxu0 0.0
    %6691 = vmatprep.subr.mxu0 0.0
    %6692 = vmatpush2.msra.mxu0 0.0
    %6693 = vmatprep.subr.mxu0 0.0
    %6694 = vmatpush2.msra.mxu0 0.0
    %6695 = vmatprep.subr.mxu0 0.0
    %6696 = vmatpush2.msra.mxu0 0.0
    %6697 = vmatprep.subr.mxu0 0.0
    %6698 = vmatpush2.msra.mxu0 0.0
    %6699 = vmatprep.subr.mxu0 0.0
    %6700 = vmatpush2.msra.mxu0 0.0
    %6701 = vmatprep.subr.mxu0 0.0
    %6702 = vmatpush2.msra.mxu0 0.0
    %6703 = vmatprep.subr.mxu0 0.0
    %6704 = vmatpush2.msra.mxu0 0.0
    %6705 = vmatprep.subr.mxu0 0.0
    %6706 = vmatpush2.msra.mxu0 0.0
    %6707 = vmatprep.subr.mxu0 0.0
    %6708 = vmatpush2.msra.mxu0 0.0
    %6709 = vmatprep.subr.mxu0 0.0
    %6710 = vmatpush2.msra.mxu0 0.0
    %6711 = vmatprep.subr.mxu0 0.0
    %6712 = vmatpush2.msra.mxu0 0.0
    %6713 = vmatprep.subr.mxu0 0.0
    %6714 = vmatpush2.msra.mxu0 0.0
    %6715 = vmatprep.subr.mxu0 0.0
    %6716 = vmatpush2.msra.mxu0 0.0
    %6717 = vmatprep.subr.mxu0 0.0
    %6718 = vmatpush2.msra.mxu0 0.0
    %6719 = vmatprep.subr.mxu0 0.0
    %6720 = vmatpush2.msra.mxu0 0.0
    %6721 = vmatprep.mubr.f32.mxu0 0.0
    %6722 = vmatmul.mubr.f32.gmra.mxu0 %v6404
    %v6723 = vpop.f32.mrf.mxu0
    %v6724 = vadd.f32 0.0, %v6723
    %v6725 = vpop.f32.mrf.mxu0
    %6726 = vmatprep.mubr.f32.mxu0 0.0
    %6727 = vmatmul.mubr.f32.gmra.mxu0 %v6406
    %v6728 = vpop.f32.mrf.mxu0
    %v6729 = vadd.f32 0.0, %v6728
    %v6730 = vpop.f32.mrf.mxu0
    %6731 = vmatprep.mubr.f32.mxu0 0.0
    %6732 = vmatmul.mubr.f32.gmra.mxu0 %v6408
    %v6733 = vpop.f32.mrf.mxu0
    %v6734 = vadd.f32 0.0, %v6733
    %v6735 = vpop.f32.mrf.mxu0
    %6736 = vmatprep.mubr.f32.mxu0 0.0
    %6737 = vmatmul.mubr.f32.gmra.mxu0 %v6410
    %v6738 = vpop.f32.mrf.mxu0
    %v6739 = vadd.f32 0.0, %v6738
    %v6740 = vpop.f32.mrf.mxu0
    %6741 = vmatprep.mubr.f32.mxu0 0.0
    %6742 = vmatmul.mubr.f32.gmra.mxu0 %v6412
    %v6743 = vpop.f32.mrf.mxu0
    %v6744 = vadd.f32 0.0, %v6743
    %v6745 = vpop.f32.mrf.mxu0
    %6746 = vmatprep.mubr.f32.mxu0 0.0
    %6747 = vmatmul.mubr.f32.gmra.mxu0 %v6414
    %v6748 = vpop.f32.mrf.mxu0
    %v6749 = vadd.f32 0.0, %v6748
    %v6750 = vpop.f32.mrf.mxu0
    %6751 = vmatprep.mubr.f32.mxu0 0.0
    %6752 = vmatmul.mubr.f32.gmra.mxu0 %v6653
    %v6753 = vpop.f32.mrf.mxu0
    %v6754 = vadd.f32 0.0, %v6753
    %v6755 = vpop.f32.mrf.mxu0
    %6756 = vmatprep.mubr.f32.mxu0 0.0
    %6757 = vmatmul.mubr.f32.gmra.mxu0 %v6655
    %v6758 = vpop.f32.mrf.mxu0
    %v6759 = vadd.f32 0.0, %v6758
    %v6760 = vpop.f32.mrf.mxu0
    %6761 = vdwg.mxu0
    %v6762 = vadd.f32 %v6643, %v6724
    %v6763 = vadd.f32 %v6644, %v6729
    %v6764 = vadd.f32 %v6645, %v6734
    %v6765 = vadd.f32 %v6646, %v6739
    %v6766 = vadd.f32 %v6647, %v6744
    %v6767 = vadd.f32 %v6648, %v6749
    %v6768 = vadd.f32 %v6649, %v6754
    %v6769 = vadd.f32 %v6650, %v6759
    %v6770 = vrot.slane %v6074, 3
    %v6771 = vrot.slane %v6079, 3
    %v6772 = vsel %vm2880, %v6770, %v6771
    %v6773 = vrot.slane %v6084, 3
    %v6774 = vsel %vm2880, %v6771, %v6773
    %v6775 = vrot.slane %v6089, 3
    %v6776 = vsel %vm2880, %v6773, %v6775
    %v6777 = vrot.slane %v6094, 3
    %v6778 = vsel %vm2880, %v6775, %v6777
    %v6779 = vrot.slane %v6099, 3
    %v6780 = vsel %vm2880, %v6777, %v6779
    %v6781 = vrot.slane %v6104, 3
    %v6782 = vsel %vm2880, %v6779, %v6781
    %v6783 = vrot.slane %v6109, 3
    %v6784 = vsel %vm2880, %v6781, %v6783
    %v6785 = vsel %vm703, %v6772, 0
    %v6787 = vsel %vm703, %v6774, 0
    %v6789 = vsel %vm703, %v6776, 0
    %v6791 = vsel %vm703, %v6778, 0
    %v6793 = vsel %vm703, %v6780, 0
    %v6795 = vsel %vm703, %v6782, 0
    %v6797 = vsel %vm703, %v6784, 0
    %v6799 = vsel %vm703, %v6783, 0
    %6801 = vmatprep.subr.mxu0 0.0
    %6802 = vmatpush1.msra.mxu0 0.0
    %6803 = vmatprep.subr.mxu0 0.0
    %6804 = vmatpush1.msra.mxu0 0.0
    %6805 = vmatprep.subr.mxu0 0.0
    %6806 = vmatpush1.msra.mxu0 0.0
    %6807 = vmatprep.subr.mxu0 0.0
    %6808 = vmatpush1.msra.mxu0 0.0
    %6809 = vmatprep.subr.mxu0 0.0
    %6810 = vmatpush1.msra.mxu0 0.0
    %6811 = vmatprep.subr.mxu0 0.0
    %6812 = vmatpush1.msra.mxu0 0.0
    %6813 = vmatprep.subr.mxu0 0.0
    %6814 = vmatpush1.msra.mxu0 0.0
    %6815 = vmatprep.subr.mxu0 0.0
    %6816 = vmatpush1.msra.mxu0 0.0
    %6817 = vmatprep.subr.mxu0 0.0
    %6818 = vmatpush1.msra.mxu0 0.0
    %6819 = vmatprep.subr.mxu0 0.0
    %6820 = vmatpush1.msra.mxu0 0.0
    %6821 = vmatprep.subr.mxu0 0.0
    %6822 = vmatpush1.msra.mxu0 0.0
    %6823 = vmatprep.subr.mxu0 0.0
    %6824 = vmatpush1.msra.mxu0 0.0
    %6825 = vmatprep.subr.mxu0 0.0
    %6826 = vmatpush1.msra.mxu0 0.0
    %6827 = vmatprep.subr.mxu0 0.0
    %6828 = vmatpush1.msra.mxu0 %v240
    %6829 = vmatprep.subr.mxu0 0.0
    %6830 = vmatpush1.msra.mxu0 %v239
    %6831 = vmatprep.subr.mxu0 0.0
    %6832 = vmatpush1.msra.mxu0 %v238
    %6833 = vmatprep.subr.mxu0 0.0
    %6834 = vmatpush2.msra.mxu0 0.0
    %6835 = vmatprep.subr.mxu0 0.0
    %6836 = vmatpush2.msra.mxu0 0.0
    %6837 = vmatprep.subr.mxu0 0.0
    %6838 = vmatpush2.msra.mxu0 0.0
    %6839 = vmatprep.subr.mxu0 0.0
    %6840 = vmatpush2.msra.mxu0 0.0
    %6841 = vmatprep.subr.mxu0 0.0
    %6842 = vmatpush2.msra.mxu0 0.0
    %6843 = vmatprep.subr.mxu0 0.0
    %6844 = vmatpush2.msra.mxu0 0.0
    %6845 = vmatprep.subr.mxu0 0.0
    %6846 = vmatpush2.msra.mxu0 0.0
    %6847 = vmatprep.subr.mxu0 0.0
    %6848 = vmatpush2.msra.mxu0 0.0
    %6849 = vmatprep.subr.mxu0 0.0
    %6850 = vmatpush2.msra.mxu0 0.0
    %6851 = vmatprep.subr.mxu0 0.0
    %6852 = vmatpush2.msra.mxu0 0.0
    %6853 = vmatprep.subr.mxu0 0.0
    %6854 = vmatpush2.msra.mxu0 0.0
    %6855 = vmatprep.subr.mxu0 0.0
    %6856 = vmatpush2.msra.mxu0 0.0
    %6857 = vmatprep.subr.mxu0 0.0
    %6858 = vmatpush2.msra.mxu0 0.0
    %6859 = vmatprep.subr.mxu0 0.0
    %6860 = vmatpush2.msra.mxu0 0.0
    %6861 = vmatprep.subr.mxu0 0.0
    %6862 = vmatpush2.msra.mxu0 0.0
    %6863 = vmatprep.subr.mxu0 0.0
    %6864 = vmatpush2.msra.mxu0 0.0
    %6865 = vmatprep.mubr.f32.mxu0 0.0
    %6866 = vmatmul.mubr.f32.gmra.mxu0 %v6785
    %v6867 = vpop.f32.mrf.mxu0
    %v6868 = vadd.f32 0.0, %v6867
    %v6869 = vpop.f32.mrf.mxu0
    %6870 = vmatprep.mubr.f32.mxu0 0.0
    %6871 = vmatmul.mubr.f32.gmra.mxu0 %v6787
    %v6872 = vpop.f32.mrf.mxu0
    %v6873 = vadd.f32 0.0, %v6872
    %v6874 = vpop.f32.mrf.mxu0
    %6875 = vmatprep.mubr.f32.mxu0 0.0
    %6876 = vmatmul.mubr.f32.gmra.mxu0 %v6789
    %v6877 = vpop.f32.mrf.mxu0
    %v6878 = vadd.f32 0.0, %v6877
    %v6879 = vpop.f32.mrf.mxu0
    %6880 = vmatprep.mubr.f32.mxu0 0.0
    %6881 = vmatmul.mubr.f32.gmra.mxu0 %v6791
    %v6882 = vpop.f32.mrf.mxu0
    %v6883 = vadd.f32 0.0, %v6882
    %v6884 = vpop.f32.mrf.mxu0
    %6885 = vmatprep.mubr.f32.mxu0 0.0
    %6886 = vmatmul.mubr.f32.gmra.mxu0 %v6793
    %v6887 = vpop.f32.mrf.mxu0
    %v6888 = vadd.f32 0.0, %v6887
    %v6889 = vpop.f32.mrf.mxu0
    %6890 = vmatprep.mubr.f32.mxu0 0.0
    %6891 = vmatmul.mubr.f32.gmra.mxu0 %v6795
    %v6892 = vpop.f32.mrf.mxu0
    %v6893 = vadd.f32 0.0, %v6892
    %v6894 = vpop.f32.mrf.mxu0
    %6895 = vmatprep.mubr.f32.mxu0 0.0
    %6896 = vmatmul.mubr.f32.gmra.mxu0 %v6797
    %v6897 = vpop.f32.mrf.mxu0
    %v6898 = vadd.f32 0.0, %v6897
    %v6899 = vpop.f32.mrf.mxu0
    %6900 = vmatprep.mubr.f32.mxu0 0.0
    %6901 = vmatmul.mubr.f32.gmra.mxu0 %v6799
    %v6902 = vpop.f32.mrf.mxu0
    %v6903 = vadd.f32 0.0, %v6902
    %v6904 = vpop.f32.mrf.mxu0
    %6905 = vdwg.mxu0
    %v6906 = vadd.f32 %v6762, %v6868
    %v6907 = vadd.f32 %v6763, %v6873
    %v6908 = vadd.f32 %v6764, %v6878
    %v6909 = vadd.f32 %v6765, %v6883
    %v6910 = vadd.f32 %v6766, %v6888
    %v6911 = vadd.f32 %v6767, %v6893
    %v6912 = vadd.f32 %v6768, %v6898
    %v6913 = vadd.f32 %v6769, %v6903
    %v6915 = vrot.slane %v6114, 2
    %v6916 = vsel %vm2847, %v6651, %v6915
    %v6917 = vsel %vm703, %v6916, 0
    %v6919 = vsel %vm703, %v6915, 0
    %6921 = vmatprep.subr.mxu0 0.0
    %6922 = vmatpush1.msra.mxu0 0.0
    %6923 = vmatprep.subr.mxu0 0.0
    %6924 = vmatpush1.msra.mxu0 0.0
    %6925 = vmatprep.subr.mxu0 0.0
    %6926 = vmatpush1.msra.mxu0 0.0
    %6927 = vmatprep.subr.mxu0 0.0
    %6928 = vmatpush1.msra.mxu0 0.0
    %6929 = vmatprep.subr.mxu0 0.0
    %6930 = vmatpush1.msra.mxu0 0.0
    %6931 = vmatprep.subr.mxu0 0.0
    %6932 = vmatpush1.msra.mxu0 0.0
    %6933 = vmatprep.subr.mxu0 0.0
    %6934 = vmatpush1.msra.mxu0 0.0
    %6935 = vmatprep.subr.mxu0 0.0
    %6936 = vmatpush1.msra.mxu0 0.0
    %6937 = vmatprep.subr.mxu0 0.0
    %6938 = vmatpush1.msra.mxu0 0.0
    %6939 = vmatprep.subr.mxu0 0.0
    %6940 = vmatpush1.msra.mxu0 0.0
    %6941 = vmatprep.subr.mxu0 0.0
    %6942 = vmatpush1.msra.mxu0 0.0
    %6943 = vmatprep.subr.mxu0 0.0
    %6944 = vmatpush1.msra.mxu0 0.0
    %6945 = vmatprep.subr.mxu0 0.0
    %6946 = vmatpush1.msra.mxu0 0.0
    %6947 = vmatprep.subr.mxu0 0.0
    %6948 = vmatpush1.msra.mxu0 %v243
    %6949 = vmatprep.subr.mxu0 0.0
    %6950 = vmatpush1.msra.mxu0 %v242
    %6951 = vmatprep.subr.mxu0 0.0
    %6952 = vmatpush1.msra.mxu0 %v241
    %6953 = vmatprep.subr.mxu0 0.0
    %6954 = vmatpush2.msra.mxu0 0.0
    %6955 = vmatprep.subr.mxu0 0.0
    %6956 = vmatpush2.msra.mxu0 0.0
    %6957 = vmatprep.subr.mxu0 0.0
    %6958 = vmatpush2.msra.mxu0 0.0
    %6959 = vmatprep.subr.mxu0 0.0
    %6960 = vmatpush2.msra.mxu0 0.0
    %6961 = vmatprep.subr.mxu0 0.0
    %6962 = vmatpush2.msra.mxu0 0.0
    %6963 = vmatprep.subr.mxu0 0.0
    %6964 = vmatpush2.msra.mxu0 0.0
    %6965 = vmatprep.subr.mxu0 0.0
    %6966 = vmatpush2.msra.mxu0 0.0
    %6967 = vmatprep.subr.mxu0 0.0
    %6968 = vmatpush2.msra.mxu0 0.0
    %6969 = vmatprep.subr.mxu0 0.0
    %6970 = vmatpush2.msra.mxu0 0.0
    %6971 = vmatprep.subr.mxu0 0.0
    %6972 = vmatpush2.msra.mxu0 0.0
    %6973 = vmatprep.subr.mxu0 0.0
    %6974 = vmatpush2.msra.mxu0 0.0
    %6975 = vmatprep.subr.mxu0 0.0
    %6976 = vmatpush2.msra.mxu0 0.0
    %6977 = vmatprep.subr.mxu0 0.0
    %6978 = vmatpush2.msra.mxu0 0.0
    %6979 = vmatprep.subr.mxu0 0.0
    %6980 = vmatpush2.msra.mxu0 0.0
    %6981 = vmatprep.subr.mxu0 0.0
    %6982 = vmatpush2.msra.mxu0 0.0
    %6983 = vmatprep.subr.mxu0 0.0
    %6984 = vmatpush2.msra.mxu0 0.0
    %6985 = vmatprep.mubr.f32.mxu0 0.0
    %6986 = vmatmul.mubr.f32.gmra.mxu0 %v6406
    %v6987 = vpop.f32.mrf.mxu0
    %v6988 = vadd.f32 0.0, %v6987
    %v6989 = vpop.f32.mrf.mxu0
    %6990 = vmatprep.mubr.f32.mxu0 0.0
    %6991 = vmatmul.mubr.f32.gmra.mxu0 %v6408
    %v6992 = vpop.f32.mrf.mxu0
    %v6993 = vadd.f32 0.0, %v6992
    %v6994 = vpop.f32.mrf.mxu0
    %6995 = vmatprep.mubr.f32.mxu0 0.0
    %6996 = vmatmul.mubr.f32.gmra.mxu0 %v6410
    %v6997 = vpop.f32.mrf.mxu0
    %v6998 = vadd.f32 0.0, %v6997
    %v6999 = vpop.f32.mrf.mxu0
    %7000 = vmatprep.mubr.f32.mxu0 0.0
    %7001 = vmatmul.mubr.f32.gmra.mxu0 %v6412
    %v7002 = vpop.f32.mrf.mxu0
    %v7003 = vadd.f32 0.0, %v7002
    %v7004 = vpop.f32.mrf.mxu0
    %7005 = vmatprep.mubr.f32.mxu0 0.0
    %7006 = vmatmul.mubr.f32.gmra.mxu0 %v6414
    %v7007 = vpop.f32.mrf.mxu0
    %v7008 = vadd.f32 0.0, %v7007
    %v7009 = vpop.f32.mrf.mxu0
    %7010 = vmatprep.mubr.f32.mxu0 0.0
    %7011 = vmatmul.mubr.f32.gmra.mxu0 %v6653
    %v7012 = vpop.f32.mrf.mxu0
    %v7013 = vadd.f32 0.0, %v7012
    %v7014 = vpop.f32.mrf.mxu0
    %7015 = vmatprep.mubr.f32.mxu0 0.0
    %7016 = vmatmul.mubr.f32.gmra.mxu0 %v6917
    %v7017 = vpop.f32.mrf.mxu0
    %v7018 = vadd.f32 0.0, %v7017
    %v7019 = vpop.f32.mrf.mxu0
    %7020 = vmatprep.mubr.f32.mxu0 0.0
    %7021 = vmatmul.mubr.f32.gmra.mxu0 %v6919
    %v7022 = vpop.f32.mrf.mxu0
    %v7023 = vadd.f32 0.0, %v7022
    %v7024 = vpop.f32.mrf.mxu0
    %7025 = vdwg.mxu0
    %v7026 = vadd.f32 %v6906, %v6988
    %v7027 = vadd.f32 %v6907, %v6993
    %v7028 = vadd.f32 %v6908, %v6998
    %v7029 = vadd.f32 %v6909, %v7003
    %v7030 = vadd.f32 %v6910, %v7008
    %v7031 = vadd.f32 %v6911, %v7013
    %v7032 = vadd.f32 %v6912, %v7018
    %v7033 = vadd.f32 %v6913, %v7023
    %v7034 = vrot.slane %v6114, 3
    %v7035 = vsel %vm2880, %v6783, %v7034
    %v7036 = vsel %vm703, %v7035, 0
    %v7038 = vsel %vm703, %v7034, 0
    %7040 = vmatprep.subr.mxu0 0.0
    %7041 = vmatpush1.msra.mxu0 0.0
    %7042 = vmatprep.subr.mxu0 0.0
    %7043 = vmatpush1.msra.mxu0 0.0
    %7044 = vmatprep.subr.mxu0 0.0
    %7045 = vmatpush1.msra.mxu0 0.0
    %7046 = vmatprep.subr.mxu0 0.0
    %7047 = vmatpush1.msra.mxu0 0.0
    %7048 = vmatprep.subr.mxu0 0.0
    %7049 = vmatpush1.msra.mxu0 0.0
    %7050 = vmatprep.subr.mxu0 0.0
    %7051 = vmatpush1.msra.mxu0 0.0
    %7052 = vmatprep.subr.mxu0 0.0
    %7053 = vmatpush1.msra.mxu0 0.0
    %7054 = vmatprep.subr.mxu0 0.0
    %7055 = vmatpush1.msra.mxu0 0.0
    %7056 = vmatprep.subr.mxu0 0.0
    %7057 = vmatpush1.msra.mxu0 0.0
    %7058 = vmatprep.subr.mxu0 0.0
    %7059 = vmatpush1.msra.mxu0 0.0
    %7060 = vmatprep.subr.mxu0 0.0
    %7061 = vmatpush1.msra.mxu0 0.0
    %7062 = vmatprep.subr.mxu0 0.0
    %7063 = vmatpush1.msra.mxu0 0.0
    %7064 = vmatprep.subr.mxu0 0.0
    %7065 = vmatpush1.msra.mxu0 0.0
    %7066 = vmatprep.subr.mxu0 0.0
    %7067 = vmatpush1.msra.mxu0 %v246
    %7068 = vmatprep.subr.mxu0 0.0
    %7069 = vmatpush1.msra.mxu0 %v245
    %7070 = vmatprep.subr.mxu0 0.0
    %7071 = vmatpush1.msra.mxu0 %v244
    %7072 = vmatprep.subr.mxu0 0.0
    %7073 = vmatpush2.msra.mxu0 0.0
    %7074 = vmatprep.subr.mxu0 0.0
    %7075 = vmatpush2.msra.mxu0 0.0
    %7076 = vmatprep.subr.mxu0 0.0
    %7077 = vmatpush2.msra.mxu0 0.0
    %7078 = vmatprep.subr.mxu0 0.0
    %7079 = vmatpush2.msra.mxu0 0.0
    %7080 = vmatprep.subr.mxu0 0.0
    %7081 = vmatpush2.msra.mxu0 0.0
    %7082 = vmatprep.subr.mxu0 0.0
    %7083 = vmatpush2.msra.mxu0 0.0
    %7084 = vmatprep.subr.mxu0 0.0
    %7085 = vmatpush2.msra.mxu0 0.0
    %7086 = vmatprep.subr.mxu0 0.0
    %7087 = vmatpush2.msra.mxu0 0.0
    %7088 = vmatprep.subr.mxu0 0.0
    %7089 = vmatpush2.msra.mxu0 0.0
    %7090 = vmatprep.subr.mxu0 0.0
    %7091 = vmatpush2.msra.mxu0 0.0
    %7092 = vmatprep.subr.mxu0 0.0
    %7093 = vmatpush2.msra.mxu0 0.0
    %7094 = vmatprep.subr.mxu0 0.0
    %7095 = vmatpush2.msra.mxu0 0.0
    %7096 = vmatprep.subr.mxu0 0.0
    %7097 = vmatpush2.msra.mxu0 0.0
    %7098 = vmatprep.subr.mxu0 0.0
    %7099 = vmatpush2.msra.mxu0 0.0
    %7100 = vmatprep.subr.mxu0 0.0
    %7101 = vmatpush2.msra.mxu0 0.0
    %7102 = vmatprep.subr.mxu0 0.0
    %7103 = vmatpush2.msra.mxu0 0.0
    %7104 = vmatprep.mubr.f32.mxu0 0.0
    %7105 = vmatmul.mubr.f32.gmra.mxu0 %v6787
    %v7106 = vpop.f32.mrf.mxu0
    %v7107 = vadd.f32 0.0, %v7106
    %v7108 = vpop.f32.mrf.mxu0
    %7109 = vmatprep.mubr.f32.mxu0 0.0
    %7110 = vmatmul.mubr.f32.gmra.mxu0 %v6789
    %v7111 = vpop.f32.mrf.mxu0
    %v7112 = vadd.f32 0.0, %v7111
    %v7113 = vpop.f32.mrf.mxu0
    %7114 = vmatprep.mubr.f32.mxu0 0.0
    %7115 = vmatmul.mubr.f32.gmra.mxu0 %v6791
    %v7116 = vpop.f32.mrf.mxu0
    %v7117 = vadd.f32 0.0, %v7116
    %v7118 = vpop.f32.mrf.mxu0
    %7119 = vmatprep.mubr.f32.mxu0 0.0
    %7120 = vmatmul.mubr.f32.gmra.mxu0 %v6793
    %v7121 = vpop.f32.mrf.mxu0
    %v7122 = vadd.f32 0.0, %v7121
    %v7123 = vpop.f32.mrf.mxu0
    %7124 = vmatprep.mubr.f32.mxu0 0.0
    %7125 = vmatmul.mubr.f32.gmra.mxu0 %v6795
    %v7126 = vpop.f32.mrf.mxu0
    %v7127 = vadd.f32 0.0, %v7126
    %v7128 = vpop.f32.mrf.mxu0
    %7129 = vmatprep.mubr.f32.mxu0 0.0
    %7130 = vmatmul.mubr.f32.gmra.mxu0 %v6797
    %v7131 = vpop.f32.mrf.mxu0
    %v7132 = vadd.f32 0.0, %v7131
    %v7133 = vpop.f32.mrf.mxu0
    %7134 = vmatprep.mubr.f32.mxu0 0.0
    %7135 = vmatmul.mubr.f32.gmra.mxu0 %v7036
    %v7136 = vpop.f32.mrf.mxu0
    %v7137 = vadd.f32 0.0, %v7136
    %v7138 = vpop.f32.mrf.mxu0
    %7139 = vmatprep.mubr.f32.mxu0 0.0
    %7140 = vmatmul.mubr.f32.gmra.mxu0 %v7038
    %v7141 = vpop.f32.mrf.mxu0
    %v7142 = vadd.f32 0.0, %v7141
    %v7143 = vpop.f32.mrf.mxu0
    %7144 = vdwg.mxu0
    %v7145 = vadd.f32 %v7026, %v7107
    %v7146 = vadd.f32 %v7027, %v7112
    %v7147 = vadd.f32 %v7028, %v7117
    %v7148 = vadd.f32 %v7029, %v7122
    %v7149 = vadd.f32 %v7030, %v7127
    %v7150 = vadd.f32 %v7031, %v7132
    %v7151 = vadd.f32 %v7032, %v7137
    %v7152 = vadd.f32 %v7033, %v7142
    %v7154 = vrot.slane %v6079, 4
    %v7155 = vrot.slane %v6084, 4
    %v7156 = vsel %vm2914, %v7154, %v7155
    %v7157 = vrot.slane %v6089, 4
    %v7158 = vsel %vm2914, %v7155, %v7157
    %v7159 = vrot.slane %v6094, 4
    %v7160 = vsel %vm2914, %v7157, %v7159
    %v7161 = vrot.slane %v6099, 4
    %v7162 = vsel %vm2914, %v7159, %v7161
    %v7163 = vrot.slane %v6104, 4
    %v7164 = vsel %vm2914, %v7161, %v7163
    %v7165 = vrot.slane %v6109, 4
    %v7166 = vsel %vm2914, %v7163, %v7165
    %v7167 = vrot.slane %v6114, 4
    %v7168 = vsel %vm2914, %v7165, %v7167
    %v7169 = vrot.slane %v6119, 4
    %v7170 = vsel %vm2914, %v7167, %v7169
    %v7171 = vsel %vm703, %v7156, 0
    %v7173 = vsel %vm703, %v7158, 0
    %v7175 = vsel %vm703, %v7160, 0
    %v7177 = vsel %vm703, %v7162, 0
    %v7179 = vsel %vm703, %v7164, 0
    %v7181 = vsel %vm703, %v7166, 0
    %v7183 = vsel %vm703, %v7168, 0
    %v7185 = vsel %vm703, %v7170, 0
    %7187 = vmatprep.subr.mxu0 0.0
    %7188 = vmatpush1.msra.mxu0 0.0
    %7189 = vmatprep.subr.mxu0 0.0
    %7190 = vmatpush1.msra.mxu0 0.0
    %7191 = vmatprep.subr.mxu0 0.0
    %7192 = vmatpush1.msra.mxu0 0.0
    %7193 = vmatprep.subr.mxu0 0.0
    %7194 = vmatpush1.msra.mxu0 0.0
    %7195 = vmatprep.subr.mxu0 0.0
    %7196 = vmatpush1.msra.mxu0 0.0
    %7197 = vmatprep.subr.mxu0 0.0
    %7198 = vmatpush1.msra.mxu0 0.0
    %7199 = vmatprep.subr.mxu0 0.0
    %7200 = vmatpush1.msra.mxu0 0.0
    %7201 = vmatprep.subr.mxu0 0.0
    %7202 = vmatpush1.msra.mxu0 0.0
    %7203 = vmatprep.subr.mxu0 0.0
    %7204 = vmatpush1.msra.mxu0 0.0
    %7205 = vmatprep.subr.mxu0 0.0
    %7206 = vmatpush1.msra.mxu0 0.0
    %7207 = vmatprep.subr.mxu0 0.0
    %7208 = vmatpush1.msra.mxu0 0.0
    %7209 = vmatprep.subr.mxu0 0.0
    %7210 = vmatpush1.msra.mxu0 0.0
    %7211 = vmatprep.subr.mxu0 0.0
    %7212 = vmatpush1.msra.mxu0 0.0
    %7213 = vmatprep.subr.mxu0 0.0
    %7214 = vmatpush1.msra.mxu0 %v249
    %7215 = vmatprep.subr.mxu0 0.0
    %7216 = vmatpush1.msra.mxu0 %v248
    %7217 = vmatprep.subr.mxu0 0.0
    %7218 = vmatpush1.msra.mxu0 %v247
    %7219 = vmatprep.subr.mxu0 0.0
    %7220 = vmatpush2.msra.mxu0 0.0
    %7221 = vmatprep.subr.mxu0 0.0
    %7222 = vmatpush2.msra.mxu0 0.0
    %7223 = vmatprep.subr.mxu0 0.0
    %7224 = vmatpush2.msra.mxu0 0.0
    %7225 = vmatprep.subr.mxu0 0.0
    %7226 = vmatpush2.msra.mxu0 0.0
    %7227 = vmatprep.subr.mxu0 0.0
    %7228 = vmatpush2.msra.mxu0 0.0
    %7229 = vmatprep.subr.mxu0 0.0
    %7230 = vmatpush2.msra.mxu0 0.0
    %7231 = vmatprep.subr.mxu0 0.0
    %7232 = vmatpush2.msra.mxu0 0.0
    %7233 = vmatprep.subr.mxu0 0.0
    %7234 = vmatpush2.msra.mxu0 0.0
    %7235 = vmatprep.subr.mxu0 0.0
    %7236 = vmatpush2.msra.mxu0 0.0
    %7237 = vmatprep.subr.mxu0 0.0
    %7238 = vmatpush2.msra.mxu0 0.0
    %7239 = vmatprep.subr.mxu0 0.0
    %7240 = vmatpush2.msra.mxu0 0.0
    %7241 = vmatprep.subr.mxu0 0.0
    %7242 = vmatpush2.msra.mxu0 0.0
    %7243 = vmatprep.subr.mxu0 0.0
    %7244 = vmatpush2.msra.mxu0 0.0
    %7245 = vmatprep.subr.mxu0 0.0
    %7246 = vmatpush2.msra.mxu0 0.0
    %7247 = vmatprep.subr.mxu0 0.0
    %7248 = vmatpush2.msra.mxu0 0.0
    %7249 = vmatprep.subr.mxu0 0.0
    %7250 = vmatpush2.msra.mxu0 0.0
    %7251 = vmatprep.mubr.f32.mxu0 0.0
    %7252 = vmatmul.mubr.f32.gmra.mxu0 %v7171
    %v7253 = vpop.f32.mrf.mxu0
    %v7254 = vadd.f32 0.0, %v7253
    %v7255 = vpop.f32.mrf.mxu0
    %7256 = vmatprep.mubr.f32.mxu0 0.0
    %7257 = vmatmul.mubr.f32.gmra.mxu0 %v7173
    %v7258 = vpop.f32.mrf.mxu0
    %v7259 = vadd.f32 0.0, %v7258
    %v7260 = vpop.f32.mrf.mxu0
    %7261 = vmatprep.mubr.f32.mxu0 0.0
    %7262 = vmatmul.mubr.f32.gmra.mxu0 %v7175
    %v7263 = vpop.f32.mrf.mxu0
    %v7264 = vadd.f32 0.0, %v7263
    %v7265 = vpop.f32.mrf.mxu0
    %7266 = vmatprep.mubr.f32.mxu0 0.0
    %7267 = vmatmul.mubr.f32.gmra.mxu0 %v7177
    %v7268 = vpop.f32.mrf.mxu0
    %v7269 = vadd.f32 0.0, %v7268
    %v7270 = vpop.f32.mrf.mxu0
    %7271 = vmatprep.mubr.f32.mxu0 0.0
    %7272 = vmatmul.mubr.f32.gmra.mxu0 %v7179
    %v7273 = vpop.f32.mrf.mxu0
    %v7274 = vadd.f32 0.0, %v7273
    %v7275 = vpop.f32.mrf.mxu0
    %7276 = vmatprep.mubr.f32.mxu0 0.0
    %7277 = vmatmul.mubr.f32.gmra.mxu0 %v7181
    %v7278 = vpop.f32.mrf.mxu0
    %v7279 = vadd.f32 0.0, %v7278
    %v7280 = vpop.f32.mrf.mxu0
    %7281 = vmatprep.mubr.f32.mxu0 0.0
    %7282 = vmatmul.mubr.f32.gmra.mxu0 %v7183
    %v7283 = vpop.f32.mrf.mxu0
    %v7284 = vadd.f32 0.0, %v7283
    %v7285 = vpop.f32.mrf.mxu0
    %7286 = vmatprep.mubr.f32.mxu0 0.0
    %7287 = vmatmul.mubr.f32.gmra.mxu0 %v7185
    %v7288 = vpop.f32.mrf.mxu0
    %v7289 = vadd.f32 0.0, %v7288
    %v7290 = vpop.f32.mrf.mxu0
    %7291 = vdwg.mxu0
    %v7292 = vadd.f32 %v7145, %v7254
    %v7293 = vadd.f32 %v7146, %v7259
    %v7294 = vadd.f32 %v7147, %v7264
    %v7295 = vadd.f32 %v7148, %v7269
    %v7296 = vadd.f32 %v7149, %v7274
    %v7297 = vadd.f32 %v7150, %v7279
    %v7298 = vadd.f32 %v7151, %v7284
    %v7299 = vadd.f32 %v7152, %v7289
    %v7300 = vadd.f32 %v7292, %v5991
    %v7301 = vadd.f32 %v7293, %v5991
    %v7302 = vadd.f32 %v7294, %v5991
    %v7303 = vadd.f32 %v7295, %v5991
    %v7304 = vadd.f32 %v7296, %v5991
    %v7305 = vadd.f32 %v7297, %v5991
    %v7306 = vadd.f32 %v7298, %v5991
    %v7307 = vadd.f32 %v7299, %v5991
    %v7308 = vmul.f32 %v5992, %v2807
    %v7309 = vmul.f32 %v5993, %v2808
    %v7310 = vmul.f32 %v5994, %v2809
    %v7311 = vmul.f32 %v5995, %v2810
    %v7312 = vmul.f32 %v5996, %v2811
    %v7313 = vmul.f32 %v5997, %v2812
    %v7314 = vmul.f32 %v5998, %v2813
    %v7315 = vmul.f32 %v5999, %v2814
    %v7316 = vsel %vm703, %v7308, 0.0
    %v7317 = vsel %vm703, %v7309, 0.0
    %v7318 = vadd.f32 %v7316, %v7317
    %v7319 = vsel %vm703, %v7310, 0.0
    %v7320 = vadd.f32 %v7318, %v7319
    %v7321 = vsel %vm703, %v7311, 0.0
    %v7322 = vadd.f32 %v7320, %v7321
    %v7323 = vsel %vm703, %v7312, 0.0
    %v7324 = vadd.f32 %v7322, %v7323
    %v7325 = vsel %vm703, %v7313, 0.0
    %v7326 = vadd.f32 %v7324, %v7325
    %v7327 = vsel %vm703, %v7314, 0.0
    %v7328 = vadd.f32 %v7326, %v7327
    %v7329 = vsel %vm4222, %v7315, 0.0
    %v7330 = vadd.f32 %v7328, %v7329
    %v7331 = vrot.slane %v7330, 4
    %v7332 = vadd.f32 %v7330, %v7331
    %v7333 = vrot.slane %v7332, 2
    %v7334 = vadd.f32 %v7332, %v7333
    %v7335 = vrot.slane %v7334, 1
    %v7336 = vadd.f32 %v7334, %v7335
    %v7337 = vadd.f32 %v7336, 0.0
    %v7338 = vmul.f32 %v7308, %v5992
    %v7339 = vmul.f32 %v7309, %v5993
    %v7340 = vmul.f32 %v7310, %v5994
    %v7341 = vmul.f32 %v7311, %v5995
    %v7342 = vmul.f32 %v7312, %v5996
    %v7343 = vmul.f32 %v7313, %v5997
    %v7344 = vmul.f32 %v7314, %v5998
    %v7345 = vmul.f32 %v7315, %v5999
    %v7346 = vsel %vm703, %v7338, 0.0
    %v7347 = vsel %vm703, %v7339, 0.0
    %v7348 = vadd.f32 %v7346, %v7347
    %v7349 = vsel %vm703, %v7340, 0.0
    %v7350 = vadd.f32 %v7348, %v7349
    %v7351 = vsel %vm703, %v7341, 0.0
    %v7352 = vadd.f32 %v7350, %v7351
    %v7353 = vsel %vm703, %v7342, 0.0
    %v7354 = vadd.f32 %v7352, %v7353
    %v7355 = vsel %vm703, %v7343, 0.0
    %v7356 = vadd.f32 %v7354, %v7355
    %v7357 = vsel %vm703, %v7344, 0.0
    %v7358 = vadd.f32 %v7356, %v7357
    %v7359 = vsel %vm4222, %v7345, 0.0
    %v7360 = vadd.f32 %v7358, %v7359
    %v7361 = vrot.slane %v7360, 4
    %v7362 = vadd.f32 %v7360, %v7361
    %v7363 = vrot.slane %v7362, 2
    %v7364 = vadd.f32 %v7362, %v7363
    %v7365 = vrot.slane %v7364, 1
    %v7366 = vadd.f32 %v7364, %v7365
    %v7367 = vadd.f32 %v7366, 0.0
    %v7368 = vmul.f32 %v7300, %v2807
    %v7369 = vmul.f32 %v7301, %v2808
    %v7370 = vmul.f32 %v7302, %v2809
    %v7371 = vmul.f32 %v7303, %v2810
    %v7372 = vmul.f32 %v7304, %v2811
    %v7373 = vmul.f32 %v7305, %v2812
    %v7374 = vmul.f32 %v7306, %v2813
    %v7375 = vmul.f32 %v7307, %v2814
    %v7376 = vsel %vm703, %v7368, 0.0
    %v7377 = vsel %vm703, %v7369, 0.0
    %v7378 = vadd.f32 %v7376, %v7377
    %v7379 = vsel %vm703, %v7370, 0.0
    %v7380 = vadd.f32 %v7378, %v7379
    %v7381 = vsel %vm703, %v7371, 0.0
    %v7382 = vadd.f32 %v7380, %v7381
    %v7383 = vsel %vm703, %v7372, 0.0
    %v7384 = vadd.f32 %v7382, %v7383
    %v7385 = vsel %vm703, %v7373, 0.0
    %v7386 = vadd.f32 %v7384, %v7385
    %v7387 = vsel %vm703, %v7374, 0.0
    %v7388 = vadd.f32 %v7386, %v7387
    %v7389 = vsel %vm4222, %v7375, 0.0
    %v7390 = vadd.f32 %v7388, %v7389
    %v7391 = vrot.slane %v7390, 4
    %v7392 = vadd.f32 %v7390, %v7391
    %v7393 = vrot.slane %v7392, 2
    %v7394 = vadd.f32 %v7392, %v7393
    %v7395 = vrot.slane %v7394, 1
    %v7396 = vadd.f32 %v7394, %v7395
    %v7397 = vadd.f32 %v7337, %v7396
    %v7398 = vmul.f32 %v7368, %v7300
    %v7399 = vmul.f32 %v7369, %v7301
    %v7400 = vmul.f32 %v7370, %v7302
    %v7401 = vmul.f32 %v7371, %v7303
    %v7402 = vmul.f32 %v7372, %v7304
    %v7403 = vmul.f32 %v7373, %v7305
    %v7404 = vmul.f32 %v7374, %v7306
    %v7405 = vmul.f32 %v7375, %v7307
    %v7406 = vsel %vm703, %v7398, 0.0
    %v7407 = vsel %vm703, %v7399, 0.0
    %v7408 = vadd.f32 %v7406, %v7407
    %v7409 = vsel %vm703, %v7400, 0.0
    %v7410 = vadd.f32 %v7408, %v7409
    %v7411 = vsel %vm703, %v7401, 0.0
    %v7412 = vadd.f32 %v7410, %v7411
    %v7413 = vsel %vm703, %v7402, 0.0
    %v7414 = vadd.f32 %v7412, %v7413
    %v7415 = vsel %vm703, %v7403, 0.0
    %v7416 = vadd.f32 %v7414, %v7415
    %v7417 = vsel %vm703, %v7404, 0.0
    %v7418 = vadd.f32 %v7416, %v7417
    %v7419 = vsel %vm4222, %v7405, 0.0
    %v7420 = vadd.f32 %v7418, %v7419
    %v7421 = vrot.slane %v7420, 4
    %v7422 = vadd.f32 %v7420, %v7421
    %v7423 = vrot.slane %v7422, 2
    %v7424 = vadd.f32 %v7422, %v7423
    %v7425 = vrot.slane %v7424, 1
    %v7426 = vadd.f32 %v7424, %v7425
    %v7427 = vadd.f32 %v7367, %v7426
    %v7428 = vmul.f32 %v7397, %v4322
    %v7429 = vmul.f32 %v7427, %v4322
    %v7430 = vmul.f32 %v7428, %v7428
    %v7431 = vsub.f32 %v7429, %v7430
    %v7432 = vmax.f32 %v7431, 0.0
    %v7433 = vadd.f32 %v7432, 1e-05
    %v7434 = vrsqrt.pop %v7433
    %v7435 = vmul.f32 %v55, %v7434
    %v7436 = vmul.f32 %v7428, %v7435
    %v7438 = vrot.slane %v7436, 7
    %v7440 = vsub.f32 %v55, %v7438
    %v7441 = vlaneseq
    %v7442 = vshrl.u32 %v7441, 7
    %v7443 = vsub.s32 0, %v7442
    %v7444 = vrot.slane %v7435, %v7443
    %v7445 = vmul.f32 %v5992, %v7444
    %v7446 = vmul.f32 %v5993, %v7444
    %v7447 = vmul.f32 %v5994, %v7444
    %v7448 = vmul.f32 %v5995, %v7444
    %v7449 = vmul.f32 %v5996, %v7444
    %v7450 = vmul.f32 %v5997, %v7444
    %v7451 = vmul.f32 %v5998, %v7444
    %v7452 = vmul.f32 %v5999, %v7444
    %v7453 = vlaneseq
    %v7454 = vshrl.u32 %v7453, 7
    %v7455 = vsub.s32 1, %v7454
    %v7456 = vrot.slane %v7440, %v7455
    %v7457 = vadd.f32 %v7445, %v7456
    %v7458 = vadd.f32 %v7446, %v7456
    %v7459 = vadd.f32 %v7447, %v7456
    %v7460 = vadd.f32 %v7448, %v7456
    %v7461 = vadd.f32 %v7449, %v7456
    %v7462 = vadd.f32 %v7450, %v7456
    %v7463 = vadd.f32 %v7451, %v7456
    %v7464 = vadd.f32 %v7452, %v7456
    %v7465 = vmax.f32 %v7457, 0.0
    %v7466 = vmax.f32 %v7458, 0.0
    %v7467 = vmax.f32 %v7459, 0.0
    %v7468 = vmax.f32 %v7460, 0.0
    %v7469 = vmax.f32 %v7461, 0.0
    %v7470 = vmax.f32 %v7462, 0.0
    %v7471 = vmax.f32 %v7463, 0.0
    %v7472 = vmax.f32 %v7464, 0.0
    %v7473 = vmul.f32 %v7300, %v7444
    %v7474 = vmul.f32 %v7301, %v7444
    %v7475 = vmul.f32 %v7302, %v7444
    %v7476 = vmul.f32 %v7303, %v7444
    %v7477 = vmul.f32 %v7304, %v7444
    %v7478 = vmul.f32 %v7305, %v7444
    %v7479 = vmul.f32 %v7306, %v7444
    %v7480 = vmul.f32 %v7307, %v7444
    %v7481 = vadd.f32 %v7473, %v7456
    %v7482 = vadd.f32 %v7474, %v7456
    %v7483 = vadd.f32 %v7475, %v7456
    %v7484 = vadd.f32 %v7476, %v7456
    %v7485 = vadd.f32 %v7477, %v7456
    %v7486 = vadd.f32 %v7478, %v7456
    %v7487 = vadd.f32 %v7479, %v7456
    %v7488 = vadd.f32 %v7480, %v7456
    %v7489 = vmax.f32 %v7481, 0.0
    %v7490 = vmax.f32 %v7482, 0.0
    %v7491 = vmax.f32 %v7483, 0.0
    %v7492 = vmax.f32 %v7484, 0.0
    %v7493 = vmax.f32 %v7485, 0.0
    %v7494 = vmax.f32 %v7486, 0.0
    %v7495 = vmax.f32 %v7487, 0.0
    %v7496 = vmax.f32 %v7488, 0.0
    %v7498 = vsel %vm2880, %v7472, 0
    %7500 = vmatprep.subr.mxu0 0.0
    %7501 = vmatpush1.msra.mxu0 0.0
    %7502 = vmatprep.subr.mxu0 0.0
    %7503 = vmatpush1.msra.mxu0 0.0
    %7504 = vmatprep.subr.mxu0 0.0
    %7505 = vmatpush1.msra.mxu0 0.0
    %7506 = vmatprep.subr.mxu0 0.0
    %7507 = vmatpush1.msra.mxu0 0.0
    %7508 = vmatprep.subr.mxu0 0.0
    %7509 = vmatpush1.msra.mxu0 0.0
    %7510 = vmatprep.subr.mxu0 0.0
    %7511 = vmatpush1.msra.mxu0 0.0
    %7512 = vmatprep.subr.mxu0 0.0
    %7513 = vmatpush1.msra.mxu0 0.0
    %7514 = vmatprep.subr.mxu0 0.0
    %7515 = vmatpush1.msra.mxu0 0.0
    %7516 = vmatprep.subr.mxu0 0.0
    %7517 = vmatpush1.msra.mxu0 %v7498
    %7518 = vmatprep.subr.mxu0 0.0
    %7519 = vmatpush1.msra.mxu0 %v7471
    %7520 = vmatprep.subr.mxu0 0.0
    %7521 = vmatpush1.msra.mxu0 %v7470
    %7522 = vmatprep.subr.mxu0 0.0
    %7523 = vmatpush1.msra.mxu0 %v7469
    %7524 = vmatprep.subr.mxu0 0.0
    %7525 = vmatpush1.msra.mxu0 %v7468
    %7526 = vmatprep.subr.mxu0 0.0
    %7527 = vmatpush1.msra.mxu0 %v7467
    %7528 = vmatprep.subr.mxu0 0.0
    %7529 = vmatpush1.msra.mxu0 %v7466
    %7530 = vmatprep.subr.mxu0 0.0
    %7531 = vmatpush1.msra.mxu0 %v7465
    %7532 = vmatprep.subr.mxu0 0.0
    %7533 = vmatpush2.msra.mxu0 0.0
    %7534 = vmatprep.subr.mxu0 0.0
    %7535 = vmatpush2.msra.mxu0 0.0
    %7536 = vmatprep.subr.mxu0 0.0
    %7537 = vmatpush2.msra.mxu0 0.0
    %7538 = vmatprep.subr.mxu0 0.0
    %7539 = vmatpush2.msra.mxu0 0.0
    %7540 = vmatprep.subr.mxu0 0.0
    %7541 = vmatpush2.msra.mxu0 0.0
    %7542 = vmatprep.subr.mxu0 0.0
    %7543 = vmatpush2.msra.mxu0 0.0
    %7544 = vmatprep.subr.mxu0 0.0
    %7545 = vmatpush2.msra.mxu0 0.0
    %7546 = vmatprep.subr.mxu0 0.0
    %7547 = vmatpush2.msra.mxu0 0.0
    %7548 = vmatprep.subr.mxu0 0.0
    %7549 = vmatpush2.msra.mxu0 0.0
    %7550 = vmatprep.subr.mxu0 0.0
    %7551 = vmatpush2.msra.mxu0 0.0
    %7552 = vmatprep.subr.mxu0 0.0
    %7553 = vmatpush2.msra.mxu0 0.0
    %7554 = vmatprep.subr.mxu0 0.0
    %7555 = vmatpush2.msra.mxu0 0.0
    %7556 = vmatprep.subr.mxu0 0.0
    %7557 = vmatpush2.msra.mxu0 0.0
    %7558 = vmatprep.subr.mxu0 0.0
    %7559 = vmatpush2.msra.mxu0 0.0
    %7560 = vmatprep.subr.mxu0 0.0
    %7561 = vmatpush2.msra.mxu0 0.0
    %7562 = vmatprep.subr.mxu0 0.0
    %7563 = vmatpush2.msra.mxu0 0.0
    %7564 = vmatprep.mubr.f32.mxu0 0.0
    %7565 = vmatmul.mubr.f32.gmra.mxu0 %v4656
    %v7566 = vpop.f32.mrf.mxu0
    %v7567 = vadd.f32 0.0, %v7566
    %v7568 = vpop.f32.mrf.mxu0
    %7569 = vmatprep.mubr.f32.mxu0 0.0
    %7570 = vmatmul.mubr.f32.gmra.mxu0 %v4659
    %v7571 = vpop.f32.mrf.mxu0
    %v7572 = vadd.f32 0.0, %v7571
    %v7573 = vpop.f32.mrf.mxu0
    %7574 = vmatprep.mubr.f32.mxu0 0.0
    %7575 = vmatmul.mubr.f32.gmra.mxu0 %v4662
    %v7576 = vpop.f32.mrf.mxu0
    %v7577 = vadd.f32 0.0, %v7576
    %v7578 = vpop.f32.mrf.mxu0
    %7579 = vmatprep.mubr.f32.mxu0 0.0
    %7580 = vmatmul.mubr.f32.gmra.mxu0 %v4665
    %v7581 = vpop.f32.mrf.mxu0
    %v7582 = vadd.f32 0.0, %v7581
    %v7583 = vpop.f32.mrf.mxu0
    %7584 = vmatprep.mubr.f32.mxu0 0.0
    %7585 = vmatmul.mubr.f32.gmra.mxu0 %v4668
    %v7586 = vpop.f32.mrf.mxu0
    %v7587 = vadd.f32 0.0, %v7586
    %v7588 = vpop.f32.mrf.mxu0
    %7589 = vmatprep.mubr.f32.mxu0 0.0
    %7590 = vmatmul.mubr.f32.gmra.mxu0 %v4671
    %v7591 = vpop.f32.mrf.mxu0
    %v7592 = vadd.f32 0.0, %v7591
    %v7593 = vpop.f32.mrf.mxu0
    %7594 = vmatprep.mubr.f32.mxu0 0.0
    %7595 = vmatmul.mubr.f32.gmra.mxu0 %v4674
    %v7596 = vpop.f32.mrf.mxu0
    %v7597 = vadd.f32 0.0, %v7596
    %v7598 = vpop.f32.mrf.mxu0
    %7599 = vmatprep.mubr.f32.mxu0 0.0
    %7600 = vmatmul.mubr.f32.gmra.mxu0 %v4677
    %v7601 = vpop.f32.mrf.mxu0
    %v7602 = vadd.f32 0.0, %v7601
    %v7603 = vpop.f32.mrf.mxu0
    %7604 = vmatprep.mubr.f32.mxu0 0.0
    %7605 = vmatmul.mubr.f32.gmra.mxu0 %v4680
    %v7606 = vpop.f32.mrf.mxu0
    %v7607 = vadd.f32 0.0, %v7606
    %v7608 = vpop.f32.mrf.mxu0
    %7609 = vmatprep.mubr.f32.mxu0 0.0
    %7610 = vmatmul.mubr.f32.gmra.mxu0 %v4683
    %v7611 = vpop.f32.mrf.mxu0
    %v7612 = vadd.f32 0.0, %v7611
    %v7613 = vpop.f32.mrf.mxu0
    %7614 = vmatprep.mubr.f32.mxu0 0.0
    %7615 = vmatmul.mubr.f32.gmra.mxu0 %v4686
    %v7616 = vpop.f32.mrf.mxu0
    %v7617 = vadd.f32 0.0, %v7616
    %v7618 = vpop.f32.mrf.mxu0
    %7619 = vdwg.mxu0
    %v7628 = vrot.slane %v7567, 1
    %v7629 = vrot.slane %v7572, 1
    %v7630 = vsel %vm2823, %v7628, %v7629
    %v7631 = vrot.slane %v7577, 1
    %v7632 = vsel %vm2823, %v7629, %v7631
    %v7633 = vrot.slane %v7582, 1
    %v7634 = vsel %vm2823, %v7631, %v7633
    %v7635 = vrot.slane %v7587, 1
    %v7636 = vsel %vm2823, %v7633, %v7635
    %v7637 = vrot.slane %v7592, 1
    %v7638 = vsel %vm2823, %v7635, %v7637
    %v7639 = vrot.slane %v7597, 1
    %v7640 = vsel %vm2823, %v7637, %v7639
    %v7641 = vrot.slane %v7602, 1
    %v7642 = vsel %vm2823, %v7639, %v7641
    %v7643 = vsel %vm703, %v7630, 0
    %v7645 = vsel %vm703, %v7632, 0
    %v7647 = vsel %vm703, %v7634, 0
    %v7649 = vsel %vm703, %v7636, 0
    %v7651 = vsel %vm703, %v7638, 0
    %v7653 = vsel %vm703, %v7640, 0
    %v7655 = vsel %vm703, %v7642, 0
    %v7657 = vsel %vm703, %v7641, 0
    %7659 = vmatprep.subr.mxu0 0.0
    %7660 = vmatpush1.msra.mxu0 0.0
    %7661 = vmatprep.subr.mxu0 0.0
    %7662 = vmatpush1.msra.mxu0 0.0
    %7663 = vmatprep.subr.mxu0 0.0
    %7664 = vmatpush1.msra.mxu0 0.0
    %7665 = vmatprep.subr.mxu0 0.0
    %7666 = vmatpush1.msra.mxu0 0.0
    %7667 = vmatprep.subr.mxu0 0.0
    %7668 = vmatpush1.msra.mxu0 0.0
    %7669 = vmatprep.subr.mxu0 0.0
    %7670 = vmatpush1.msra.mxu0 0.0
    %7671 = vmatprep.subr.mxu0 0.0
    %7672 = vmatpush1.msra.mxu0 0.0
    %7673 = vmatprep.subr.mxu0 0.0
    %7674 = vmatpush1.msra.mxu0 0.0
    %7675 = vmatprep.subr.mxu0 0.0
    %7676 = vmatpush1.msra.mxu0 0.0
    %7677 = vmatprep.subr.mxu0 0.0
    %7678 = vmatpush1.msra.mxu0 0.0
    %7679 = vmatprep.subr.mxu0 0.0
    %7680 = vmatpush1.msra.mxu0 0.0
    %7681 = vmatprep.subr.mxu0 0.0
    %7682 = vmatpush1.msra.mxu0 0.0
    %7683 = vmatprep.subr.mxu0 0.0
    %7684 = vmatpush1.msra.mxu0 0.0
    %7685 = vmatprep.subr.mxu0 0.0
    %7686 = vmatpush1.msra.mxu0 %v255
    %7687 = vmatprep.subr.mxu0 0.0
    %7688 = vmatpush1.msra.mxu0 %v254
    %7689 = vmatprep.subr.mxu0 0.0
    %7690 = vmatpush1.msra.mxu0 %v253
    %7691 = vmatprep.subr.mxu0 0.0
    %7692 = vmatpush2.msra.mxu0 0.0
    %7693 = vmatprep.subr.mxu0 0.0
    %7694 = vmatpush2.msra.mxu0 0.0
    %7695 = vmatprep.subr.mxu0 0.0
    %7696 = vmatpush2.msra.mxu0 0.0
    %7697 = vmatprep.subr.mxu0 0.0
    %7698 = vmatpush2.msra.mxu0 0.0
    %7699 = vmatprep.subr.mxu0 0.0
    %7700 = vmatpush2.msra.mxu0 0.0
    %7701 = vmatprep.subr.mxu0 0.0
    %7702 = vmatpush2.msra.mxu0 0.0
    %7703 = vmatprep.subr.mxu0 0.0
    %7704 = vmatpush2.msra.mxu0 0.0
    %7705 = vmatprep.subr.mxu0 0.0
    %7706 = vmatpush2.msra.mxu0 0.0
    %7707 = vmatprep.subr.mxu0 0.0
    %7708 = vmatpush2.msra.mxu0 0.0
    %7709 = vmatprep.subr.mxu0 0.0
    %7710 = vmatpush2.msra.mxu0 0.0
    %7711 = vmatprep.subr.mxu0 0.0
    %7712 = vmatpush2.msra.mxu0 0.0
    %7713 = vmatprep.subr.mxu0 0.0
    %7714 = vmatpush2.msra.mxu0 0.0
    %7715 = vmatprep.subr.mxu0 0.0
    %7716 = vmatpush2.msra.mxu0 0.0
    %7717 = vmatprep.subr.mxu0 0.0
    %7718 = vmatpush2.msra.mxu0 0.0
    %7719 = vmatprep.subr.mxu0 0.0
    %7720 = vmatpush2.msra.mxu0 0.0
    %7721 = vmatprep.subr.mxu0 0.0
    %7722 = vmatpush2.msra.mxu0 0.0
    %7723 = vmatprep.mubr.f32.mxu0 0.0
    %7724 = vmatmul.mubr.f32.gmra.mxu0 %v7643
    %v7725 = vpop.f32.mrf.mxu0
    %v7726 = vadd.f32 0.0, %v7725
    %v7727 = vpop.f32.mrf.mxu0
    %7728 = vmatprep.mubr.f32.mxu0 0.0
    %7729 = vmatmul.mubr.f32.gmra.mxu0 %v7645
    %v7730 = vpop.f32.mrf.mxu0
    %v7731 = vadd.f32 0.0, %v7730
    %v7732 = vpop.f32.mrf.mxu0
    %7733 = vmatprep.mubr.f32.mxu0 0.0
    %7734 = vmatmul.mubr.f32.gmra.mxu0 %v7647
    %v7735 = vpop.f32.mrf.mxu0
    %v7736 = vadd.f32 0.0, %v7735
    %v7737 = vpop.f32.mrf.mxu0
    %7738 = vmatprep.mubr.f32.mxu0 0.0
    %7739 = vmatmul.mubr.f32.gmra.mxu0 %v7649
    %v7740 = vpop.f32.mrf.mxu0
    %v7741 = vadd.f32 0.0, %v7740
    %v7742 = vpop.f32.mrf.mxu0
    %7743 = vmatprep.mubr.f32.mxu0 0.0
    %7744 = vmatmul.mubr.f32.gmra.mxu0 %v7651
    %v7745 = vpop.f32.mrf.mxu0
    %v7746 = vadd.f32 0.0, %v7745
    %v7747 = vpop.f32.mrf.mxu0
    %7748 = vmatprep.mubr.f32.mxu0 0.0
    %7749 = vmatmul.mubr.f32.gmra.mxu0 %v7653
    %v7750 = vpop.f32.mrf.mxu0
    %v7751 = vadd.f32 0.0, %v7750
    %v7752 = vpop.f32.mrf.mxu0
    %7753 = vmatprep.mubr.f32.mxu0 0.0
    %7754 = vmatmul.mubr.f32.gmra.mxu0 %v7655
    %v7755 = vpop.f32.mrf.mxu0
    %v7756 = vadd.f32 0.0, %v7755
    %v7757 = vpop.f32.mrf.mxu0
    %7758 = vmatprep.mubr.f32.mxu0 0.0
    %7759 = vmatmul.mubr.f32.gmra.mxu0 %v7657
    %v7760 = vpop.f32.mrf.mxu0
    %v7761 = vadd.f32 0.0, %v7760
    %v7762 = vpop.f32.mrf.mxu0
    %7763 = vdwg.mxu0
    %v7764 = vsel %vm703, %v7567, 0
    %v7766 = vsel %vm703, %v7572, 0
    %v7768 = vsel %vm703, %v7577, 0
    %v7770 = vsel %vm703, %v7582, 0
    %v7772 = vsel %vm703, %v7587, 0
    %v7774 = vsel %vm703, %v7592, 0
    %v7776 = vsel %vm703, %v7597, 0
    %v7778 = vsel %vm703, %v7602, 0
    %7780 = vmatprep.subr.mxu0 0.0
    %7781 = vmatpush1.msra.mxu0 0.0
    %7782 = vmatprep.subr.mxu0 0.0
    %7783 = vmatpush1.msra.mxu0 0.0
    %7784 = vmatprep.subr.mxu0 0.0
    %7785 = vmatpush1.msra.mxu0 0.0
    %7786 = vmatprep.subr.mxu0 0.0
    %7787 = vmatpush1.msra.mxu0 0.0
    %7788 = vmatprep.subr.mxu0 0.0
    %7789 = vmatpush1.msra.mxu0 0.0
    %7790 = vmatprep.subr.mxu0 0.0
    %7791 = vmatpush1.msra.mxu0 0.0
    %7792 = vmatprep.subr.mxu0 0.0
    %7793 = vmatpush1.msra.mxu0 0.0
    %7794 = vmatprep.subr.mxu0 0.0
    %7795 = vmatpush1.msra.mxu0 0.0
    %7796 = vmatprep.subr.mxu0 0.0
    %7797 = vmatpush1.msra.mxu0 0.0
    %7798 = vmatprep.subr.mxu0 0.0
    %7799 = vmatpush1.msra.mxu0 0.0
    %7800 = vmatprep.subr.mxu0 0.0
    %7801 = vmatpush1.msra.mxu0 0.0
    %7802 = vmatprep.subr.mxu0 0.0
    %7803 = vmatpush1.msra.mxu0 0.0
    %7804 = vmatprep.subr.mxu0 0.0
    %7805 = vmatpush1.msra.mxu0 0.0
    %7806 = vmatprep.subr.mxu0 0.0
    %7807 = vmatpush1.msra.mxu0 %v252
    %7808 = vmatprep.subr.mxu0 0.0
    %7809 = vmatpush1.msra.mxu0 %v251
    %7810 = vmatprep.subr.mxu0 0.0
    %7811 = vmatpush1.msra.mxu0 %v250
    %7812 = vmatprep.subr.mxu0 0.0
    %7813 = vmatpush2.msra.mxu0 0.0
    %7814 = vmatprep.subr.mxu0 0.0
    %7815 = vmatpush2.msra.mxu0 0.0
    %7816 = vmatprep.subr.mxu0 0.0
    %7817 = vmatpush2.msra.mxu0 0.0
    %7818 = vmatprep.subr.mxu0 0.0
    %7819 = vmatpush2.msra.mxu0 0.0
    %7820 = vmatprep.subr.mxu0 0.0
    %7821 = vmatpush2.msra.mxu0 0.0
    %7822 = vmatprep.subr.mxu0 0.0
    %7823 = vmatpush2.msra.mxu0 0.0
    %7824 = vmatprep.subr.mxu0 0.0
    %7825 = vmatpush2.msra.mxu0 0.0
    %7826 = vmatprep.subr.mxu0 0.0
    %7827 = vmatpush2.msra.mxu0 0.0
    %7828 = vmatprep.subr.mxu0 0.0
    %7829 = vmatpush2.msra.mxu0 0.0
    %7830 = vmatprep.subr.mxu0 0.0
    %7831 = vmatpush2.msra.mxu0 0.0
    %7832 = vmatprep.subr.mxu0 0.0
    %7833 = vmatpush2.msra.mxu0 0.0
    %7834 = vmatprep.subr.mxu0 0.0
    %7835 = vmatpush2.msra.mxu0 0.0
    %7836 = vmatprep.subr.mxu0 0.0
    %7837 = vmatpush2.msra.mxu0 0.0
    %7838 = vmatprep.subr.mxu0 0.0
    %7839 = vmatpush2.msra.mxu0 0.0
    %7840 = vmatprep.subr.mxu0 0.0
    %7841 = vmatpush2.msra.mxu0 0.0
    %7842 = vmatprep.subr.mxu0 0.0
    %7843 = vmatpush2.msra.mxu0 0.0
    %7844 = vmatprep.mubr.f32.mxu0 0.0
    %7845 = vmatmul.mubr.f32.gmra.mxu0 %v7764
    %v7846 = vpop.f32.mrf.mxu0
    %v7847 = vadd.f32 %v7726, %v7846
    %v7848 = vpop.f32.mrf.mxu0
    %7849 = vmatprep.mubr.f32.mxu0 0.0
    %7850 = vmatmul.mubr.f32.gmra.mxu0 %v7766
    %v7851 = vpop.f32.mrf.mxu0
    %v7852 = vadd.f32 %v7731, %v7851
    %v7853 = vpop.f32.mrf.mxu0
    %7854 = vmatprep.mubr.f32.mxu0 0.0
    %7855 = vmatmul.mubr.f32.gmra.mxu0 %v7768
    %v7856 = vpop.f32.mrf.mxu0
    %v7857 = vadd.f32 %v7736, %v7856
    %v7858 = vpop.f32.mrf.mxu0
    %7859 = vmatprep.mubr.f32.mxu0 0.0
    %7860 = vmatmul.mubr.f32.gmra.mxu0 %v7770
    %v7861 = vpop.f32.mrf.mxu0
    %v7862 = vadd.f32 %v7741, %v7861
    %v7863 = vpop.f32.mrf.mxu0
    %7864 = vmatprep.mubr.f32.mxu0 0.0
    %7865 = vmatmul.mubr.f32.gmra.mxu0 %v7772
    %v7866 = vpop.f32.mrf.mxu0
    %v7867 = vadd.f32 %v7746, %v7866
    %v7868 = vpop.f32.mrf.mxu0
    %7869 = vmatprep.mubr.f32.mxu0 0.0
    %7870 = vmatmul.mubr.f32.gmra.mxu0 %v7774
    %v7871 = vpop.f32.mrf.mxu0
    %v7872 = vadd.f32 %v7751, %v7871
    %v7873 = vpop.f32.mrf.mxu0
    %7874 = vmatprep.mubr.f32.mxu0 0.0
    %7875 = vmatmul.mubr.f32.gmra.mxu0 %v7776
    %v7876 = vpop.f32.mrf.mxu0
    %v7877 = vadd.f32 %v7756, %v7876
    %v7878 = vpop.f32.mrf.mxu0
    %7879 = vmatprep.mubr.f32.mxu0 0.0
    %7880 = vmatmul.mubr.f32.gmra.mxu0 %v7778
    %v7881 = vpop.f32.mrf.mxu0
    %v7882 = vadd.f32 %v7761, %v7881
    %v7883 = vpop.f32.mrf.mxu0
    %7884 = vdwg.mxu0
    %v7885 = vrot.slane %v7567, 2
    %v7886 = vrot.slane %v7572, 2
    %v7887 = vsel %vm2847, %v7885, %v7886
    %v7888 = vrot.slane %v7577, 2
    %v7889 = vsel %vm2847, %v7886, %v7888
    %v7890 = vrot.slane %v7582, 2
    %v7891 = vsel %vm2847, %v7888, %v7890
    %v7892 = vrot.slane %v7587, 2
    %v7893 = vsel %vm2847, %v7890, %v7892
    %v7894 = vrot.slane %v7592, 2
    %v7895 = vsel %vm2847, %v7892, %v7894
    %v7896 = vrot.slane %v7597, 2
    %v7897 = vsel %vm2847, %v7894, %v7896
    %v7898 = vrot.slane %v7602, 2
    %v7899 = vsel %vm2847, %v7896, %v7898
    %v7900 = vsel %vm703, %v7887, 0
    %v7902 = vsel %vm703, %v7889, 0
    %v7904 = vsel %vm703, %v7891, 0
    %v7906 = vsel %vm703, %v7893, 0
    %v7908 = vsel %vm703, %v7895, 0
    %v7910 = vsel %vm703, %v7897, 0
    %v7912 = vsel %vm703, %v7899, 0
    %v7914 = vsel %vm703, %v7898, 0
    %7916 = vmatprep.subr.mxu0 0.0
    %7917 = vmatpush1.msra.mxu0 0.0
    %7918 = vmatprep.subr.mxu0 0.0
    %7919 = vmatpush1.msra.mxu0 0.0
    %7920 = vmatprep.subr.mxu0 0.0
    %7921 = vmatpush1.msra.mxu0 0.0
    %7922 = vmatprep.subr.mxu0 0.0
    %7923 = vmatpush1.msra.mxu0 0.0
    %7924 = vmatprep.subr.mxu0 0.0
    %7925 = vmatpush1.msra.mxu0 0.0
    %7926 = vmatprep.subr.mxu0 0.0
    %7927 = vmatpush1.msra.mxu0 0.0
    %7928 = vmatprep.subr.mxu0 0.0
    %7929 = vmatpush1.msra.mxu0 0.0
    %7930 = vmatprep.subr.mxu0 0.0
    %7931 = vmatpush1.msra.mxu0 0.0
    %7932 = vmatprep.subr.mxu0 0.0
    %7933 = vmatpush1.msra.mxu0 0.0
    %7934 = vmatprep.subr.mxu0 0.0
    %7935 = vmatpush1.msra.mxu0 0.0
    %7936 = vmatprep.subr.mxu0 0.0
    %7937 = vmatpush1.msra.mxu0 0.0
    %7938 = vmatprep.subr.mxu0 0.0
    %7939 = vmatpush1.msra.mxu0 0.0
    %7940 = vmatprep.subr.mxu0 0.0
    %7941 = vmatpush1.msra.mxu0 0.0
    %7942 = vmatprep.subr.mxu0 0.0
    %7943 = vmatpush1.msra.mxu0 %v258
    %7944 = vmatprep.subr.mxu0 0.0
    %7945 = vmatpush1.msra.mxu0 %v257
    %7946 = vmatprep.subr.mxu0 0.0
    %7947 = vmatpush1.msra.mxu0 %v256
    %7948 = vmatprep.subr.mxu0 0.0
    %7949 = vmatpush2.msra.mxu0 0.0
    %7950 = vmatprep.subr.mxu0 0.0
    %7951 = vmatpush2.msra.mxu0 0.0
    %7952 = vmatprep.subr.mxu0 0.0
    %7953 = vmatpush2.msra.mxu0 0.0
    %7954 = vmatprep.subr.mxu0 0.0
    %7955 = vmatpush2.msra.mxu0 0.0
    %7956 = vmatprep.subr.mxu0 0.0
    %7957 = vmatpush2.msra.mxu0 0.0
    %7958 = vmatprep.subr.mxu0 0.0
    %7959 = vmatpush2.msra.mxu0 0.0
    %7960 = vmatprep.subr.mxu0 0.0
    %7961 = vmatpush2.msra.mxu0 0.0
    %7962 = vmatprep.subr.mxu0 0.0
    %7963 = vmatpush2.msra.mxu0 0.0
    %7964 = vmatprep.subr.mxu0 0.0
    %7965 = vmatpush2.msra.mxu0 0.0
    %7966 = vmatprep.subr.mxu0 0.0
    %7967 = vmatpush2.msra.mxu0 0.0
    %7968 = vmatprep.subr.mxu0 0.0
    %7969 = vmatpush2.msra.mxu0 0.0
    %7970 = vmatprep.subr.mxu0 0.0
    %7971 = vmatpush2.msra.mxu0 0.0
    %7972 = vmatprep.subr.mxu0 0.0
    %7973 = vmatpush2.msra.mxu0 0.0
    %7974 = vmatprep.subr.mxu0 0.0
    %7975 = vmatpush2.msra.mxu0 0.0
    %7976 = vmatprep.subr.mxu0 0.0
    %7977 = vmatpush2.msra.mxu0 0.0
    %7978 = vmatprep.subr.mxu0 0.0
    %7979 = vmatpush2.msra.mxu0 0.0
    %7980 = vmatprep.mubr.f32.mxu0 0.0
    %7981 = vmatmul.mubr.f32.gmra.mxu0 %v7900
    %v7982 = vpop.f32.mrf.mxu0
    %v7983 = vadd.f32 0.0, %v7982
    %v7984 = vpop.f32.mrf.mxu0
    %7985 = vmatprep.mubr.f32.mxu0 0.0
    %7986 = vmatmul.mubr.f32.gmra.mxu0 %v7902
    %v7987 = vpop.f32.mrf.mxu0
    %v7988 = vadd.f32 0.0, %v7987
    %v7989 = vpop.f32.mrf.mxu0
    %7990 = vmatprep.mubr.f32.mxu0 0.0
    %7991 = vmatmul.mubr.f32.gmra.mxu0 %v7904
    %v7992 = vpop.f32.mrf.mxu0
    %v7993 = vadd.f32 0.0, %v7992
    %v7994 = vpop.f32.mrf.mxu0
    %7995 = vmatprep.mubr.f32.mxu0 0.0
    %7996 = vmatmul.mubr.f32.gmra.mxu0 %v7906
    %v7997 = vpop.f32.mrf.mxu0
    %v7998 = vadd.f32 0.0, %v7997
    %v7999 = vpop.f32.mrf.mxu0
    %8000 = vmatprep.mubr.f32.mxu0 0.0
    %8001 = vmatmul.mubr.f32.gmra.mxu0 %v7908
    %v8002 = vpop.f32.mrf.mxu0
    %v8003 = vadd.f32 0.0, %v8002
    %v8004 = vpop.f32.mrf.mxu0
    %8005 = vmatprep.mubr.f32.mxu0 0.0
    %8006 = vmatmul.mubr.f32.gmra.mxu0 %v7910
    %v8007 = vpop.f32.mrf.mxu0
    %v8008 = vadd.f32 0.0, %v8007
    %v8009 = vpop.f32.mrf.mxu0
    %8010 = vmatprep.mubr.f32.mxu0 0.0
    %8011 = vmatmul.mubr.f32.gmra.mxu0 %v7912
    %v8012 = vpop.f32.mrf.mxu0
    %v8013 = vadd.f32 0.0, %v8012
    %v8014 = vpop.f32.mrf.mxu0
    %8015 = vmatprep.mubr.f32.mxu0 0.0
    %8016 = vmatmul.mubr.f32.gmra.mxu0 %v7914
    %v8017 = vpop.f32.mrf.mxu0
    %v8018 = vadd.f32 0.0, %v8017
    %v8019 = vpop.f32.mrf.mxu0
    %8020 = vdwg.mxu0
    %v8021 = vadd.f32 %v7847, %v7983
    %v8022 = vadd.f32 %v7852, %v7988
    %v8023 = vadd.f32 %v7857, %v7993
    %v8024 = vadd.f32 %v7862, %v7998
    %v8025 = vadd.f32 %v7867, %v8003
    %v8026 = vadd.f32 %v7872, %v8008
    %v8027 = vadd.f32 %v7877, %v8013
    %v8028 = vadd.f32 %v7882, %v8018
    %v8030 = vrot.slane %v7607, 1
    %v8031 = vsel %vm2823, %v7641, %v8030
    %v8032 = vsel %vm703, %v8031, 0
    %v8034 = vsel %vm703, %v8030, 0
    %8036 = vmatprep.subr.mxu0 0.0
    %8037 = vmatpush1.msra.mxu0 0.0
    %8038 = vmatprep.subr.mxu0 0.0
    %8039 = vmatpush1.msra.mxu0 0.0
    %8040 = vmatprep.subr.mxu0 0.0
    %8041 = vmatpush1.msra.mxu0 0.0
    %8042 = vmatprep.subr.mxu0 0.0
    %8043 = vmatpush1.msra.mxu0 0.0
    %8044 = vmatprep.subr.mxu0 0.0
    %8045 = vmatpush1.msra.mxu0 0.0
    %8046 = vmatprep.subr.mxu0 0.0
    %8047 = vmatpush1.msra.mxu0 0.0
    %8048 = vmatprep.subr.mxu0 0.0
    %8049 = vmatpush1.msra.mxu0 0.0
    %8050 = vmatprep.subr.mxu0 0.0
    %8051 = vmatpush1.msra.mxu0 0.0
    %8052 = vmatprep.subr.mxu0 0.0
    %8053 = vmatpush1.msra.mxu0 0.0
    %8054 = vmatprep.subr.mxu0 0.0
    %8055 = vmatpush1.msra.mxu0 0.0
    %8056 = vmatprep.subr.mxu0 0.0
    %8057 = vmatpush1.msra.mxu0 0.0
    %8058 = vmatprep.subr.mxu0 0.0
    %8059 = vmatpush1.msra.mxu0 0.0
    %8060 = vmatprep.subr.mxu0 0.0
    %8061 = vmatpush1.msra.mxu0 0.0
    %8062 = vmatprep.subr.mxu0 0.0
    %8063 = vmatpush1.msra.mxu0 %v261
    %8064 = vmatprep.subr.mxu0 0.0
    %8065 = vmatpush1.msra.mxu0 %v260
    %8066 = vmatprep.subr.mxu0 0.0
    %8067 = vmatpush1.msra.mxu0 %v259
    %8068 = vmatprep.subr.mxu0 0.0
    %8069 = vmatpush2.msra.mxu0 0.0
    %8070 = vmatprep.subr.mxu0 0.0
    %8071 = vmatpush2.msra.mxu0 0.0
    %8072 = vmatprep.subr.mxu0 0.0
    %8073 = vmatpush2.msra.mxu0 0.0
    %8074 = vmatprep.subr.mxu0 0.0
    %8075 = vmatpush2.msra.mxu0 0.0
    %8076 = vmatprep.subr.mxu0 0.0
    %8077 = vmatpush2.msra.mxu0 0.0
    %8078 = vmatprep.subr.mxu0 0.0
    %8079 = vmatpush2.msra.mxu0 0.0
    %8080 = vmatprep.subr.mxu0 0.0
    %8081 = vmatpush2.msra.mxu0 0.0
    %8082 = vmatprep.subr.mxu0 0.0
    %8083 = vmatpush2.msra.mxu0 0.0
    %8084 = vmatprep.subr.mxu0 0.0
    %8085 = vmatpush2.msra.mxu0 0.0
    %8086 = vmatprep.subr.mxu0 0.0
    %8087 = vmatpush2.msra.mxu0 0.0
    %8088 = vmatprep.subr.mxu0 0.0
    %8089 = vmatpush2.msra.mxu0 0.0
    %8090 = vmatprep.subr.mxu0 0.0
    %8091 = vmatpush2.msra.mxu0 0.0
    %8092 = vmatprep.subr.mxu0 0.0
    %8093 = vmatpush2.msra.mxu0 0.0
    %8094 = vmatprep.subr.mxu0 0.0
    %8095 = vmatpush2.msra.mxu0 0.0
    %8096 = vmatprep.subr.mxu0 0.0
    %8097 = vmatpush2.msra.mxu0 0.0
    %8098 = vmatprep.subr.mxu0 0.0
    %8099 = vmatpush2.msra.mxu0 0.0
    %8100 = vmatprep.mubr.f32.mxu0 0.0
    %8101 = vmatmul.mubr.f32.gmra.mxu0 %v7645
    %v8102 = vpop.f32.mrf.mxu0
    %v8103 = vadd.f32 0.0, %v8102
    %v8104 = vpop.f32.mrf.mxu0
    %8105 = vmatprep.mubr.f32.mxu0 0.0
    %8106 = vmatmul.mubr.f32.gmra.mxu0 %v7647
    %v8107 = vpop.f32.mrf.mxu0
    %v8108 = vadd.f32 0.0, %v8107
    %v8109 = vpop.f32.mrf.mxu0
    %8110 = vmatprep.mubr.f32.mxu0 0.0
    %8111 = vmatmul.mubr.f32.gmra.mxu0 %v7649
    %v8112 = vpop.f32.mrf.mxu0
    %v8113 = vadd.f32 0.0, %v8112
    %v8114 = vpop.f32.mrf.mxu0
    %8115 = vmatprep.mubr.f32.mxu0 0.0
    %8116 = vmatmul.mubr.f32.gmra.mxu0 %v7651
    %v8117 = vpop.f32.mrf.mxu0
    %v8118 = vadd.f32 0.0, %v8117
    %v8119 = vpop.f32.mrf.mxu0
    %8120 = vmatprep.mubr.f32.mxu0 0.0
    %8121 = vmatmul.mubr.f32.gmra.mxu0 %v7653
    %v8122 = vpop.f32.mrf.mxu0
    %v8123 = vadd.f32 0.0, %v8122
    %v8124 = vpop.f32.mrf.mxu0
    %8125 = vmatprep.mubr.f32.mxu0 0.0
    %8126 = vmatmul.mubr.f32.gmra.mxu0 %v7655
    %v8127 = vpop.f32.mrf.mxu0
    %v8128 = vadd.f32 0.0, %v8127
    %v8129 = vpop.f32.mrf.mxu0
    %8130 = vmatprep.mubr.f32.mxu0 0.0
    %8131 = vmatmul.mubr.f32.gmra.mxu0 %v8032
    %v8132 = vpop.f32.mrf.mxu0
    %v8133 = vadd.f32 0.0, %v8132
    %v8134 = vpop.f32.mrf.mxu0
    %8135 = vmatprep.mubr.f32.mxu0 0.0
    %8136 = vmatmul.mubr.f32.gmra.mxu0 %v8034
    %v8137 = vpop.f32.mrf.mxu0
    %v8138 = vadd.f32 0.0, %v8137
    %v8139 = vpop.f32.mrf.mxu0
    %8140 = vdwg.mxu0
    %v8141 = vadd.f32 %v8021, %v8103
    %v8142 = vadd.f32 %v8022, %v8108
    %v8143 = vadd.f32 %v8023, %v8113
    %v8144 = vadd.f32 %v8024, %v8118
    %v8145 = vadd.f32 %v8025, %v8123
    %v8146 = vadd.f32 %v8026, %v8128
    %v8147 = vadd.f32 %v8027, %v8133
    %v8148 = vadd.f32 %v8028, %v8138
    %v8149 = vrot.slane %v7607, 2
    %v8150 = vsel %vm2847, %v7898, %v8149
    %v8151 = vsel %vm703, %v8150, 0
    %v8153 = vsel %vm703, %v8149, 0
    %8155 = vmatprep.subr.mxu0 0.0
    %8156 = vmatpush1.msra.mxu0 0.0
    %8157 = vmatprep.subr.mxu0 0.0
    %8158 = vmatpush1.msra.mxu0 0.0
    %8159 = vmatprep.subr.mxu0 0.0
    %8160 = vmatpush1.msra.mxu0 0.0
    %8161 = vmatprep.subr.mxu0 0.0
    %8162 = vmatpush1.msra.mxu0 0.0
    %8163 = vmatprep.subr.mxu0 0.0
    %8164 = vmatpush1.msra.mxu0 0.0
    %8165 = vmatprep.subr.mxu0 0.0
    %8166 = vmatpush1.msra.mxu0 0.0
    %8167 = vmatprep.subr.mxu0 0.0
    %8168 = vmatpush1.msra.mxu0 0.0
    %8169 = vmatprep.subr.mxu0 0.0
    %8170 = vmatpush1.msra.mxu0 0.0
    %8171 = vmatprep.subr.mxu0 0.0
    %8172 = vmatpush1.msra.mxu0 0.0
    %8173 = vmatprep.subr.mxu0 0.0
    %8174 = vmatpush1.msra.mxu0 0.0
    %8175 = vmatprep.subr.mxu0 0.0
    %8176 = vmatpush1.msra.mxu0 0.0
    %8177 = vmatprep.subr.mxu0 0.0
    %8178 = vmatpush1.msra.mxu0 0.0
    %8179 = vmatprep.subr.mxu0 0.0
    %8180 = vmatpush1.msra.mxu0 0.0
    %8181 = vmatprep.subr.mxu0 0.0
    %8182 = vmatpush1.msra.mxu0 %v264
    %8183 = vmatprep.subr.mxu0 0.0
    %8184 = vmatpush1.msra.mxu0 %v263
    %8185 = vmatprep.subr.mxu0 0.0
    %8186 = vmatpush1.msra.mxu0 %v262
    %8187 = vmatprep.subr.mxu0 0.0
    %8188 = vmatpush2.msra.mxu0 0.0
    %8189 = vmatprep.subr.mxu0 0.0
    %8190 = vmatpush2.msra.mxu0 0.0
    %8191 = vmatprep.subr.mxu0 0.0
    %8192 = vmatpush2.msra.mxu0 0.0
    %8193 = vmatprep.subr.mxu0 0.0
    %8194 = vmatpush2.msra.mxu0 0.0
    %8195 = vmatprep.subr.mxu0 0.0
    %8196 = vmatpush2.msra.mxu0 0.0
    %8197 = vmatprep.subr.mxu0 0.0
    %8198 = vmatpush2.msra.mxu0 0.0
    %8199 = vmatprep.subr.mxu0 0.0
    %8200 = vmatpush2.msra.mxu0 0.0
    %8201 = vmatprep.subr.mxu0 0.0
    %8202 = vmatpush2.msra.mxu0 0.0
    %8203 = vmatprep.subr.mxu0 0.0
    %8204 = vmatpush2.msra.mxu0 0.0
    %8205 = vmatprep.subr.mxu0 0.0
    %8206 = vmatpush2.msra.mxu0 0.0
    %8207 = vmatprep.subr.mxu0 0.0
    %8208 = vmatpush2.msra.mxu0 0.0
    %8209 = vmatprep.subr.mxu0 0.0
    %8210 = vmatpush2.msra.mxu0 0.0
    %8211 = vmatprep.subr.mxu0 0.0
    %8212 = vmatpush2.msra.mxu0 0.0
    %8213 = vmatprep.subr.mxu0 0.0
    %8214 = vmatpush2.msra.mxu0 0.0
    %8215 = vmatprep.subr.mxu0 0.0
    %8216 = vmatpush2.msra.mxu0 0.0
    %8217 = vmatprep.subr.mxu0 0.0
    %8218 = vmatpush2.msra.mxu0 0.0
    %8219 = vmatprep.mubr.f32.mxu0 0.0
    %8220 = vmatmul.mubr.f32.gmra.mxu0 %v7902
    %v8221 = vpop.f32.mrf.mxu0
    %v8222 = vadd.f32 0.0, %v8221
    %v8223 = vpop.f32.mrf.mxu0
    %8224 = vmatprep.mubr.f32.mxu0 0.0
    %8225 = vmatmul.mubr.f32.gmra.mxu0 %v7904
    %v8226 = vpop.f32.mrf.mxu0
    %v8227 = vadd.f32 0.0, %v8226
    %v8228 = vpop.f32.mrf.mxu0
    %8229 = vmatprep.mubr.f32.mxu0 0.0
    %8230 = vmatmul.mubr.f32.gmra.mxu0 %v7906
    %v8231 = vpop.f32.mrf.mxu0
    %v8232 = vadd.f32 0.0, %v8231
    %v8233 = vpop.f32.mrf.mxu0
    %8234 = vmatprep.mubr.f32.mxu0 0.0
    %8235 = vmatmul.mubr.f32.gmra.mxu0 %v7908
    %v8236 = vpop.f32.mrf.mxu0
    %v8237 = vadd.f32 0.0, %v8236
    %v8238 = vpop.f32.mrf.mxu0
    %8239 = vmatprep.mubr.f32.mxu0 0.0
    %8240 = vmatmul.mubr.f32.gmra.mxu0 %v7910
    %v8241 = vpop.f32.mrf.mxu0
    %v8242 = vadd.f32 0.0, %v8241
    %v8243 = vpop.f32.mrf.mxu0
    %8244 = vmatprep.mubr.f32.mxu0 0.0
    %8245 = vmatmul.mubr.f32.gmra.mxu0 %v7912
    %v8246 = vpop.f32.mrf.mxu0
    %v8247 = vadd.f32 0.0, %v8246
    %v8248 = vpop.f32.mrf.mxu0
    %8249 = vmatprep.mubr.f32.mxu0 0.0
    %8250 = vmatmul.mubr.f32.gmra.mxu0 %v8151
    %v8251 = vpop.f32.mrf.mxu0
    %v8252 = vadd.f32 0.0, %v8251
    %v8253 = vpop.f32.mrf.mxu0
    %8254 = vmatprep.mubr.f32.mxu0 0.0
    %8255 = vmatmul.mubr.f32.gmra.mxu0 %v8153
    %v8256 = vpop.f32.mrf.mxu0
    %v8257 = vadd.f32 0.0, %v8256
    %v8258 = vpop.f32.mrf.mxu0
    %8259 = vdwg.mxu0
    %v8260 = vadd.f32 %v8141, %v8222
    %v8261 = vadd.f32 %v8142, %v8227
    %v8262 = vadd.f32 %v8143, %v8232
    %v8263 = vadd.f32 %v8144, %v8237
    %v8264 = vadd.f32 %v8145, %v8242
    %v8265 = vadd.f32 %v8146, %v8247
    %v8266 = vadd.f32 %v8147, %v8252
    %v8267 = vadd.f32 %v8148, %v8257
    %v8268 = vrot.slane %v7572, 3
    %v8269 = vrot.slane %v7577, 3
    %v8270 = vsel %vm2880, %v8268, %v8269
    %v8271 = vrot.slane %v7582, 3
    %v8272 = vsel %vm2880, %v8269, %v8271
    %v8273 = vrot.slane %v7587, 3
    %v8274 = vsel %vm2880, %v8271, %v8273
    %v8275 = vrot.slane %v7592, 3
    %v8276 = vsel %vm2880, %v8273, %v8275
    %v8277 = vrot.slane %v7597, 3
    %v8278 = vsel %vm2880, %v8275, %v8277
    %v8279 = vrot.slane %v7602, 3
    %v8280 = vsel %vm2880, %v8277, %v8279
    %v8281 = vrot.slane %v7607, 3
    %v8282 = vsel %vm2880, %v8279, %v8281
    %v8283 = vsel %vm703, %v8270, 0
    %v8285 = vsel %vm703, %v8272, 0
    %v8287 = vsel %vm703, %v8274, 0
    %v8289 = vsel %vm703, %v8276, 0
    %v8291 = vsel %vm703, %v8278, 0
    %v8293 = vsel %vm703, %v8280, 0
    %v8295 = vsel %vm703, %v8282, 0
    %v8297 = vsel %vm703, %v8281, 0
    %8299 = vmatprep.subr.mxu0 0.0
    %8300 = vmatpush1.msra.mxu0 0.0
    %8301 = vmatprep.subr.mxu0 0.0
    %8302 = vmatpush1.msra.mxu0 0.0
    %8303 = vmatprep.subr.mxu0 0.0
    %8304 = vmatpush1.msra.mxu0 0.0
    %8305 = vmatprep.subr.mxu0 0.0
    %8306 = vmatpush1.msra.mxu0 0.0
    %8307 = vmatprep.subr.mxu0 0.0
    %8308 = vmatpush1.msra.mxu0 0.0
    %8309 = vmatprep.subr.mxu0 0.0
    %8310 = vmatpush1.msra.mxu0 0.0
    %8311 = vmatprep.subr.mxu0 0.0
    %8312 = vmatpush1.msra.mxu0 0.0
    %8313 = vmatprep.subr.mxu0 0.0
    %8314 = vmatpush1.msra.mxu0 0.0
    %8315 = vmatprep.subr.mxu0 0.0
    %8316 = vmatpush1.msra.mxu0 0.0
    %8317 = vmatprep.subr.mxu0 0.0
    %8318 = vmatpush1.msra.mxu0 0.0
    %8319 = vmatprep.subr.mxu0 0.0
    %8320 = vmatpush1.msra.mxu0 0.0
    %8321 = vmatprep.subr.mxu0 0.0
    %8322 = vmatpush1.msra.mxu0 0.0
    %8323 = vmatprep.subr.mxu0 0.0
    %8324 = vmatpush1.msra.mxu0 0.0
    %8325 = vmatprep.subr.mxu0 0.0
    %8326 = vmatpush1.msra.mxu0 %v267
    %8327 = vmatprep.subr.mxu0 0.0
    %8328 = vmatpush1.msra.mxu0 %v266
    %8329 = vmatprep.subr.mxu0 0.0
    %8330 = vmatpush1.msra.mxu0 %v265
    %8331 = vmatprep.subr.mxu0 0.0
    %8332 = vmatpush2.msra.mxu0 0.0
    %8333 = vmatprep.subr.mxu0 0.0
    %8334 = vmatpush2.msra.mxu0 0.0
    %8335 = vmatprep.subr.mxu0 0.0
    %8336 = vmatpush2.msra.mxu0 0.0
    %8337 = vmatprep.subr.mxu0 0.0
    %8338 = vmatpush2.msra.mxu0 0.0
    %8339 = vmatprep.subr.mxu0 0.0
    %8340 = vmatpush2.msra.mxu0 0.0
    %8341 = vmatprep.subr.mxu0 0.0
    %8342 = vmatpush2.msra.mxu0 0.0
    %8343 = vmatprep.subr.mxu0 0.0
    %8344 = vmatpush2.msra.mxu0 0.0
    %8345 = vmatprep.subr.mxu0 0.0
    %8346 = vmatpush2.msra.mxu0 0.0
    %8347 = vmatprep.subr.mxu0 0.0
    %8348 = vmatpush2.msra.mxu0 0.0
    %8349 = vmatprep.subr.mxu0 0.0
    %8350 = vmatpush2.msra.mxu0 0.0
    %8351 = vmatprep.subr.mxu0 0.0
    %8352 = vmatpush2.msra.mxu0 0.0
    %8353 = vmatprep.subr.mxu0 0.0
    %8354 = vmatpush2.msra.mxu0 0.0
    %8355 = vmatprep.subr.mxu0 0.0
    %8356 = vmatpush2.msra.mxu0 0.0
    %8357 = vmatprep.subr.mxu0 0.0
    %8358 = vmatpush2.msra.mxu0 0.0
    %8359 = vmatprep.subr.mxu0 0.0
    %8360 = vmatpush2.msra.mxu0 0.0
    %8361 = vmatprep.subr.mxu0 0.0
    %8362 = vmatpush2.msra.mxu0 0.0
    %8363 = vmatprep.mubr.f32.mxu0 0.0
    %8364 = vmatmul.mubr.f32.gmra.mxu0 %v8283
    %v8365 = vpop.f32.mrf.mxu0
    %v8366 = vadd.f32 0.0, %v8365
    %v8367 = vpop.f32.mrf.mxu0
    %8368 = vmatprep.mubr.f32.mxu0 0.0
    %8369 = vmatmul.mubr.f32.gmra.mxu0 %v8285
    %v8370 = vpop.f32.mrf.mxu0
    %v8371 = vadd.f32 0.0, %v8370
    %v8372 = vpop.f32.mrf.mxu0
    %8373 = vmatprep.mubr.f32.mxu0 0.0
    %8374 = vmatmul.mubr.f32.gmra.mxu0 %v8287
    %v8375 = vpop.f32.mrf.mxu0
    %v8376 = vadd.f32 0.0, %v8375
    %v8377 = vpop.f32.mrf.mxu0
    %8378 = vmatprep.mubr.f32.mxu0 0.0
    %8379 = vmatmul.mubr.f32.gmra.mxu0 %v8289
    %v8380 = vpop.f32.mrf.mxu0
    %v8381 = vadd.f32 0.0, %v8380
    %v8382 = vpop.f32.mrf.mxu0
    %8383 = vmatprep.mubr.f32.mxu0 0.0
    %8384 = vmatmul.mubr.f32.gmra.mxu0 %v8291
    %v8385 = vpop.f32.mrf.mxu0
    %v8386 = vadd.f32 0.0, %v8385
    %v8387 = vpop.f32.mrf.mxu0
    %8388 = vmatprep.mubr.f32.mxu0 0.0
    %8389 = vmatmul.mubr.f32.gmra.mxu0 %v8293
    %v8390 = vpop.f32.mrf.mxu0
    %v8391 = vadd.f32 0.0, %v8390
    %v8392 = vpop.f32.mrf.mxu0
    %8393 = vmatprep.mubr.f32.mxu0 0.0
    %8394 = vmatmul.mubr.f32.gmra.mxu0 %v8295
    %v8395 = vpop.f32.mrf.mxu0
    %v8396 = vadd.f32 0.0, %v8395
    %v8397 = vpop.f32.mrf.mxu0
    %8398 = vmatprep.mubr.f32.mxu0 0.0
    %8399 = vmatmul.mubr.f32.gmra.mxu0 %v8297
    %v8400 = vpop.f32.mrf.mxu0
    %v8401 = vadd.f32 0.0, %v8400
    %v8402 = vpop.f32.mrf.mxu0
    %8403 = vdwg.mxu0
    %v8404 = vadd.f32 %v8260, %v8366
    %v8405 = vadd.f32 %v8261, %v8371
    %v8406 = vadd.f32 %v8262, %v8376
    %v8407 = vadd.f32 %v8263, %v8381
    %v8408 = vadd.f32 %v8264, %v8386
    %v8409 = vadd.f32 %v8265, %v8391
    %v8410 = vadd.f32 %v8266, %v8396
    %v8411 = vadd.f32 %v8267, %v8401
    %v8413 = vrot.slane %v7612, 2
    %v8414 = vsel %vm2847, %v8149, %v8413
    %v8415 = vsel %vm703, %v8414, 0
    %v8417 = vsel %vm703, %v8413, 0
    %8419 = vmatprep.subr.mxu0 0.0
    %8420 = vmatpush1.msra.mxu0 0.0
    %8421 = vmatprep.subr.mxu0 0.0
    %8422 = vmatpush1.msra.mxu0 0.0
    %8423 = vmatprep.subr.mxu0 0.0
    %8424 = vmatpush1.msra.mxu0 0.0
    %8425 = vmatprep.subr.mxu0 0.0
    %8426 = vmatpush1.msra.mxu0 0.0
    %8427 = vmatprep.subr.mxu0 0.0
    %8428 = vmatpush1.msra.mxu0 0.0
    %8429 = vmatprep.subr.mxu0 0.0
    %8430 = vmatpush1.msra.mxu0 0.0
    %8431 = vmatprep.subr.mxu0 0.0
    %8432 = vmatpush1.msra.mxu0 0.0
    %8433 = vmatprep.subr.mxu0 0.0
    %8434 = vmatpush1.msra.mxu0 0.0
    %8435 = vmatprep.subr.mxu0 0.0
    %8436 = vmatpush1.msra.mxu0 0.0
    %8437 = vmatprep.subr.mxu0 0.0
    %8438 = vmatpush1.msra.mxu0 0.0
    %8439 = vmatprep.subr.mxu0 0.0
    %8440 = vmatpush1.msra.mxu0 0.0
    %8441 = vmatprep.subr.mxu0 0.0
    %8442 = vmatpush1.msra.mxu0 0.0
    %8443 = vmatprep.subr.mxu0 0.0
    %8444 = vmatpush1.msra.mxu0 0.0
    %8445 = vmatprep.subr.mxu0 0.0
    %8446 = vmatpush1.msra.mxu0 %v270
    %8447 = vmatprep.subr.mxu0 0.0
    %8448 = vmatpush1.msra.mxu0 %v269
    %8449 = vmatprep.subr.mxu0 0.0
    %8450 = vmatpush1.msra.mxu0 %v268
    %8451 = vmatprep.subr.mxu0 0.0
    %8452 = vmatpush2.msra.mxu0 0.0
    %8453 = vmatprep.subr.mxu0 0.0
    %8454 = vmatpush2.msra.mxu0 0.0
    %8455 = vmatprep.subr.mxu0 0.0
    %8456 = vmatpush2.msra.mxu0 0.0
    %8457 = vmatprep.subr.mxu0 0.0
    %8458 = vmatpush2.msra.mxu0 0.0
    %8459 = vmatprep.subr.mxu0 0.0
    %8460 = vmatpush2.msra.mxu0 0.0
    %8461 = vmatprep.subr.mxu0 0.0
    %8462 = vmatpush2.msra.mxu0 0.0
    %8463 = vmatprep.subr.mxu0 0.0
    %8464 = vmatpush2.msra.mxu0 0.0
    %8465 = vmatprep.subr.mxu0 0.0
    %8466 = vmatpush2.msra.mxu0 0.0
    %8467 = vmatprep.subr.mxu0 0.0
    %8468 = vmatpush2.msra.mxu0 0.0
    %8469 = vmatprep.subr.mxu0 0.0
    %8470 = vmatpush2.msra.mxu0 0.0
    %8471 = vmatprep.subr.mxu0 0.0
    %8472 = vmatpush2.msra.mxu0 0.0
    %8473 = vmatprep.subr.mxu0 0.0
    %8474 = vmatpush2.msra.mxu0 0.0
    %8475 = vmatprep.subr.mxu0 0.0
    %8476 = vmatpush2.msra.mxu0 0.0
    %8477 = vmatprep.subr.mxu0 0.0
    %8478 = vmatpush2.msra.mxu0 0.0
    %8479 = vmatprep.subr.mxu0 0.0
    %8480 = vmatpush2.msra.mxu0 0.0
    %8481 = vmatprep.subr.mxu0 0.0
    %8482 = vmatpush2.msra.mxu0 0.0
    %8483 = vmatprep.mubr.f32.mxu0 0.0
    %8484 = vmatmul.mubr.f32.gmra.mxu0 %v7904
    %v8485 = vpop.f32.mrf.mxu0
    %v8486 = vadd.f32 0.0, %v8485
    %v8487 = vpop.f32.mrf.mxu0
    %8488 = vmatprep.mubr.f32.mxu0 0.0
    %8489 = vmatmul.mubr.f32.gmra.mxu0 %v7906
    %v8490 = vpop.f32.mrf.mxu0
    %v8491 = vadd.f32 0.0, %v8490
    %v8492 = vpop.f32.mrf.mxu0
    %8493 = vmatprep.mubr.f32.mxu0 0.0
    %8494 = vmatmul.mubr.f32.gmra.mxu0 %v7908
    %v8495 = vpop.f32.mrf.mxu0
    %v8496 = vadd.f32 0.0, %v8495
    %v8497 = vpop.f32.mrf.mxu0
    %8498 = vmatprep.mubr.f32.mxu0 0.0
    %8499 = vmatmul.mubr.f32.gmra.mxu0 %v7910
    %v8500 = vpop.f32.mrf.mxu0
    %v8501 = vadd.f32 0.0, %v8500
    %v8502 = vpop.f32.mrf.mxu0
    %8503 = vmatprep.mubr.f32.mxu0 0.0
    %8504 = vmatmul.mubr.f32.gmra.mxu0 %v7912
    %v8505 = vpop.f32.mrf.mxu0
    %v8506 = vadd.f32 0.0, %v8505
    %v8507 = vpop.f32.mrf.mxu0
    %8508 = vmatprep.mubr.f32.mxu0 0.0
    %8509 = vmatmul.mubr.f32.gmra.mxu0 %v8151
    %v8510 = vpop.f32.mrf.mxu0
    %v8511 = vadd.f32 0.0, %v8510
    %v8512 = vpop.f32.mrf.mxu0
    %8513 = vmatprep.mubr.f32.mxu0 0.0
    %8514 = vmatmul.mubr.f32.gmra.mxu0 %v8415
    %v8515 = vpop.f32.mrf.mxu0
    %v8516 = vadd.f32 0.0, %v8515
    %v8517 = vpop.f32.mrf.mxu0
    %8518 = vmatprep.mubr.f32.mxu0 0.0
    %8519 = vmatmul.mubr.f32.gmra.mxu0 %v8417
    %v8520 = vpop.f32.mrf.mxu0
    %v8521 = vadd.f32 0.0, %v8520
    %v8522 = vpop.f32.mrf.mxu0
    %8523 = vdwg.mxu0
    %v8524 = vadd.f32 %v8404, %v8486
    %v8525 = vadd.f32 %v8405, %v8491
    %v8526 = vadd.f32 %v8406, %v8496
    %v8527 = vadd.f32 %v8407, %v8501
    %v8528 = vadd.f32 %v8408, %v8506
    %v8529 = vadd.f32 %v8409, %v8511
    %v8530 = vadd.f32 %v8410, %v8516
    %v8531 = vadd.f32 %v8411, %v8521
    %v8532 = vrot.slane %v7612, 3
    %v8533 = vsel %vm2880, %v8281, %v8532
    %v8534 = vsel %vm703, %v8533, 0
    %v8536 = vsel %vm703, %v8532, 0
    %8538 = vmatprep.subr.mxu0 0.0
    %8539 = vmatpush1.msra.mxu0 0.0
    %8540 = vmatprep.subr.mxu0 0.0
    %8541 = vmatpush1.msra.mxu0 0.0
    %8542 = vmatprep.subr.mxu0 0.0
    %8543 = vmatpush1.msra.mxu0 0.0
    %8544 = vmatprep.subr.mxu0 0.0
    %8545 = vmatpush1.msra.mxu0 0.0
    %8546 = vmatprep.subr.mxu0 0.0
    %8547 = vmatpush1.msra.mxu0 0.0
    %8548 = vmatprep.subr.mxu0 0.0
    %8549 = vmatpush1.msra.mxu0 0.0
    %8550 = vmatprep.subr.mxu0 0.0
    %8551 = vmatpush1.msra.mxu0 0.0
    %8552 = vmatprep.subr.mxu0 0.0
    %8553 = vmatpush1.msra.mxu0 0.0
    %8554 = vmatprep.subr.mxu0 0.0
    %8555 = vmatpush1.msra.mxu0 0.0
    %8556 = vmatprep.subr.mxu0 0.0
    %8557 = vmatpush1.msra.mxu0 0.0
    %8558 = vmatprep.subr.mxu0 0.0
    %8559 = vmatpush1.msra.mxu0 0.0
    %8560 = vmatprep.subr.mxu0 0.0
    %8561 = vmatpush1.msra.mxu0 0.0
    %8562 = vmatprep.subr.mxu0 0.0
    %8563 = vmatpush1.msra.mxu0 0.0
    %8564 = vmatprep.subr.mxu0 0.0
    %8565 = vmatpush1.msra.mxu0 %v273
    %8566 = vmatprep.subr.mxu0 0.0
    %8567 = vmatpush1.msra.mxu0 %v272
    %8568 = vmatprep.subr.mxu0 0.0
    %8569 = vmatpush1.msra.mxu0 %v271
    %8570 = vmatprep.subr.mxu0 0.0
    %8571 = vmatpush2.msra.mxu0 0.0
    %8572 = vmatprep.subr.mxu0 0.0
    %8573 = vmatpush2.msra.mxu0 0.0
    %8574 = vmatprep.subr.mxu0 0.0
    %8575 = vmatpush2.msra.mxu0 0.0
    %8576 = vmatprep.subr.mxu0 0.0
    %8577 = vmatpush2.msra.mxu0 0.0
    %8578 = vmatprep.subr.mxu0 0.0
    %8579 = vmatpush2.msra.mxu0 0.0
    %8580 = vmatprep.subr.mxu0 0.0
    %8581 = vmatpush2.msra.mxu0 0.0
    %8582 = vmatprep.subr.mxu0 0.0
    %8583 = vmatpush2.msra.mxu0 0.0
    %8584 = vmatprep.subr.mxu0 0.0
    %8585 = vmatpush2.msra.mxu0 0.0
    %8586 = vmatprep.subr.mxu0 0.0
    %8587 = vmatpush2.msra.mxu0 0.0
    %8588 = vmatprep.subr.mxu0 0.0
    %8589 = vmatpush2.msra.mxu0 0.0
    %8590 = vmatprep.subr.mxu0 0.0
    %8591 = vmatpush2.msra.mxu0 0.0
    %8592 = vmatprep.subr.mxu0 0.0
    %8593 = vmatpush2.msra.mxu0 0.0
    %8594 = vmatprep.subr.mxu0 0.0
    %8595 = vmatpush2.msra.mxu0 0.0
    %8596 = vmatprep.subr.mxu0 0.0
    %8597 = vmatpush2.msra.mxu0 0.0
    %8598 = vmatprep.subr.mxu0 0.0
    %8599 = vmatpush2.msra.mxu0 0.0
    %8600 = vmatprep.subr.mxu0 0.0
    %8601 = vmatpush2.msra.mxu0 0.0
    %8602 = vmatprep.mubr.f32.mxu0 0.0
    %8603 = vmatmul.mubr.f32.gmra.mxu0 %v8285
    %v8604 = vpop.f32.mrf.mxu0
    %v8605 = vadd.f32 0.0, %v8604
    %v8606 = vpop.f32.mrf.mxu0
    %8607 = vmatprep.mubr.f32.mxu0 0.0
    %8608 = vmatmul.mubr.f32.gmra.mxu0 %v8287
    %v8609 = vpop.f32.mrf.mxu0
    %v8610 = vadd.f32 0.0, %v8609
    %v8611 = vpop.f32.mrf.mxu0
    %8612 = vmatprep.mubr.f32.mxu0 0.0
    %8613 = vmatmul.mubr.f32.gmra.mxu0 %v8289
    %v8614 = vpop.f32.mrf.mxu0
    %v8615 = vadd.f32 0.0, %v8614
    %v8616 = vpop.f32.mrf.mxu0
    %8617 = vmatprep.mubr.f32.mxu0 0.0
    %8618 = vmatmul.mubr.f32.gmra.mxu0 %v8291
    %v8619 = vpop.f32.mrf.mxu0
    %v8620 = vadd.f32 0.0, %v8619
    %v8621 = vpop.f32.mrf.mxu0
    %8622 = vmatprep.mubr.f32.mxu0 0.0
    %8623 = vmatmul.mubr.f32.gmra.mxu0 %v8293
    %v8624 = vpop.f32.mrf.mxu0
    %v8625 = vadd.f32 0.0, %v8624
    %v8626 = vpop.f32.mrf.mxu0
    %8627 = vmatprep.mubr.f32.mxu0 0.0
    %8628 = vmatmul.mubr.f32.gmra.mxu0 %v8295
    %v8629 = vpop.f32.mrf.mxu0
    %v8630 = vadd.f32 0.0, %v8629
    %v8631 = vpop.f32.mrf.mxu0
    %8632 = vmatprep.mubr.f32.mxu0 0.0
    %8633 = vmatmul.mubr.f32.gmra.mxu0 %v8534
    %v8634 = vpop.f32.mrf.mxu0
    %v8635 = vadd.f32 0.0, %v8634
    %v8636 = vpop.f32.mrf.mxu0
    %8637 = vmatprep.mubr.f32.mxu0 0.0
    %8638 = vmatmul.mubr.f32.gmra.mxu0 %v8536
    %v8639 = vpop.f32.mrf.mxu0
    %v8640 = vadd.f32 0.0, %v8639
    %v8641 = vpop.f32.mrf.mxu0
    %8642 = vdwg.mxu0
    %v8643 = vadd.f32 %v8524, %v8605
    %v8644 = vadd.f32 %v8525, %v8610
    %v8645 = vadd.f32 %v8526, %v8615
    %v8646 = vadd.f32 %v8527, %v8620
    %v8647 = vadd.f32 %v8528, %v8625
    %v8648 = vadd.f32 %v8529, %v8630
    %v8649 = vadd.f32 %v8530, %v8635
    %v8650 = vadd.f32 %v8531, %v8640
    %v8652 = vrot.slane %v7577, 4
    %v8653 = vrot.slane %v7582, 4
    %v8654 = vsel %vm2914, %v8652, %v8653
    %v8655 = vrot.slane %v7587, 4
    %v8656 = vsel %vm2914, %v8653, %v8655
    %v8657 = vrot.slane %v7592, 4
    %v8658 = vsel %vm2914, %v8655, %v8657
    %v8659 = vrot.slane %v7597, 4
    %v8660 = vsel %vm2914, %v8657, %v8659
    %v8661 = vrot.slane %v7602, 4
    %v8662 = vsel %vm2914, %v8659, %v8661
    %v8663 = vrot.slane %v7607, 4
    %v8664 = vsel %vm2914, %v8661, %v8663
    %v8665 = vrot.slane %v7612, 4
    %v8666 = vsel %vm2914, %v8663, %v8665
    %v8667 = vrot.slane %v7617, 4
    %v8668 = vsel %vm2914, %v8665, %v8667
    %v8669 = vsel %vm703, %v8654, 0
    %v8671 = vsel %vm703, %v8656, 0
    %v8673 = vsel %vm703, %v8658, 0
    %v8675 = vsel %vm703, %v8660, 0
    %v8677 = vsel %vm703, %v8662, 0
    %v8679 = vsel %vm703, %v8664, 0
    %v8681 = vsel %vm703, %v8666, 0
    %v8683 = vsel %vm703, %v8668, 0
    %8685 = vmatprep.subr.mxu0 0.0
    %8686 = vmatpush1.msra.mxu0 0.0
    %8687 = vmatprep.subr.mxu0 0.0
    %8688 = vmatpush1.msra.mxu0 0.0
    %8689 = vmatprep.subr.mxu0 0.0
    %8690 = vmatpush1.msra.mxu0 0.0
    %8691 = vmatprep.subr.mxu0 0.0
    %8692 = vmatpush1.msra.mxu0 0.0
    %8693 = vmatprep.subr.mxu0 0.0
    %8694 = vmatpush1.msra.mxu0 0.0
    %8695 = vmatprep.subr.mxu0 0.0
    %8696 = vmatpush1.msra.mxu0 0.0
    %8697 = vmatprep.subr.mxu0 0.0
    %8698 = vmatpush1.msra.mxu0 0.0
    %8699 = vmatprep.subr.mxu0 0.0
    %8700 = vmatpush1.msra.mxu0 0.0
    %8701 = vmatprep.subr.mxu0 0.0
    %8702 = vmatpush1.msra.mxu0 0.0
    %8703 = vmatprep.subr.mxu0 0.0
    %8704 = vmatpush1.msra.mxu0 0.0
    %8705 = vmatprep.subr.mxu0 0.0
    %8706 = vmatpush1.msra.mxu0 0.0
    %8707 = vmatprep.subr.mxu0 0.0
    %8708 = vmatpush1.msra.mxu0 0.0
    %8709 = vmatprep.subr.mxu0 0.0
    %8710 = vmatpush1.msra.mxu0 0.0
    %8711 = vmatprep.subr.mxu0 0.0
    %8712 = vmatpush1.msra.mxu0 %v276
    %8713 = vmatprep.subr.mxu0 0.0
    %8714 = vmatpush1.msra.mxu0 %v275
    %8715 = vmatprep.subr.mxu0 0.0
    %8716 = vmatpush1.msra.mxu0 %v274
    %8717 = vmatprep.subr.mxu0 0.0
    %8718 = vmatpush2.msra.mxu0 0.0
    %8719 = vmatprep.subr.mxu0 0.0
    %8720 = vmatpush2.msra.mxu0 0.0
    %8721 = vmatprep.subr.mxu0 0.0
    %8722 = vmatpush2.msra.mxu0 0.0
    %8723 = vmatprep.subr.mxu0 0.0
    %8724 = vmatpush2.msra.mxu0 0.0
    %8725 = vmatprep.subr.mxu0 0.0
    %8726 = vmatpush2.msra.mxu0 0.0
    %8727 = vmatprep.subr.mxu0 0.0
    %8728 = vmatpush2.msra.mxu0 0.0
    %8729 = vmatprep.subr.mxu0 0.0
    %8730 = vmatpush2.msra.mxu0 0.0
    %8731 = vmatprep.subr.mxu0 0.0
    %8732 = vmatpush2.msra.mxu0 0.0
    %8733 = vmatprep.subr.mxu0 0.0
    %8734 = vmatpush2.msra.mxu0 0.0
    %8735 = vmatprep.subr.mxu0 0.0
    %8736 = vmatpush2.msra.mxu0 0.0
    %8737 = vmatprep.subr.mxu0 0.0
    %8738 = vmatpush2.msra.mxu0 0.0
    %8739 = vmatprep.subr.mxu0 0.0
    %8740 = vmatpush2.msra.mxu0 0.0
    %8741 = vmatprep.subr.mxu0 0.0
    %8742 = vmatpush2.msra.mxu0 0.0
    %8743 = vmatprep.subr.mxu0 0.0
    %8744 = vmatpush2.msra.mxu0 0.0
    %8745 = vmatprep.subr.mxu0 0.0
    %8746 = vmatpush2.msra.mxu0 0.0
    %8747 = vmatprep.subr.mxu0 0.0
    %8748 = vmatpush2.msra.mxu0 0.0
    %8749 = vmatprep.mubr.f32.mxu0 0.0
    %8750 = vmatmul.mubr.f32.gmra.mxu0 %v8669
    %v8751 = vpop.f32.mrf.mxu0
    %v8752 = vadd.f32 0.0, %v8751
    %v8753 = vpop.f32.mrf.mxu0
    %8754 = vmatprep.mubr.f32.mxu0 0.0
    %8755 = vmatmul.mubr.f32.gmra.mxu0 %v8671
    %v8756 = vpop.f32.mrf.mxu0
    %v8757 = vadd.f32 0.0, %v8756
    %v8758 = vpop.f32.mrf.mxu0
    %8759 = vmatprep.mubr.f32.mxu0 0.0
    %8760 = vmatmul.mubr.f32.gmra.mxu0 %v8673
    %v8761 = vpop.f32.mrf.mxu0
    %v8762 = vadd.f32 0.0, %v8761
    %v8763 = vpop.f32.mrf.mxu0
    %8764 = vmatprep.mubr.f32.mxu0 0.0
    %8765 = vmatmul.mubr.f32.gmra.mxu0 %v8675
    %v8766 = vpop.f32.mrf.mxu0
    %v8767 = vadd.f32 0.0, %v8766
    %v8768 = vpop.f32.mrf.mxu0
    %8769 = vmatprep.mubr.f32.mxu0 0.0
    %8770 = vmatmul.mubr.f32.gmra.mxu0 %v8677
    %v8771 = vpop.f32.mrf.mxu0
    %v8772 = vadd.f32 0.0, %v8771
    %v8773 = vpop.f32.mrf.mxu0
    %8774 = vmatprep.mubr.f32.mxu0 0.0
    %8775 = vmatmul.mubr.f32.gmra.mxu0 %v8679
    %v8776 = vpop.f32.mrf.mxu0
    %v8777 = vadd.f32 0.0, %v8776
    %v8778 = vpop.f32.mrf.mxu0
    %8779 = vmatprep.mubr.f32.mxu0 0.0
    %8780 = vmatmul.mubr.f32.gmra.mxu0 %v8681
    %v8781 = vpop.f32.mrf.mxu0
    %v8782 = vadd.f32 0.0, %v8781
    %v8783 = vpop.f32.mrf.mxu0
    %8784 = vmatprep.mubr.f32.mxu0 0.0
    %8785 = vmatmul.mubr.f32.gmra.mxu0 %v8683
    %v8786 = vpop.f32.mrf.mxu0
    %v8787 = vadd.f32 0.0, %v8786
    %v8788 = vpop.f32.mrf.mxu0
    %8789 = vdwg.mxu0
    %v8790 = vadd.f32 %v8643, %v8752
    %v8791 = vadd.f32 %v8644, %v8757
    %v8792 = vadd.f32 %v8645, %v8762
    %v8793 = vadd.f32 %v8646, %v8767
    %v8794 = vadd.f32 %v8647, %v8772
    %v8795 = vadd.f32 %v8648, %v8777
    %v8796 = vadd.f32 %v8649, %v8782
    %v8797 = vadd.f32 %v8650, %v8787
    %v8798 = vlaneseq
    %v8799 = vshrl.u32 %v8798, 7
    %v8800 = vsub.s32 6, %v8799
    %v8801 = vrot.slane %v55, %v8800
    %v8802 = vadd.f32 %v8790, %v8801
    %v8803 = vadd.f32 %v8791, %v8801
    %v8804 = vadd.f32 %v8792, %v8801
    %v8805 = vadd.f32 %v8793, %v8801
    %v8806 = vadd.f32 %v8794, %v8801
    %v8807 = vadd.f32 %v8795, %v8801
    %v8808 = vadd.f32 %v8796, %v8801
    %v8809 = vadd.f32 %v8797, %v8801
    %v8810 = vadd.f32 %v8802, %v4487
    %v8811 = vadd.f32 %v8803, %v4492
    %v8812 = vadd.f32 %v8804, %v4497
    %v8813 = vadd.f32 %v8805, %v4502
    %v8814 = vadd.f32 %v8806, %v4507
    %v8815 = vadd.f32 %v8807, %v4512
    %v8816 = vadd.f32 %v8808, %v4517
    %v8817 = vadd.f32 %v8809, %v4522
    %v8819 = vsel %vm2880, %v7496, 0
    %8821 = vmatprep.subr.mxu0 0.0
    %8822 = vmatpush1.msra.mxu0 0.0
    %8823 = vmatprep.subr.mxu0 0.0
    %8824 = vmatpush1.msra.mxu0 0.0
    %8825 = vmatprep.subr.mxu0 0.0
    %8826 = vmatpush1.msra.mxu0 0.0
    %8827 = vmatprep.subr.mxu0 0.0
    %8828 = vmatpush1.msra.mxu0 0.0
    %8829 = vmatprep.subr.mxu0 0.0
    %8830 = vmatpush1.msra.mxu0 0.0
    %8831 = vmatprep.subr.mxu0 0.0
    %8832 = vmatpush1.msra.mxu0 0.0
    %8833 = vmatprep.subr.mxu0 0.0
    %8834 = vmatpush1.msra.mxu0 0.0
    %8835 = vmatprep.subr.mxu0 0.0
    %8836 = vmatpush1.msra.mxu0 0.0
    %8837 = vmatprep.subr.mxu0 0.0
    %8838 = vmatpush1.msra.mxu0 %v8819
    %8839 = vmatprep.subr.mxu0 0.0
    %8840 = vmatpush1.msra.mxu0 %v7495
    %8841 = vmatprep.subr.mxu0 0.0
    %8842 = vmatpush1.msra.mxu0 %v7494
    %8843 = vmatprep.subr.mxu0 0.0
    %8844 = vmatpush1.msra.mxu0 %v7493
    %8845 = vmatprep.subr.mxu0 0.0
    %8846 = vmatpush1.msra.mxu0 %v7492
    %8847 = vmatprep.subr.mxu0 0.0
    %8848 = vmatpush1.msra.mxu0 %v7491
    %8849 = vmatprep.subr.mxu0 0.0
    %8850 = vmatpush1.msra.mxu0 %v7490
    %8851 = vmatprep.subr.mxu0 0.0
    %8852 = vmatpush1.msra.mxu0 %v7489
    %8853 = vmatprep.subr.mxu0 0.0
    %8854 = vmatpush2.msra.mxu0 0.0
    %8855 = vmatprep.subr.mxu0 0.0
    %8856 = vmatpush2.msra.mxu0 0.0
    %8857 = vmatprep.subr.mxu0 0.0
    %8858 = vmatpush2.msra.mxu0 0.0
    %8859 = vmatprep.subr.mxu0 0.0
    %8860 = vmatpush2.msra.mxu0 0.0
    %8861 = vmatprep.subr.mxu0 0.0
    %8862 = vmatpush2.msra.mxu0 0.0
    %8863 = vmatprep.subr.mxu0 0.0
    %8864 = vmatpush2.msra.mxu0 0.0
    %8865 = vmatprep.subr.mxu0 0.0
    %8866 = vmatpush2.msra.mxu0 0.0
    %8867 = vmatprep.subr.mxu0 0.0
    %8868 = vmatpush2.msra.mxu0 0.0
    %8869 = vmatprep.subr.mxu0 0.0
    %8870 = vmatpush2.msra.mxu0 0.0
    %8871 = vmatprep.subr.mxu0 0.0
    %8872 = vmatpush2.msra.mxu0 0.0
    %8873 = vmatprep.subr.mxu0 0.0
    %8874 = vmatpush2.msra.mxu0 0.0
    %8875 = vmatprep.subr.mxu0 0.0
    %8876 = vmatpush2.msra.mxu0 0.0
    %8877 = vmatprep.subr.mxu0 0.0
    %8878 = vmatpush2.msra.mxu0 0.0
    %8879 = vmatprep.subr.mxu0 0.0
    %8880 = vmatpush2.msra.mxu0 0.0
    %8881 = vmatprep.subr.mxu0 0.0
    %8882 = vmatpush2.msra.mxu0 0.0
    %8883 = vmatprep.subr.mxu0 0.0
    %8884 = vmatpush2.msra.mxu0 0.0
    %8885 = vmatprep.mubr.f32.mxu0 0.0
    %8886 = vmatmul.mubr.f32.gmra.mxu0 %v4656
    %v8887 = vpop.f32.mrf.mxu0
    %v8888 = vadd.f32 0.0, %v8887
    %v8889 = vpop.f32.mrf.mxu0
    %8890 = vmatprep.mubr.f32.mxu0 0.0
    %8891 = vmatmul.mubr.f32.gmra.mxu0 %v4659
    %v8892 = vpop.f32.mrf.mxu0
    %v8893 = vadd.f32 0.0, %v8892
    %v8894 = vpop.f32.mrf.mxu0
    %8895 = vmatprep.mubr.f32.mxu0 0.0
    %8896 = vmatmul.mubr.f32.gmra.mxu0 %v4662
    %v8897 = vpop.f32.mrf.mxu0
    %v8898 = vadd.f32 0.0, %v8897
    %v8899 = vpop.f32.mrf.mxu0
    %8900 = vmatprep.mubr.f32.mxu0 0.0
    %8901 = vmatmul.mubr.f32.gmra.mxu0 %v4665
    %v8902 = vpop.f32.mrf.mxu0
    %v8903 = vadd.f32 0.0, %v8902
    %v8904 = vpop.f32.mrf.mxu0
    %8905 = vmatprep.mubr.f32.mxu0 0.0
    %8906 = vmatmul.mubr.f32.gmra.mxu0 %v4668
    %v8907 = vpop.f32.mrf.mxu0
    %v8908 = vadd.f32 0.0, %v8907
    %v8909 = vpop.f32.mrf.mxu0
    %8910 = vmatprep.mubr.f32.mxu0 0.0
    %8911 = vmatmul.mubr.f32.gmra.mxu0 %v4671
    %v8912 = vpop.f32.mrf.mxu0
    %v8913 = vadd.f32 0.0, %v8912
    %v8914 = vpop.f32.mrf.mxu0
    %8915 = vmatprep.mubr.f32.mxu0 0.0
    %8916 = vmatmul.mubr.f32.gmra.mxu0 %v4674
    %v8917 = vpop.f32.mrf.mxu0
    %v8918 = vadd.f32 0.0, %v8917
    %v8919 = vpop.f32.mrf.mxu0
    %8920 = vmatprep.mubr.f32.mxu0 0.0
    %8921 = vmatmul.mubr.f32.gmra.mxu0 %v4677
    %v8922 = vpop.f32.mrf.mxu0
    %v8923 = vadd.f32 0.0, %v8922
    %v8924 = vpop.f32.mrf.mxu0
    %8925 = vmatprep.mubr.f32.mxu0 0.0
    %8926 = vmatmul.mubr.f32.gmra.mxu0 %v4680
    %v8927 = vpop.f32.mrf.mxu0
    %v8928 = vadd.f32 0.0, %v8927
    %v8929 = vpop.f32.mrf.mxu0
    %8930 = vmatprep.mubr.f32.mxu0 0.0
    %8931 = vmatmul.mubr.f32.gmra.mxu0 %v4683
    %v8932 = vpop.f32.mrf.mxu0
    %v8933 = vadd.f32 0.0, %v8932
    %v8934 = vpop.f32.mrf.mxu0
    %8935 = vmatprep.mubr.f32.mxu0 0.0
    %8936 = vmatmul.mubr.f32.gmra.mxu0 %v4686
    %v8937 = vpop.f32.mrf.mxu0
    %v8938 = vadd.f32 0.0, %v8937
    %v8939 = vpop.f32.mrf.mxu0
    %8940 = vdwg.mxu0
    %v8949 = vrot.slane %v8888, 1
    %v8950 = vrot.slane %v8893, 1
    %v8951 = vsel %vm2823, %v8949, %v8950
    %v8952 = vrot.slane %v8898, 1
    %v8953 = vsel %vm2823, %v8950, %v8952
    %v8954 = vrot.slane %v8903, 1
    %v8955 = vsel %vm2823, %v8952, %v8954
    %v8956 = vrot.slane %v8908, 1
    %v8957 = vsel %vm2823, %v8954, %v8956
    %v8958 = vrot.slane %v8913, 1
    %v8959 = vsel %vm2823, %v8956, %v8958
    %v8960 = vrot.slane %v8918, 1
    %v8961 = vsel %vm2823, %v8958, %v8960
    %v8962 = vrot.slane %v8923, 1
    %v8963 = vsel %vm2823, %v8960, %v8962
    %v8964 = vsel %vm703, %v8951, 0
    %v8966 = vsel %vm703, %v8953, 0
    %v8968 = vsel %vm703, %v8955, 0
    %v8970 = vsel %vm703, %v8957, 0
    %v8972 = vsel %vm703, %v8959, 0
    %v8974 = vsel %vm703, %v8961, 0
    %v8976 = vsel %vm703, %v8963, 0
    %v8978 = vsel %vm703, %v8962, 0
    %8980 = vmatprep.subr.mxu0 0.0
    %8981 = vmatpush1.msra.mxu0 0.0
    %8982 = vmatprep.subr.mxu0 0.0
    %8983 = vmatpush1.msra.mxu0 0.0
    %8984 = vmatprep.subr.mxu0 0.0
    %8985 = vmatpush1.msra.mxu0 0.0
    %8986 = vmatprep.subr.mxu0 0.0
    %8987 = vmatpush1.msra.mxu0 0.0
    %8988 = vmatprep.subr.mxu0 0.0
    %8989 = vmatpush1.msra.mxu0 0.0
    %8990 = vmatprep.subr.mxu0 0.0
    %8991 = vmatpush1.msra.mxu0 0.0
    %8992 = vmatprep.subr.mxu0 0.0
    %8993 = vmatpush1.msra.mxu0 0.0
    %8994 = vmatprep.subr.mxu0 0.0
    %8995 = vmatpush1.msra.mxu0 0.0
    %8996 = vmatprep.subr.mxu0 0.0
    %8997 = vmatpush1.msra.mxu0 0.0
    %8998 = vmatprep.subr.mxu0 0.0
    %8999 = vmatpush1.msra.mxu0 0.0
    %9000 = vmatprep.subr.mxu0 0.0
    %9001 = vmatpush1.msra.mxu0 0.0
    %9002 = vmatprep.subr.mxu0 0.0
    %9003 = vmatpush1.msra.mxu0 0.0
    %9004 = vmatprep.subr.mxu0 0.0
    %9005 = vmatpush1.msra.mxu0 0.0
    %9006 = vmatprep.subr.mxu0 0.0
    %9007 = vmatpush1.msra.mxu0 %v255
    %9008 = vmatprep.subr.mxu0 0.0
    %9009 = vmatpush1.msra.mxu0 %v254
    %9010 = vmatprep.subr.mxu0 0.0
    %9011 = vmatpush1.msra.mxu0 %v253
    %9012 = vmatprep.subr.mxu0 0.0
    %9013 = vmatpush2.msra.mxu0 0.0
    %9014 = vmatprep.subr.mxu0 0.0
    %9015 = vmatpush2.msra.mxu0 0.0
    %9016 = vmatprep.subr.mxu0 0.0
    %9017 = vmatpush2.msra.mxu0 0.0
    %9018 = vmatprep.subr.mxu0 0.0
    %9019 = vmatpush2.msra.mxu0 0.0
    %9020 = vmatprep.subr.mxu0 0.0
    %9021 = vmatpush2.msra.mxu0 0.0
    %9022 = vmatprep.subr.mxu0 0.0
    %9023 = vmatpush2.msra.mxu0 0.0
    %9024 = vmatprep.subr.mxu0 0.0
    %9025 = vmatpush2.msra.mxu0 0.0
    %9026 = vmatprep.subr.mxu0 0.0
    %9027 = vmatpush2.msra.mxu0 0.0
    %9028 = vmatprep.subr.mxu0 0.0
    %9029 = vmatpush2.msra.mxu0 0.0
    %9030 = vmatprep.subr.mxu0 0.0
    %9031 = vmatpush2.msra.mxu0 0.0
    %9032 = vmatprep.subr.mxu0 0.0
    %9033 = vmatpush2.msra.mxu0 0.0
    %9034 = vmatprep.subr.mxu0 0.0
    %9035 = vmatpush2.msra.mxu0 0.0
    %9036 = vmatprep.subr.mxu0 0.0
    %9037 = vmatpush2.msra.mxu0 0.0
    %9038 = vmatprep.subr.mxu0 0.0
    %9039 = vmatpush2.msra.mxu0 0.0
    %9040 = vmatprep.subr.mxu0 0.0
    %9041 = vmatpush2.msra.mxu0 0.0
    %9042 = vmatprep.subr.mxu0 0.0
    %9043 = vmatpush2.msra.mxu0 0.0
    %9044 = vmatprep.mubr.f32.mxu0 0.0
    %9045 = vmatmul.mubr.f32.gmra.mxu0 %v8964
    %v9046 = vpop.f32.mrf.mxu0
    %v9047 = vadd.f32 0.0, %v9046
    %v9048 = vpop.f32.mrf.mxu0
    %9049 = vmatprep.mubr.f32.mxu0 0.0
    %9050 = vmatmul.mubr.f32.gmra.mxu0 %v8966
    %v9051 = vpop.f32.mrf.mxu0
    %v9052 = vadd.f32 0.0, %v9051
    %v9053 = vpop.f32.mrf.mxu0
    %9054 = vmatprep.mubr.f32.mxu0 0.0
    %9055 = vmatmul.mubr.f32.gmra.mxu0 %v8968
    %v9056 = vpop.f32.mrf.mxu0
    %v9057 = vadd.f32 0.0, %v9056
    %v9058 = vpop.f32.mrf.mxu0
    %9059 = vmatprep.mubr.f32.mxu0 0.0
    %9060 = vmatmul.mubr.f32.gmra.mxu0 %v8970
    %v9061 = vpop.f32.mrf.mxu0
    %v9062 = vadd.f32 0.0, %v9061
    %v9063 = vpop.f32.mrf.mxu0
    %9064 = vmatprep.mubr.f32.mxu0 0.0
    %9065 = vmatmul.mubr.f32.gmra.mxu0 %v8972
    %v9066 = vpop.f32.mrf.mxu0
    %v9067 = vadd.f32 0.0, %v9066
    %v9068 = vpop.f32.mrf.mxu0
    %9069 = vmatprep.mubr.f32.mxu0 0.0
    %9070 = vmatmul.mubr.f32.gmra.mxu0 %v8974
    %v9071 = vpop.f32.mrf.mxu0
    %v9072 = vadd.f32 0.0, %v9071
    %v9073 = vpop.f32.mrf.mxu0
    %9074 = vmatprep.mubr.f32.mxu0 0.0
    %9075 = vmatmul.mubr.f32.gmra.mxu0 %v8976
    %v9076 = vpop.f32.mrf.mxu0
    %v9077 = vadd.f32 0.0, %v9076
    %v9078 = vpop.f32.mrf.mxu0
    %9079 = vmatprep.mubr.f32.mxu0 0.0
    %9080 = vmatmul.mubr.f32.gmra.mxu0 %v8978
    %v9081 = vpop.f32.mrf.mxu0
    %v9082 = vadd.f32 0.0, %v9081
    %v9083 = vpop.f32.mrf.mxu0
    %9084 = vdwg.mxu0
    %v9085 = vsel %vm703, %v8888, 0
    %v9087 = vsel %vm703, %v8893, 0
    %v9089 = vsel %vm703, %v8898, 0
    %v9091 = vsel %vm703, %v8903, 0
    %v9093 = vsel %vm703, %v8908, 0
    %v9095 = vsel %vm703, %v8913, 0
    %v9097 = vsel %vm703, %v8918, 0
    %v9099 = vsel %vm703, %v8923, 0
    %9101 = vmatprep.subr.mxu0 0.0
    %9102 = vmatpush1.msra.mxu0 0.0
    %9103 = vmatprep.subr.mxu0 0.0
    %9104 = vmatpush1.msra.mxu0 0.0
    %9105 = vmatprep.subr.mxu0 0.0
    %9106 = vmatpush1.msra.mxu0 0.0
    %9107 = vmatprep.subr.mxu0 0.0
    %9108 = vmatpush1.msra.mxu0 0.0
    %9109 = vmatprep.subr.mxu0 0.0
    %9110 = vmatpush1.msra.mxu0 0.0
    %9111 = vmatprep.subr.mxu0 0.0
    %9112 = vmatpush1.msra.mxu0 0.0
    %9113 = vmatprep.subr.mxu0 0.0
    %9114 = vmatpush1.msra.mxu0 0.0
    %9115 = vmatprep.subr.mxu0 0.0
    %9116 = vmatpush1.msra.mxu0 0.0
    %9117 = vmatprep.subr.mxu0 0.0
    %9118 = vmatpush1.msra.mxu0 0.0
    %9119 = vmatprep.subr.mxu0 0.0
    %9120 = vmatpush1.msra.mxu0 0.0
    %9121 = vmatprep.subr.mxu0 0.0
    %9122 = vmatpush1.msra.mxu0 0.0
    %9123 = vmatprep.subr.mxu0 0.0
    %9124 = vmatpush1.msra.mxu0 0.0
    %9125 = vmatprep.subr.mxu0 0.0
    %9126 = vmatpush1.msra.mxu0 0.0
    %9127 = vmatprep.subr.mxu0 0.0
    %9128 = vmatpush1.msra.mxu0 %v252
    %9129 = vmatprep.subr.mxu0 0.0
    %9130 = vmatpush1.msra.mxu0 %v251
    %9131 = vmatprep.subr.mxu0 0.0
    %9132 = vmatpush1.msra.mxu0 %v250
    %9133 = vmatprep.subr.mxu0 0.0
    %9134 = vmatpush2.msra.mxu0 0.0
    %9135 = vmatprep.subr.mxu0 0.0
    %9136 = vmatpush2.msra.mxu0 0.0
    %9137 = vmatprep.subr.mxu0 0.0
    %9138 = vmatpush2.msra.mxu0 0.0
    %9139 = vmatprep.subr.mxu0 0.0
    %9140 = vmatpush2.msra.mxu0 0.0
    %9141 = vmatprep.subr.mxu0 0.0
    %9142 = vmatpush2.msra.mxu0 0.0
    %9143 = vmatprep.subr.mxu0 0.0
    %9144 = vmatpush2.msra.mxu0 0.0
    %9145 = vmatprep.subr.mxu0 0.0
    %9146 = vmatpush2.msra.mxu0 0.0
    %9147 = vmatprep.subr.mxu0 0.0
    %9148 = vmatpush2.msra.mxu0 0.0
    %9149 = vmatprep.subr.mxu0 0.0
    %9150 = vmatpush2.msra.mxu0 0.0
    %9151 = vmatprep.subr.mxu0 0.0
    %9152 = vmatpush2.msra.mxu0 0.0
    %9153 = vmatprep.subr.mxu0 0.0
    %9154 = vmatpush2.msra.mxu0 0.0
    %9155 = vmatprep.subr.mxu0 0.0
    %9156 = vmatpush2.msra.mxu0 0.0
    %9157 = vmatprep.subr.mxu0 0.0
    %9158 = vmatpush2.msra.mxu0 0.0
    %9159 = vmatprep.subr.mxu0 0.0
    %9160 = vmatpush2.msra.mxu0 0.0
    %9161 = vmatprep.subr.mxu0 0.0
    %9162 = vmatpush2.msra.mxu0 0.0
    %9163 = vmatprep.subr.mxu0 0.0
    %9164 = vmatpush2.msra.mxu0 0.0
    %9165 = vmatprep.mubr.f32.mxu0 0.0
    %9166 = vmatmul.mubr.f32.gmra.mxu0 %v9085
    %v9167 = vpop.f32.mrf.mxu0
    %v9168 = vadd.f32 %v9047, %v9167
    %v9169 = vpop.f32.mrf.mxu0
    %9170 = vmatprep.mubr.f32.mxu0 0.0
    %9171 = vmatmul.mubr.f32.gmra.mxu0 %v9087
    %v9172 = vpop.f32.mrf.mxu0
    %v9173 = vadd.f32 %v9052, %v9172
    %v9174 = vpop.f32.mrf.mxu0
    %9175 = vmatprep.mubr.f32.mxu0 0.0
    %9176 = vmatmul.mubr.f32.gmra.mxu0 %v9089
    %v9177 = vpop.f32.mrf.mxu0
    %v9178 = vadd.f32 %v9057, %v9177
    %v9179 = vpop.f32.mrf.mxu0
    %9180 = vmatprep.mubr.f32.mxu0 0.0
    %9181 = vmatmul.mubr.f32.gmra.mxu0 %v9091
    %v9182 = vpop.f32.mrf.mxu0
    %v9183 = vadd.f32 %v9062, %v9182
    %v9184 = vpop.f32.mrf.mxu0
    %9185 = vmatprep.mubr.f32.mxu0 0.0
    %9186 = vmatmul.mubr.f32.gmra.mxu0 %v9093
    %v9187 = vpop.f32.mrf.mxu0
    %v9188 = vadd.f32 %v9067, %v9187
    %v9189 = vpop.f32.mrf.mxu0
    %9190 = vmatprep.mubr.f32.mxu0 0.0
    %9191 = vmatmul.mubr.f32.gmra.mxu0 %v9095
    %v9192 = vpop.f32.mrf.mxu0
    %v9193 = vadd.f32 %v9072, %v9192
    %v9194 = vpop.f32.mrf.mxu0
    %9195 = vmatprep.mubr.f32.mxu0 0.0
    %9196 = vmatmul.mubr.f32.gmra.mxu0 %v9097
    %v9197 = vpop.f32.mrf.mxu0
    %v9198 = vadd.f32 %v9077, %v9197
    %v9199 = vpop.f32.mrf.mxu0
    %9200 = vmatprep.mubr.f32.mxu0 0.0
    %9201 = vmatmul.mubr.f32.gmra.mxu0 %v9099
    %v9202 = vpop.f32.mrf.mxu0
    %v9203 = vadd.f32 %v9082, %v9202
    %v9204 = vpop.f32.mrf.mxu0
    %9205 = vdwg.mxu0
    %v9206 = vrot.slane %v8888, 2
    %v9207 = vrot.slane %v8893, 2
    %v9208 = vsel %vm2847, %v9206, %v9207
    %v9209 = vrot.slane %v8898, 2
    %v9210 = vsel %vm2847, %v9207, %v9209
    %v9211 = vrot.slane %v8903, 2
    %v9212 = vsel %vm2847, %v9209, %v9211
    %v9213 = vrot.slane %v8908, 2
    %v9214 = vsel %vm2847, %v9211, %v9213
    %v9215 = vrot.slane %v8913, 2
    %v9216 = vsel %vm2847, %v9213, %v9215
    %v9217 = vrot.slane %v8918, 2
    %v9218 = vsel %vm2847, %v9215, %v9217
    %v9219 = vrot.slane %v8923, 2
    %v9220 = vsel %vm2847, %v9217, %v9219
    %v9221 = vsel %vm703, %v9208, 0
    %v9223 = vsel %vm703, %v9210, 0
    %v9225 = vsel %vm703, %v9212, 0
    %v9227 = vsel %vm703, %v9214, 0
    %v9229 = vsel %vm703, %v9216, 0
    %v9231 = vsel %vm703, %v9218, 0
    %v9233 = vsel %vm703, %v9220, 0
    %v9235 = vsel %vm703, %v9219, 0
    %9237 = vmatprep.subr.mxu0 0.0
    %9238 = vmatpush1.msra.mxu0 0.0
    %9239 = vmatprep.subr.mxu0 0.0
    %9240 = vmatpush1.msra.mxu0 0.0
    %9241 = vmatprep.subr.mxu0 0.0
    %9242 = vmatpush1.msra.mxu0 0.0
    %9243 = vmatprep.subr.mxu0 0.0
    %9244 = vmatpush1.msra.mxu0 0.0
    %9245 = vmatprep.subr.mxu0 0.0
    %9246 = vmatpush1.msra.mxu0 0.0
    %9247 = vmatprep.subr.mxu0 0.0
    %9248 = vmatpush1.msra.mxu0 0.0
    %9249 = vmatprep.subr.mxu0 0.0
    %9250 = vmatpush1.msra.mxu0 0.0
    %9251 = vmatprep.subr.mxu0 0.0
    %9252 = vmatpush1.msra.mxu0 0.0
    %9253 = vmatprep.subr.mxu0 0.0
    %9254 = vmatpush1.msra.mxu0 0.0
    %9255 = vmatprep.subr.mxu0 0.0
    %9256 = vmatpush1.msra.mxu0 0.0
    %9257 = vmatprep.subr.mxu0 0.0
    %9258 = vmatpush1.msra.mxu0 0.0
    %9259 = vmatprep.subr.mxu0 0.0
    %9260 = vmatpush1.msra.mxu0 0.0
    %9261 = vmatprep.subr.mxu0 0.0
    %9262 = vmatpush1.msra.mxu0 0.0
    %9263 = vmatprep.subr.mxu0 0.0
    %9264 = vmatpush1.msra.mxu0 %v258
    %9265 = vmatprep.subr.mxu0 0.0
    %9266 = vmatpush1.msra.mxu0 %v257
    %9267 = vmatprep.subr.mxu0 0.0
    %9268 = vmatpush1.msra.mxu0 %v256
    %9269 = vmatprep.subr.mxu0 0.0
    %9270 = vmatpush2.msra.mxu0 0.0
    %9271 = vmatprep.subr.mxu0 0.0
    %9272 = vmatpush2.msra.mxu0 0.0
    %9273 = vmatprep.subr.mxu0 0.0
    %9274 = vmatpush2.msra.mxu0 0.0
    %9275 = vmatprep.subr.mxu0 0.0
    %9276 = vmatpush2.msra.mxu0 0.0
    %9277 = vmatprep.subr.mxu0 0.0
    %9278 = vmatpush2.msra.mxu0 0.0
    %9279 = vmatprep.subr.mxu0 0.0
    %9280 = vmatpush2.msra.mxu0 0.0
    %9281 = vmatprep.subr.mxu0 0.0
    %9282 = vmatpush2.msra.mxu0 0.0
    %9283 = vmatprep.subr.mxu0 0.0
    %9284 = vmatpush2.msra.mxu0 0.0
    %9285 = vmatprep.subr.mxu0 0.0
    %9286 = vmatpush2.msra.mxu0 0.0
    %9287 = vmatprep.subr.mxu0 0.0
    %9288 = vmatpush2.msra.mxu0 0.0
    %9289 = vmatprep.subr.mxu0 0.0
    %9290 = vmatpush2.msra.mxu0 0.0
    %9291 = vmatprep.subr.mxu0 0.0
    %9292 = vmatpush2.msra.mxu0 0.0
    %9293 = vmatprep.subr.mxu0 0.0
    %9294 = vmatpush2.msra.mxu0 0.0
    %9295 = vmatprep.subr.mxu0 0.0
    %9296 = vmatpush2.msra.mxu0 0.0
    %9297 = vmatprep.subr.mxu0 0.0
    %9298 = vmatpush2.msra.mxu0 0.0
    %9299 = vmatprep.subr.mxu0 0.0
    %9300 = vmatpush2.msra.mxu0 0.0
    %9301 = vmatprep.mubr.f32.mxu0 0.0
    %9302 = vmatmul.mubr.f32.gmra.mxu0 %v9221
    %v9303 = vpop.f32.mrf.mxu0
    %v9304 = vadd.f32 0.0, %v9303
    %v9305 = vpop.f32.mrf.mxu0
    %9306 = vmatprep.mubr.f32.mxu0 0.0
    %9307 = vmatmul.mubr.f32.gmra.mxu0 %v9223
    %v9308 = vpop.f32.mrf.mxu0
    %v9309 = vadd.f32 0.0, %v9308
    %v9310 = vpop.f32.mrf.mxu0
    %9311 = vmatprep.mubr.f32.mxu0 0.0
    %9312 = vmatmul.mubr.f32.gmra.mxu0 %v9225
    %v9313 = vpop.f32.mrf.mxu0
    %v9314 = vadd.f32 0.0, %v9313
    %v9315 = vpop.f32.mrf.mxu0
    %9316 = vmatprep.mubr.f32.mxu0 0.0
    %9317 = vmatmul.mubr.f32.gmra.mxu0 %v9227
    %v9318 = vpop.f32.mrf.mxu0
    %v9319 = vadd.f32 0.0, %v9318
    %v9320 = vpop.f32.mrf.mxu0
    %9321 = vmatprep.mubr.f32.mxu0 0.0
    %9322 = vmatmul.mubr.f32.gmra.mxu0 %v9229
    %v9323 = vpop.f32.mrf.mxu0
    %v9324 = vadd.f32 0.0, %v9323
    %v9325 = vpop.f32.mrf.mxu0
    %9326 = vmatprep.mubr.f32.mxu0 0.0
    %9327 = vmatmul.mubr.f32.gmra.mxu0 %v9231
    %v9328 = vpop.f32.mrf.mxu0
    %v9329 = vadd.f32 0.0, %v9328
    %v9330 = vpop.f32.mrf.mxu0
    %9331 = vmatprep.mubr.f32.mxu0 0.0
    %9332 = vmatmul.mubr.f32.gmra.mxu0 %v9233
    %v9333 = vpop.f32.mrf.mxu0
    %v9334 = vadd.f32 0.0, %v9333
    %v9335 = vpop.f32.mrf.mxu0
    %9336 = vmatprep.mubr.f32.mxu0 0.0
    %9337 = vmatmul.mubr.f32.gmra.mxu0 %v9235
    %v9338 = vpop.f32.mrf.mxu0
    %v9339 = vadd.f32 0.0, %v9338
    %v9340 = vpop.f32.mrf.mxu0
    %9341 = vdwg.mxu0
    %v9342 = vadd.f32 %v9168, %v9304
    %v9343 = vadd.f32 %v9173, %v9309
    %v9344 = vadd.f32 %v9178, %v9314
    %v9345 = vadd.f32 %v9183, %v9319
    %v9346 = vadd.f32 %v9188, %v9324
    %v9347 = vadd.f32 %v9193, %v9329
    %v9348 = vadd.f32 %v9198, %v9334
    %v9349 = vadd.f32 %v9203, %v9339
    %v9351 = vrot.slane %v8928, 1
    %v9352 = vsel %vm2823, %v8962, %v9351
    %v9353 = vsel %vm703, %v9352, 0
    %v9355 = vsel %vm703, %v9351, 0
    %9357 = vmatprep.subr.mxu0 0.0
    %9358 = vmatpush1.msra.mxu0 0.0
    %9359 = vmatprep.subr.mxu0 0.0
    %9360 = vmatpush1.msra.mxu0 0.0
    %9361 = vmatprep.subr.mxu0 0.0
    %9362 = vmatpush1.msra.mxu0 0.0
    %9363 = vmatprep.subr.mxu0 0.0
    %9364 = vmatpush1.msra.mxu0 0.0
    %9365 = vmatprep.subr.mxu0 0.0
    %9366 = vmatpush1.msra.mxu0 0.0
    %9367 = vmatprep.subr.mxu0 0.0
    %9368 = vmatpush1.msra.mxu0 0.0
    %9369 = vmatprep.subr.mxu0 0.0
    %9370 = vmatpush1.msra.mxu0 0.0
    %9371 = vmatprep.subr.mxu0 0.0
    %9372 = vmatpush1.msra.mxu0 0.0
    %9373 = vmatprep.subr.mxu0 0.0
    %9374 = vmatpush1.msra.mxu0 0.0
    %9375 = vmatprep.subr.mxu0 0.0
    %9376 = vmatpush1.msra.mxu0 0.0
    %9377 = vmatprep.subr.mxu0 0.0
    %9378 = vmatpush1.msra.mxu0 0.0
    %9379 = vmatprep.subr.mxu0 0.0
    %9380 = vmatpush1.msra.mxu0 0.0
    %9381 = vmatprep.subr.mxu0 0.0
    %9382 = vmatpush1.msra.mxu0 0.0
    %9383 = vmatprep.subr.mxu0 0.0
    %9384 = vmatpush1.msra.mxu0 %v261
    %9385 = vmatprep.subr.mxu0 0.0
    %9386 = vmatpush1.msra.mxu0 %v260
    %9387 = vmatprep.subr.mxu0 0.0
    %9388 = vmatpush1.msra.mxu0 %v259
    %9389 = vmatprep.subr.mxu0 0.0
    %9390 = vmatpush2.msra.mxu0 0.0
    %9391 = vmatprep.subr.mxu0 0.0
    %9392 = vmatpush2.msra.mxu0 0.0
    %9393 = vmatprep.subr.mxu0 0.0
    %9394 = vmatpush2.msra.mxu0 0.0
    %9395 = vmatprep.subr.mxu0 0.0
    %9396 = vmatpush2.msra.mxu0 0.0
    %9397 = vmatprep.subr.mxu0 0.0
    %9398 = vmatpush2.msra.mxu0 0.0
    %9399 = vmatprep.subr.mxu0 0.0
    %9400 = vmatpush2.msra.mxu0 0.0
    %9401 = vmatprep.subr.mxu0 0.0
    %9402 = vmatpush2.msra.mxu0 0.0
    %9403 = vmatprep.subr.mxu0 0.0
    %9404 = vmatpush2.msra.mxu0 0.0
    %9405 = vmatprep.subr.mxu0 0.0
    %9406 = vmatpush2.msra.mxu0 0.0
    %9407 = vmatprep.subr.mxu0 0.0
    %9408 = vmatpush2.msra.mxu0 0.0
    %9409 = vmatprep.subr.mxu0 0.0
    %9410 = vmatpush2.msra.mxu0 0.0
    %9411 = vmatprep.subr.mxu0 0.0
    %9412 = vmatpush2.msra.mxu0 0.0
    %9413 = vmatprep.subr.mxu0 0.0
    %9414 = vmatpush2.msra.mxu0 0.0
    %9415 = vmatprep.subr.mxu0 0.0
    %9416 = vmatpush2.msra.mxu0 0.0
    %9417 = vmatprep.subr.mxu0 0.0
    %9418 = vmatpush2.msra.mxu0 0.0
    %9419 = vmatprep.subr.mxu0 0.0
    %9420 = vmatpush2.msra.mxu0 0.0
    %9421 = vmatprep.mubr.f32.mxu0 0.0
    %9422 = vmatmul.mubr.f32.gmra.mxu0 %v8966
    %v9423 = vpop.f32.mrf.mxu0
    %v9424 = vadd.f32 0.0, %v9423
    %v9425 = vpop.f32.mrf.mxu0
    %9426 = vmatprep.mubr.f32.mxu0 0.0
    %9427 = vmatmul.mubr.f32.gmra.mxu0 %v8968
    %v9428 = vpop.f32.mrf.mxu0
    %v9429 = vadd.f32 0.0, %v9428
    %v9430 = vpop.f32.mrf.mxu0
    %9431 = vmatprep.mubr.f32.mxu0 0.0
    %9432 = vmatmul.mubr.f32.gmra.mxu0 %v8970
    %v9433 = vpop.f32.mrf.mxu0
    %v9434 = vadd.f32 0.0, %v9433
    %v9435 = vpop.f32.mrf.mxu0
    %9436 = vmatprep.mubr.f32.mxu0 0.0
    %9437 = vmatmul.mubr.f32.gmra.mxu0 %v8972
    %v9438 = vpop.f32.mrf.mxu0
    %v9439 = vadd.f32 0.0, %v9438
    %v9440 = vpop.f32.mrf.mxu0
    %9441 = vmatprep.mubr.f32.mxu0 0.0
    %9442 = vmatmul.mubr.f32.gmra.mxu0 %v8974
    %v9443 = vpop.f32.mrf.mxu0
    %v9444 = vadd.f32 0.0, %v9443
    %v9445 = vpop.f32.mrf.mxu0
    %9446 = vmatprep.mubr.f32.mxu0 0.0
    %9447 = vmatmul.mubr.f32.gmra.mxu0 %v8976
    %v9448 = vpop.f32.mrf.mxu0
    %v9449 = vadd.f32 0.0, %v9448
    %v9450 = vpop.f32.mrf.mxu0
    %9451 = vmatprep.mubr.f32.mxu0 0.0
    %9452 = vmatmul.mubr.f32.gmra.mxu0 %v9353
    %v9453 = vpop.f32.mrf.mxu0
    %v9454 = vadd.f32 0.0, %v9453
    %v9455 = vpop.f32.mrf.mxu0
    %9456 = vmatprep.mubr.f32.mxu0 0.0
    %9457 = vmatmul.mubr.f32.gmra.mxu0 %v9355
    %v9458 = vpop.f32.mrf.mxu0
    %v9459 = vadd.f32 0.0, %v9458
    %v9460 = vpop.f32.mrf.mxu0
    %9461 = vdwg.mxu0
    %v9462 = vadd.f32 %v9342, %v9424
    %v9463 = vadd.f32 %v9343, %v9429
    %v9464 = vadd.f32 %v9344, %v9434
    %v9465 = vadd.f32 %v9345, %v9439
    %v9466 = vadd.f32 %v9346, %v9444
    %v9467 = vadd.f32 %v9347, %v9449
    %v9468 = vadd.f32 %v9348, %v9454
    %v9469 = vadd.f32 %v9349, %v9459
    %v9470 = vrot.slane %v8928, 2
    %v9471 = vsel %vm2847, %v9219, %v9470
    %v9472 = vsel %vm703, %v9471, 0
    %v9474 = vsel %vm703, %v9470, 0
    %9476 = vmatprep.subr.mxu0 0.0
    %9477 = vmatpush1.msra.mxu0 0.0
    %9478 = vmatprep.subr.mxu0 0.0
    %9479 = vmatpush1.msra.mxu0 0.0
    %9480 = vmatprep.subr.mxu0 0.0
    %9481 = vmatpush1.msra.mxu0 0.0
    %9482 = vmatprep.subr.mxu0 0.0
    %9483 = vmatpush1.msra.mxu0 0.0
    %9484 = vmatprep.subr.mxu0 0.0
    %9485 = vmatpush1.msra.mxu0 0.0
    %9486 = vmatprep.subr.mxu0 0.0
    %9487 = vmatpush1.msra.mxu0 0.0
    %9488 = vmatprep.subr.mxu0 0.0
    %9489 = vmatpush1.msra.mxu0 0.0
    %9490 = vmatprep.subr.mxu0 0.0
    %9491 = vmatpush1.msra.mxu0 0.0
    %9492 = vmatprep.subr.mxu0 0.0
    %9493 = vmatpush1.msra.mxu0 0.0
    %9494 = vmatprep.subr.mxu0 0.0
    %9495 = vmatpush1.msra.mxu0 0.0
    %9496 = vmatprep.subr.mxu0 0.0
    %9497 = vmatpush1.msra.mxu0 0.0
    %9498 = vmatprep.subr.mxu0 0.0
    %9499 = vmatpush1.msra.mxu0 0.0
    %9500 = vmatprep.subr.mxu0 0.0
    %9501 = vmatpush1.msra.mxu0 0.0
    %9502 = vmatprep.subr.mxu0 0.0
    %9503 = vmatpush1.msra.mxu0 %v264
    %9504 = vmatprep.subr.mxu0 0.0
    %9505 = vmatpush1.msra.mxu0 %v263
    %9506 = vmatprep.subr.mxu0 0.0
    %9507 = vmatpush1.msra.mxu0 %v262
    %9508 = vmatprep.subr.mxu0 0.0
    %9509 = vmatpush2.msra.mxu0 0.0
    %9510 = vmatprep.subr.mxu0 0.0
    %9511 = vmatpush2.msra.mxu0 0.0
    %9512 = vmatprep.subr.mxu0 0.0
    %9513 = vmatpush2.msra.mxu0 0.0
    %9514 = vmatprep.subr.mxu0 0.0
    %9515 = vmatpush2.msra.mxu0 0.0
    %9516 = vmatprep.subr.mxu0 0.0
    %9517 = vmatpush2.msra.mxu0 0.0
    %9518 = vmatprep.subr.mxu0 0.0
    %9519 = vmatpush2.msra.mxu0 0.0
    %9520 = vmatprep.subr.mxu0 0.0
    %9521 = vmatpush2.msra.mxu0 0.0
    %9522 = vmatprep.subr.mxu0 0.0
    %9523 = vmatpush2.msra.mxu0 0.0
    %9524 = vmatprep.subr.mxu0 0.0
    %9525 = vmatpush2.msra.mxu0 0.0
    %9526 = vmatprep.subr.mxu0 0.0
    %9527 = vmatpush2.msra.mxu0 0.0
    %9528 = vmatprep.subr.mxu0 0.0
    %9529 = vmatpush2.msra.mxu0 0.0
    %9530 = vmatprep.subr.mxu0 0.0
    %9531 = vmatpush2.msra.mxu0 0.0
    %9532 = vmatprep.subr.mxu0 0.0
    %9533 = vmatpush2.msra.mxu0 0.0
    %9534 = vmatprep.subr.mxu0 0.0
    %9535 = vmatpush2.msra.mxu0 0.0
    %9536 = vmatprep.subr.mxu0 0.0
    %9537 = vmatpush2.msra.mxu0 0.0
    %9538 = vmatprep.subr.mxu0 0.0
    %9539 = vmatpush2.msra.mxu0 0.0
    %9540 = vmatprep.mubr.f32.mxu0 0.0
    %9541 = vmatmul.mubr.f32.gmra.mxu0 %v9223
    %v9542 = vpop.f32.mrf.mxu0
    %v9543 = vadd.f32 0.0, %v9542
    %v9544 = vpop.f32.mrf.mxu0
    %9545 = vmatprep.mubr.f32.mxu0 0.0
    %9546 = vmatmul.mubr.f32.gmra.mxu0 %v9225
    %v9547 = vpop.f32.mrf.mxu0
    %v9548 = vadd.f32 0.0, %v9547
    %v9549 = vpop.f32.mrf.mxu0
    %9550 = vmatprep.mubr.f32.mxu0 0.0
    %9551 = vmatmul.mubr.f32.gmra.mxu0 %v9227
    %v9552 = vpop.f32.mrf.mxu0
    %v9553 = vadd.f32 0.0, %v9552
    %v9554 = vpop.f32.mrf.mxu0
    %9555 = vmatprep.mubr.f32.mxu0 0.0
    %9556 = vmatmul.mubr.f32.gmra.mxu0 %v9229
    %v9557 = vpop.f32.mrf.mxu0
    %v9558 = vadd.f32 0.0, %v9557
    %v9559 = vpop.f32.mrf.mxu0
    %9560 = vmatprep.mubr.f32.mxu0 0.0
    %9561 = vmatmul.mubr.f32.gmra.mxu0 %v9231
    %v9562 = vpop.f32.mrf.mxu0
    %v9563 = vadd.f32 0.0, %v9562
    %v9564 = vpop.f32.mrf.mxu0
    %9565 = vmatprep.mubr.f32.mxu0 0.0
    %9566 = vmatmul.mubr.f32.gmra.mxu0 %v9233
    %v9567 = vpop.f32.mrf.mxu0
    %v9568 = vadd.f32 0.0, %v9567
    %v9569 = vpop.f32.mrf.mxu0
    %9570 = vmatprep.mubr.f32.mxu0 0.0
    %9571 = vmatmul.mubr.f32.gmra.mxu0 %v9472
    %v9572 = vpop.f32.mrf.mxu0
    %v9573 = vadd.f32 0.0, %v9572
    %v9574 = vpop.f32.mrf.mxu0
    %9575 = vmatprep.mubr.f32.mxu0 0.0
    %9576 = vmatmul.mubr.f32.gmra.mxu0 %v9474
    %v9577 = vpop.f32.mrf.mxu0
    %v9578 = vadd.f32 0.0, %v9577
    %v9579 = vpop.f32.mrf.mxu0
    %9580 = vdwg.mxu0
    %v9581 = vadd.f32 %v9462, %v9543
    %v9582 = vadd.f32 %v9463, %v9548
    %v9583 = vadd.f32 %v9464, %v9553
    %v9584 = vadd.f32 %v9465, %v9558
    %v9585 = vadd.f32 %v9466, %v9563
    %v9586 = vadd.f32 %v9467, %v9568
    %v9587 = vadd.f32 %v9468, %v9573
    %v9588 = vadd.f32 %v9469, %v9578
    %v9589 = vrot.slane %v8893, 3
    %v9590 = vrot.slane %v8898, 3
    %v9591 = vsel %vm2880, %v9589, %v9590
    %v9592 = vrot.slane %v8903, 3
    %v9593 = vsel %vm2880, %v9590, %v9592
    %v9594 = vrot.slane %v8908, 3
    %v9595 = vsel %vm2880, %v9592, %v9594
    %v9596 = vrot.slane %v8913, 3
    %v9597 = vsel %vm2880, %v9594, %v9596
    %v9598 = vrot.slane %v8918, 3
    %v9599 = vsel %vm2880, %v9596, %v9598
    %v9600 = vrot.slane %v8923, 3
    %v9601 = vsel %vm2880, %v9598, %v9600
    %v9602 = vrot.slane %v8928, 3
    %v9603 = vsel %vm2880, %v9600, %v9602
    %v9604 = vsel %vm703, %v9591, 0
    %v9606 = vsel %vm703, %v9593, 0
    %v9608 = vsel %vm703, %v9595, 0
    %v9610 = vsel %vm703, %v9597, 0
    %v9612 = vsel %vm703, %v9599, 0
    %v9614 = vsel %vm703, %v9601, 0
    %v9616 = vsel %vm703, %v9603, 0
    %v9618 = vsel %vm703, %v9602, 0
    %9620 = vmatprep.subr.mxu0 0.0
    %9621 = vmatpush1.msra.mxu0 0.0
    %9622 = vmatprep.subr.mxu0 0.0
    %9623 = vmatpush1.msra.mxu0 0.0
    %9624 = vmatprep.subr.mxu0 0.0
    %9625 = vmatpush1.msra.mxu0 0.0
    %9626 = vmatprep.subr.mxu0 0.0
    %9627 = vmatpush1.msra.mxu0 0.0
    %9628 = vmatprep.subr.mxu0 0.0
    %9629 = vmatpush1.msra.mxu0 0.0
    %9630 = vmatprep.subr.mxu0 0.0
    %9631 = vmatpush1.msra.mxu0 0.0
    %9632 = vmatprep.subr.mxu0 0.0
    %9633 = vmatpush1.msra.mxu0 0.0
    %9634 = vmatprep.subr.mxu0 0.0
    %9635 = vmatpush1.msra.mxu0 0.0
    %9636 = vmatprep.subr.mxu0 0.0
    %9637 = vmatpush1.msra.mxu0 0.0
    %9638 = vmatprep.subr.mxu0 0.0
    %9639 = vmatpush1.msra.mxu0 0.0
    %9640 = vmatprep.subr.mxu0 0.0
    %9641 = vmatpush1.msra.mxu0 0.0
    %9642 = vmatprep.subr.mxu0 0.0
    %9643 = vmatpush1.msra.mxu0 0.0
    %9644 = vmatprep.subr.mxu0 0.0
    %9645 = vmatpush1.msra.mxu0 0.0
    %9646 = vmatprep.subr.mxu0 0.0
    %9647 = vmatpush1.msra.mxu0 %v267
    %9648 = vmatprep.subr.mxu0 0.0
    %9649 = vmatpush1.msra.mxu0 %v266
    %9650 = vmatprep.subr.mxu0 0.0
    %9651 = vmatpush1.msra.mxu0 %v265
    %9652 = vmatprep.subr.mxu0 0.0
    %9653 = vmatpush2.msra.mxu0 0.0
    %9654 = vmatprep.subr.mxu0 0.0
    %9655 = vmatpush2.msra.mxu0 0.0
    %9656 = vmatprep.subr.mxu0 0.0
    %9657 = vmatpush2.msra.mxu0 0.0
    %9658 = vmatprep.subr.mxu0 0.0
    %9659 = vmatpush2.msra.mxu0 0.0
    %9660 = vmatprep.subr.mxu0 0.0
    %9661 = vmatpush2.msra.mxu0 0.0
    %9662 = vmatprep.subr.mxu0 0.0
    %9663 = vmatpush2.msra.mxu0 0.0
    %9664 = vmatprep.subr.mxu0 0.0
    %9665 = vmatpush2.msra.mxu0 0.0
    %9666 = vmatprep.subr.mxu0 0.0
    %9667 = vmatpush2.msra.mxu0 0.0
    %9668 = vmatprep.subr.mxu0 0.0
    %9669 = vmatpush2.msra.mxu0 0.0
    %9670 = vmatprep.subr.mxu0 0.0
    %9671 = vmatpush2.msra.mxu0 0.0
    %9672 = vmatprep.subr.mxu0 0.0
    %9673 = vmatpush2.msra.mxu0 0.0
    %9674 = vmatprep.subr.mxu0 0.0
    %9675 = vmatpush2.msra.mxu0 0.0
    %9676 = vmatprep.subr.mxu0 0.0
    %9677 = vmatpush2.msra.mxu0 0.0
    %9678 = vmatprep.subr.mxu0 0.0
    %9679 = vmatpush2.msra.mxu0 0.0
    %9680 = vmatprep.subr.mxu0 0.0
    %9681 = vmatpush2.msra.mxu0 0.0
    %9682 = vmatprep.subr.mxu0 0.0
    %9683 = vmatpush2.msra.mxu0 0.0
    %9684 = vmatprep.mubr.f32.mxu0 0.0
    %9685 = vmatmul.mubr.f32.gmra.mxu0 %v9604
    %v9686 = vpop.f32.mrf.mxu0
    %v9687 = vadd.f32 0.0, %v9686
    %v9688 = vpop.f32.mrf.mxu0
    %9689 = vmatprep.mubr.f32.mxu0 0.0
    %9690 = vmatmul.mubr.f32.gmra.mxu0 %v9606
    %v9691 = vpop.f32.mrf.mxu0
    %v9692 = vadd.f32 0.0, %v9691
    %v9693 = vpop.f32.mrf.mxu0
    %9694 = vmatprep.mubr.f32.mxu0 0.0
    %9695 = vmatmul.mubr.f32.gmra.mxu0 %v9608
    %v9696 = vpop.f32.mrf.mxu0
    %v9697 = vadd.f32 0.0, %v9696
    %v9698 = vpop.f32.mrf.mxu0
    %9699 = vmatprep.mubr.f32.mxu0 0.0
    %9700 = vmatmul.mubr.f32.gmra.mxu0 %v9610
    %v9701 = vpop.f32.mrf.mxu0
    %v9702 = vadd.f32 0.0, %v9701
    %v9703 = vpop.f32.mrf.mxu0
    %9704 = vmatprep.mubr.f32.mxu0 0.0
    %9705 = vmatmul.mubr.f32.gmra.mxu0 %v9612
    %v9706 = vpop.f32.mrf.mxu0
    %v9707 = vadd.f32 0.0, %v9706
    %v9708 = vpop.f32.mrf.mxu0
    %9709 = vmatprep.mubr.f32.mxu0 0.0
    %9710 = vmatmul.mubr.f32.gmra.mxu0 %v9614
    %v9711 = vpop.f32.mrf.mxu0
    %v9712 = vadd.f32 0.0, %v9711
    %v9713 = vpop.f32.mrf.mxu0
    %9714 = vmatprep.mubr.f32.mxu0 0.0
    %9715 = vmatmul.mubr.f32.gmra.mxu0 %v9616
    %v9716 = vpop.f32.mrf.mxu0
    %v9717 = vadd.f32 0.0, %v9716
    %v9718 = vpop.f32.mrf.mxu0
    %9719 = vmatprep.mubr.f32.mxu0 0.0
    %9720 = vmatmul.mubr.f32.gmra.mxu0 %v9618
    %v9721 = vpop.f32.mrf.mxu0
    %v9722 = vadd.f32 0.0, %v9721
    %v9723 = vpop.f32.mrf.mxu0
    %9724 = vdwg.mxu0
    %v9725 = vadd.f32 %v9581, %v9687
    %v9726 = vadd.f32 %v9582, %v9692
    %v9727 = vadd.f32 %v9583, %v9697
    %v9728 = vadd.f32 %v9584, %v9702
    %v9729 = vadd.f32 %v9585, %v9707
    %v9730 = vadd.f32 %v9586, %v9712
    %v9731 = vadd.f32 %v9587, %v9717
    %v9732 = vadd.f32 %v9588, %v9722
    %v9734 = vrot.slane %v8933, 2
    %v9735 = vsel %vm2847, %v9470, %v9734
    %v9736 = vsel %vm703, %v9735, 0
    %v9738 = vsel %vm703, %v9734, 0
    %9740 = vmatprep.subr.mxu0 0.0
    %9741 = vmatpush1.msra.mxu0 0.0
    %9742 = vmatprep.subr.mxu0 0.0
    %9743 = vmatpush1.msra.mxu0 0.0
    %9744 = vmatprep.subr.mxu0 0.0
    %9745 = vmatpush1.msra.mxu0 0.0
    %9746 = vmatprep.subr.mxu0 0.0
    %9747 = vmatpush1.msra.mxu0 0.0
    %9748 = vmatprep.subr.mxu0 0.0
    %9749 = vmatpush1.msra.mxu0 0.0
    %9750 = vmatprep.subr.mxu0 0.0
    %9751 = vmatpush1.msra.mxu0 0.0
    %9752 = vmatprep.subr.mxu0 0.0
    %9753 = vmatpush1.msra.mxu0 0.0
    %9754 = vmatprep.subr.mxu0 0.0
    %9755 = vmatpush1.msra.mxu0 0.0
    %9756 = vmatprep.subr.mxu0 0.0
    %9757 = vmatpush1.msra.mxu0 0.0
    %9758 = vmatprep.subr.mxu0 0.0
    %9759 = vmatpush1.msra.mxu0 0.0
    %9760 = vmatprep.subr.mxu0 0.0
    %9761 = vmatpush1.msra.mxu0 0.0
    %9762 = vmatprep.subr.mxu0 0.0
    %9763 = vmatpush1.msra.mxu0 0.0
    %9764 = vmatprep.subr.mxu0 0.0
    %9765 = vmatpush1.msra.mxu0 0.0
    %9766 = vmatprep.subr.mxu0 0.0
    %9767 = vmatpush1.msra.mxu0 %v270
    %9768 = vmatprep.subr.mxu0 0.0
    %9769 = vmatpush1.msra.mxu0 %v269
    %9770 = vmatprep.subr.mxu0 0.0
    %9771 = vmatpush1.msra.mxu0 %v268
    %9772 = vmatprep.subr.mxu0 0.0
    %9773 = vmatpush2.msra.mxu0 0.0
    %9774 = vmatprep.subr.mxu0 0.0
    %9775 = vmatpush2.msra.mxu0 0.0
    %9776 = vmatprep.subr.mxu0 0.0
    %9777 = vmatpush2.msra.mxu0 0.0
    %9778 = vmatprep.subr.mxu0 0.0
    %9779 = vmatpush2.msra.mxu0 0.0
    %9780 = vmatprep.subr.mxu0 0.0
    %9781 = vmatpush2.msra.mxu0 0.0
    %9782 = vmatprep.subr.mxu0 0.0
    %9783 = vmatpush2.msra.mxu0 0.0
    %9784 = vmatprep.subr.mxu0 0.0
    %9785 = vmatpush2.msra.mxu0 0.0
    %9786 = vmatprep.subr.mxu0 0.0
    %9787 = vmatpush2.msra.mxu0 0.0
    %9788 = vmatprep.subr.mxu0 0.0
    %9789 = vmatpush2.msra.mxu0 0.0
    %9790 = vmatprep.subr.mxu0 0.0
    %9791 = vmatpush2.msra.mxu0 0.0
    %9792 = vmatprep.subr.mxu0 0.0
    %9793 = vmatpush2.msra.mxu0 0.0
    %9794 = vmatprep.subr.mxu0 0.0
    %9795 = vmatpush2.msra.mxu0 0.0
    %9796 = vmatprep.subr.mxu0 0.0
    %9797 = vmatpush2.msra.mxu0 0.0
    %9798 = vmatprep.subr.mxu0 0.0
    %9799 = vmatpush2.msra.mxu0 0.0
    %9800 = vmatprep.subr.mxu0 0.0
    %9801 = vmatpush2.msra.mxu0 0.0
    %9802 = vmatprep.subr.mxu0 0.0
    %9803 = vmatpush2.msra.mxu0 0.0
    %9804 = vmatprep.mubr.f32.mxu0 0.0
    %9805 = vmatmul.mubr.f32.gmra.mxu0 %v9225
    %v9806 = vpop.f32.mrf.mxu0
    %v9807 = vadd.f32 0.0, %v9806
    %v9808 = vpop.f32.mrf.mxu0
    %9809 = vmatprep.mubr.f32.mxu0 0.0
    %9810 = vmatmul.mubr.f32.gmra.mxu0 %v9227
    %v9811 = vpop.f32.mrf.mxu0
    %v9812 = vadd.f32 0.0, %v9811
    %v9813 = vpop.f32.mrf.mxu0
    %9814 = vmatprep.mubr.f32.mxu0 0.0
    %9815 = vmatmul.mubr.f32.gmra.mxu0 %v9229
    %v9816 = vpop.f32.mrf.mxu0
    %v9817 = vadd.f32 0.0, %v9816
    %v9818 = vpop.f32.mrf.mxu0
    %9819 = vmatprep.mubr.f32.mxu0 0.0
    %9820 = vmatmul.mubr.f32.gmra.mxu0 %v9231
    %v9821 = vpop.f32.mrf.mxu0
    %v9822 = vadd.f32 0.0, %v9821
    %v9823 = vpop.f32.mrf.mxu0
    %9824 = vmatprep.mubr.f32.mxu0 0.0
    %9825 = vmatmul.mubr.f32.gmra.mxu0 %v9233
    %v9826 = vpop.f32.mrf.mxu0
    %v9827 = vadd.f32 0.0, %v9826
    %v9828 = vpop.f32.mrf.mxu0
    %9829 = vmatprep.mubr.f32.mxu0 0.0
    %9830 = vmatmul.mubr.f32.gmra.mxu0 %v9472
    %v9831 = vpop.f32.mrf.mxu0
    %v9832 = vadd.f32 0.0, %v9831
    %v9833 = vpop.f32.mrf.mxu0
    %9834 = vmatprep.mubr.f32.mxu0 0.0
    %9835 = vmatmul.mubr.f32.gmra.mxu0 %v9736
    %v9836 = vpop.f32.mrf.mxu0
    %v9837 = vadd.f32 0.0, %v9836
    %v9838 = vpop.f32.mrf.mxu0
    %9839 = vmatprep.mubr.f32.mxu0 0.0
    %9840 = vmatmul.mubr.f32.gmra.mxu0 %v9738
    %v9841 = vpop.f32.mrf.mxu0
    %v9842 = vadd.f32 0.0, %v9841
    %v9843 = vpop.f32.mrf.mxu0
    %9844 = vdwg.mxu0
    %v9845 = vadd.f32 %v9725, %v9807
    %v9846 = vadd.f32 %v9726, %v9812
    %v9847 = vadd.f32 %v9727, %v9817
    %v9848 = vadd.f32 %v9728, %v9822
    %v9849 = vadd.f32 %v9729, %v9827
    %v9850 = vadd.f32 %v9730, %v9832
    %v9851 = vadd.f32 %v9731, %v9837
    %v9852 = vadd.f32 %v9732, %v9842
    %v9853 = vrot.slane %v8933, 3
    %v9854 = vsel %vm2880, %v9602, %v9853
    %v9855 = vsel %vm703, %v9854, 0
    %v9857 = vsel %vm703, %v9853, 0
    %9859 = vmatprep.subr.mxu0 0.0
    %9860 = vmatpush1.msra.mxu0 0.0
    %9861 = vmatprep.subr.mxu0 0.0
    %9862 = vmatpush1.msra.mxu0 0.0
    %9863 = vmatprep.subr.mxu0 0.0
    %9864 = vmatpush1.msra.mxu0 0.0
    %9865 = vmatprep.subr.mxu0 0.0
    %9866 = vmatpush1.msra.mxu0 0.0
    %9867 = vmatprep.subr.mxu0 0.0
    %9868 = vmatpush1.msra.mxu0 0.0
    %9869 = vmatprep.subr.mxu0 0.0
    %9870 = vmatpush1.msra.mxu0 0.0
    %9871 = vmatprep.subr.mxu0 0.0
    %9872 = vmatpush1.msra.mxu0 0.0
    %9873 = vmatprep.subr.mxu0 0.0
    %9874 = vmatpush1.msra.mxu0 0.0
    %9875 = vmatprep.subr.mxu0 0.0
    %9876 = vmatpush1.msra.mxu0 0.0
    %9877 = vmatprep.subr.mxu0 0.0
    %9878 = vmatpush1.msra.mxu0 0.0
    %9879 = vmatprep.subr.mxu0 0.0
    %9880 = vmatpush1.msra.mxu0 0.0
    %9881 = vmatprep.subr.mxu0 0.0
    %9882 = vmatpush1.msra.mxu0 0.0
    %9883 = vmatprep.subr.mxu0 0.0
    %9884 = vmatpush1.msra.mxu0 0.0
    %9885 = vmatprep.subr.mxu0 0.0
    %9886 = vmatpush1.msra.mxu0 %v273
    %9887 = vmatprep.subr.mxu0 0.0
    %9888 = vmatpush1.msra.mxu0 %v272
    %9889 = vmatprep.subr.mxu0 0.0
    %9890 = vmatpush1.msra.mxu0 %v271
    %9891 = vmatprep.subr.mxu0 0.0
    %9892 = vmatpush2.msra.mxu0 0.0
    %9893 = vmatprep.subr.mxu0 0.0
    %9894 = vmatpush2.msra.mxu0 0.0
    %9895 = vmatprep.subr.mxu0 0.0
    %9896 = vmatpush2.msra.mxu0 0.0
    %9897 = vmatprep.subr.mxu0 0.0
    %9898 = vmatpush2.msra.mxu0 0.0
    %9899 = vmatprep.subr.mxu0 0.0
    %9900 = vmatpush2.msra.mxu0 0.0
    %9901 = vmatprep.subr.mxu0 0.0
    %9902 = vmatpush2.msra.mxu0 0.0
    %9903 = vmatprep.subr.mxu0 0.0
    %9904 = vmatpush2.msra.mxu0 0.0
    %9905 = vmatprep.subr.mxu0 0.0
    %9906 = vmatpush2.msra.mxu0 0.0
    %9907 = vmatprep.subr.mxu0 0.0
    %9908 = vmatpush2.msra.mxu0 0.0
    %9909 = vmatprep.subr.mxu0 0.0
    %9910 = vmatpush2.msra.mxu0 0.0
    %9911 = vmatprep.subr.mxu0 0.0
    %9912 = vmatpush2.msra.mxu0 0.0
    %9913 = vmatprep.subr.mxu0 0.0
    %9914 = vmatpush2.msra.mxu0 0.0
    %9915 = vmatprep.subr.mxu0 0.0
    %9916 = vmatpush2.msra.mxu0 0.0
    %9917 = vmatprep.subr.mxu0 0.0
    %9918 = vmatpush2.msra.mxu0 0.0
    %9919 = vmatprep.subr.mxu0 0.0
    %9920 = vmatpush2.msra.mxu0 0.0
    %9921 = vmatprep.subr.mxu0 0.0
    %9922 = vmatpush2.msra.mxu0 0.0
    %9923 = vmatprep.mubr.f32.mxu0 0.0
    %9924 = vmatmul.mubr.f32.gmra.mxu0 %v9606
    %v9925 = vpop.f32.mrf.mxu0
    %v9926 = vadd.f32 0.0, %v9925
    %v9927 = vpop.f32.mrf.mxu0
    %9928 = vmatprep.mubr.f32.mxu0 0.0
    %9929 = vmatmul.mubr.f32.gmra.mxu0 %v9608
    %v9930 = vpop.f32.mrf.mxu0
    %v9931 = vadd.f32 0.0, %v9930
    %v9932 = vpop.f32.mrf.mxu0
    %9933 = vmatprep.mubr.f32.mxu0 0.0
    %9934 = vmatmul.mubr.f32.gmra.mxu0 %v9610
    %v9935 = vpop.f32.mrf.mxu0
    %v9936 = vadd.f32 0.0, %v9935
    %v9937 = vpop.f32.mrf.mxu0
    %9938 = vmatprep.mubr.f32.mxu0 0.0
    %9939 = vmatmul.mubr.f32.gmra.mxu0 %v9612
    %v9940 = vpop.f32.mrf.mxu0
    %v9941 = vadd.f32 0.0, %v9940
    %v9942 = vpop.f32.mrf.mxu0
    %9943 = vmatprep.mubr.f32.mxu0 0.0
    %9944 = vmatmul.mubr.f32.gmra.mxu0 %v9614
    %v9945 = vpop.f32.mrf.mxu0
    %v9946 = vadd.f32 0.0, %v9945
    %v9947 = vpop.f32.mrf.mxu0
    %9948 = vmatprep.mubr.f32.mxu0 0.0
    %9949 = vmatmul.mubr.f32.gmra.mxu0 %v9616
    %v9950 = vpop.f32.mrf.mxu0
    %v9951 = vadd.f32 0.0, %v9950
    %v9952 = vpop.f32.mrf.mxu0
    %9953 = vmatprep.mubr.f32.mxu0 0.0
    %9954 = vmatmul.mubr.f32.gmra.mxu0 %v9855
    %v9955 = vpop.f32.mrf.mxu0
    %v9956 = vadd.f32 0.0, %v9955
    %v9957 = vpop.f32.mrf.mxu0
    %9958 = vmatprep.mubr.f32.mxu0 0.0
    %9959 = vmatmul.mubr.f32.gmra.mxu0 %v9857
    %v9960 = vpop.f32.mrf.mxu0
    %v9961 = vadd.f32 0.0, %v9960
    %v9962 = vpop.f32.mrf.mxu0
    %9963 = vdwg.mxu0
    %v9964 = vadd.f32 %v9845, %v9926
    %v9965 = vadd.f32 %v9846, %v9931
    %v9966 = vadd.f32 %v9847, %v9936
    %v9967 = vadd.f32 %v9848, %v9941
    %v9968 = vadd.f32 %v9849, %v9946
    %v9969 = vadd.f32 %v9850, %v9951
    %v9970 = vadd.f32 %v9851, %v9956
    %v9971 = vadd.f32 %v9852, %v9961
    %v9973 = vrot.slane %v8898, 4
    %v9974 = vrot.slane %v8903, 4
    %v9975 = vsel %vm2914, %v9973, %v9974
    %v9976 = vrot.slane %v8908, 4
    %v9977 = vsel %vm2914, %v9974, %v9976
    %v9978 = vrot.slane %v8913, 4
    %v9979 = vsel %vm2914, %v9976, %v9978
    %v9980 = vrot.slane %v8918, 4
    %v9981 = vsel %vm2914, %v9978, %v9980
    %v9982 = vrot.slane %v8923, 4
    %v9983 = vsel %vm2914, %v9980, %v9982
    %v9984 = vrot.slane %v8928, 4
    %v9985 = vsel %vm2914, %v9982, %v9984
    %v9986 = vrot.slane %v8933, 4
    %v9987 = vsel %vm2914, %v9984, %v9986
    %v9988 = vrot.slane %v8938, 4
    %v9989 = vsel %vm2914, %v9986, %v9988
    %v9990 = vsel %vm703, %v9975, 0
    %v9992 = vsel %vm703, %v9977, 0
    %v9994 = vsel %vm703, %v9979, 0
    %v9996 = vsel %vm703, %v9981, 0
    %v9998 = vsel %vm703, %v9983, 0
    %v10000 = vsel %vm703, %v9985, 0
    %v10002 = vsel %vm703, %v9987, 0
    %v10004 = vsel %vm703, %v9989, 0
    %10006 = vmatprep.subr.mxu0 0.0
    %10007 = vmatpush1.msra.mxu0 0.0
    %10008 = vmatprep.subr.mxu0 0.0
    %10009 = vmatpush1.msra.mxu0 0.0
    %10010 = vmatprep.subr.mxu0 0.0
    %10011 = vmatpush1.msra.mxu0 0.0
    %10012 = vmatprep.subr.mxu0 0.0
    %10013 = vmatpush1.msra.mxu0 0.0
    %10014 = vmatprep.subr.mxu0 0.0
    %10015 = vmatpush1.msra.mxu0 0.0
    %10016 = vmatprep.subr.mxu0 0.0
    %10017 = vmatpush1.msra.mxu0 0.0
    %10018 = vmatprep.subr.mxu0 0.0
    %10019 = vmatpush1.msra.mxu0 0.0
    %10020 = vmatprep.subr.mxu0 0.0
    %10021 = vmatpush1.msra.mxu0 0.0
    %10022 = vmatprep.subr.mxu0 0.0
    %10023 = vmatpush1.msra.mxu0 0.0
    %10024 = vmatprep.subr.mxu0 0.0
    %10025 = vmatpush1.msra.mxu0 0.0
    %10026 = vmatprep.subr.mxu0 0.0
    %10027 = vmatpush1.msra.mxu0 0.0
    %10028 = vmatprep.subr.mxu0 0.0
    %10029 = vmatpush1.msra.mxu0 0.0
    %10030 = vmatprep.subr.mxu0 0.0
    %10031 = vmatpush1.msra.mxu0 0.0
    %10032 = vmatprep.subr.mxu0 0.0
    %10033 = vmatpush1.msra.mxu0 %v276
    %10034 = vmatprep.subr.mxu0 0.0
    %10035 = vmatpush1.msra.mxu0 %v275
    %10036 = vmatprep.subr.mxu0 0.0
    %10037 = vmatpush1.msra.mxu0 %v274
    %10038 = vmatprep.subr.mxu0 0.0
    %10039 = vmatpush2.msra.mxu0 0.0
    %10040 = vmatprep.subr.mxu0 0.0
    %10041 = vmatpush2.msra.mxu0 0.0
    %10042 = vmatprep.subr.mxu0 0.0
    %10043 = vmatpush2.msra.mxu0 0.0
    %10044 = vmatprep.subr.mxu0 0.0
    %10045 = vmatpush2.msra.mxu0 0.0
    %10046 = vmatprep.subr.mxu0 0.0
    %10047 = vmatpush2.msra.mxu0 0.0
    %10048 = vmatprep.subr.mxu0 0.0
    %10049 = vmatpush2.msra.mxu0 0.0
    %10050 = vmatprep.subr.mxu0 0.0
    %10051 = vmatpush2.msra.mxu0 0.0
    %10052 = vmatprep.subr.mxu0 0.0
    %10053 = vmatpush2.msra.mxu0 0.0
    %10054 = vmatprep.subr.mxu0 0.0
    %10055 = vmatpush2.msra.mxu0 0.0
    %10056 = vmatprep.subr.mxu0 0.0
    %10057 = vmatpush2.msra.mxu0 0.0
    %10058 = vmatprep.subr.mxu0 0.0
    %10059 = vmatpush2.msra.mxu0 0.0
    %10060 = vmatprep.subr.mxu0 0.0
    %10061 = vmatpush2.msra.mxu0 0.0
    %10062 = vmatprep.subr.mxu0 0.0
    %10063 = vmatpush2.msra.mxu0 0.0
    %10064 = vmatprep.subr.mxu0 0.0
    %10065 = vmatpush2.msra.mxu0 0.0
    %10066 = vmatprep.subr.mxu0 0.0
    %10067 = vmatpush2.msra.mxu0 0.0
    %10068 = vmatprep.subr.mxu0 0.0
    %10069 = vmatpush2.msra.mxu0 0.0
    %10070 = vmatprep.mubr.f32.mxu0 0.0
    %10071 = vmatmul.mubr.f32.gmra.mxu0 %v9990
    %v10072 = vpop.f32.mrf.mxu0
    %v10073 = vadd.f32 0.0, %v10072
    %v10074 = vpop.f32.mrf.mxu0
    %10075 = vmatprep.mubr.f32.mxu0 0.0
    %10076 = vmatmul.mubr.f32.gmra.mxu0 %v9992
    %v10077 = vpop.f32.mrf.mxu0
    %v10078 = vadd.f32 0.0, %v10077
    %v10079 = vpop.f32.mrf.mxu0
    %10080 = vmatprep.mubr.f32.mxu0 0.0
    %10081 = vmatmul.mubr.f32.gmra.mxu0 %v9994
    %v10082 = vpop.f32.mrf.mxu0
    %v10083 = vadd.f32 0.0, %v10082
    %v10084 = vpop.f32.mrf.mxu0
    %10085 = vmatprep.mubr.f32.mxu0 0.0
    %10086 = vmatmul.mubr.f32.gmra.mxu0 %v9996
    %v10087 = vpop.f32.mrf.mxu0
    %v10088 = vadd.f32 0.0, %v10087
    %v10089 = vpop.f32.mrf.mxu0
    %10090 = vmatprep.mubr.f32.mxu0 0.0
    %10091 = vmatmul.mubr.f32.gmra.mxu0 %v9998
    %v10092 = vpop.f32.mrf.mxu0
    %v10093 = vadd.f32 0.0, %v10092
    %v10094 = vpop.f32.mrf.mxu0
    %10095 = vmatprep.mubr.f32.mxu0 0.0
    %10096 = vmatmul.mubr.f32.gmra.mxu0 %v10000
    %v10097 = vpop.f32.mrf.mxu0
    %v10098 = vadd.f32 0.0, %v10097
    %v10099 = vpop.f32.mrf.mxu0
    %10100 = vmatprep.mubr.f32.mxu0 0.0
    %10101 = vmatmul.mubr.f32.gmra.mxu0 %v10002
    %v10102 = vpop.f32.mrf.mxu0
    %v10103 = vadd.f32 0.0, %v10102
    %v10104 = vpop.f32.mrf.mxu0
    %10105 = vmatprep.mubr.f32.mxu0 0.0
    %10106 = vmatmul.mubr.f32.gmra.mxu0 %v10004
    %v10107 = vpop.f32.mrf.mxu0
    %v10108 = vadd.f32 0.0, %v10107
    %v10109 = vpop.f32.mrf.mxu0
    %10110 = vdwg.mxu0
    %v10111 = vadd.f32 %v9964, %v10073
    %v10112 = vadd.f32 %v9965, %v10078
    %v10113 = vadd.f32 %v9966, %v10083
    %v10114 = vadd.f32 %v9967, %v10088
    %v10115 = vadd.f32 %v9968, %v10093
    %v10116 = vadd.f32 %v9969, %v10098
    %v10117 = vadd.f32 %v9970, %v10103
    %v10118 = vadd.f32 %v9971, %v10108
    %v10119 = vadd.f32 %v10111, %v8801
    %v10120 = vadd.f32 %v10112, %v8801
    %v10121 = vadd.f32 %v10113, %v8801
    %v10122 = vadd.f32 %v10114, %v8801
    %v10123 = vadd.f32 %v10115, %v8801
    %v10124 = vadd.f32 %v10116, %v8801
    %v10125 = vadd.f32 %v10117, %v8801
    %v10126 = vadd.f32 %v10118, %v8801
    %v10127 = vadd.f32 %v10119, %v4616
    %v10128 = vadd.f32 %v10120, %v4621
    %v10129 = vadd.f32 %v10121, %v4626
    %v10130 = vadd.f32 %v10122, %v4631
    %v10131 = vadd.f32 %v10123, %v4636
    %v10132 = vadd.f32 %v10124, %v4641
    %v10133 = vadd.f32 %v10125, %v4646
    %v10134 = vadd.f32 %v10126, %v4651
    %v10135 = vmul.f32 %v8810, %v2807
    %v10136 = vmul.f32 %v8811, %v2808
    %v10137 = vmul.f32 %v8812, %v2809
    %v10138 = vmul.f32 %v8813, %v2810
    %v10139 = vmul.f32 %v8814, %v2811
    %v10140 = vmul.f32 %v8815, %v2812
    %v10141 = vmul.f32 %v8816, %v2813
    %v10142 = vmul.f32 %v8817, %v2814
    %v10143 = vsel %vm703, %v10135, 0.0
    %v10144 = vsel %vm703, %v10136, 0.0
    %v10145 = vadd.f32 %v10143, %v10144
    %v10146 = vsel %vm703, %v10137, 0.0
    %v10147 = vadd.f32 %v10145, %v10146
    %v10148 = vsel %vm703, %v10138, 0.0
    %v10149 = vadd.f32 %v10147, %v10148
    %v10150 = vsel %vm703, %v10139, 0.0
    %v10151 = vadd.f32 %v10149, %v10150
    %v10152 = vsel %vm703, %v10140, 0.0
    %v10153 = vadd.f32 %v10151, %v10152
    %v10154 = vsel %vm703, %v10141, 0.0
    %v10155 = vadd.f32 %v10153, %v10154
    %v10156 = vsel %vm4222, %v10142, 0.0
    %v10157 = vadd.f32 %v10155, %v10156
    %v10158 = vrot.slane %v10157, 4
    %v10159 = vadd.f32 %v10157, %v10158
    %v10160 = vrot.slane %v10159, 2
    %v10161 = vadd.f32 %v10159, %v10160
    %v10162 = vrot.slane %v10161, 1
    %v10163 = vadd.f32 %v10161, %v10162
    %v10164 = vadd.f32 %v10163, 0.0
    %v10165 = vmul.f32 %v10135, %v8810
    %v10166 = vmul.f32 %v10136, %v8811
    %v10167 = vmul.f32 %v10137, %v8812
    %v10168 = vmul.f32 %v10138, %v8813
    %v10169 = vmul.f32 %v10139, %v8814
    %v10170 = vmul.f32 %v10140, %v8815
    %v10171 = vmul.f32 %v10141, %v8816
    %v10172 = vmul.f32 %v10142, %v8817
    %v10173 = vsel %vm703, %v10165, 0.0
    %v10174 = vsel %vm703, %v10166, 0.0
    %v10175 = vadd.f32 %v10173, %v10174
    %v10176 = vsel %vm703, %v10167, 0.0
    %v10177 = vadd.f32 %v10175, %v10176
    %v10178 = vsel %vm703, %v10168, 0.0
    %v10179 = vadd.f32 %v10177, %v10178
    %v10180 = vsel %vm703, %v10169, 0.0
    %v10181 = vadd.f32 %v10179, %v10180
    %v10182 = vsel %vm703, %v10170, 0.0
    %v10183 = vadd.f32 %v10181, %v10182
    %v10184 = vsel %vm703, %v10171, 0.0
    %v10185 = vadd.f32 %v10183, %v10184
    %v10186 = vsel %vm4222, %v10172, 0.0
    %v10187 = vadd.f32 %v10185, %v10186
    %v10188 = vrot.slane %v10187, 4
    %v10189 = vadd.f32 %v10187, %v10188
    %v10190 = vrot.slane %v10189, 2
    %v10191 = vadd.f32 %v10189, %v10190
    %v10192 = vrot.slane %v10191, 1
    %v10193 = vadd.f32 %v10191, %v10192
    %v10194 = vadd.f32 %v10193, 0.0
    %v10195 = vmul.f32 %v10127, %v2807
    %v10196 = vmul.f32 %v10128, %v2808
    %v10197 = vmul.f32 %v10129, %v2809
    %v10198 = vmul.f32 %v10130, %v2810
    %v10199 = vmul.f32 %v10131, %v2811
    %v10200 = vmul.f32 %v10132, %v2812
    %v10201 = vmul.f32 %v10133, %v2813
    %v10202 = vmul.f32 %v10134, %v2814
    %v10203 = vsel %vm703, %v10195, 0.0
    %v10204 = vsel %vm703, %v10196, 0.0
    %v10205 = vadd.f32 %v10203, %v10204
    %v10206 = vsel %vm703, %v10197, 0.0
    %v10207 = vadd.f32 %v10205, %v10206
    %v10208 = vsel %vm703, %v10198, 0.0
    %v10209 = vadd.f32 %v10207, %v10208
    %v10210 = vsel %vm703, %v10199, 0.0
    %v10211 = vadd.f32 %v10209, %v10210
    %v10212 = vsel %vm703, %v10200, 0.0
    %v10213 = vadd.f32 %v10211, %v10212
    %v10214 = vsel %vm703, %v10201, 0.0
    %v10215 = vadd.f32 %v10213, %v10214
    %v10216 = vsel %vm4222, %v10202, 0.0
    %v10217 = vadd.f32 %v10215, %v10216
    %v10218 = vrot.slane %v10217, 4
    %v10219 = vadd.f32 %v10217, %v10218
    %v10220 = vrot.slane %v10219, 2
    %v10221 = vadd.f32 %v10219, %v10220
    %v10222 = vrot.slane %v10221, 1
    %v10223 = vadd.f32 %v10221, %v10222
    %v10224 = vadd.f32 %v10164, %v10223
    %v10225 = vmul.f32 %v10195, %v10127
    %v10226 = vmul.f32 %v10196, %v10128
    %v10227 = vmul.f32 %v10197, %v10129
    %v10228 = vmul.f32 %v10198, %v10130
    %v10229 = vmul.f32 %v10199, %v10131
    %v10230 = vmul.f32 %v10200, %v10132
    %v10231 = vmul.f32 %v10201, %v10133
    %v10232 = vmul.f32 %v10202, %v10134
    %v10233 = vsel %vm703, %v10225, 0.0
    %v10234 = vsel %vm703, %v10226, 0.0
    %v10235 = vadd.f32 %v10233, %v10234
    %v10236 = vsel %vm703, %v10227, 0.0
    %v10237 = vadd.f32 %v10235, %v10236
    %v10238 = vsel %vm703, %v10228, 0.0
    %v10239 = vadd.f32 %v10237, %v10238
    %v10240 = vsel %vm703, %v10229, 0.0
    %v10241 = vadd.f32 %v10239, %v10240
    %v10242 = vsel %vm703, %v10230, 0.0
    %v10243 = vadd.f32 %v10241, %v10242
    %v10244 = vsel %vm703, %v10231, 0.0
    %v10245 = vadd.f32 %v10243, %v10244
    %v10246 = vsel %vm4222, %v10232, 0.0
    %v10247 = vadd.f32 %v10245, %v10246
    %v10248 = vrot.slane %v10247, 4
    %v10249 = vadd.f32 %v10247, %v10248
    %v10250 = vrot.slane %v10249, 2
    %v10251 = vadd.f32 %v10249, %v10250
    %v10252 = vrot.slane %v10251, 1
    %v10253 = vadd.f32 %v10251, %v10252
    %v10254 = vadd.f32 %v10194, %v10253
    %v10255 = vmul.f32 %v10224, %v4322
    %v10256 = vmul.f32 %v10254, %v4322
    %v10257 = vmul.f32 %v10255, %v10255
    %v10258 = vsub.f32 %v10256, %v10257
    %v10259 = vmax.f32 %v10258, 0.0
    %v10260 = vadd.f32 %v10259, 1e-05
    %v10261 = vrsqrt.pop %v10260
    %v10262 = vmul.f32 %v55, %v10261
    %v10263 = vmul.f32 %v10255, %v10262
    %v10265 = vrot.slane %v10263, 7
    %v10267 = vsub.f32 %v55, %v10265
    %v10268 = vlaneseq
    %v10269 = vshrl.u32 %v10268, 7
    %v10270 = vsub.s32 2, %v10269
    %v10271 = vrot.slane %v10262, %v10270
    %v10272 = vmul.f32 %v8810, %v10271
    %v10273 = vmul.f32 %v8811, %v10271
    %v10274 = vmul.f32 %v8812, %v10271
    %v10275 = vmul.f32 %v8813, %v10271
    %v10276 = vmul.f32 %v8814, %v10271
    %v10277 = vmul.f32 %v8815, %v10271
    %v10278 = vmul.f32 %v8816, %v10271
    %v10279 = vmul.f32 %v8817, %v10271
    %v10280 = vlaneseq
    %v10281 = vshrl.u32 %v10280, 7
    %v10282 = vsub.s32 3, %v10281
    %v10283 = vrot.slane %v10267, %v10282
    %v10284 = vadd.f32 %v10272, %v10283
    %v10285 = vadd.f32 %v10273, %v10283
    %v10286 = vadd.f32 %v10274, %v10283
    %v10287 = vadd.f32 %v10275, %v10283
    %v10288 = vadd.f32 %v10276, %v10283
    %v10289 = vadd.f32 %v10277, %v10283
    %v10290 = vadd.f32 %v10278, %v10283
    %v10291 = vadd.f32 %v10279, %v10283
    %v10292 = vmax.f32 %v10284, 0.0
    %v10293 = vmax.f32 %v10285, 0.0
    %v10294 = vmax.f32 %v10286, 0.0
    %v10295 = vmax.f32 %v10287, 0.0
    %v10296 = vmax.f32 %v10288, 0.0
    %v10297 = vmax.f32 %v10289, 0.0
    %v10298 = vmax.f32 %v10290, 0.0
    %v10299 = vmax.f32 %v10291, 0.0
    %v10300 = vmul.f32 %v10127, %v10271
    %v10301 = vmul.f32 %v10128, %v10271
    %v10302 = vmul.f32 %v10129, %v10271
    %v10303 = vmul.f32 %v10130, %v10271
    %v10304 = vmul.f32 %v10131, %v10271
    %v10305 = vmul.f32 %v10132, %v10271
    %v10306 = vmul.f32 %v10133, %v10271
    %v10307 = vmul.f32 %v10134, %v10271
    %v10308 = vadd.f32 %v10300, %v10283
    %v10309 = vadd.f32 %v10301, %v10283
    %v10310 = vadd.f32 %v10302, %v10283
    %v10311 = vadd.f32 %v10303, %v10283
    %v10312 = vadd.f32 %v10304, %v10283
    %v10313 = vadd.f32 %v10305, %v10283
    %v10314 = vadd.f32 %v10306, %v10283
    %v10315 = vadd.f32 %v10307, %v10283
    %v10316 = vmax.f32 %v10308, 0.0
    %v10317 = vmax.f32 %v10309, 0.0
    %v10318 = vmax.f32 %v10310, 0.0
    %v10319 = vmax.f32 %v10311, 0.0
    %v10320 = vmax.f32 %v10312, 0.0
    %v10321 = vmax.f32 %v10313, 0.0
    %v10322 = vmax.f32 %v10314, 0.0
    %v10323 = vmax.f32 %v10315, 0.0
    %v10324 = vmul.f32 %v10292, %v2807
    %v10325 = vmul.f32 %v10293, %v2808
    %v10326 = vmul.f32 %v10294, %v2809
    %v10327 = vmul.f32 %v10295, %v2810
    %v10328 = vmul.f32 %v10296, %v2811
    %v10329 = vmul.f32 %v10297, %v2812
    %v10330 = vmul.f32 %v10298, %v2813
    %v10331 = vmul.f32 %v10299, %v2814
    %v10332 = vsel %vm703, %v10324, 0.0
    %v10333 = vsel %vm703, %v10325, 0.0
    %v10334 = vadd.f32 %v10332, %v10333
    %v10335 = vsel %vm703, %v10326, 0.0
    %v10336 = vadd.f32 %v10334, %v10335
    %v10337 = vsel %vm703, %v10327, 0.0
    %v10338 = vadd.f32 %v10336, %v10337
    %v10339 = vsel %vm703, %v10328, 0.0
    %v10340 = vadd.f32 %v10338, %v10339
    %v10341 = vsel %vm703, %v10329, 0.0
    %v10342 = vadd.f32 %v10340, %v10341
    %v10343 = vsel %vm703, %v10330, 0.0
    %v10344 = vadd.f32 %v10342, %v10343
    %v10345 = vsel %vm4222, %v10331, 0.0
    %v10346 = vadd.f32 %v10344, %v10345
    %v10347 = vrot.slane %v10346, 4
    %v10348 = vadd.f32 %v10346, %v10347
    %v10349 = vrot.slane %v10348, 2
    %v10350 = vadd.f32 %v10348, %v10349
    %v10351 = vrot.slane %v10350, 1
    %v10352 = vadd.f32 %v10350, %v10351
    %v10353 = vmul.f32 %v10352, 0.020408163
    %v10355 = vsel %vm703, %v10353, 0
    %10357 = vmatprep.subr.mxu0 0.0
    %10358 = vmatpush1.msra.mxu0 0.0
    %10359 = vmatprep.subr.mxu0 0.0
    %10360 = vmatpush1.msra.mxu0 0.0
    %10361 = vmatprep.subr.mxu0 0.0
    %10362 = vmatpush1.msra.mxu0 0.0
    %10363 = vmatprep.subr.mxu0 0.0
    %10364 = vmatpush1.msra.mxu0 0.0
    %10365 = vmatprep.subr.mxu0 0.0
    %10366 = vmatpush1.msra.mxu0 0.0
    %10367 = vmatprep.subr.mxu0 0.0
    %10368 = vmatpush1.msra.mxu0 0.0
    %10369 = vmatprep.subr.mxu0 0.0
    %10370 = vmatpush1.msra.mxu0 0.0
    %10371 = vmatprep.subr.mxu0 0.0
    %10372 = vmatpush1.msra.mxu0 0.0
    %10373 = vmatprep.subr.mxu0 0.0
    %10374 = vmatpush1.msra.mxu0 0.0
    %10375 = vmatprep.subr.mxu0 0.0
    %10376 = vmatpush1.msra.mxu0 0.0
    %10377 = vmatprep.subr.mxu0 0.0
    %10378 = vmatpush1.msra.mxu0 0.0
    %10379 = vmatprep.subr.mxu0 0.0
    %10380 = vmatpush1.msra.mxu0 0.0
    %10381 = vmatprep.subr.mxu0 0.0
    %10382 = vmatpush1.msra.mxu0 0.0
    %10383 = vmatprep.subr.mxu0 0.0
    %10384 = vmatpush1.msra.mxu0 %v75
    %10385 = vmatprep.subr.mxu0 0.0
    %10386 = vmatpush1.msra.mxu0 %v74
    %10387 = vmatprep.subr.mxu0 0.0
    %10388 = vmatpush1.msra.mxu0 %v73
    %10389 = vmatprep.subr.mxu0 0.0
    %10390 = vmatpush2.msra.mxu0 0.0
    %10391 = vmatprep.subr.mxu0 0.0
    %10392 = vmatpush2.msra.mxu0 0.0
    %10393 = vmatprep.subr.mxu0 0.0
    %10394 = vmatpush2.msra.mxu0 0.0
    %10395 = vmatprep.subr.mxu0 0.0
    %10396 = vmatpush2.msra.mxu0 0.0
    %10397 = vmatprep.subr.mxu0 0.0
    %10398 = vmatpush2.msra.mxu0 0.0
    %10399 = vmatprep.subr.mxu0 0.0
    %10400 = vmatpush2.msra.mxu0 0.0
    %10401 = vmatprep.subr.mxu0 0.0
    %10402 = vmatpush2.msra.mxu0 0.0
    %10403 = vmatprep.subr.mxu0 0.0
    %10404 = vmatpush2.msra.mxu0 0.0
    %10405 = vmatprep.subr.mxu0 0.0
    %10406 = vmatpush2.msra.mxu0 0.0
    %10407 = vmatprep.subr.mxu0 0.0
    %10408 = vmatpush2.msra.mxu0 0.0
    %10409 = vmatprep.subr.mxu0 0.0
    %10410 = vmatpush2.msra.mxu0 0.0
    %10411 = vmatprep.subr.mxu0 0.0
    %10412 = vmatpush2.msra.mxu0 0.0
    %10413 = vmatprep.subr.mxu0 0.0
    %10414 = vmatpush2.msra.mxu0 0.0
    %10415 = vmatprep.subr.mxu0 0.0
    %10416 = vmatpush2.msra.mxu0 0.0
    %10417 = vmatprep.subr.mxu0 0.0
    %10418 = vmatpush2.msra.mxu0 0.0
    %10419 = vmatprep.subr.mxu0 0.0
    %10420 = vmatpush2.msra.mxu0 0.0
    %10421 = vmatprep.mubr.f32.mxu0 0.0
    %10422 = vmatmul.mubr.f32.gmra.mxu0 %v10355
    %v10423 = vpop.f32.mrf.mxu0
    %v10424 = vadd.f32 %v72, %v10423
    %v10425 = vpop.f32.mrf.mxu0
    %10426 = vdwg.mxu0
    %vm10427 = vcmask 32768
    %10428 = vst.msk [vmem:[#allocation2] sm:$0x1] %vm10427, %v10424
    %v10429 = vmul.f32 %v10316, %v2807
    %v10430 = vmul.f32 %v10317, %v2808
    %v10431 = vmul.f32 %v10318, %v2809
    %v10432 = vmul.f32 %v10319, %v2810
    %v10433 = vmul.f32 %v10320, %v2811
    %v10434 = vmul.f32 %v10321, %v2812
    %v10435 = vmul.f32 %v10322, %v2813
    %v10436 = vmul.f32 %v10323, %v2814
    %v10437 = vsel %vm703, %v10429, 0.0
    %v10438 = vsel %vm703, %v10430, 0.0
    %v10439 = vadd.f32 %v10437, %v10438
    %v10440 = vsel %vm703, %v10431, 0.0
    %v10441 = vadd.f32 %v10439, %v10440
    %v10442 = vsel %vm703, %v10432, 0.0
    %v10443 = vadd.f32 %v10441, %v10442
    %v10444 = vsel %vm703, %v10433, 0.0
    %v10445 = vadd.f32 %v10443, %v10444
    %v10446 = vsel %vm703, %v10434, 0.0
    %v10447 = vadd.f32 %v10445, %v10446
    %v10448 = vsel %vm703, %v10435, 0.0
    %v10449 = vadd.f32 %v10447, %v10448
    %v10450 = vsel %vm4222, %v10436, 0.0
    %v10451 = vadd.f32 %v10449, %v10450
    %v10452 = vrot.slane %v10451, 4
    %v10453 = vadd.f32 %v10451, %v10452
    %v10454 = vrot.slane %v10453, 2
    %v10455 = vadd.f32 %v10453, %v10454
    %v10456 = vrot.slane %v10455, 1
    %v10457 = vadd.f32 %v10455, %v10456
    %v10458 = vmul.f32 %v10457, 0.020408163
    %v10460 = vsel %vm703, %v10458, 0
    %10462 = vmatprep.subr.mxu0 0.0
    %10463 = vmatpush1.msra.mxu0 0.0
    %10464 = vmatprep.subr.mxu0 0.0
    %10465 = vmatpush1.msra.mxu0 0.0
    %10466 = vmatprep.subr.mxu0 0.0
    %10467 = vmatpush1.msra.mxu0 0.0
    %10468 = vmatprep.subr.mxu0 0.0
    %10469 = vmatpush1.msra.mxu0 0.0
    %10470 = vmatprep.subr.mxu0 0.0
    %10471 = vmatpush1.msra.mxu0 0.0
    %10472 = vmatprep.subr.mxu0 0.0
    %10473 = vmatpush1.msra.mxu0 0.0
    %10474 = vmatprep.subr.mxu0 0.0
    %10475 = vmatpush1.msra.mxu0 0.0
    %10476 = vmatprep.subr.mxu0 0.0
    %10477 = vmatpush1.msra.mxu0 0.0
    %10478 = vmatprep.subr.mxu0 0.0
    %10479 = vmatpush1.msra.mxu0 0.0
    %10480 = vmatprep.subr.mxu0 0.0
    %10481 = vmatpush1.msra.mxu0 0.0
    %10482 = vmatprep.subr.mxu0 0.0
    %10483 = vmatpush1.msra.mxu0 0.0
    %10484 = vmatprep.subr.mxu0 0.0
    %10485 = vmatpush1.msra.mxu0 0.0
    %10486 = vmatprep.subr.mxu0 0.0
    %10487 = vmatpush1.msra.mxu0 0.0
    %10488 = vmatprep.subr.mxu0 0.0
    %10489 = vmatpush1.msra.mxu0 %v75
    %10490 = vmatprep.subr.mxu0 0.0
    %10491 = vmatpush1.msra.mxu0 %v74
    %10492 = vmatprep.subr.mxu0 0.0
    %10493 = vmatpush1.msra.mxu0 %v73
    %10494 = vmatprep.subr.mxu0 0.0
    %10495 = vmatpush2.msra.mxu0 0.0
    %10496 = vmatprep.subr.mxu0 0.0
    %10497 = vmatpush2.msra.mxu0 0.0
    %10498 = vmatprep.subr.mxu0 0.0
    %10499 = vmatpush2.msra.mxu0 0.0
    %10500 = vmatprep.subr.mxu0 0.0
    %10501 = vmatpush2.msra.mxu0 0.0
    %10502 = vmatprep.subr.mxu0 0.0
    %10503 = vmatpush2.msra.mxu0 0.0
    %10504 = vmatprep.subr.mxu0 0.0
    %10505 = vmatpush2.msra.mxu0 0.0
    %10506 = vmatprep.subr.mxu0 0.0
    %10507 = vmatpush2.msra.mxu0 0.0
    %10508 = vmatprep.subr.mxu0 0.0
    %10509 = vmatpush2.msra.mxu0 0.0
    %10510 = vmatprep.subr.mxu0 0.0
    %10511 = vmatpush2.msra.mxu0 0.0
    %10512 = vmatprep.subr.mxu0 0.0
    %10513 = vmatpush2.msra.mxu0 0.0
    %10514 = vmatprep.subr.mxu0 0.0
    %10515 = vmatpush2.msra.mxu0 0.0
    %10516 = vmatprep.subr.mxu0 0.0
    %10517 = vmatpush2.msra.mxu0 0.0
    %10518 = vmatprep.subr.mxu0 0.0
    %10519 = vmatpush2.msra.mxu0 0.0
    %10520 = vmatprep.subr.mxu0 0.0
    %10521 = vmatpush2.msra.mxu0 0.0
    %10522 = vmatprep.subr.mxu0 0.0
    %10523 = vmatpush2.msra.mxu0 0.0
    %10524 = vmatprep.subr.mxu0 0.0
    %10525 = vmatpush2.msra.mxu0 0.0
    %10526 = vmatprep.mubr.f32.mxu0 0.0
    %10527 = vmatmul.mubr.f32.gmra.mxu0 %v10460
    %v10528 = vpop.f32.mrf.mxu0
    %v10529 = vadd.f32 %v72, %v10528
    %v10530 = vpop.f32.mrf.mxu0
    %10531 = vdwg.mxu0
    %10532 = vst.msk [vmem:[#allocation2 + $0x1] sm:$0x1] %vm10427, %v10529
    // Predicated region
    $region66: #{ssrn_forward.1} parent=1 // pred_check
      _
    $region67: #{ssrn_forward.1} parent=1 // pred_check_branch
      %10534 = sbr.rel (0) target = $region69
    $region68: #{ssrn_forward.1} parent=1 // pred_region
      %s10536 = ssub.s32 32, 32
      %10537 = vsyncadd [#allocation3], %s10536
      %s10539 = sshll.u32 [#allocation2], 4
      %s10540 = int_to_ptr.vmem [resolvable:$true] %s10539
      %10542 = dma.vmem_to_hbm [thread:$0]  %s10540, 32, %s16, [#allocation3]
    $region69: #{ssrn_forward.1} parent=1 // pred_fallthru
      _
    // Predicated region
    $region70: #{ssrn_forward.1} parent=1 // pred_check
      _
    $region71: #{ssrn_forward.1} parent=1 // pred_check_branch
      %10544 = sbr.rel (0) target = $region73
    $region72: #{ssrn_forward.1} parent=1 // pred_region
      %10545 = dma.done [#allocation3], 32
    $region73: #{ssrn_forward.1} parent=1 // pred_fallthru
      _
    %10546 = vsyncpa [#allocation3], 1

</llo_original>
